<compile_context>
chip_gen: v7x
topology: tpu7x:2x2x1
jax: 0.10.0
libtpu: 0.0.40
codegen_flags: <defaults>
</compile_context>

<pallas_src>
import functools

import jax
import jax.numpy as jnp
from jax.experimental import pallas as pl
from jax.experimental.pallas import tpu as pltpu


# ----------------------------------------------------------------------------
# helpers
# ----------------------------------------------------------------------------

def _round_up(x, m):
    return ((x + m - 1) // m) * m


def _row_tiles(m, max_tile=128):
    """Pick a sublane-aligned row tile that matches the real row count."""
    mp = max(8, _round_up(m, 8))
    if mp <= max_tile:
        return mp, mp
    mp = _round_up(m, max_tile)
    return max_tile, mp


# ----------------------------------------------------------------------------
# Pallas kernels
# ----------------------------------------------------------------------------

def _matmul_t_kernel(w_ref, x_ref, b_ref, o_ref):
    # o = w @ x + b ; w:(Cout,K) bf16, x:(K,tn) bf16, b:(Cout,1) f32 -> (Cout,tn) f32
    acc = jnp.dot(w_ref[...], x_ref[...], preferred_element_type=jnp.float32)
    o_ref[...] = acc + b_ref[...]


def pallas_matmul_t(wmat, xcolT, bias, tn=128):
    """Lane-dense GEMM: (Cout,K) @ (K,M) + bias, M padded to 128-lane tiles."""
    cout, k = wmat.shape
    _, m = xcolT.shape
    mp = _round_up(m, tn)
    xp = jnp.pad(xcolT, ((0, 0), (0, mp - m))).astype(jnp.bfloat16)
    wb = wmat.astype(jnp.bfloat16)
    out = pl.pallas_call(
        _matmul_t_kernel,
        out_shape=jax.ShapeDtypeStruct((cout, mp), jnp.float32),
        grid=(mp // tn,),
        in_specs=[
            pl.BlockSpec((cout, k), lambda i: (0, 0)),
            pl.BlockSpec((k, tn), lambda i: (0, i)),
            pl.BlockSpec((cout, 1), lambda i: (0, 0)),
        ],
        out_specs=pl.BlockSpec((cout, tn), lambda i: (0, i)),
        compiler_params=pltpu.CompilerParams(
            dimension_semantics=("parallel",)),
    )(wb, xp, bias.reshape(cout, 1).astype(jnp.float32))
    return out[:, :m]


def _encoder_kernel(x_ref, mask_ref, wqkv_ref, bqkv_ref, wo_ref, bo_ref,
                    ln1g_ref, ln1b_ref, w1_ref, b1_ref, w2_ref, b2_ref,
                    ln2g_ref, ln2b_ref, o_ref, *, d, scale, eps):
    f32, bf16 = jnp.float32, jnp.bfloat16
    x = x_ref[...]                                        # (Mp, D) f32

    # QKV projection (bf16 MXU, f32 accumulate)
    qkv = jnp.dot(x.astype(bf16), wqkv_ref[...],
                  preferred_element_type=f32) + bqkv_ref[...]
    q = qkv[:, :d]
    k = qkv[:, d:2 * d]
    v = qkv[:, 2 * d:3 * d]

    # Single-head attention over all batches at once; cross-batch entries are
    # disabled by the additive block-diagonal mask.
    s = jax.lax.dot_general(q.astype(bf16), k.astype(bf16),
                            (((1,), (1,)), ((), ())),
                            preferred_element_type=f32)
    s = s * scale + mask_ref[...]
    s = s - jnp.max(s, axis=-1, keepdims=True)
    p = jnp.exp(s)
    p = p * pl.reciprocal(jnp.sum(p, axis=-1, keepdims=True), approx=True)
    attn = jnp.dot(p.astype(bf16), v.astype(bf16), preferred_element_type=f32)
    attn = jnp.dot(attn.astype(bf16), wo_ref[...],
                   preferred_element_type=f32) + bo_ref[...]

    def _ln(z, g, b):                                     # f32 layernorm
        mu = jnp.mean(z, axis=-1, keepdims=True)
        zc = z - mu
        var = jnp.mean(zc * zc, axis=-1, keepdims=True)
        return zc * jax.lax.rsqrt(var + eps) * g + b

    x1 = _ln(x + attn, ln1g_ref[...], ln1b_ref[...])      # fused residual+LN1

    h = jnp.dot(x1.astype(bf16), w1_ref[...],
                preferred_element_type=f32) + b1_ref[...]
    h = jnp.maximum(h, 0.0)
    ff = jnp.dot(h.astype(bf16), w2_ref[...],
                 preferred_element_type=f32) + b2_ref[...]

    o_ref[...] = _ln(x1 + ff, ln2g_ref[...], ln2b_ref[...])  # residual+LN2


def _fc_head_kernel(x_ref, w1_ref, b1_ref, w2_ref, b2_ref, o_ref):
    f32, bf16 = jnp.float32, jnp.bfloat16
    h = jnp.dot(x_ref[...].astype(bf16), w1_ref[...],
                preferred_element_type=f32) + b1_ref[...]
    h = jnp.tanh(h)
    y = jnp.dot(h.astype(bf16), w2_ref[...],
                preferred_element_type=f32) + b2_ref[...]
    o_ref[...] = y


# ----------------------------------------------------------------------------
# Conv / deconv wrappers (im2col layout glue in JAX, GEMM in Pallas)
# ----------------------------------------------------------------------------

def conv2d(x, w, b, sh, sw):
    """PyTorch-semantics Conv2d, no padding. x:(N,Cin,H,W), w:(Cout,Cin,kh,kw)."""
    n, cin, h, wdt = x.shape
    cout, _, kh, kw = w.shape
    ho = (h - kh) // sh + 1
    wo = (wdt - kw) // sw + 1
    cols = []
    for i in range(kh):
        for j in range(kw):
            cols.append(x[:, :, i:i + sh * (ho - 1) + 1:sh,
                           j:j + sw * (wo - 1) + 1:sw])
    cols = jnp.stack(cols, axis=2)                    # (N, Cin, kh*kw, Ho, Wo)
    xcolT = jnp.transpose(cols, (1, 2, 0, 3, 4)).reshape(cin * kh * kw,
                                                         n * ho * wo)
    wmat = w.reshape(cout, cin * kh * kw)
    y = pallas_matmul_t(wmat, xcolT, b)               # (Cout, N*Ho*Wo) lane-dense
    y = y.reshape(cout, n, ho, wo)
    return jnp.transpose(y, (1, 0, 2, 3))             # (N, Cout, Ho, Wo)


def conv_transpose2d(x, w, b, sh, sw):
    """PyTorch-semantics ConvTranspose2d, no padding, as dilate+pad+conv.
    x:(N,Cin,H,W), w:(Cin,Cout,kh,kw)."""
    _, cout, kh, kw = w.shape
    # Interior-dilate by stride and edge-pad by k-1 in a single lax.pad.
    xd = jax.lax.pad(x, jnp.array(0.0, x.dtype),
                     ((0, 0, 0), (0, 0, 0),
                      (kh - 1, kh - 1, sh - 1),
                      (kw - 1, kw - 1, sw - 1)))
    # Equivalent ordinary conv weight: swap Cin/Cout, flip spatially.
    wc = jnp.transpose(w[:, :, ::-1, ::-1], (1, 0, 2, 3))   # (Cout, Cin, kh, kw)
    return conv2d(xd, wc, b, 1, 1)


# ----------------------------------------------------------------------------
# Fused transformer encoder layer (post-norm, nhead=1, relu FFN) & FC head
# ----------------------------------------------------------------------------

def transformer_encoder_layer(x, p):
    B, S, D = x.shape
    M = B * S
    Mp = max(8, _round_up(M, 8))
    x2d = x.reshape(M, D)
    if Mp != M:
        x2d = jnp.pad(x2d, ((0, Mp - M), (0, 0)))

    # Additive block-diagonal mask (each sequence only attends to itself);
    # also masks any padded columns. Constant-folded under jit.
    grp = jnp.arange(Mp) // S
    valid = (grp[:, None] == grp[None, :]) & (jnp.arange(Mp)[None, :] < M)
    mask = jnp.where(valid, 0.0, -1e30).astype(jnp.float32)

    bf = jnp.bfloat16
    args = [
        x2d, mask,
        p["in_proj_w"].astype(bf), p["in_proj_b"].reshape(1, -1),
        p["out_proj_w"].astype(bf), p["out_proj_b"].reshape(1, -1),
        p["ln1_g"].reshape(1, -1), p["ln1_b"].reshape(1, -1),
        p["lin1_w"].astype(bf), p["lin1_b"].reshape(1, -1),
        p["lin2_w"].astype(bf), p["lin2_b"].reshape(1, -1),
        p["ln2_g"].reshape(1, -1), p["ln2_b"].reshape(1, -1),
    ]

    def _full(shape):
        return pl.BlockSpec(shape, lambda i: (0,) * len(shape))

    out = pl.pallas_call(
        functools.partial(_encoder_kernel, d=D, scale=1.0 / (D ** 0.5), eps=1e-5),
        out_shape=jax.ShapeDtypeStruct((Mp, D), jnp.float32),
        grid=(1,),
        in_specs=[_full(a.shape) for a in args],
        out_specs=_full((Mp, D)),
        compiler_params=pltpu.CompilerParams(
            dimension_semantics=("arbitrary",)),
    )(*args)
    return out[:M].reshape(B, S, D)


def fc_head(x2d, w1, b1, w2, b2):
    M, K = x2d.shape
    H = w1.shape[1]
    O = w2.shape[1]
    tm, Mp = _row_tiles(M)
    xp = jnp.pad(x2d, ((0, Mp - M), (0, 0)))
    out = pl.pallas_call(
        _fc_head_kernel,
        out_shape=jax.ShapeDtypeStruct((Mp, O), jnp.float32),
        grid=(Mp // tm,),
        in_specs=[
            pl.BlockSpec((tm, K), lambda i: (i, 0)),
            pl.BlockSpec((K, H), lambda i: (0, 0)),
            pl.BlockSpec((1, H), lambda i: (0, 0)),
            pl.BlockSpec((H, O), lambda i: (0, 0)),
            pl.BlockSpec((1, O), lambda i: (0, 0)),
        ],
        out_specs=pl.BlockSpec((tm, O), lambda i: (i, 0)),
        compiler_params=pltpu.CompilerParams(
            dimension_semantics=("parallel",)),
    )(xp, w1.astype(jnp.bfloat16), b1.reshape(1, H),
      w2.astype(jnp.bfloat16), b2.reshape(1, O))
    return out[:M]


# ----------------------------------------------------------------------------
# Parameters (deterministic xavier-uniform style init; linear weights stored
# as (in, out) so kernels compute x @ w + b directly)
# ----------------------------------------------------------------------------

IN_CH = [2, 16, 32, 64]
OUT_CH = [16, 32, 64, 128]
D_MODEL = 128
FF = 2048
FC_IN = 31
FC_OUT = 2 * 15 + 1   # TODO(synk): params['_M'] comes from external config; fixed to 15.


def _xavier(key, shape, fan_in, fan_out, gain):
    bound = gain * (6.0 / (fan_in + fan_out)) ** 0.5
    return jax.random.uniform(key, shape, jnp.float32, -bound, bound)


def init_params(key):
    ks = jax.random.split(key, 16)
    g = 2.0 ** 0.5
    p = {}
    for i in range(4):
        ci, co = IN_CH[i], OUT_CH[i]
        p[f"conv{i}_w"] = _xavier(ks[i], (co, ci, 3, 3), ci * 9, co * 9, g)
        p[f"conv{i}_b"] = jnp.zeros((co,), jnp.float32)
    for i in range(4):
        ci, co = OUT_CH[-1 - i], IN_CH[-1 - i]
        p[f"deconv{i}_w"] = _xavier(ks[4 + i], (ci, co, 3, 3), co * 9, ci * 9, g)
        p[f"deconv{i}_b"] = jnp.zeros((co,), jnp.float32)
    p["in_proj_w"] = _xavier(ks[8], (D_MODEL, 3 * D_MODEL), D_MODEL, 3 * D_MODEL, 1.0)
    p["in_proj_b"] = jnp.zeros((3 * D_MODEL,), jnp.float32)
    p["out_proj_w"] = _xavier(ks[9], (D_MODEL, D_MODEL), D_MODEL, D_MODEL, 1.0)
    p["out_proj_b"] = jnp.zeros((D_MODEL,), jnp.float32)
    p["lin1_w"] = _xavier(ks[10], (D_MODEL, FF), D_MODEL, FF, 1.0)
    p["lin1_b"] = jnp.zeros((FF,), jnp.float32)
    p["lin2_w"] = _xavier(ks[11], (FF, D_MODEL), FF, D_MODEL, 1.0)
    p["lin2_b"] = jnp.zeros((D_MODEL,), jnp.float32)
    p["ln1_g"] = jnp.ones((D_MODEL,), jnp.float32)
    p["ln1_b"] = jnp.zeros((D_MODEL,), jnp.float32)
    p["ln2_g"] = jnp.ones((D_MODEL,), jnp.float32)
    p["ln2_b"] = jnp.zeros((D_MODEL,), jnp.float32)
    p["fc1_w"] = _xavier(ks[12], (FC_IN, 512), FC_IN, 512, g)
    p["fc1_b"] = jnp.zeros((512,), jnp.float32)
    p["fc2_w"] = _xavier(ks[13], (512, FC_OUT), 512, FC_OUT, g)
    p["fc2_b"] = jnp.zeros((FC_OUT,), jnp.float32)
    return p


# ----------------------------------------------------------------------------
# conv_trans.forward
# ----------------------------------------------------------------------------

def conv_trans_forward(params, x):
    # x: [B, F, 2, H, W]  (W must reduce to 1 after 4 stride-2 convs, e.g. W=31)
    B, F_cnt = x.shape[0], x.shape[1]
    x = x.reshape((B * F_cnt,) + x.shape[2:])                  # (N, 2, H, W)

    for i in range(4):                                         # Conv stack
        x = conv2d(x, params[f"conv{i}_w"], params[f"conv{i}_b"], sh=1, sw=2)

    N, C, H4, W4 = x.shape                                     # (N, 128, H-8, 1)
    x = jnp.transpose(x, (0, 2, 1, 3)).reshape(N, H4, C * W4)  # (N, seq, 128)
    x = transformer_encoder_layer(x, params)                   # fused kernel
    x = x.reshape(N, H4, OUT_CH[-1], -1)
    x = jnp.transpose(x, (0, 2, 1, 3))                         # (N, 128, H4, 1)

    for i in range(4):                                         # Deconv stack
        x = conv_transpose2d(x, params[f"deconv{i}_w"], params[f"deconv{i}_b"],
                             sh=1, sw=2)

    N2, C2, H2, W2 = x.shape                                   # (N, 2, H, 31)
    y = fc_head(x.reshape(N2 * C2 * H2, W2),
                params["fc1_w"], params["fc1_b"],
                params["fc2_w"], params["fc2_b"])              # fused fc1+tanh+fc2
    x = y.reshape(N2, C2, H2, FC_OUT)
    return x.reshape((B, F_cnt) + x.shape[1:])                 # [B, F, 2, H, 31]


# ----------------------------------------------------------------------------

if __name__ == "__main__":
    key = jax.random.PRNGKey(0)
    pkey, xkey = jax.random.split(key)
    params = init_params(pkey)

    B, F_cnt, C, H, W = 2, 2, 2, 12, 31
    x = jax.random.normal(xkey, (B, F_cnt, C, H, W), jnp.float32)

    fwd = jax.jit(conv_trans_forward)
    y = fwd(params, x)
    jax.block_until_ready(y)

    assert y.shape == (B, F_cnt, 2, H, FC_OUT), y.shape
    assert jnp.all(jnp.isfinite(y))
    print("KERNEL_OK")
</pallas_src>

<mosaic_0001>
module attributes {stable_mosaic.version = 11 : i64} {
  func.func @_matmul_t_kernel(%arg0: i32, %arg1: memref<16x18xbf16, #tpu.memory_space<vmem>>, %arg2: memref<18x128xbf16, #tpu.memory_space<vmem>>, %arg3: memref<16x1xf32, #tpu.memory_space<vmem>>, %arg4: memref<16x128xf32, #tpu.memory_space<vmem>>) attributes {dimension_semantics = [#tpu.dimension_semantics<parallel>], iteration_bounds = array<i64: 5>, scalar_prefetch = 0 : i64, scratch_operands = 0 : i64, tpu.core_type = #tpu.core_type<tc>, window_params = [{pipeline_mode = #tpu.pipeline_mode<synchronous>, transform_indices = @transform_0, window_bounds = array<i64: 16, 18>}, {transform_indices = @transform_1, window_bounds = array<i64: 18, 128>}, {pipeline_mode = #tpu.pipeline_mode<synchronous>, transform_indices = @transform_2, window_bounds = array<i64: 16, 1>}, {transform_indices = @transform_3, window_bounds = array<i64: 16, 128>}]} {
    %c0 = arith.constant 0 : index
    %c0_0 = arith.constant 0 : index
    %0 = vector.load %arg1[%c0, %c0_0] : memref<16x18xbf16, #tpu.memory_space<vmem>>, vector<16x18xbf16>
    %c0_1 = arith.constant 0 : index
    %c0_2 = arith.constant 0 : index
    %1 = vector.load %arg2[%c0_1, %c0_2] : memref<18x128xbf16, #tpu.memory_space<vmem>>, vector<18x128xbf16>
    %cst = arith.constant dense<0.000000e+00> : vector<16x128xf32>
    %2 = tpu.matmul %0, %1, %cst {dimension_numbers = #tpu.dot_dimension_numbers<[1], [0], [0], [1], [0, 0, 1, 1], [], []>} : vector<16x18xbf16>, vector<18x128xbf16>, vector<16x128xf32> -> vector<16x128xf32>
    %c0_3 = arith.constant 0 : index
    %c0_4 = arith.constant 0 : index
    %3 = vector.load %arg3[%c0_3, %c0_4] : memref<16x1xf32, #tpu.memory_space<vmem>>, vector<16x1xf32>
    %4 = vector.broadcast %3 : vector<16x1xf32> to vector<16x128xf32>
    %5 = arith.addf %2, %4 : vector<16x128xf32>
    %c0_5 = arith.constant 0 : index
    %c0_6 = arith.constant 0 : index
    %6 = vector.load %arg4[%c0_5, %c0_6] : memref<16x128xf32, #tpu.memory_space<vmem>>, vector<16x128xf32>
    tpu.vector_store %arg4[%c0_5, %c0_6], %5 {strides = array<i32>} : memref<16x128xf32, #tpu.memory_space<vmem>>, vector<16x128xf32>,
    return
  }
  func.func @transform_0(%arg0: i32) -> (i32, i32) {
    %c0_i32 = arith.constant 0 : i32
    %c0_i32_0 = arith.constant 0 : i32
    %c0_i32_1 = arith.constant 0 : i32
    return %c0_i32, %c0_i32_0 : i32, i32
  }
  func.func @transform_1(%arg0: i32) -> (i32, i32) {
    %c0_i32 = arith.constant 0 : i32
    %c0_i32_0 = arith.constant 0 : i32
    return %c0_i32, %arg0 : i32, i32
  }
  func.func @transform_2(%arg0: i32) -> (i32, i32) {
    %c0_i32 = arith.constant 0 : i32
    %c0_i32_0 = arith.constant 0 : i32
    %c0_i32_1 = arith.constant 0 : i32
    return %c0_i32, %c0_i32_0 : i32, i32
  }
  func.func @transform_3(%arg0: i32) -> (i32, i32) {
    %c0_i32 = arith.constant 0 : i32
    %c0_i32_0 = arith.constant 0 : i32
    return %c0_i32, %arg0 : i32, i32
  }
}

module attributes {stable_mosaic.version = 11 : i64} {
  func.func @_matmul_t_kernel(%arg0: i32, %arg1: memref<32x144xbf16, #tpu.memory_space<vmem>>, %arg2: memref<144x128xbf16, #tpu.memory_space<vmem>>, %arg3: memref<32x1xf32, #tpu.memory_space<vmem>>, %arg4: memref<32x128xf32, #tpu.memory_space<vmem>>) attributes {dimension_semantics = [#tpu.dimension_semantics<parallel>], iteration_bounds = array<i64: 2>, scalar_prefetch = 0 : i64, scratch_operands = 0 : i64, tpu.core_type = #tpu.core_type<tc>, window_params = [{pipeline_mode = #tpu.pipeline_mode<synchronous>, transform_indices = @transform_0, window_bounds = array<i64: 32, 144>}, {transform_indices = @transform_1, window_bounds = array<i64: 144, 128>}, {pipeline_mode = #tpu.pipeline_mode<synchronous>, transform_indices = @transform_2, window_bounds = array<i64: 32, 1>}, {transform_indices = @transform_3, window_bounds = array<i64: 32, 128>}]} {
    %c0 = arith.constant 0 : index
    %c0_0 = arith.constant 0 : index
    %0 = vector.load %arg1[%c0, %c0_0] : memref<32x144xbf16, #tpu.memory_space<vmem>>, vector<32x144xbf16>
    %c0_1 = arith.constant 0 : index
    %c0_2 = arith.constant 0 : index
    %1 = vector.load %arg2[%c0_1, %c0_2] : memref<144x128xbf16, #tpu.memory_space<vmem>>, vector<144x128xbf16>
    %cst = arith.constant dense<0.000000e+00> : vector<32x128xf32>
    %2 = tpu.matmul %0, %1, %cst {dimension_numbers = #tpu.dot_dimension_numbers<[1], [0], [0], [1], [0, 0, 1, 1], [], []>} : vector<32x144xbf16>, vector<144x128xbf16>, vector<32x128xf32> -> vector<32x128xf32>
    %c0_3 = arith.constant 0 : index
    %c0_4 = arith.constant 0 : index
    %3 = vector.load %arg3[%c0_3, %c0_4] : memref<32x1xf32, #tpu.memory_space<vmem>>, vector<32x1xf32>
    %4 = vector.broadcast %3 : vector<32x1xf32> to vector<32x128xf32>
    %5 = arith.addf %2, %4 : vector<32x128xf32>
    %c0_5 = arith.constant 0 : index
    %c0_6 = arith.constant 0 : index
    %6 = vector.load %arg4[%c0_5, %c0_6] : memref<32x128xf32, #tpu.memory_space<vmem>>, vector<32x128xf32>
    tpu.vector_store %arg4[%c0_5, %c0_6], %5 {strides = array<i32>} : memref<32x128xf32, #tpu.memory_space<vmem>>, vector<32x128xf32>,
    return
  }
  func.func @transform_0(%arg0: i32) -> (i32, i32) {
    %c0_i32 = arith.constant 0 : i32
    %c0_i32_0 = arith.constant 0 : i32
    %c0_i32_1 = arith.constant 0 : i32
    return %c0_i32, %c0_i32_0 : i32, i32
  }
  func.func @transform_1(%arg0: i32) -> (i32, i32) {
    %c0_i32 = arith.constant 0 : i32
    %c0_i32_0 = arith.constant 0 : i32
    return %c0_i32, %arg0 : i32, i32
  }
  func.func @transform_2(%arg0: i32) -> (i32, i32) {
    %c0_i32 = arith.constant 0 : i32
    %c0_i32_0 = arith.constant 0 : i32
    %c0_i32_1 = arith.constant 0 : i32
    return %c0_i32, %c0_i32_0 : i32, i32
  }
  func.func @transform_3(%arg0: i32) -> (i32, i32) {
    %c0_i32 = arith.constant 0 : i32
    %c0_i32_0 = arith.constant 0 : i32
    return %c0_i32, %arg0 : i32, i32
  }
}

module attributes {stable_mosaic.version = 11 : i64} {
  func.func @_matmul_t_kernel(%arg0: i32, %arg1: memref<64x288xbf16, #tpu.memory_space<vmem>>, %arg2: memref<288x128xbf16, #tpu.memory_space<vmem>>, %arg3: memref<64x1xf32, #tpu.memory_space<vmem>>, %arg4: memref<64x128xf32, #tpu.memory_space<vmem>>) attributes {dimension_semantics = [#tpu.dimension_semantics<parallel>], iteration_bounds = array<i64: 1>, scalar_prefetch = 0 : i64, scratch_operands = 0 : i64, tpu.core_type = #tpu.core_type<tc>, window_params = [{pipeline_mode = #tpu.pipeline_mode<synchronous>, transform_indices = @transform_0, window_bounds = array<i64: 64, 288>}, {transform_indices = @transform_1, window_bounds = array<i64: 288, 128>}, {pipeline_mode = #tpu.pipeline_mode<synchronous>, transform_indices = @transform_2, window_bounds = array<i64: 64, 1>}, {transform_indices = @transform_3, window_bounds = array<i64: 64, 128>}]} {
    %c0 = arith.constant 0 : index
    %c0_0 = arith.constant 0 : index
    %0 = vector.load %arg1[%c0, %c0_0] : memref<64x288xbf16, #tpu.memory_space<vmem>>, vector<64x288xbf16>
    %c0_1 = arith.constant 0 : index
    %c0_2 = arith.constant 0 : index
    %1 = vector.load %arg2[%c0_1, %c0_2] : memref<288x128xbf16, #tpu.memory_space<vmem>>, vector<288x128xbf16>
    %cst = arith.constant dense<0.000000e+00> : vector<64x128xf32>
    %2 = tpu.matmul %0, %1, %cst {dimension_numbers = #tpu.dot_dimension_numbers<[1], [0], [0], [1], [0, 0, 1, 1], [], []>} : vector<64x288xbf16>, vector<288x128xbf16>, vector<64x128xf32> -> vector<64x128xf32>
    %c0_3 = arith.constant 0 : index
    %c0_4 = arith.constant 0 : index
    %3 = vector.load %arg3[%c0_3, %c0_4] : memref<64x1xf32, #tpu.memory_space<vmem>>, vector<64x1xf32>
    %4 = vector.broadcast %3 : vector<64x1xf32> to vector<64x128xf32>
    %5 = arith.addf %2, %4 : vector<64x128xf32>
    %c0_5 = arith.constant 0 : index
    %c0_6 = arith.constant 0 : index
    %6 = vector.load %arg4[%c0_5, %c0_6] : memref<64x128xf32, #tpu.memory_space<vmem>>, vector<64x128xf32>
    tpu.vector_store %arg4[%c0_5, %c0_6], %5 {strides = array<i32>} : memref<64x128xf32, #tpu.memory_space<vmem>>, vector<64x128xf32>,
    return
  }
  func.func @transform_0(%arg0: i32) -> (i32, i32) {
    %c0_i32 = arith.constant 0 : i32
    %c0_i32_0 = arith.constant 0 : i32
    %c0_i32_1 = arith.constant 0 : i32
    return %c0_i32, %c0_i32_0 : i32, i32
  }
  func.func @transform_1(%arg0: i32) -> (i32, i32) {
    %c0_i32 = arith.constant 0 : i32
    %c0_i32_0 = arith.constant 0 : i32
    return %c0_i32, %arg0 : i32, i32
  }
  func.func @transform_2(%arg0: i32) -> (i32, i32) {
    %c0_i32 = arith.constant 0 : i32
    %c0_i32_0 = arith.constant 0 : i32
    %c0_i32_1 = arith.constant 0 : i32
    return %c0_i32, %c0_i32_0 : i32, i32
  }
  func.func @transform_3(%arg0: i32) -> (i32, i32) {
    %c0_i32 = arith.constant 0 : i32
    %c0_i32_0 = arith.constant 0 : i32
    return %c0_i32, %arg0 : i32, i32
  }
}

module attributes {stable_mosaic.version = 11 : i64} {
  func.func @_matmul_t_kernel(%arg0: i32, %arg1: memref<128x576xbf16, #tpu.memory_space<vmem>>, %arg2: memref<576x128xbf16, #tpu.memory_space<vmem>>, %arg3: memref<128x1xf32, #tpu.memory_space<vmem>>, %arg4: memref<128x128xf32, #tpu.memory_space<vmem>>) attributes {dimension_semantics = [#tpu.dimension_semantics<parallel>], iteration_bounds = array<i64: 1>, scalar_prefetch = 0 : i64, scratch_operands = 0 : i64, tpu.core_type = #tpu.core_type<tc>, window_params = [{pipeline_mode = #tpu.pipeline_mode<synchronous>, transform_indices = @transform_0, window_bounds = array<i64: 128, 576>}, {transform_indices = @transform_1, window_bounds = array<i64: 576, 128>}, {pipeline_mode = #tpu.pipeline_mode<synchronous>, transform_indices = @transform_2, window_bounds = array<i64: 128, 1>}, {transform_indices = @transform_3, window_bounds = array<i64: 128, 128>}]} {
    %c0 = arith.constant 0 : index
    %c0_0 = arith.constant 0 : index
    %0 = vector.load %arg1[%c0, %c0_0] : memref<128x576xbf16, #tpu.memory_space<vmem>>, vector<128x576xbf16>
    %c0_1 = arith.constant 0 : index
    %c0_2 = arith.constant 0 : index
    %1 = vector.load %arg2[%c0_1, %c0_2] : memref<576x128xbf16, #tpu.memory_space<vmem>>, vector<576x128xbf16>
    %cst = arith.constant dense<0.000000e+00> : vector<128x128xf32>
    %2 = tpu.matmul %0, %1, %cst {dimension_numbers = #tpu.dot_dimension_numbers<[1], [0], [0], [1], [0, 0, 1, 1], [], []>} : vector<128x576xbf16>, vector<576x128xbf16>, vector<128x128xf32> -> vector<128x128xf32>
    %c0_3 = arith.constant 0 : index
    %c0_4 = arith.constant 0 : index
    %3 = vector.load %arg3[%c0_3, %c0_4] : memref<128x1xf32, #tpu.memory_space<vmem>>, vector<128x1xf32>
    %4 = vector.broadcast %3 : vector<128x1xf32> to vector<128x128xf32>
    %5 = arith.addf %2, %4 : vector<128x128xf32>
    %c0_5 = arith.constant 0 : index
    %c0_6 = arith.constant 0 : index
    %6 = vector.load %arg4[%c0_5, %c0_6] : memref<128x128xf32, #tpu.memory_space<vmem>>, vector<128x128xf32>
    tpu.vector_store %arg4[%c0_5, %c0_6], %5 {strides = array<i32>} : memref<128x128xf32, #tpu.memory_space<vmem>>, vector<128x128xf32>,
    return
  }
  func.func @transform_0(%arg0: i32) -> (i32, i32) {
    %c0_i32 = arith.constant 0 : i32
    %c0_i32_0 = arith.constant 0 : i32
    %c0_i32_1 = arith.constant 0 : i32
    return %c0_i32, %c0_i32_0 : i32, i32
  }
  func.func @transform_1(%arg0: i32) -> (i32, i32) {
    %c0_i32 = arith.constant 0 : i32
    %c0_i32_0 = arith.constant 0 : i32
    return %c0_i32, %arg0 : i32, i32
  }
  func.func @transform_2(%arg0: i32) -> (i32, i32) {
    %c0_i32 = arith.constant 0 : i32
    %c0_i32_0 = arith.constant 0 : i32
    %c0_i32_1 = arith.constant 0 : i32
    return %c0_i32, %c0_i32_0 : i32, i32
  }
  func.func @transform_3(%arg0: i32) -> (i32, i32) {
    %c0_i32 = arith.constant 0 : i32
    %c0_i32_0 = arith.constant 0 : i32
    return %c0_i32, %arg0 : i32, i32
  }
}

module attributes {stable_mosaic.version = 11 : i64} {
  func.func @_encoder_kernel(%arg0: i32, %arg1: memref<16x128xf32, #tpu.memory_space<vmem>>, %arg2: memref<16x16xf32, #tpu.memory_space<vmem>>, %arg3: memref<128x384xbf16, #tpu.memory_space<vmem>>, %arg4: memref<1x384xf32, #tpu.memory_space<vmem>>, %arg5: memref<128x128xbf16, #tpu.memory_space<vmem>>, %arg6: memref<1x128xf32, #tpu.memory_space<vmem>>, %arg7: memref<1x128xf32, #tpu.memory_space<vmem>>, %arg8: memref<1x128xf32, #tpu.memory_space<vmem>>, %arg9: memref<128x2048xbf16, #tpu.memory_space<vmem>>, %arg10: memref<1x2048xf32, #tpu.memory_space<vmem>>, %arg11: memref<2048x128xbf16, #tpu.memory_space<vmem>>, %arg12: memref<1x128xf32, #tpu.memory_space<vmem>>, %arg13: memref<1x128xf32, #tpu.memory_space<vmem>>, %arg14: memref<1x128xf32, #tpu.memory_space<vmem>>, %arg15: memref<16x128xf32, #tpu.memory_space<vmem>>) attributes {dimension_semantics = [#tpu.dimension_semantics<arbitrary>], iteration_bounds = array<i64: 1>, scalar_prefetch = 0 : i64, scratch_operands = 0 : i64, tpu.core_type = #tpu.core_type<tc>, window_params = [{pipeline_mode = #tpu.pipeline_mode<synchronous>, transform_indices = @transform_0, window_bounds = array<i64: 16, 128>}, {pipeline_mode = #tpu.pipeline_mode<synchronous>, transform_indices = @transform_1, window_bounds = array<i64: 16, 16>}, {pipeline_mode = #tpu.pipeline_mode<synchronous>, transform_indices = @transform_2, window_bounds = array<i64: 128, 384>}, {pipeline_mode = #tpu.pipeline_mode<synchronous>, transform_indices = @transform_3, window_bounds = array<i64: 1, 384>}, {pipeline_mode = #tpu.pipeline_mode<synchronous>, transform_indices = @transform_4, window_bounds = array<i64: 128, 128>}, {pipeline_mode = #tpu.pipeline_mode<synchronous>, transform_indices = @transform_5, window_bounds = array<i64: 1, 128>}, {pipeline_mode = #tpu.pipeline_mode<synchronous>, transform_indices = @transform_6, window_bounds = array<i64: 1, 128>}, {pipeline_mode = #tpu.pipeline_mode<synchronous>, transform_indices = @transform_7, window_bounds = array<i64: 1, 128>}, {pipeline_mode = #tpu.pipeline_mode<synchronous>, transform_indices = @transform_8, window_bounds = array<i64: 128, 2048>}, {pipeline_mode = #tpu.pipeline_mode<synchronous>, transform_indices = @transform_9, window_bounds = array<i64: 1, 2048>}, {pipeline_mode = #tpu.pipeline_mode<synchronous>, transform_indices = @transform_10, window_bounds = array<i64: 2048, 128>}, {pipeline_mode = #tpu.pipeline_mode<synchronous>, transform_indices = @transform_11, window_bounds = array<i64: 1, 128>}, {pipeline_mode = #tpu.pipeline_mode<synchronous>, transform_indices = @transform_12, window_bounds = array<i64: 1, 128>}, {pipeline_mode = #tpu.pipeline_mode<synchronous>, transform_indices = @transform_13, window_bounds = array<i64: 1, 128>}, {pipeline_mode = #tpu.pipeline_mode<synchronous>, transform_indices = @transform_14, window_bounds = array<i64: 16, 128>}]} {
    %c0 = arith.constant 0 : index
    %c0_0 = arith.constant 0 : index
    %0 = vector.load %arg1[%c0, %c0_0] : memref<16x128xf32, #tpu.memory_space<vmem>>, vector<16x128xf32>
    %1 = arith.truncf %0 : vector<16x128xf32> to vector<16x128xbf16>
    %c0_1 = arith.constant 0 : index
    %c0_2 = arith.constant 0 : index
    %2 = vector.load %arg3[%c0_1, %c0_2] : memref<128x384xbf16, #tpu.memory_space<vmem>>, vector<128x384xbf16>
    %cst = arith.constant dense<0.000000e+00> : vector<16x384xf32>
    %3 = tpu.matmul %1, %2, %cst {dimension_numbers = #tpu.dot_dimension_numbers<[1], [0], [0], [1], [0, 0, 1, 1], [], []>} : vector<16x128xbf16>, vector<128x384xbf16>, vector<16x384xf32> -> vector<16x384xf32>
    %c0_3 = arith.constant 0 : index
    %c0_4 = arith.constant 0 : index
    %4 = vector.load %arg4[%c0_3, %c0_4] : memref<1x384xf32, #tpu.memory_space<vmem>>, vector<1x384xf32>
    %5 = vector.broadcast %4 : vector<1x384xf32> to vector<16x384xf32>
    %6 = arith.addf %3, %5 : vector<16x384xf32>
    %7 = vector.extract_strided_slice %6 {offsets = [0, 0], sizes = [16, 128], strides = [1, 1]} : vector<16x384xf32> to vector<16x128xf32>
    %8 = vector.extract_strided_slice %6 {offsets = [0, 128], sizes = [16, 128], strides = [1, 1]} : vector<16x384xf32> to vector<16x128xf32>
    %9 = vector.extract_strided_slice %6 {offsets = [0, 256], sizes = [16, 128], strides = [1, 1]} : vector<16x384xf32> to vector<16x128xf32>
    %10 = arith.truncf %7 : vector<16x128xf32> to vector<16x128xbf16>
    %11 = arith.truncf %8 : vector<16x128xf32> to vector<16x128xbf16>
    %cst_5 = arith.constant dense<0.000000e+00> : vector<16x16xf32>
    %12 = tpu.matmul %10, %11, %cst_5 {dimension_numbers = #tpu.dot_dimension_numbers<[1], [1], [0], [0], [0, 0, 1, 0], [], []>} : vector<16x128xbf16>, vector<16x128xbf16>, vector<16x16xf32> -> vector<16x16xf32>
    %cst_6 = arith.constant 0.0883883461 : f32
    %13 = vector.broadcast %cst_6 : f32 to vector<16x16xf32>
    %14 = arith.mulf %12, %13 : vector<16x16xf32>
    %c0_7 = arith.constant 0 : index
    %c0_8 = arith.constant 0 : index
    %15 = vector.load %arg2[%c0_7, %c0_8] : memref<16x16xf32, #tpu.memory_space<vmem>>, vector<16x16xf32>
    %16 = arith.addf %14, %15 : vector<16x16xf32>
    %cst_9 = arith.constant dense<0xFF800000> : vector<16xf32>
    %17 = vector.multi_reduction <maximumf>, %16, %cst_9 [1] : vector<16x16xf32> to vector<16xf32>
    %18 = vector.shape_cast %17 : vector<16xf32> to vector<16x1xf32>
    %19 = vector.broadcast %18 : vector<16x1xf32> to vector<16x16xf32>
    %20 = arith.subf %16, %19 : vector<16x16xf32>
    %21 = math.exp %20 : vector<16x16xf32>
    %cst_10 = arith.constant dense<0.000000e+00> : vector<16xf32>
    %22 = vector.multi_reduction <add>, %21, %cst_10 [1] : vector<16x16xf32> to vector<16xf32>
    %23 = vector.shape_cast %22 : vector<16xf32> to vector<16x1xf32>
    %24 = tpu.reciprocal %23 {approx = true} : vector<16x1xf32> -> vector<16x1xf32>
    %25 = vector.broadcast %24 : vector<16x1xf32> to vector<16x16xf32>
    %26 = arith.mulf %21, %25 : vector<16x16xf32>
    %27 = arith.truncf %26 : vector<16x16xf32> to vector<16x16xbf16>
    %28 = arith.truncf %9 : vector<16x128xf32> to vector<16x128xbf16>
    %cst_11 = arith.constant dense<0.000000e+00> : vector<16x128xf32>
    %29 = tpu.matmul %27, %28, %cst_11 {dimension_numbers = #tpu.dot_dimension_numbers<[1], [0], [0], [1], [0, 0, 1, 1], [], []>} : vector<16x16xbf16>, vector<16x128xbf16>, vector<16x128xf32> -> vector<16x128xf32>
    %30 = arith.truncf %29 : vector<16x128xf32> to vector<16x128xbf16>
    %c0_12 = arith.constant 0 : index
    %c0_13 = arith.constant 0 : index
    %31 = vector.load %arg5[%c0_12, %c0_13] : memref<128x128xbf16, #tpu.memory_space<vmem>>, vector<128x128xbf16>
    %cst_14 = arith.constant dense<0.000000e+00> : vector<16x128xf32>
    %32 = tpu.matmul %30, %31, %cst_14 {dimension_numbers = #tpu.dot_dimension_numbers<[1], [0], [0], [1], [0, 0, 1, 1], [], []>} : vector<16x128xbf16>, vector<128x128xbf16>, vector<16x128xf32> -> vector<16x128xf32>
    %c0_15 = arith.constant 0 : index
    %c0_16 = arith.constant 0 : index
    %33 = vector.load %arg6[%c0_15, %c0_16] : memref<1x128xf32, #tpu.memory_space<vmem>>, vector<1x128xf32>
    %34 = vector.broadcast %33 : vector<1x128xf32> to vector<16x128xf32>
    %35 = arith.addf %32, %34 : vector<16x128xf32>
    %36 = arith.addf %0, %35 : vector<16x128xf32>
    %c0_17 = arith.constant 0 : index
    %c0_18 = arith.constant 0 : index
    %37 = vector.load %arg7[%c0_17, %c0_18] : memref<1x128xf32, #tpu.memory_space<vmem>>, vector<1x128xf32>
    %c0_19 = arith.constant 0 : index
    %c0_20 = arith.constant 0 : index
    %38 = vector.load %arg8[%c0_19, %c0_20] : memref<1x128xf32, #tpu.memory_space<vmem>>, vector<1x128xf32>
    %cst_21 = arith.constant dense<0.000000e+00> : vector<16xf32>
    %39 = vector.multi_reduction <add>, %36, %cst_21 [1] : vector<16x128xf32> to vector<16xf32>
    %40 = vector.shape_cast %39 : vector<16xf32> to vector<16x1xf32>
    %cst_22 = arith.constant 1.280000e+02 : f32
    %41 = vector.broadcast %cst_22 : f32 to vector<16x1xf32>
    %42 = arith.divf %40, %41 : vector<16x1xf32>
    %43 = vector.broadcast %42 : vector<16x1xf32> to vector<16x128xf32>
    %44 = arith.subf %36, %43 : vector<16x128xf32>
    %45 = arith.mulf %44, %44 : vector<16x128xf32>
    %cst_23 = arith.constant dense<0.000000e+00> : vector<16xf32>
    %46 = vector.multi_reduction <add>, %45, %cst_23 [1] : vector<16x128xf32> to vector<16xf32>
    %47 = vector.shape_cast %46 : vector<16xf32> to vector<16x1xf32>
    %cst_24 = arith.constant 1.280000e+02 : f32
    %48 = vector.broadcast %cst_24 : f32 to vector<16x1xf32>
    %49 = arith.divf %47, %48 : vector<16x1xf32>
    %cst_25 = arith.constant 9.99999974E-6 : f32
    %50 = vector.broadcast %cst_25 : f32 to vector<16x1xf32>
    %51 = arith.addf %49, %50 : vector<16x1xf32>
    %52 = math.rsqrt %51 : vector<16x1xf32>
    %53 = vector.broadcast %52 : vector<16x1xf32> to vector<16x128xf32>
    %54 = arith.mulf %44, %53 : vector<16x128xf32>
    %55 = vector.broadcast %37 : vector<1x128xf32> to vector<16x128xf32>
    %56 = arith.mulf %54, %55 : vector<16x128xf32>
    %57 = vector.broadcast %38 : vector<1x128xf32> to vector<16x128xf32>
    %58 = arith.addf %56, %57 : vector<16x128xf32>
    %59 = arith.truncf %58 : vector<16x128xf32> to vector<16x128xbf16>
    %c0_26 = arith.constant 0 : index
    %c0_27 = arith.constant 0 : index
    %60 = vector.load %arg9[%c0_26, %c0_27] : memref<128x2048xbf16, #tpu.memory_space<vmem>>, vector<128x2048xbf16>
    %cst_28 = arith.constant dense<0.000000e+00> : vector<16x2048xf32>
    %61 = tpu.matmul %59, %60, %cst_28 {dimension_numbers = #tpu.dot_dimension_numbers<[1], [0], [0], [1], [0, 0, 1, 1], [], []>} : vector<16x128xbf16>, vector<128x2048xbf16>, vector<16x2048xf32> -> vector<16x2048xf32>
    %c0_29 = arith.constant 0 : index
    %c0_30 = arith.constant 0 : index
    %62 = vector.load %arg10[%c0_29, %c0_30] : memref<1x2048xf32, #tpu.memory_space<vmem>>, vector<1x2048xf32>
    %63 = vector.broadcast %62 : vector<1x2048xf32> to vector<16x2048xf32>
    %64 = arith.addf %61, %63 : vector<16x2048xf32>
    %cst_31 = arith.constant 0.000000e+00 : f32
    %65 = vector.broadcast %cst_31 : f32 to vector<16x2048xf32>
    %66 = arith.maximumf %64, %65 : vector<16x2048xf32>
    %67 = arith.truncf %66 : vector<16x2048xf32> to vector<16x2048xbf16>
    %c0_32 = arith.constant 0 : index
    %c0_33 = arith.constant 0 : index
    %68 = vector.load %arg11[%c0_32, %c0_33] : memref<2048x128xbf16, #tpu.memory_space<vmem>>, vector<2048x128xbf16>
    %cst_34 = arith.constant dense<0.000000e+00> : vector<16x128xf32>
    %69 = tpu.matmul %67, %68, %cst_34 {dimension_numbers = #tpu.dot_dimension_numbers<[1], [0], [0], [1], [0, 0, 1, 1], [], []>} : vector<16x2048xbf16>, vector<2048x128xbf16>, vector<16x128xf32> -> vector<16x128xf32>
    %c0_35 = arith.constant 0 : index
    %c0_36 = arith.constant 0 : index
    %70 = vector.load %arg12[%c0_35, %c0_36] : memref<1x128xf32, #tpu.memory_space<vmem>>, vector<1x128xf32>
    %71 = vector.broadcast %70 : vector<1x128xf32> to vector<16x128xf32>
    %72 = arith.addf %69, %71 : vector<16x128xf32>
    %73 = arith.addf %58, %72 : vector<16x128xf32>
    %c0_37 = arith.constant 0 : index
    %c0_38 = arith.constant 0 : index
    %74 = vector.load %arg13[%c0_37, %c0_38] : memref<1x128xf32, #tpu.memory_space<vmem>>, vector<1x128xf32>
    %c0_39 = arith.constant 0 : index
    %c0_40 = arith.constant 0 : index
    %75 = vector.load %arg14[%c0_39, %c0_40] : memref<1x128xf32, #tpu.memory_space<vmem>>, vector<1x128xf32>
    %cst_41 = arith.constant dense<0.000000e+00> : vector<16xf32>
    %76 = vector.multi_reduction <add>, %73, %cst_41 [1] : vector<16x128xf32> to vector<16xf32>
    %77 = vector.shape_cast %76 : vector<16xf32> to vector<16x1xf32>
    %cst_42 = arith.constant 1.280000e+02 : f32
    %78 = vector.broadcast %cst_42 : f32 to vector<16x1xf32>
    %79 = arith.divf %77, %78 : vector<16x1xf32>
    %80 = vector.broadcast %79 : vector<16x1xf32> to vector<16x128xf32>
    %81 = arith.subf %73, %80 : vector<16x128xf32>
    %82 = arith.mulf %81, %81 : vector<16x128xf32>
    %cst_43 = arith.constant dense<0.000000e+00> : vector<16xf32>
    %83 = vector.multi_reduction <add>, %82, %cst_43 [1] : vector<16x128xf32> to vector<16xf32>
    %84 = vector.shape_cast %83 : vector<16xf32> to vector<16x1xf32>
    %cst_44 = arith.constant 1.280000e+02 : f32
    %85 = vector.broadcast %cst_44 : f32 to vector<16x1xf32>
    %86 = arith.divf %84, %85 : vector<16x1xf32>
    %cst_45 = arith.constant 9.99999974E-6 : f32
    %87 = vector.broadcast %cst_45 : f32 to vector<16x1xf32>
    %88 = arith.addf %86, %87 : vector<16x1xf32>
    %89 = math.rsqrt %88 : vector<16x1xf32>
    %90 = vector.broadcast %89 : vector<16x1xf32> to vector<16x128xf32>
    %91 = arith.mulf %81, %90 : vector<16x128xf32>
    %92 = vector.broadcast %74 : vector<1x128xf32> to vector<16x128xf32>
    %93 = arith.mulf %91, %92 : vector<16x128xf32>
    %94 = vector.broadcast %75 : vector<1x128xf32> to vector<16x128xf32>
    %95 = arith.addf %93, %94 : vector<16x128xf32>
    %c0_46 = arith.constant 0 : index
    %c0_47 = arith.constant 0 : index
    %96 = vector.load %arg15[%c0_46, %c0_47] : memref<16x128xf32, #tpu.memory_space<vmem>>, vector<16x128xf32>
    tpu.vector_store %arg15[%c0_46, %c0_47], %95 {strides = array<i32>} : memref<16x128xf32, #tpu.memory_space<vmem>>, vector<16x128xf32>,
    return
  }
  func.func @transform_0(%arg0: i32) -> (i32, i32) {
    %c0_i32 = arith.constant 0 : i32
    %c0_i32_0 = arith.constant 0 : i32
    %c0_i32_1 = arith.constant 0 : i32
    return %c0_i32, %c0_i32_0 : i32, i32
  }
  func.func @transform_1(%arg0: i32) -> (i32, i32) {
    %c0_i32 = arith.constant 0 : i32
    %c0_i32_0 = arith.constant 0 : i32
    %c0_i32_1 = arith.constant 0 : i32
    return %c0_i32, %c0_i32_0 : i32, i32
  }
  func.func @transform_2(%arg0: i32) -> (i32, i32) {
    %c0_i32 = arith.constant 0 : i32
    %c0_i32_0 = arith.constant 0 : i32
    %c0_i32_1 = arith.constant 0 : i32
    return %c0_i32, %c0_i32_0 : i32, i32
  }
  func.func @transform_3(%arg0: i32) -> (i32, i32) {
    %c0_i32 = arith.constant 0 : i32
    %c0_i32_0 = arith.constant 0 : i32
    %c0_i32_1 = arith.constant 0 : i32
    return %c0_i32, %c0_i32_0 : i32, i32
  }
  func.func @transform_4(%arg0: i32) -> (i32, i32) {
    %c0_i32 = arith.constant 0 : i32
    %c0_i32_0 = arith.constant 0 : i32
    %c0_i32_1 = arith.constant 0 : i32
    return %c0_i32, %c0_i32_0 : i32, i32
  }
  func.func @transform_5(%arg0: i32) -> (i32, i32) {
    %c0_i32 = arith.constant 0 : i32
    %c0_i32_0 = arith.constant 0 : i32
    %c0_i32_1 = arith.constant 0 : i32
    return %c0_i32, %c0_i32_0 : i32, i32
  }
  func.func @transform_6(%arg0: i32) -> (i32, i32) {
    %c0_i32 = arith.constant 0 : i32
    %c0_i32_0 = arith.constant 0 : i32
    %c0_i32_1 = arith.constant 0 : i32
    return %c0_i32, %c0_i32_0 : i32, i32
  }
  func.func @transform_7(%arg0: i32) -> (i32, i32) {
    %c0_i32 = arith.constant 0 : i32
    %c0_i32_0 = arith.constant 0 : i32
    %c0_i32_1 = arith.constant 0 : i32
    return %c0_i32, %c0_i32_0 : i32, i32
  }
  func.func @transform_8(%arg0: i32) -> (i32, i32) {
    %c0_i32 = arith.constant 0 : i32
    %c0_i32_0 = arith.constant 0 : i32
    %c0_i32_1 = arith.constant 0 : i32
    return %c0_i32, %c0_i32_0 : i32, i32
  }
  func.func @transform_9(%arg0: i32) -> (i32, i32) {
    %c0_i32 = arith.constant 0 : i32
    %c0_i32_0 = arith.constant 0 : i32
    %c0_i32_1 = arith.constant 0 : i32
    return %c0_i32, %c0_i32_0 : i32, i32
  }
  func.func @transform_10(%arg0: i32) -> (i32, i32) {
    %c0_i32 = arith.constant 0 : i32
    %c0_i32_0 = arith.constant 0 : i32
    %c0_i32_1 = arith.constant 0 : i32
    return %c0_i32, %c0_i32_0 : i32, i32
  }
  func.func @transform_11(%arg0: i32) -> (i32, i32) {
    %c0_i32 = arith.constant 0 : i32
    %c0_i32_0 = arith.constant 0 : i32
    %c0_i32_1 = arith.constant 0 : i32
    return %c0_i32, %c0_i32_0 : i32, i32
  }
  func.func @transform_12(%arg0: i32) -> (i32, i32) {
    %c0_i32 = arith.constant 0 : i32
    %c0_i32_0 = arith.constant 0 : i32
    %c0_i32_1 = arith.constant 0 : i32
    return %c0_i32, %c0_i32_0 : i32, i32
  }
  func.func @transform_13(%arg0: i32) -> (i32, i32) {
    %c0_i32 = arith.constant 0 : i32
    %c0_i32_0 = arith.constant 0 : i32
    %c0_i32_1 = arith.constant 0 : i32
    return %c0_i32, %c0_i32_0 : i32, i32
  }
  func.func @transform_14(%arg0: i32) -> (i32, i32) {
    %c0_i32 = arith.constant 0 : i32
    %c0_i32_0 = arith.constant 0 : i32
    %c0_i32_1 = arith.constant 0 : i32
    return %c0_i32, %c0_i32_0 : i32, i32
  }
}

module attributes {stable_mosaic.version = 11 : i64} {
  func.func @_matmul_t_kernel(%arg0: i32, %arg1: memref<64x1152xbf16, #tpu.memory_space<vmem>>, %arg2: memref<1152x128xbf16, #tpu.memory_space<vmem>>, %arg3: memref<64x1xf32, #tpu.memory_space<vmem>>, %arg4: memref<64x128xf32, #tpu.memory_space<vmem>>) attributes {dimension_semantics = [#tpu.dimension_semantics<parallel>], iteration_bounds = array<i64: 1>, scalar_prefetch = 0 : i64, scratch_operands = 0 : i64, tpu.core_type = #tpu.core_type<tc>, window_params = [{pipeline_mode = #tpu.pipeline_mode<synchronous>, transform_indices = @transform_0, window_bounds = array<i64: 64, 1152>}, {transform_indices = @transform_1, window_bounds = array<i64: 1152, 128>}, {pipeline_mode = #tpu.pipeline_mode<synchronous>, transform_indices = @transform_2, window_bounds = array<i64: 64, 1>}, {transform_indices = @transform_3, window_bounds = array<i64: 64, 128>}]} {
    %c0 = arith.constant 0 : index
    %c0_0 = arith.constant 0 : index
    %0 = vector.load %arg1[%c0, %c0_0] : memref<64x1152xbf16, #tpu.memory_space<vmem>>, vector<64x1152xbf16>
    %c0_1 = arith.constant 0 : index
    %c0_2 = arith.constant 0 : index
    %1 = vector.load %arg2[%c0_1, %c0_2] : memref<1152x128xbf16, #tpu.memory_space<vmem>>, vector<1152x128xbf16>
    %cst = arith.constant dense<0.000000e+00> : vector<64x128xf32>
    %2 = tpu.matmul %0, %1, %cst {dimension_numbers = #tpu.dot_dimension_numbers<[1], [0], [0], [1], [0, 0, 1, 1], [], []>} : vector<64x1152xbf16>, vector<1152x128xbf16>, vector<64x128xf32> -> vector<64x128xf32>
    %c0_3 = arith.constant 0 : index
    %c0_4 = arith.constant 0 : index
    %3 = vector.load %arg3[%c0_3, %c0_4] : memref<64x1xf32, #tpu.memory_space<vmem>>, vector<64x1xf32>
    %4 = vector.broadcast %3 : vector<64x1xf32> to vector<64x128xf32>
    %5 = arith.addf %2, %4 : vector<64x128xf32>
    %c0_5 = arith.constant 0 : index
    %c0_6 = arith.constant 0 : index
    %6 = vector.load %arg4[%c0_5, %c0_6] : memref<64x128xf32, #tpu.memory_space<vmem>>, vector<64x128xf32>
    tpu.vector_store %arg4[%c0_5, %c0_6], %5 {strides = array<i32>} : memref<64x128xf32, #tpu.memory_space<vmem>>, vector<64x128xf32>,
    return
  }
  func.func @transform_0(%arg0: i32) -> (i32, i32) {
    %c0_i32 = arith.constant 0 : i32
    %c0_i32_0 = arith.constant 0 : i32
    %c0_i32_1 = arith.constant 0 : i32
    return %c0_i32, %c0_i32_0 : i32, i32
  }
  func.func @transform_1(%arg0: i32) -> (i32, i32) {
    %c0_i32 = arith.constant 0 : i32
    %c0_i32_0 = arith.constant 0 : i32
    return %c0_i32, %arg0 : i32, i32
  }
  func.func @transform_2(%arg0: i32) -> (i32, i32) {
    %c0_i32 = arith.constant 0 : i32
    %c0_i32_0 = arith.constant 0 : i32
    %c0_i32_1 = arith.constant 0 : i32
    return %c0_i32, %c0_i32_0 : i32, i32
  }
  func.func @transform_3(%arg0: i32) -> (i32, i32) {
    %c0_i32 = arith.constant 0 : i32
    %c0_i32_0 = arith.constant 0 : i32
    return %c0_i32, %arg0 : i32, i32
  }
}

module attributes {stable_mosaic.version = 11 : i64} {
  func.func @_matmul_t_kernel(%arg0: i32, %arg1: memref<32x576xbf16, #tpu.memory_space<vmem>>, %arg2: memref<576x128xbf16, #tpu.memory_space<vmem>>, %arg3: memref<32x1xf32, #tpu.memory_space<vmem>>, %arg4: memref<32x128xf32, #tpu.memory_space<vmem>>) attributes {dimension_semantics = [#tpu.dimension_semantics<parallel>], iteration_bounds = array<i64: 2>, scalar_prefetch = 0 : i64, scratch_operands = 0 : i64, tpu.core_type = #tpu.core_type<tc>, window_params = [{pipeline_mode = #tpu.pipeline_mode<synchronous>, transform_indices = @transform_0, window_bounds = array<i64: 32, 576>}, {transform_indices = @transform_1, window_bounds = array<i64: 576, 128>}, {pipeline_mode = #tpu.pipeline_mode<synchronous>, transform_indices = @transform_2, window_bounds = array<i64: 32, 1>}, {transform_indices = @transform_3, window_bounds = array<i64: 32, 128>}]} {
    %c0 = arith.constant 0 : index
    %c0_0 = arith.constant 0 : index
    %0 = vector.load %arg1[%c0, %c0_0] : memref<32x576xbf16, #tpu.memory_space<vmem>>, vector<32x576xbf16>
    %c0_1 = arith.constant 0 : index
    %c0_2 = arith.constant 0 : index
    %1 = vector.load %arg2[%c0_1, %c0_2] : memref<576x128xbf16, #tpu.memory_space<vmem>>, vector<576x128xbf16>
    %cst = arith.constant dense<0.000000e+00> : vector<32x128xf32>
    %2 = tpu.matmul %0, %1, %cst {dimension_numbers = #tpu.dot_dimension_numbers<[1], [0], [0], [1], [0, 0, 1, 1], [], []>} : vector<32x576xbf16>, vector<576x128xbf16>, vector<32x128xf32> -> vector<32x128xf32>
    %c0_3 = arith.constant 0 : index
    %c0_4 = arith.constant 0 : index
    %3 = vector.load %arg3[%c0_3, %c0_4] : memref<32x1xf32, #tpu.memory_space<vmem>>, vector<32x1xf32>
    %4 = vector.broadcast %3 : vector<32x1xf32> to vector<32x128xf32>
    %5 = arith.addf %2, %4 : vector<32x128xf32>
    %c0_5 = arith.constant 0 : index
    %c0_6 = arith.constant 0 : index
    %6 = vector.load %arg4[%c0_5, %c0_6] : memref<32x128xf32, #tpu.memory_space<vmem>>, vector<32x128xf32>
    tpu.vector_store %arg4[%c0_5, %c0_6], %5 {strides = array<i32>} : memref<32x128xf32, #tpu.memory_space<vmem>>, vector<32x128xf32>,
    return
  }
  func.func @transform_0(%arg0: i32) -> (i32, i32) {
    %c0_i32 = arith.constant 0 : i32
    %c0_i32_0 = arith.constant 0 : i32
    %c0_i32_1 = arith.constant 0 : i32
    return %c0_i32, %c0_i32_0 : i32, i32
  }
  func.func @transform_1(%arg0: i32) -> (i32, i32) {
    %c0_i32 = arith.constant 0 : i32
    %c0_i32_0 = arith.constant 0 : i32
    return %c0_i32, %arg0 : i32, i32
  }
  func.func @transform_2(%arg0: i32) -> (i32, i32) {
    %c0_i32 = arith.constant 0 : i32
    %c0_i32_0 = arith.constant 0 : i32
    %c0_i32_1 = arith.constant 0 : i32
    return %c0_i32, %c0_i32_0 : i32, i32
  }
  func.func @transform_3(%arg0: i32) -> (i32, i32) {
    %c0_i32 = arith.constant 0 : i32
    %c0_i32_0 = arith.constant 0 : i32
    return %c0_i32, %arg0 : i32, i32
  }
}

module attributes {stable_mosaic.version = 11 : i64} {
  func.func @_matmul_t_kernel(%arg0: i32, %arg1: memref<16x288xbf16, #tpu.memory_space<vmem>>, %arg2: memref<288x128xbf16, #tpu.memory_space<vmem>>, %arg3: memref<16x1xf32, #tpu.memory_space<vmem>>, %arg4: memref<16x128xf32, #tpu.memory_space<vmem>>) attributes {dimension_semantics = [#tpu.dimension_semantics<parallel>], iteration_bounds = array<i64: 5>, scalar_prefetch = 0 : i64, scratch_operands = 0 : i64, tpu.core_type = #tpu.core_type<tc>, window_params = [{pipeline_mode = #tpu.pipeline_mode<synchronous>, transform_indices = @transform_0, window_bounds = array<i64: 16, 288>}, {transform_indices = @transform_1, window_bounds = array<i64: 288, 128>}, {pipeline_mode = #tpu.pipeline_mode<synchronous>, transform_indices = @transform_2, window_bounds = array<i64: 16, 1>}, {transform_indices = @transform_3, window_bounds = array<i64: 16, 128>}]} {
    %c0 = arith.constant 0 : index
    %c0_0 = arith.constant 0 : index
    %0 = vector.load %arg1[%c0, %c0_0] : memref<16x288xbf16, #tpu.memory_space<vmem>>, vector<16x288xbf16>
    %c0_1 = arith.constant 0 : index
    %c0_2 = arith.constant 0 : index
    %1 = vector.load %arg2[%c0_1, %c0_2] : memref<288x128xbf16, #tpu.memory_space<vmem>>, vector<288x128xbf16>
    %cst = arith.constant dense<0.000000e+00> : vector<16x128xf32>
    %2 = tpu.matmul %0, %1, %cst {dimension_numbers = #tpu.dot_dimension_numbers<[1], [0], [0], [1], [0, 0, 1, 1], [], []>} : vector<16x288xbf16>, vector<288x128xbf16>, vector<16x128xf32> -> vector<16x128xf32>
    %c0_3 = arith.constant 0 : index
    %c0_4 = arith.constant 0 : index
    %3 = vector.load %arg3[%c0_3, %c0_4] : memref<16x1xf32, #tpu.memory_space<vmem>>, vector<16x1xf32>
    %4 = vector.broadcast %3 : vector<16x1xf32> to vector<16x128xf32>
    %5 = arith.addf %2, %4 : vector<16x128xf32>
    %c0_5 = arith.constant 0 : index
    %c0_6 = arith.constant 0 : index
    %6 = vector.load %arg4[%c0_5, %c0_6] : memref<16x128xf32, #tpu.memory_space<vmem>>, vector<16x128xf32>
    tpu.vector_store %arg4[%c0_5, %c0_6], %5 {strides = array<i32>} : memref<16x128xf32, #tpu.memory_space<vmem>>, vector<16x128xf32>,
    return
  }
  func.func @transform_0(%arg0: i32) -> (i32, i32) {
    %c0_i32 = arith.constant 0 : i32
    %c0_i32_0 = arith.constant 0 : i32
    %c0_i32_1 = arith.constant 0 : i32
    return %c0_i32, %c0_i32_0 : i32, i32
  }
  func.func @transform_1(%arg0: i32) -> (i32, i32) {
    %c0_i32 = arith.constant 0 : i32
    %c0_i32_0 = arith.constant 0 : i32
    return %c0_i32, %arg0 : i32, i32
  }
  func.func @transform_2(%arg0: i32) -> (i32, i32) {
    %c0_i32 = arith.constant 0 : i32
    %c0_i32_0 = arith.constant 0 : i32
    %c0_i32_1 = arith.constant 0 : i32
    return %c0_i32, %c0_i32_0 : i32, i32
  }
  func.func @transform_3(%arg0: i32) -> (i32, i32) {
    %c0_i32 = arith.constant 0 : i32
    %c0_i32_0 = arith.constant 0 : i32
    return %c0_i32, %arg0 : i32, i32
  }
}

module attributes {stable_mosaic.version = 11 : i64} {
  func.func @_matmul_t_kernel(%arg0: i32, %arg1: memref<2x144xbf16, #tpu.memory_space<vmem>>, %arg2: memref<144x128xbf16, #tpu.memory_space<vmem>>, %arg3: memref<2x1xf32, #tpu.memory_space<vmem>>, %arg4: memref<2x128xf32, #tpu.memory_space<vmem>>) attributes {dimension_semantics = [#tpu.dimension_semantics<parallel>], iteration_bounds = array<i64: 12>, scalar_prefetch = 0 : i64, scratch_operands = 0 : i64, tpu.core_type = #tpu.core_type<tc>, window_params = [{pipeline_mode = #tpu.pipeline_mode<synchronous>, transform_indices = @transform_0, window_bounds = array<i64: 2, 144>}, {transform_indices = @transform_1, window_bounds = array<i64: 144, 128>}, {pipeline_mode = #tpu.pipeline_mode<synchronous>, transform_indices = @transform_2, window_bounds = array<i64: 2, 1>}, {transform_indices = @transform_3, window_bounds = array<i64: 2, 128>}]} {
    %c0 = arith.constant 0 : index
    %c0_0 = arith.constant 0 : index
    %0 = vector.load %arg1[%c0, %c0_0] : memref<2x144xbf16, #tpu.memory_space<vmem>>, vector<2x144xbf16>
    %c0_1 = arith.constant 0 : index
    %c0_2 = arith.constant 0 : index
    %1 = vector.load %arg2[%c0_1, %c0_2] : memref<144x128xbf16, #tpu.memory_space<vmem>>, vector<144x128xbf16>
    %cst = arith.constant dense<0.000000e+00> : vector<2x128xf32>
    %2 = tpu.matmul %0, %1, %cst {dimension_numbers = #tpu.dot_dimension_numbers<[1], [0], [0], [1], [0, 0, 1, 1], [], []>} : vector<2x144xbf16>, vector<144x128xbf16>, vector<2x128xf32> -> vector<2x128xf32>
    %c0_3 = arith.constant 0 : index
    %c0_4 = arith.constant 0 : index
    %3 = vector.load %arg3[%c0_3, %c0_4] : memref<2x1xf32, #tpu.memory_space<vmem>>, vector<2x1xf32>
    %4 = vector.broadcast %3 : vector<2x1xf32> to vector<2x128xf32>
    %5 = arith.addf %2, %4 : vector<2x128xf32>
    %c0_5 = arith.constant 0 : index
    %c0_6 = arith.constant 0 : index
    %6 = vector.load %arg4[%c0_5, %c0_6] : memref<2x128xf32, #tpu.memory_space<vmem>>, vector<2x128xf32>
    tpu.vector_store %arg4[%c0_5, %c0_6], %5 {strides = array<i32>} : memref<2x128xf32, #tpu.memory_space<vmem>>, vector<2x128xf32>,
    return
  }
  func.func @transform_0(%arg0: i32) -> (i32, i32) {
    %c0_i32 = arith.constant 0 : i32
    %c0_i32_0 = arith.constant 0 : i32
    %c0_i32_1 = arith.constant 0 : i32
    return %c0_i32, %c0_i32_0 : i32, i32
  }
  func.func @transform_1(%arg0: i32) -> (i32, i32) {
    %c0_i32 = arith.constant 0 : i32
    %c0_i32_0 = arith.constant 0 : i32
    return %c0_i32, %arg0 : i32, i32
  }
  func.func @transform_2(%arg0: i32) -> (i32, i32) {
    %c0_i32 = arith.constant 0 : i32
    %c0_i32_0 = arith.constant 0 : i32
    %c0_i32_1 = arith.constant 0 : i32
    return %c0_i32, %c0_i32_0 : i32, i32
  }
  func.func @transform_3(%arg0: i32) -> (i32, i32) {
    %c0_i32 = arith.constant 0 : i32
    %c0_i32_0 = arith.constant 0 : i32
    return %c0_i32, %arg0 : i32, i32
  }
}

module attributes {stable_mosaic.version = 11 : i64} {
  func.func @_fc_head_kernel(%arg0: i32, %arg1: memref<96x31xf32, #tpu.memory_space<vmem>>, %arg2: memref<31x512xbf16, #tpu.memory_space<vmem>>, %arg3: memref<1x512xf32, #tpu.memory_space<vmem>>, %arg4: memref<512x31xbf16, #tpu.memory_space<vmem>>, %arg5: memref<1x31xf32, #tpu.memory_space<vmem>>, %arg6: memref<96x31xf32, #tpu.memory_space<vmem>>) attributes {dimension_semantics = [#tpu.dimension_semantics<parallel>], iteration_bounds = array<i64: 1>, scalar_prefetch = 0 : i64, scratch_operands = 0 : i64, tpu.core_type = #tpu.core_type<tc>, window_params = [{transform_indices = @transform_0, window_bounds = array<i64: 96, 31>}, {pipeline_mode = #tpu.pipeline_mode<synchronous>, transform_indices = @transform_1, window_bounds = array<i64: 31, 512>}, {pipeline_mode = #tpu.pipeline_mode<synchronous>, transform_indices = @transform_2, window_bounds = array<i64: 1, 512>}, {pipeline_mode = #tpu.pipeline_mode<synchronous>, transform_indices = @transform_3, window_bounds = array<i64: 512, 31>}, {pipeline_mode = #tpu.pipeline_mode<synchronous>, transform_indices = @transform_4, window_bounds = array<i64: 1, 31>}, {transform_indices = @transform_5, window_bounds = array<i64: 96, 31>}]} {
    %c0 = arith.constant 0 : index
    %c0_0 = arith.constant 0 : index
    %0 = vector.load %arg1[%c0, %c0_0] : memref<96x31xf32, #tpu.memory_space<vmem>>, vector<96x31xf32>
    %1 = arith.truncf %0 : vector<96x31xf32> to vector<96x31xbf16>
    %c0_1 = arith.constant 0 : index
    %c0_2 = arith.constant 0 : index
    %2 = vector.load %arg2[%c0_1, %c0_2] : memref<31x512xbf16, #tpu.memory_space<vmem>>, vector<31x512xbf16>
    %cst = arith.constant dense<0.000000e+00> : vector<96x512xf32>
    %3 = tpu.matmul %1, %2, %cst {dimension_numbers = #tpu.dot_dimension_numbers<[1], [0], [0], [1], [0, 0, 1, 1], [], []>} : vector<96x31xbf16>, vector<31x512xbf16>, vector<96x512xf32> -> vector<96x512xf32>
    %c0_3 = arith.constant 0 : index
    %c0_4 = arith.constant 0 : index
    %4 = vector.load %arg3[%c0_3, %c0_4] : memref<1x512xf32, #tpu.memory_space<vmem>>, vector<1x512xf32>
    %5 = vector.broadcast %4 : vector<1x512xf32> to vector<96x512xf32>
    %6 = arith.addf %3, %5 : vector<96x512xf32>
    %7 = math.tanh %6 : vector<96x512xf32>
    %8 = arith.truncf %7 : vector<96x512xf32> to vector<96x512xbf16>
    %c0_5 = arith.constant 0 : index
    %c0_6 = arith.constant 0 : index
    %9 = vector.load %arg4[%c0_5, %c0_6] : memref<512x31xbf16, #tpu.memory_space<vmem>>, vector<512x31xbf16>
    %cst_7 = arith.constant dense<0.000000e+00> : vector<96x31xf32>
    %10 = tpu.matmul %8, %9, %cst_7 {dimension_numbers = #tpu.dot_dimension_numbers<[1], [0], [0], [1], [0, 0, 1, 1], [], []>} : vector<96x512xbf16>, vector<512x31xbf16>, vector<96x31xf32> -> vector<96x31xf32>
    %c0_8 = arith.constant 0 : index
    %c0_9 = arith.constant 0 : index
    %11 = vector.load %arg5[%c0_8, %c0_9] : memref<1x31xf32, #tpu.memory_space<vmem>>, vector<1x31xf32>
    %12 = vector.broadcast %11 : vector<1x31xf32> to vector<96x31xf32>
    %13 = arith.addf %10, %12 : vector<96x31xf32>
    %c0_10 = arith.constant 0 : index
    %c0_11 = arith.constant 0 : index
    %14 = vector.load %arg6[%c0_10, %c0_11] : memref<96x31xf32, #tpu.memory_space<vmem>>, vector<96x31xf32>
    tpu.vector_store %arg6[%c0_10, %c0_11], %13 {strides = array<i32>} : memref<96x31xf32, #tpu.memory_space<vmem>>, vector<96x31xf32>,
    return
  }
  func.func @transform_0(%arg0: i32) -> (i32, i32) {
    %c0_i32 = arith.constant 0 : i32
    %c0_i32_0 = arith.constant 0 : i32
    return %arg0, %c0_i32 : i32, i32
  }
  func.func @transform_1(%arg0: i32) -> (i32, i32) {
    %c0_i32 = arith.constant 0 : i32
    %c0_i32_0 = arith.constant 0 : i32
    %c0_i32_1 = arith.constant 0 : i32
    return %c0_i32, %c0_i32_0 : i32, i32
  }
  func.func @transform_2(%arg0: i32) -> (i32, i32) {
    %c0_i32 = arith.constant 0 : i32
    %c0_i32_0 = arith.constant 0 : i32
    %c0_i32_1 = arith.constant 0 : i32
    return %c0_i32, %c0_i32_0 : i32, i32
  }
  func.func @transform_3(%arg0: i32) -> (i32, i32) {
    %c0_i32 = arith.constant 0 : i32
    %c0_i32_0 = arith.constant 0 : i32
    %c0_i32_1 = arith.constant 0 : i32
    return %c0_i32, %c0_i32_0 : i32, i32
  }
  func.func @transform_4(%arg0: i32) -> (i32, i32) {
    %c0_i32 = arith.constant 0 : i32
    %c0_i32_0 = arith.constant 0 : i32
    %c0_i32_1 = arith.constant 0 : i32
    return %c0_i32, %c0_i32_0 : i32, i32
  }
  func.func @transform_5(%arg0: i32) -> (i32, i32) {
    %c0_i32 = arith.constant 0 : i32
    %c0_i32_0 = arith.constant 0 : i32
    return %arg0, %c0_i32 : i32, i32
  }
}

</mosaic_0001>

<llo_original>
// kernel: conv_trans_forward.10
$region0: #{conv_trans_forward.10}
  #allocation0 [shape = 'u32[]', space=smem, size = 0x4, offset = 0x4, fixed_abs, tag = 'smem constant byte address 0x4 - core index']
  #allocation1 [shape = 'u32[144,128]{1,0:T(1,128)}', space=vmem, size = 0x12000, scoped, tag = 'internal scratch']
  %s0 = inlined_call_operand.vmem [shape: bf16[16,18], index: 0, kind: input, shape index: {}]
  %s1 = inlined_call_operand.vmem [shape: bf16[18,640], index: 1, kind: input, shape index: {}]
  %s2 = inlined_call_operand.vmem [shape: f32[16,1], index: 2, kind: input, shape index: {}]
  %s3 = inlined_call_operand.vmem [shape: f32[16,640], index: 3, kind: output, shape index: {}]
  %s4 = sld [smem:[#allocation0]]
  $region120: #{conv_trans_forward.10} parent=0
    _
  %s6 = ssub.s32 1, %s4
  %s7 = scalar_select 0, %s6, %s4
  $region1: #{conv_trans_forward.10} parent=0
    #allocation2 [shape = 'u8[12288]{0}', space=vmem, size = 0x3000, scoped, tag = 'input window, operand 1']
    #allocation3 [shape = 'u8[16384]{0}', space=vmem, size = 0x4000, scoped, tag = 'output window, operand 0']
    loop: start=0, step=1, limit=7
    $region2: #{conv_trans_forward.10} parent=1 // loop_pre_header
      _
    $region3: #{conv_trans_forward.10} parent=1 // loop_header
      %s9 = sphi 0, %s13
      %p10 = scmp.ge.s32.totalorder %s9, 7
      %s17 = sphi 0, %s17
      %s19 = sphi 0, %s17
      %s20 = sphi 0, %s19
      %s34 = sphi 0, %s20
      %s40 = sphi 0, %s42
      %s43 = sphi 0, %s40
      %s44 = sphi 0, %s43
      %s60 = sphi 0, %s44
      %s64 = sphi 0, %s64
      %s66 = sphi 0, %s64
      %s67 = sphi 0, %s66
      %s81 = sphi 0, %s67
      %s87 = sphi 0, %s89
      %s90 = sphi 0, %s87
      %s91 = sphi 0, %s90
      %s107 = sphi 0, %s91
    $region4: #{conv_trans_forward.10} parent=1 // loop_header_branch
      %12 = sbr.rel (%p10) target = $region8
    $region5: #{conv_trans_forward.10} parent=1 // loop_body
      %s14 = ssub.s32 %s9, 1
      %s15 = ssub.s32 %s9, 2
      %s16 = sadd.s32 %s9, 1
      %s18 = sadd.s32 %s17, 1
      %p21 = scmp.eq.s32.totalorder %s9, 4
      %p22 = scmp.ne.s32.totalorder %s17, %s19
      %p23 = scmp.eq.s32.totalorder %s9, 0
      %p24 = por %p22, %p23
      %p25 = scmp.ne.s32.totalorder %s17, %s19
      %p26 = scmp.eq.s32.totalorder %s14, 4
      %p27 = por %p25, %p26
      %p28 = scmp.ne.s32.totalorder %s19, %s20
      %p29 = scmp.eq.s32.totalorder %s14, 0
      %p30 = por %p28, %p29
      %p31 = scmp.ne.s32.totalorder %s19, %s20
      %p32 = scmp.eq.s32.totalorder %s15, 4
      %p33 = por %p31, %p32
      %p35 = scmp.ne.s32.totalorder %s20, %s34
      %p36 = scmp.eq.s32.totalorder %s15, 0
      %p37 = por %p35, %p36
      %s38 = ssub.s32 %s9, %s16
      %p39 = scmp.eq.s32.totalorder %s38, 0
      %s41 = sadd.s32 %s40, 1
      %s42 = scalar_select %p39, %s40, %s41
      %p45 = pneg %p39
      %p46 = scmp.eq.s32.totalorder %s9, 4
      %p47 = por %p45, %p46
      %p48 = scmp.ne.s32.totalorder %s40, %s43
      %p49 = scmp.eq.s32.totalorder %s9, 0
      %p50 = por %p48, %p49
      %p51 = scmp.ne.s32.totalorder %s40, %s43
      %p52 = scmp.eq.s32.totalorder %s14, 4
      %p53 = por %p51, %p52
      %p54 = scmp.ne.s32.totalorder %s43, %s44
      %p55 = scmp.eq.s32.totalorder %s14, 0
      %p56 = por %p54, %p55
      %p57 = scmp.ne.s32.totalorder %s43, %s44
      %p58 = scmp.eq.s32.totalorder %s15, 4
      %p59 = por %p57, %p58
      %p61 = scmp.ne.s32.totalorder %s44, %s60
      %p62 = scmp.eq.s32.totalorder %s15, 0
      %p63 = por %p61, %p62
      %s65 = sadd.s32 %s64, 1
      %p68 = scmp.eq.s32.totalorder %s9, 4
      %p69 = scmp.ne.s32.totalorder %s64, %s66
      %p70 = scmp.eq.s32.totalorder %s9, 0
      %p71 = por %p69, %p70
      %p72 = scmp.ne.s32.totalorder %s64, %s66
      %p73 = scmp.eq.s32.totalorder %s14, 4
      %p74 = por %p72, %p73
      %p75 = scmp.ne.s32.totalorder %s66, %s67
      %p76 = scmp.eq.s32.totalorder %s14, 0
      %p77 = por %p75, %p76
      %p78 = scmp.ne.s32.totalorder %s66, %s67
      %p79 = scmp.eq.s32.totalorder %s15, 4
      %p80 = por %p78, %p79
      %p82 = scmp.ne.s32.totalorder %s67, %s81
      %p83 = scmp.eq.s32.totalorder %s15, 0
      %p84 = por %p82, %p83
      %s85 = ssub.s32 %s9, %s16
      %p86 = scmp.eq.s32.totalorder %s85, 0
      %s88 = sadd.s32 %s87, 1
      %s89 = scalar_select %p86, %s87, %s88
      %p92 = pneg %p86
      %p93 = scmp.eq.s32.totalorder %s9, 4
      %p94 = por %p92, %p93
      %p95 = scmp.ne.s32.totalorder %s87, %s90
      %p96 = scmp.eq.s32.totalorder %s9, 0
      %p97 = por %p95, %p96
      %p98 = scmp.ne.s32.totalorder %s87, %s90
      %p99 = scmp.eq.s32.totalorder %s14, 4
      %p100 = por %p98, %p99
      %p101 = scmp.ne.s32.totalorder %s90, %s91
      %p102 = scmp.eq.s32.totalorder %s14, 0
      %p103 = por %p101, %p102
      %p104 = scmp.ne.s32.totalorder %s90, %s91
      %p105 = scmp.eq.s32.totalorder %s15, 4
      %p106 = por %p104, %p105
      %p108 = scmp.ne.s32.totalorder %s91, %s107
      %p109 = scmp.eq.s32.totalorder %s15, 0
      %p110 = por %p108, %p109
      %p111 = scmp.le.s32.totalorder 1, %s9
      %p112 = scmp.lt.s32.totalorder %s9, 6
      %p113 = pnand %p111, %p112
      %p114 = pneg %p113
      // Predicated region
      $region9: #{conv_trans_forward.10} parent=5 // pred_check
        _
      $region10: #{conv_trans_forward.10} parent=5 // pred_check_branch
        %116 = sbr.rel (%p113) target = $region12
      $region11: #{conv_trans_forward.10} parent=5 // pred_region
        %s117 = ssub.s32 %s9, 1
        // Predicated region
        $region13: #{conv_trans_forward.10} parent=11 // pred_check
          %p118 = pneg %p30
        $region14: #{conv_trans_forward.10} parent=11 // pred_check_branch
          %120 = sbr.rel (%p118) target = $region16
        $region15: #{conv_trans_forward.10} parent=11 // pred_region
          _
        $region16: #{conv_trans_forward.10} parent=11 // pred_fallthru
          _
        // Predicated region
        $region17: #{conv_trans_forward.10} parent=11 // pred_check
          %p121 = pneg %p77
        $region18: #{conv_trans_forward.10} parent=11 // pred_check_branch
          %123 = sbr.rel (%p121) target = $region20
        $region19: #{conv_trans_forward.10} parent=11 // pred_region
          _
        $region20: #{conv_trans_forward.10} parent=11 // pred_fallthru
          _
      $region12: #{conv_trans_forward.10} parent=5 // pred_fallthru
        _
      %p124 = scmp.lt.s32.totalorder %s9, 5
      // Predicated region
      $region21: #{conv_trans_forward.10} parent=5 // pred_check
        %p125 = pneg %p124
      $region22: #{conv_trans_forward.10} parent=5 // pred_check_branch
        %127 = sbr.rel (%p125) target = $region24
      $region23: #{conv_trans_forward.10} parent=5 // pred_region
        // Predicated region
        $region25: #{conv_trans_forward.10} parent=23 // pred_check
          %p128 = pneg %p50
        $region26: #{conv_trans_forward.10} parent=23 // pred_check_branch
          %130 = sbr.rel (%p128) target = $region28
        $region27: #{conv_trans_forward.10} parent=23 // pred_region
          %s131 = sand.u32 %s40, 1
          %s132 = sand.u32 %s40, 1
          %s133 = smul.addr %s132, 12
          %s134 = scalar_lea.vmem [#allocation2], %s133
          %s135 = smul.addr %s9, 4
          %s136 = scalar_lea.vmem %s1, %s135
          // Predicated region
          $region29: #{conv_trans_forward.10} parent=27 // pred_check
            _
          $region30: #{conv_trans_forward.10} parent=27 // pred_check_branch
            %138 = sbr.rel (0) target = $region32
          $region31: #{conv_trans_forward.10} parent=27 // pred_region
            // Predicated region
            $region33: #{conv_trans_forward.10} parent=31 // pred_check
              _
            $region34: #{conv_trans_forward.10} parent=31 // pred_check_branch
              %140 = sbr.rel target = $region36
            $region35: #{conv_trans_forward.10} parent=31 // pred_region
              // Predicated region
              $region48: #{conv_trans_forward.10} parent=35 // pred_check
                _
              $region49: #{conv_trans_forward.10} parent=35 // pred_check_branch
                %159 = sbr.rel (0) target = $region51
              $region50: #{conv_trans_forward.10} parent=35 // pred_region
                loop: start=0, step=1, limit=1
                $region52: #{conv_trans_forward.10} parent=50 // loop_pre_header
                  _
                $region53: #{conv_trans_forward.10} parent=50 // loop_header
                  %s161 = sphi 0, %s165
                  %p162 = scmp.ge.s32.totalorder %s161, 1
                  %s166 = sphi %s136, %s136
                  %s167 = sphi %s134, %s134
                $region54: #{conv_trans_forward.10} parent=50 // loop_header_branch
                  %164 = sbr.rel (%p162) target = $region58
                $region55: #{conv_trans_forward.10} parent=50 // loop_body
                  _
                $region56: #{conv_trans_forward.10} parent=50 // loop_footer
                  %s165 = sadd.s32 1, %s161
                $region57: #{conv_trans_forward.10} parent=50 // loop_footer_branch
                  %160 = sbr.rel target = $region53
                $region58: #{conv_trans_forward.10} parent=50 // loop_exit
                  _
                loop: start=0, step=1, limit=1
                $region59: #{conv_trans_forward.10} parent=50 // loop_pre_header
                  _
                $region60: #{conv_trans_forward.10} parent=50 // loop_header
                  %s170 = sphi 0, %s174
                  %p171 = scmp.ge.s32.totalorder %s170, 1
                  %s175 = sphi %s136, %s136
                  %s176 = sphi %s134, %s134
                $region61: #{conv_trans_forward.10} parent=50 // loop_header_branch
                  %173 = sbr.rel (%p171) target = $region65
                $region62: #{conv_trans_forward.10} parent=50 // loop_body
                  %v177 = vld [vmem:[%s175] sm:$0xf]
                  %178 = vst [vmem:[%s176] sm:$0xf] %v177
                  %v179 = vld [vmem:[%s175 + $0x14] sm:$0xf]
                  %180 = vst [vmem:[%s176 + $0x4] sm:$0xf] %v179
                  %v181 = vld [vmem:[%s175 + $0x28] sm:$0xf]
                  %182 = vst [vmem:[%s176 + $0x8] sm:$0xf] %v181
                $region63: #{conv_trans_forward.10} parent=50 // loop_footer
                  %s174 = sadd.s32 1, %s170
                $region64: #{conv_trans_forward.10} parent=50 // loop_footer_branch
                  %169 = sbr.rel target = $region60
                $region65: #{conv_trans_forward.10} parent=50 // loop_exit
                  _
              $region51: #{conv_trans_forward.10} parent=35 // pred_fallthru
                _
            $region36: #{conv_trans_forward.10} parent=31 // pred_fallthru
              _
            // Predicated region
            $region37: #{conv_trans_forward.10} parent=31 // pred_check
              _
            $region38: #{conv_trans_forward.10} parent=31 // pred_check_branch
              %142 = sbr.rel (0) target = $region40
            $region39: #{conv_trans_forward.10} parent=31 // pred_region
              loop: start=0, step=1, limit=1
              $region41: #{conv_trans_forward.10} parent=39 // loop_pre_header
                _
              $region42: #{conv_trans_forward.10} parent=39 // loop_header
                %s145 = sphi 0, %s149
                %p146 = scmp.ge.s32.totalorder %s145, 1
                %s150 = sphi %s136, %s136
                %s151 = sphi %s134, %s134
              $region43: #{conv_trans_forward.10} parent=39 // loop_header_branch
                %148 = sbr.rel (%p146) target = $region47
              $region44: #{conv_trans_forward.10} parent=39 // loop_body
                %v152 = vld [vmem:[%s150] sm:$0xf]
                %153 = vst [vmem:[%s151] sm:$0xf] %v152
                %v154 = vld [vmem:[%s150 + $0x14] sm:$0xf]
                %155 = vst [vmem:[%s151 + $0x4] sm:$0xf] %v154
                %v156 = vld [vmem:[%s150 + $0x28] sm:$0xf]
                %157 = vst [vmem:[%s151 + $0x8] sm:$0xf] %v156
              $region45: #{conv_trans_forward.10} parent=39 // loop_footer
                %s149 = sadd.s32 1, %s145
              $region46: #{conv_trans_forward.10} parent=39 // loop_footer_branch
                %144 = sbr.rel target = $region42
              $region47: #{conv_trans_forward.10} parent=39 // loop_exit
                _
            $region40: #{conv_trans_forward.10} parent=31 // pred_fallthru
              _
          $region32: #{conv_trans_forward.10} parent=27 // pred_fallthru
            _
          %183 = vnop
        $region28: #{conv_trans_forward.10} parent=23 // pred_fallthru
          _
      $region24: #{conv_trans_forward.10} parent=5 // pred_fallthru
        _
      %p184 = scmp.le.s32.totalorder 1, %s9
      %p185 = scmp.lt.s32.totalorder %s9, 6
      %p186 = pnand %p184, %p185
      %p187 = pneg %p186
      // Predicated region
      $region66: #{conv_trans_forward.10} parent=5 // pred_check
        _
      $region67: #{conv_trans_forward.10} parent=5 // pred_check_branch
        %189 = sbr.rel (%p186) target = $region69
      $region68: #{conv_trans_forward.10} parent=5 // pred_region
        %s190 = ssub.s32 %s9, 1
        %s191 = sand.u32 %s43, 1
        %s192 = sand.u32 %s43, 1
        %s193 = smul.addr %s192, 12
        %s194 = scalar_lea.vmem [#allocation2], %s193
        // Predicated region
        $region70: #{conv_trans_forward.10} parent=68 // pred_check
          %p195 = pneg %p56
        $region71: #{conv_trans_forward.10} parent=68 // pred_check_branch
          %197 = sbr.rel (%p195) target = $region73
        $region72: #{conv_trans_forward.10} parent=68 // pred_region
          _
        $region73: #{conv_trans_forward.10} parent=68 // pred_fallthru
          _
        %p198 = pneg %p30
        %p199 = pneg %p27
        %s200 = sand.u32 %s43, 1
        %s201 = sand.u32 %s43, 1
        %s202 = smul.addr %s201, 12
        %s203 = scalar_lea.vmem [#allocation2], %s202
        %p204 = pneg %p56
        %p205 = pneg %p53
        %p206 = pneg %p77
        %p207 = pneg %p74
        %p208 = pneg %p103
        %p209 = pneg %p100
        %s210 = sand.u32 %s90, 1
        %s211 = sand.u32 %s90, 1
        %s212 = smul.addr %s211, 16
        %s213 = scalar_lea.vmem [#allocation3], %s212
        %v215 = vld [vmem:[%s0] sm:$0xf]
        %v216 = vld [vmem:[%s0 + $0x4] sm:$0xf]
        %v217 = vld [vmem:[%s194] sm:$0xf]
        %v218 = vld [vmem:[%s194 + $0x4] sm:$0xf]
        %v219 = vld [vmem:[%s194 + $0x8] sm:$0x1]
        %v220 = vld [vmem:[%s2] sm:$0xff]
        %v221 = vld [vmem:[%s2 + $0x8] sm:$0xff]
        %223 = vset.pattern.permute.xlu0 0
        %224 = vperm.xlu0 %223, %v220
        %v225 = vpop.permute.xlu0 %224
        %228 = vset.pattern.permute.xlu0 0
        %229 = vperm.xlu0 %228, %v221
        %v230 = vpop.permute.xlu0 %229
        %v234 = vunpack.c.l.b16 %v215
        %v235 = vunpack.c.l.b16 %v216
        %v236 = vpack.c.b16 %v235, %v234
        %v240 = vunpack.c.l.b16 %v217
        %v241 = vunpack.c.l.b16 %v218
        %v242 = vunpack.c.l.b16 %v219
        %v243 = vpack.c.b16 %v241, %v240
        %v244 = vpack.c.b16 %v242, %v242
        %vm246 = vcmask 146432
        %v248 = vsel %vm246, %v236, 0
        %vm250 = vcmask 1040384
        %v252 = vsel %vm250, %v244, 0
        %254 = vmatprep.subr.bf16.mxu0 0
        %255 = vmatpush1.bf16.msra.mxu0 %v243
        %256 = vmatprep.subr.bf16.mxu0 0
        %257 = vmatpush1.bf16.msra.mxu0 %v252
        %258 = vmatprep.subr.bf16.mxu0 0
        %259 = vmatpush1.bf16.msra.mxu0 0
        %260 = vmatprep.subr.bf16.mxu0 0
        %261 = vmatpush1.bf16.msra.mxu0 0
        %262 = vmatprep.subr.bf16.mxu0 0
        %263 = vmatpush1.bf16.msra.mxu0 0
        %264 = vmatprep.subr.bf16.mxu0 0
        %265 = vmatpush1.bf16.msra.mxu0 0
        %266 = vmatprep.subr.bf16.mxu0 0
        %267 = vmatpush1.bf16.msra.mxu0 0
        %268 = vmatprep.subr.bf16.mxu0 0
        %269 = vmatpush1.bf16.msra.mxu0 0
        %270 = vmatprep.subr.bf16.mxu0 0
        %271 = vmatpush1.bf16.msra.mxu0 0
        %272 = vmatprep.subr.bf16.mxu0 0
        %273 = vmatpush1.bf16.msra.mxu0 0
        %274 = vmatprep.subr.bf16.mxu0 0
        %275 = vmatpush1.bf16.msra.mxu0 0
        %276 = vmatprep.subr.bf16.mxu0 0
        %277 = vmatpush1.bf16.msra.mxu0 0
        %278 = vmatprep.subr.bf16.mxu0 0
        %279 = vmatpush1.bf16.msra.mxu0 0
        %280 = vmatprep.subr.bf16.mxu0 0
        %281 = vmatpush1.bf16.msra.mxu0 0
        %282 = vmatprep.subr.bf16.mxu0 0
        %283 = vmatpush1.bf16.msra.mxu0 0
        %284 = vmatprep.subr.bf16.mxu0 0
        %285 = vmatpush1.bf16.msra.mxu0 0
        %286 = vmatprep.mubr.bf16.mxu0 0
        %287 = vmatmul.mubr.bf16.gmra.mrb[0].mxu0 %v248
        %v288 = vpop.f32.mrb[0].mxu0
        %v289 = vadd.f32 %v225, %v288
        %v290 = vpop.f32.mrb[0].mxu0
        %v291 = vpop.f32.mrb[0].mxu0
        %v292 = vadd.f32 %v230, %v291
        %v293 = vpop.f32.mrb[0].mxu0
        %294 = vdwg.mxu0
        %295 = vst [vmem:[%s213] sm:$0xff] %v289
        %296 = vst [vmem:[%s213 + $0x8] sm:$0xff] %v292
        %s297 = sand.u32 %s90, 1
        %s298 = sand.u32 %s90, 1
        %s299 = smul.addr %s298, 16
        %s300 = scalar_lea.vmem [#allocation3], %s299
        // Predicated region
        $region74: #{conv_trans_forward.10} parent=68 // pred_check
          %p301 = pneg %p100
        $region75: #{conv_trans_forward.10} parent=68 // pred_check_branch
          %303 = sbr.rel (%p301) target = $region77
        $region76: #{conv_trans_forward.10} parent=68 // pred_region
          %s304 = smul.addr %s14, 8
          %s305 = scalar_lea.vmem %s3, %s304
          // Predicated region
          $region78: #{conv_trans_forward.10} parent=76 // pred_check
            _
          $region79: #{conv_trans_forward.10} parent=76 // pred_check_branch
            %307 = sbr.rel (0) target = $region81
          $region80: #{conv_trans_forward.10} parent=76 // pred_region
            // Predicated region
            $region82: #{conv_trans_forward.10} parent=80 // pred_check
              _
            $region83: #{conv_trans_forward.10} parent=80 // pred_check_branch
              %309 = sbr.rel (0) target = $region85
            $region84: #{conv_trans_forward.10} parent=80 // pred_region
              // Predicated region
              $region97: #{conv_trans_forward.10} parent=84 // pred_check
                _
              $region98: #{conv_trans_forward.10} parent=84 // pred_check_branch
                %326 = sbr.rel (0) target = $region100
              $region99: #{conv_trans_forward.10} parent=84 // pred_region
                loop: start=0, step=1, limit=1
                $region101: #{conv_trans_forward.10} parent=99 // loop_pre_header
                  _
                $region102: #{conv_trans_forward.10} parent=99 // loop_header
                  %s328 = sphi 0, %s332
                  %p329 = scmp.ge.s32.totalorder %s328, 1
                  %s333 = sphi %s300, %s300
                  %s334 = sphi %s305, %s305
                $region103: #{conv_trans_forward.10} parent=99 // loop_header_branch
                  %331 = sbr.rel (%p329) target = $region107
                $region104: #{conv_trans_forward.10} parent=99 // loop_body
                  %v335 = vld [vmem:[%s333] sm:$0xff]
                  %336 = vst [vmem:[%s334] sm:$0xff] %v335
                  %v337 = vld [vmem:[%s333 + $0x8] sm:$0xff]
                  %338 = vst [vmem:[%s334 + $0x28] sm:$0xff] %v337
                $region105: #{conv_trans_forward.10} parent=99 // loop_footer
                  %s332 = sadd.s32 1, %s328
                $region106: #{conv_trans_forward.10} parent=99 // loop_footer_branch
                  %327 = sbr.rel target = $region102
                $region107: #{conv_trans_forward.10} parent=99 // loop_exit
                  _
              $region100: #{conv_trans_forward.10} parent=84 // pred_fallthru
                _
              // Predicated region
              $region108: #{conv_trans_forward.10} parent=84 // pred_check
                _
              $region109: #{conv_trans_forward.10} parent=84 // pred_check_branch
                %340 = sbr.rel target = $region111
              $region110: #{conv_trans_forward.10} parent=84 // pred_region
                _
              $region111: #{conv_trans_forward.10} parent=84 // pred_fallthru
                _
            $region85: #{conv_trans_forward.10} parent=80 // pred_fallthru
              _
            // Predicated region
            $region86: #{conv_trans_forward.10} parent=80 // pred_check
              _
            $region87: #{conv_trans_forward.10} parent=80 // pred_check_branch
              %311 = sbr.rel target = $region89
            $region88: #{conv_trans_forward.10} parent=80 // pred_region
              loop: start=0, step=1, limit=1
              $region90: #{conv_trans_forward.10} parent=88 // loop_pre_header
                _
              $region91: #{conv_trans_forward.10} parent=88 // loop_header
                %s314 = sphi 0, %s318
                %p315 = scmp.ge.s32.totalorder %s314, 1
                %s319 = sphi %s300, %s300
                %s320 = sphi %s305, %s305
              $region92: #{conv_trans_forward.10} parent=88 // loop_header_branch
                %317 = sbr.rel (%p315) target = $region96
              $region93: #{conv_trans_forward.10} parent=88 // loop_body
                %v321 = vld [vmem:[%s319] sm:$0xff]
                %322 = vst [vmem:[%s320] sm:$0xff] %v321
                %v323 = vld [vmem:[%s319 + $0x8] sm:$0xff]
                %324 = vst [vmem:[%s320 + $0x28] sm:$0xff] %v323
              $region94: #{conv_trans_forward.10} parent=88 // loop_footer
                %s318 = sadd.s32 1, %s314
              $region95: #{conv_trans_forward.10} parent=88 // loop_footer_branch
                %313 = sbr.rel target = $region91
              $region96: #{conv_trans_forward.10} parent=88 // loop_exit
                _
            $region89: #{conv_trans_forward.10} parent=80 // pred_fallthru
              _
          $region81: #{conv_trans_forward.10} parent=76 // pred_fallthru
            _
          %341 = vnop
        $region77: #{conv_trans_forward.10} parent=68 // pred_fallthru
          _
      $region69: #{conv_trans_forward.10} parent=5 // pred_fallthru
        _
      %p342 = scmp.le.s32.totalorder 2, %s9
      // Predicated region
      $region112: #{conv_trans_forward.10} parent=5 // pred_check
        %p343 = pneg %p342
      $region113: #{conv_trans_forward.10} parent=5 // pred_check_branch
        %345 = sbr.rel (%p343) target = $region115
      $region114: #{conv_trans_forward.10} parent=5 // pred_region
        %s346 = ssub.s32 %s9, 2
        // Predicated region
        $region116: #{conv_trans_forward.10} parent=114 // pred_check
          %p347 = pneg %p106
        $region117: #{conv_trans_forward.10} parent=114 // pred_check_branch
          %349 = sbr.rel (%p347) target = $region119
        $region118: #{conv_trans_forward.10} parent=114 // pred_region
          %s350 = sand.u32 %s91, 1
          %s351 = sand.u32 %s91, 1
          %s352 = smul.addr %s351, 16
          %s353 = scalar_lea.vmem [#allocation3], %s352
        $region119: #{conv_trans_forward.10} parent=114 // pred_fallthru
          _
      $region115: #{conv_trans_forward.10} parent=5 // pred_fallthru
        _
    $region6: #{conv_trans_forward.10} parent=1 // loop_footer
      %s13 = sadd.s32 1, %s9
    $region7: #{conv_trans_forward.10} parent=1 // loop_footer_branch
      %8 = sbr.rel target = $region3
    $region8: #{conv_trans_forward.10} parent=1 // loop_exit
      _

// kernel: conv_trans_forward.11
$region0: #{conv_trans_forward.11}
  #allocation0 [shape = 'u32[]', space=smem, size = 0x4, offset = 0x4, fixed_abs, tag = 'smem constant byte address 0x4 - core index']
  #allocation1 [shape = 'u32[144,128]{1,0:T(1,128)}', space=vmem, size = 0x12000, scoped, tag = 'internal scratch']
  %s0 = inlined_call_operand.vmem [shape: bf16[32,144], index: 0, kind: input, shape index: {}]
  %s1 = inlined_call_operand.vmem [shape: bf16[144,256], index: 1, kind: input, shape index: {}]
  %s2 = inlined_call_operand.vmem [shape: f32[32,1], index: 2, kind: input, shape index: {}]
  %s3 = inlined_call_operand.vmem [shape: f32[32,256], index: 3, kind: output, shape index: {}]
  %s4 = sld [smem:[#allocation0]]
  $region120: #{conv_trans_forward.11} parent=0
    _
  %s6 = ssub.s32 1, %s4
  %s7 = scalar_select 0, %s6, %s4
  $region1: #{conv_trans_forward.11} parent=0
    #allocation2 [shape = 'u8[73728]{0}', space=vmem, size = 0x12000, scoped, tag = 'input window, operand 1']
    #allocation3 [shape = 'u8[32768]{0}', space=vmem, size = 0x8000, scoped, tag = 'output window, operand 0']
    loop: start=0, step=1, limit=4
    $region2: #{conv_trans_forward.11} parent=1 // loop_pre_header
      _
    $region3: #{conv_trans_forward.11} parent=1 // loop_header
      %s9 = sphi 0, %s13
      %p10 = scmp.ge.s32.totalorder %s9, 4
      %s17 = sphi 0, %s17
      %s19 = sphi 0, %s17
      %s20 = sphi 0, %s19
      %s34 = sphi 0, %s20
      %s40 = sphi 0, %s42
      %s43 = sphi 0, %s40
      %s44 = sphi 0, %s43
      %s60 = sphi 0, %s44
      %s64 = sphi 0, %s64
      %s66 = sphi 0, %s64
      %s67 = sphi 0, %s66
      %s81 = sphi 0, %s67
      %s87 = sphi 0, %s89
      %s90 = sphi 0, %s87
      %s91 = sphi 0, %s90
      %s107 = sphi 0, %s91
    $region4: #{conv_trans_forward.11} parent=1 // loop_header_branch
      %12 = sbr.rel (%p10) target = $region8
    $region5: #{conv_trans_forward.11} parent=1 // loop_body
      %s14 = ssub.s32 %s9, 1
      %s15 = ssub.s32 %s9, 2
      %s16 = sadd.s32 %s9, 1
      %s18 = sadd.s32 %s17, 1
      %p21 = scmp.eq.s32.totalorder %s9, 1
      %p22 = scmp.ne.s32.totalorder %s17, %s19
      %p23 = scmp.eq.s32.totalorder %s9, 0
      %p24 = por %p22, %p23
      %p25 = scmp.ne.s32.totalorder %s17, %s19
      %p26 = scmp.eq.s32.totalorder %s14, 1
      %p27 = por %p25, %p26
      %p28 = scmp.ne.s32.totalorder %s19, %s20
      %p29 = scmp.eq.s32.totalorder %s14, 0
      %p30 = por %p28, %p29
      %p31 = scmp.ne.s32.totalorder %s19, %s20
      %p32 = scmp.eq.s32.totalorder %s15, 1
      %p33 = por %p31, %p32
      %p35 = scmp.ne.s32.totalorder %s20, %s34
      %p36 = scmp.eq.s32.totalorder %s15, 0
      %p37 = por %p35, %p36
      %s38 = ssub.s32 %s9, %s16
      %p39 = scmp.eq.s32.totalorder %s38, 0
      %s41 = sadd.s32 %s40, 1
      %s42 = scalar_select %p39, %s40, %s41
      %p45 = pneg %p39
      %p46 = scmp.eq.s32.totalorder %s9, 1
      %p47 = por %p45, %p46
      %p48 = scmp.ne.s32.totalorder %s40, %s43
      %p49 = scmp.eq.s32.totalorder %s9, 0
      %p50 = por %p48, %p49
      %p51 = scmp.ne.s32.totalorder %s40, %s43
      %p52 = scmp.eq.s32.totalorder %s14, 1
      %p53 = por %p51, %p52
      %p54 = scmp.ne.s32.totalorder %s43, %s44
      %p55 = scmp.eq.s32.totalorder %s14, 0
      %p56 = por %p54, %p55
      %p57 = scmp.ne.s32.totalorder %s43, %s44
      %p58 = scmp.eq.s32.totalorder %s15, 1
      %p59 = por %p57, %p58
      %p61 = scmp.ne.s32.totalorder %s44, %s60
      %p62 = scmp.eq.s32.totalorder %s15, 0
      %p63 = por %p61, %p62
      %s65 = sadd.s32 %s64, 1
      %p68 = scmp.eq.s32.totalorder %s9, 1
      %p69 = scmp.ne.s32.totalorder %s64, %s66
      %p70 = scmp.eq.s32.totalorder %s9, 0
      %p71 = por %p69, %p70
      %p72 = scmp.ne.s32.totalorder %s64, %s66
      %p73 = scmp.eq.s32.totalorder %s14, 1
      %p74 = por %p72, %p73
      %p75 = scmp.ne.s32.totalorder %s66, %s67
      %p76 = scmp.eq.s32.totalorder %s14, 0
      %p77 = por %p75, %p76
      %p78 = scmp.ne.s32.totalorder %s66, %s67
      %p79 = scmp.eq.s32.totalorder %s15, 1
      %p80 = por %p78, %p79
      %p82 = scmp.ne.s32.totalorder %s67, %s81
      %p83 = scmp.eq.s32.totalorder %s15, 0
      %p84 = por %p82, %p83
      %s85 = ssub.s32 %s9, %s16
      %p86 = scmp.eq.s32.totalorder %s85, 0
      %s88 = sadd.s32 %s87, 1
      %s89 = scalar_select %p86, %s87, %s88
      %p92 = pneg %p86
      %p93 = scmp.eq.s32.totalorder %s9, 1
      %p94 = por %p92, %p93
      %p95 = scmp.ne.s32.totalorder %s87, %s90
      %p96 = scmp.eq.s32.totalorder %s9, 0
      %p97 = por %p95, %p96
      %p98 = scmp.ne.s32.totalorder %s87, %s90
      %p99 = scmp.eq.s32.totalorder %s14, 1
      %p100 = por %p98, %p99
      %p101 = scmp.ne.s32.totalorder %s90, %s91
      %p102 = scmp.eq.s32.totalorder %s14, 0
      %p103 = por %p101, %p102
      %p104 = scmp.ne.s32.totalorder %s90, %s91
      %p105 = scmp.eq.s32.totalorder %s15, 1
      %p106 = por %p104, %p105
      %p108 = scmp.ne.s32.totalorder %s91, %s107
      %p109 = scmp.eq.s32.totalorder %s15, 0
      %p110 = por %p108, %p109
      %p111 = scmp.le.s32.totalorder 1, %s9
      %p112 = scmp.lt.s32.totalorder %s9, 3
      %p113 = pnand %p111, %p112
      %p114 = pneg %p113
      // Predicated region
      $region9: #{conv_trans_forward.11} parent=5 // pred_check
        _
      $region10: #{conv_trans_forward.11} parent=5 // pred_check_branch
        %116 = sbr.rel (%p113) target = $region12
      $region11: #{conv_trans_forward.11} parent=5 // pred_region
        %s117 = ssub.s32 %s9, 1
        // Predicated region
        $region13: #{conv_trans_forward.11} parent=11 // pred_check
          %p118 = pneg %p30
        $region14: #{conv_trans_forward.11} parent=11 // pred_check_branch
          %120 = sbr.rel (%p118) target = $region16
        $region15: #{conv_trans_forward.11} parent=11 // pred_region
          _
        $region16: #{conv_trans_forward.11} parent=11 // pred_fallthru
          _
        // Predicated region
        $region17: #{conv_trans_forward.11} parent=11 // pred_check
          %p121 = pneg %p77
        $region18: #{conv_trans_forward.11} parent=11 // pred_check_branch
          %123 = sbr.rel (%p121) target = $region20
        $region19: #{conv_trans_forward.11} parent=11 // pred_region
          _
        $region20: #{conv_trans_forward.11} parent=11 // pred_fallthru
          _
      $region12: #{conv_trans_forward.11} parent=5 // pred_fallthru
        _
      %p124 = scmp.lt.s32.totalorder %s9, 2
      // Predicated region
      $region21: #{conv_trans_forward.11} parent=5 // pred_check
        %p125 = pneg %p124
      $region22: #{conv_trans_forward.11} parent=5 // pred_check_branch
        %127 = sbr.rel (%p125) target = $region24
      $region23: #{conv_trans_forward.11} parent=5 // pred_region
        // Predicated region
        $region25: #{conv_trans_forward.11} parent=23 // pred_check
          %p128 = pneg %p50
        $region26: #{conv_trans_forward.11} parent=23 // pred_check_branch
          %130 = sbr.rel (%p128) target = $region28
        $region27: #{conv_trans_forward.11} parent=23 // pred_region
          %s131 = sand.u32 %s40, 1
          %s132 = sand.u32 %s40, 1
          %s133 = smul.addr %s132, 72
          %s134 = scalar_lea.vmem [#allocation2], %s133
          %s135 = smul.addr %s9, 4
          %s136 = scalar_lea.vmem %s1, %s135
          // Predicated region
          $region29: #{conv_trans_forward.11} parent=27 // pred_check
            _
          $region30: #{conv_trans_forward.11} parent=27 // pred_check_branch
            %138 = sbr.rel (0) target = $region32
          $region31: #{conv_trans_forward.11} parent=27 // pred_region
            // Predicated region
            $region33: #{conv_trans_forward.11} parent=31 // pred_check
              _
            $region34: #{conv_trans_forward.11} parent=31 // pred_check_branch
              %140 = sbr.rel target = $region36
            $region35: #{conv_trans_forward.11} parent=31 // pred_region
              // Predicated region
              $region48: #{conv_trans_forward.11} parent=35 // pred_check
                _
              $region49: #{conv_trans_forward.11} parent=35 // pred_check_branch
                %189 = sbr.rel (0) target = $region51
              $region50: #{conv_trans_forward.11} parent=35 // pred_region
                loop: start=0, step=1, limit=1
                $region52: #{conv_trans_forward.11} parent=50 // loop_pre_header
                  _
                $region53: #{conv_trans_forward.11} parent=50 // loop_header
                  %s191 = sphi 0, %s195
                  %p192 = scmp.ge.s32.totalorder %s191, 1
                  %s196 = sphi %s136, %s136
                  %s197 = sphi %s134, %s134
                $region54: #{conv_trans_forward.11} parent=50 // loop_header_branch
                  %194 = sbr.rel (%p192) target = $region58
                $region55: #{conv_trans_forward.11} parent=50 // loop_body
                  _
                $region56: #{conv_trans_forward.11} parent=50 // loop_footer
                  %s195 = sadd.s32 1, %s191
                $region57: #{conv_trans_forward.11} parent=50 // loop_footer_branch
                  %190 = sbr.rel target = $region53
                $region58: #{conv_trans_forward.11} parent=50 // loop_exit
                  _
                loop: start=0, step=1, limit=1
                $region59: #{conv_trans_forward.11} parent=50 // loop_pre_header
                  _
                $region60: #{conv_trans_forward.11} parent=50 // loop_header
                  %s200 = sphi 0, %s204
                  %p201 = scmp.ge.s32.totalorder %s200, 1
                  %s205 = sphi %s136, %s136
                  %s206 = sphi %s134, %s134
                $region61: #{conv_trans_forward.11} parent=50 // loop_header_branch
                  %203 = sbr.rel (%p201) target = $region65
                $region62: #{conv_trans_forward.11} parent=50 // loop_body
                  %v207 = vld [vmem:[%s205] sm:$0xf]
                  %208 = vst [vmem:[%s206] sm:$0xf] %v207
                  %v209 = vld [vmem:[%s205 + $0x8] sm:$0xf]
                  %210 = vst [vmem:[%s206 + $0x4] sm:$0xf] %v209
                  %v211 = vld [vmem:[%s205 + $0x10] sm:$0xf]
                  %212 = vst [vmem:[%s206 + $0x8] sm:$0xf] %v211
                  %v213 = vld [vmem:[%s205 + $0x18] sm:$0xf]
                  %214 = vst [vmem:[%s206 + $0xc] sm:$0xf] %v213
                  %v215 = vld [vmem:[%s205 + $0x20] sm:$0xf]
                  %216 = vst [vmem:[%s206 + $0x10] sm:$0xf] %v215
                  %v217 = vld [vmem:[%s205 + $0x28] sm:$0xf]
                  %218 = vst [vmem:[%s206 + $0x14] sm:$0xf] %v217
                  %v219 = vld [vmem:[%s205 + $0x30] sm:$0xf]
                  %220 = vst [vmem:[%s206 + $0x18] sm:$0xf] %v219
                  %v221 = vld [vmem:[%s205 + $0x38] sm:$0xf]
                  %222 = vst [vmem:[%s206 + $0x1c] sm:$0xf] %v221
                  %v223 = vld [vmem:[%s205 + $0x40] sm:$0xf]
                  %224 = vst [vmem:[%s206 + $0x20] sm:$0xf] %v223
                  %v225 = vld [vmem:[%s205 + $0x48] sm:$0xf]
                  %226 = vst [vmem:[%s206 + $0x24] sm:$0xf] %v225
                  %v227 = vld [vmem:[%s205 + $0x50] sm:$0xf]
                  %228 = vst [vmem:[%s206 + $0x28] sm:$0xf] %v227
                  %v229 = vld [vmem:[%s205 + $0x58] sm:$0xf]
                  %230 = vst [vmem:[%s206 + $0x2c] sm:$0xf] %v229
                  %v231 = vld [vmem:[%s205 + $0x60] sm:$0xf]
                  %232 = vst [vmem:[%s206 + $0x30] sm:$0xf] %v231
                  %v233 = vld [vmem:[%s205 + $0x68] sm:$0xf]
                  %234 = vst [vmem:[%s206 + $0x34] sm:$0xf] %v233
                  %v235 = vld [vmem:[%s205 + $0x70] sm:$0xf]
                  %236 = vst [vmem:[%s206 + $0x38] sm:$0xf] %v235
                  %v237 = vld [vmem:[%s205 + $0x78] sm:$0xf]
                  %238 = vst [vmem:[%s206 + $0x3c] sm:$0xf] %v237
                  %v239 = vld [vmem:[%s205 + $0x80] sm:$0xf]
                  %240 = vst [vmem:[%s206 + $0x40] sm:$0xf] %v239
                  %v241 = vld [vmem:[%s205 + $0x88] sm:$0xf]
                  %242 = vst [vmem:[%s206 + $0x44] sm:$0xf] %v241
                $region63: #{conv_trans_forward.11} parent=50 // loop_footer
                  %s204 = sadd.s32 1, %s200
                $region64: #{conv_trans_forward.11} parent=50 // loop_footer_branch
                  %199 = sbr.rel target = $region60
                $region65: #{conv_trans_forward.11} parent=50 // loop_exit
                  _
              $region51: #{conv_trans_forward.11} parent=35 // pred_fallthru
                _
            $region36: #{conv_trans_forward.11} parent=31 // pred_fallthru
              _
            // Predicated region
            $region37: #{conv_trans_forward.11} parent=31 // pred_check
              _
            $region38: #{conv_trans_forward.11} parent=31 // pred_check_branch
              %142 = sbr.rel (0) target = $region40
            $region39: #{conv_trans_forward.11} parent=31 // pred_region
              loop: start=0, step=1, limit=1
              $region41: #{conv_trans_forward.11} parent=39 // loop_pre_header
                _
              $region42: #{conv_trans_forward.11} parent=39 // loop_header
                %s145 = sphi 0, %s149
                %p146 = scmp.ge.s32.totalorder %s145, 1
                %s150 = sphi %s136, %s136
                %s151 = sphi %s134, %s134
              $region43: #{conv_trans_forward.11} parent=39 // loop_header_branch
                %148 = sbr.rel (%p146) target = $region47
              $region44: #{conv_trans_forward.11} parent=39 // loop_body
                %v152 = vld [vmem:[%s150] sm:$0xf]
                %153 = vst [vmem:[%s151] sm:$0xf] %v152
                %v154 = vld [vmem:[%s150 + $0x8] sm:$0xf]
                %155 = vst [vmem:[%s151 + $0x4] sm:$0xf] %v154
                %v156 = vld [vmem:[%s150 + $0x10] sm:$0xf]
                %157 = vst [vmem:[%s151 + $0x8] sm:$0xf] %v156
                %v158 = vld [vmem:[%s150 + $0x18] sm:$0xf]
                %159 = vst [vmem:[%s151 + $0xc] sm:$0xf] %v158
                %v160 = vld [vmem:[%s150 + $0x20] sm:$0xf]
                %161 = vst [vmem:[%s151 + $0x10] sm:$0xf] %v160
                %v162 = vld [vmem:[%s150 + $0x28] sm:$0xf]
                %163 = vst [vmem:[%s151 + $0x14] sm:$0xf] %v162
                %v164 = vld [vmem:[%s150 + $0x30] sm:$0xf]
                %165 = vst [vmem:[%s151 + $0x18] sm:$0xf] %v164
                %v166 = vld [vmem:[%s150 + $0x38] sm:$0xf]
                %167 = vst [vmem:[%s151 + $0x1c] sm:$0xf] %v166
                %v168 = vld [vmem:[%s150 + $0x40] sm:$0xf]
                %169 = vst [vmem:[%s151 + $0x20] sm:$0xf] %v168
                %v170 = vld [vmem:[%s150 + $0x48] sm:$0xf]
                %171 = vst [vmem:[%s151 + $0x24] sm:$0xf] %v170
                %v172 = vld [vmem:[%s150 + $0x50] sm:$0xf]
                %173 = vst [vmem:[%s151 + $0x28] sm:$0xf] %v172
                %v174 = vld [vmem:[%s150 + $0x58] sm:$0xf]
                %175 = vst [vmem:[%s151 + $0x2c] sm:$0xf] %v174
                %v176 = vld [vmem:[%s150 + $0x60] sm:$0xf]
                %177 = vst [vmem:[%s151 + $0x30] sm:$0xf] %v176
                %v178 = vld [vmem:[%s150 + $0x68] sm:$0xf]
                %179 = vst [vmem:[%s151 + $0x34] sm:$0xf] %v178
                %v180 = vld [vmem:[%s150 + $0x70] sm:$0xf]
                %181 = vst [vmem:[%s151 + $0x38] sm:$0xf] %v180
                %v182 = vld [vmem:[%s150 + $0x78] sm:$0xf]
                %183 = vst [vmem:[%s151 + $0x3c] sm:$0xf] %v182
                %v184 = vld [vmem:[%s150 + $0x80] sm:$0xf]
                %185 = vst [vmem:[%s151 + $0x40] sm:$0xf] %v184
                %v186 = vld [vmem:[%s150 + $0x88] sm:$0xf]
                %187 = vst [vmem:[%s151 + $0x44] sm:$0xf] %v186
              $region45: #{conv_trans_forward.11} parent=39 // loop_footer
                %s149 = sadd.s32 1, %s145
              $region46: #{conv_trans_forward.11} parent=39 // loop_footer_branch
                %144 = sbr.rel target = $region42
              $region47: #{conv_trans_forward.11} parent=39 // loop_exit
                _
            $region40: #{conv_trans_forward.11} parent=31 // pred_fallthru
              _
          $region32: #{conv_trans_forward.11} parent=27 // pred_fallthru
            _
          %243 = vnop
        $region28: #{conv_trans_forward.11} parent=23 // pred_fallthru
          _
      $region24: #{conv_trans_forward.11} parent=5 // pred_fallthru
        _
      %p244 = scmp.le.s32.totalorder 1, %s9
      %p245 = scmp.lt.s32.totalorder %s9, 3
      %p246 = pnand %p244, %p245
      %p247 = pneg %p246
      // Predicated region
      $region66: #{conv_trans_forward.11} parent=5 // pred_check
        _
      $region67: #{conv_trans_forward.11} parent=5 // pred_check_branch
        %249 = sbr.rel (%p246) target = $region69
      $region68: #{conv_trans_forward.11} parent=5 // pred_region
        %s250 = ssub.s32 %s9, 1
        %s251 = sand.u32 %s43, 1
        %s252 = sand.u32 %s43, 1
        %s253 = smul.addr %s252, 72
        %s254 = scalar_lea.vmem [#allocation2], %s253
        // Predicated region
        $region70: #{conv_trans_forward.11} parent=68 // pred_check
          %p255 = pneg %p56
        $region71: #{conv_trans_forward.11} parent=68 // pred_check_branch
          %257 = sbr.rel (%p255) target = $region73
        $region72: #{conv_trans_forward.11} parent=68 // pred_region
          _
        $region73: #{conv_trans_forward.11} parent=68 // pred_fallthru
          _
        %p258 = pneg %p30
        %p259 = pneg %p27
        %s260 = sand.u32 %s43, 1
        %s261 = sand.u32 %s43, 1
        %s262 = smul.addr %s261, 72
        %s263 = scalar_lea.vmem [#allocation2], %s262
        %p264 = pneg %p56
        %p265 = pneg %p53
        %p266 = pneg %p77
        %p267 = pneg %p74
        %p268 = pneg %p103
        %p269 = pneg %p100
        %s270 = sand.u32 %s90, 1
        %s271 = sand.u32 %s90, 1
        %s272 = smul.addr %s271, 32
        %s273 = scalar_lea.vmem [#allocation3], %s272
        %v275 = vld [vmem:[%s0] sm:$0xff]
        %v276 = vld [vmem:[%s0 + $0x8] sm:$0xff]
        %v277 = vld [vmem:[%s0 + $0x10] sm:$0xff]
        %v278 = vld [vmem:[%s0 + $0x18] sm:$0xff]
        %v279 = vld [vmem:[%s254] sm:$0xf]
        %v280 = vld [vmem:[%s254 + $0x4] sm:$0xf]
        %v281 = vld [vmem:[%s254 + $0x8] sm:$0xf]
        %v282 = vld [vmem:[%s254 + $0xc] sm:$0xf]
        %v283 = vld [vmem:[%s254 + $0x10] sm:$0xf]
        %v284 = vld [vmem:[%s254 + $0x14] sm:$0xf]
        %v285 = vld [vmem:[%s254 + $0x18] sm:$0xf]
        %v286 = vld [vmem:[%s254 + $0x1c] sm:$0xf]
        %v287 = vld [vmem:[%s254 + $0x20] sm:$0xf]
        %v288 = vld [vmem:[%s254 + $0x24] sm:$0xf]
        %v289 = vld [vmem:[%s254 + $0x28] sm:$0xf]
        %v290 = vld [vmem:[%s254 + $0x2c] sm:$0xf]
        %v291 = vld [vmem:[%s254 + $0x30] sm:$0xf]
        %v292 = vld [vmem:[%s254 + $0x34] sm:$0xf]
        %v293 = vld [vmem:[%s254 + $0x38] sm:$0xf]
        %v294 = vld [vmem:[%s254 + $0x3c] sm:$0xf]
        %v295 = vld [vmem:[%s254 + $0x40] sm:$0xf]
        %v296 = vld [vmem:[%s254 + $0x44] sm:$0xf]
        %v297 = vld [vmem:[%s2] sm:$0xff]
        %v298 = vld [vmem:[%s2 + $0x8] sm:$0xff]
        %v299 = vld [vmem:[%s2 + $0x10] sm:$0xff]
        %v300 = vld [vmem:[%s2 + $0x18] sm:$0xff]
        %302 = vset.pattern.permute.xlu0 0
        %303 = vperm.xlu0 %302, %v297
        %v304 = vpop.permute.xlu0 %303
        %307 = vset.pattern.permute.xlu0 0
        %308 = vperm.xlu0 %307, %v298
        %v309 = vpop.permute.xlu0 %308
        %312 = vset.pattern.permute.xlu0 0
        %313 = vperm.xlu0 %312, %v299
        %v314 = vpop.permute.xlu0 %313
        %317 = vset.pattern.permute.xlu0 0
        %318 = vperm.xlu0 %317, %v300
        %v319 = vpop.permute.xlu0 %318
        %v325 = vunpack.c.l.b16 %v275
        %v326 = vunpack.c.h.b16 %v275
        %v327 = vunpack.c.l.b16 %v276
        %v328 = vunpack.c.h.b16 %v276
        %v329 = vunpack.c.l.b16 %v277
        %v330 = vunpack.c.h.b16 %v277
        %v331 = vunpack.c.l.b16 %v278
        %v332 = vunpack.c.h.b16 %v278
        %v333 = vpack.c.b16 %v327, %v325
        %v334 = vpack.c.b16 %v328, %v326
        %v335 = vpack.c.b16 %v331, %v329
        %v336 = vpack.c.b16 %v332, %v330
        %v357 = vunpack.c.l.b16 %v279
        %v358 = vunpack.c.l.b16 %v280
        %v359 = vunpack.c.l.b16 %v281
        %v360 = vunpack.c.l.b16 %v282
        %v361 = vunpack.c.l.b16 %v283
        %v362 = vunpack.c.l.b16 %v284
        %v363 = vunpack.c.l.b16 %v285
        %v364 = vunpack.c.l.b16 %v286
        %v365 = vunpack.c.l.b16 %v287
        %v366 = vunpack.c.l.b16 %v288
        %v367 = vunpack.c.l.b16 %v289
        %v368 = vunpack.c.l.b16 %v290
        %v369 = vunpack.c.l.b16 %v291
        %v370 = vunpack.c.l.b16 %v292
        %v371 = vunpack.c.l.b16 %v293
        %v372 = vunpack.c.l.b16 %v294
        %v373 = vunpack.c.l.b16 %v295
        %v374 = vunpack.c.l.b16 %v296
        %v375 = vpack.c.b16 %v358, %v357
        %v376 = vpack.c.b16 %v360, %v359
        %v377 = vpack.c.b16 %v362, %v361
        %v378 = vpack.c.b16 %v364, %v363
        %v379 = vpack.c.b16 %v366, %v365
        %v380 = vpack.c.b16 %v368, %v367
        %v381 = vpack.c.b16 %v370, %v369
        %v382 = vpack.c.b16 %v372, %v371
        %v383 = vpack.c.b16 %v374, %v373
        %vm393 = vcmask 130048
        %v395 = vsel %vm393, %v334, 0
        %v398 = vsel %vm393, %v336, 0
        %400 = vmatprep.subr.bf16.mxu0 0
        %401 = vmatpush1.bf16.msra.mxu0 %v375
        %402 = vmatprep.subr.bf16.mxu0 0
        %403 = vmatpush1.bf16.msra.mxu0 %v376
        %404 = vmatprep.subr.bf16.mxu0 0
        %405 = vmatpush1.bf16.msra.mxu0 %v377
        %406 = vmatprep.subr.bf16.mxu0 0
        %407 = vmatpush1.bf16.msra.mxu0 %v378
        %408 = vmatprep.subr.bf16.mxu0 0
        %409 = vmatpush1.bf16.msra.mxu0 %v379
        %410 = vmatprep.subr.bf16.mxu0 0
        %411 = vmatpush1.bf16.msra.mxu0 %v380
        %412 = vmatprep.subr.bf16.mxu0 0
        %413 = vmatpush1.bf16.msra.mxu0 %v381
        %414 = vmatprep.subr.bf16.mxu0 0
        %415 = vmatpush1.bf16.msra.mxu0 %v382
        %416 = vmatprep.subr.bf16.mxu0 0
        %417 = vmatpush1.bf16.msra.mxu0 %v383
        %418 = vmatprep.subr.bf16.mxu0 0
        %419 = vmatpush1.bf16.msra.mxu0 0
        %420 = vmatprep.subr.bf16.mxu0 0
        %421 = vmatpush1.bf16.msra.mxu0 0
        %422 = vmatprep.subr.bf16.mxu0 0
        %423 = vmatpush1.bf16.msra.mxu0 0
        %424 = vmatprep.subr.bf16.mxu0 0
        %425 = vmatpush1.bf16.msra.mxu0 0
        %426 = vmatprep.subr.bf16.mxu0 0
        %427 = vmatpush1.bf16.msra.mxu0 0
        %428 = vmatprep.subr.bf16.mxu0 0
        %429 = vmatpush1.bf16.msra.mxu0 0
        %430 = vmatprep.subr.bf16.mxu0 0
        %431 = vmatpush1.bf16.msra.mxu0 0
        %432 = vmatprep.mubr.bf16.mxu0 %v395
        %433 = vmatmul.mubr.bf16.gmra.mrb[0].mxu0 %v333
        %v434 = vpop.f32.mrb[0].mxu0
        %v435 = vadd.f32 %v304, %v434
        %v436 = vpop.f32.mrb[0].mxu0
        %v437 = vpop.f32.mrb[0].mxu0
        %v438 = vadd.f32 %v309, %v437
        %v439 = vpop.f32.mrb[0].mxu0
        %440 = vmatprep.mubr.bf16.mxu0 %v398
        %441 = vmatmul.mubr.bf16.gmra.mrb[0].mxu0 %v335
        %v442 = vpop.f32.mrb[0].mxu0
        %v443 = vadd.f32 %v314, %v442
        %v444 = vpop.f32.mrb[0].mxu0
        %v445 = vpop.f32.mrb[0].mxu0
        %v446 = vadd.f32 %v319, %v445
        %v447 = vpop.f32.mrb[0].mxu0
        %448 = vdwg.mxu0
        %449 = vst [vmem:[%s273] sm:$0xff] %v435
        %450 = vst [vmem:[%s273 + $0x8] sm:$0xff] %v438
        %451 = vst [vmem:[%s273 + $0x10] sm:$0xff] %v443
        %452 = vst [vmem:[%s273 + $0x18] sm:$0xff] %v446
        %s453 = sand.u32 %s90, 1
        %s454 = sand.u32 %s90, 1
        %s455 = smul.addr %s454, 32
        %s456 = scalar_lea.vmem [#allocation3], %s455
        // Predicated region
        $region74: #{conv_trans_forward.11} parent=68 // pred_check
          %p457 = pneg %p100
        $region75: #{conv_trans_forward.11} parent=68 // pred_check_branch
          %459 = sbr.rel (%p457) target = $region77
        $region76: #{conv_trans_forward.11} parent=68 // pred_region
          %s460 = smul.addr %s14, 8
          %s461 = scalar_lea.vmem %s3, %s460
          // Predicated region
          $region78: #{conv_trans_forward.11} parent=76 // pred_check
            _
          $region79: #{conv_trans_forward.11} parent=76 // pred_check_branch
            %463 = sbr.rel (0) target = $region81
          $region80: #{conv_trans_forward.11} parent=76 // pred_region
            // Predicated region
            $region82: #{conv_trans_forward.11} parent=80 // pred_check
              _
            $region83: #{conv_trans_forward.11} parent=80 // pred_check_branch
              %465 = sbr.rel (0) target = $region85
            $region84: #{conv_trans_forward.11} parent=80 // pred_region
              // Predicated region
              $region97: #{conv_trans_forward.11} parent=84 // pred_check
                _
              $region98: #{conv_trans_forward.11} parent=84 // pred_check_branch
                %486 = sbr.rel (0) target = $region100
              $region99: #{conv_trans_forward.11} parent=84 // pred_region
                loop: start=0, step=1, limit=1
                $region101: #{conv_trans_forward.11} parent=99 // loop_pre_header
                  _
                $region102: #{conv_trans_forward.11} parent=99 // loop_header
                  %s488 = sphi 0, %s492
                  %p489 = scmp.ge.s32.totalorder %s488, 1
                  %s493 = sphi %s456, %s456
                  %s494 = sphi %s461, %s461
                $region103: #{conv_trans_forward.11} parent=99 // loop_header_branch
                  %491 = sbr.rel (%p489) target = $region107
                $region104: #{conv_trans_forward.11} parent=99 // loop_body
                  %v495 = vld [vmem:[%s493] sm:$0xff]
                  %496 = vst [vmem:[%s494] sm:$0xff] %v495
                  %v497 = vld [vmem:[%s493 + $0x8] sm:$0xff]
                  %498 = vst [vmem:[%s494 + $0x10] sm:$0xff] %v497
                  %v499 = vld [vmem:[%s493 + $0x10] sm:$0xff]
                  %500 = vst [vmem:[%s494 + $0x20] sm:$0xff] %v499
                  %v501 = vld [vmem:[%s493 + $0x18] sm:$0xff]
                  %502 = vst [vmem:[%s494 + $0x30] sm:$0xff] %v501
                $region105: #{conv_trans_forward.11} parent=99 // loop_footer
                  %s492 = sadd.s32 1, %s488
                $region106: #{conv_trans_forward.11} parent=99 // loop_footer_branch
                  %487 = sbr.rel target = $region102
                $region107: #{conv_trans_forward.11} parent=99 // loop_exit
                  _
              $region100: #{conv_trans_forward.11} parent=84 // pred_fallthru
                _
              // Predicated region
              $region108: #{conv_trans_forward.11} parent=84 // pred_check
                _
              $region109: #{conv_trans_forward.11} parent=84 // pred_check_branch
                %504 = sbr.rel target = $region111
              $region110: #{conv_trans_forward.11} parent=84 // pred_region
                _
              $region111: #{conv_trans_forward.11} parent=84 // pred_fallthru
                _
            $region85: #{conv_trans_forward.11} parent=80 // pred_fallthru
              _
            // Predicated region
            $region86: #{conv_trans_forward.11} parent=80 // pred_check
              _
            $region87: #{conv_trans_forward.11} parent=80 // pred_check_branch
              %467 = sbr.rel target = $region89
            $region88: #{conv_trans_forward.11} parent=80 // pred_region
              loop: start=0, step=1, limit=1
              $region90: #{conv_trans_forward.11} parent=88 // loop_pre_header
                _
              $region91: #{conv_trans_forward.11} parent=88 // loop_header
                %s470 = sphi 0, %s474
                %p471 = scmp.ge.s32.totalorder %s470, 1
                %s475 = sphi %s456, %s456
                %s476 = sphi %s461, %s461
              $region92: #{conv_trans_forward.11} parent=88 // loop_header_branch
                %473 = sbr.rel (%p471) target = $region96
              $region93: #{conv_trans_forward.11} parent=88 // loop_body
                %v477 = vld [vmem:[%s475] sm:$0xff]
                %478 = vst [vmem:[%s476] sm:$0xff] %v477
                %v479 = vld [vmem:[%s475 + $0x8] sm:$0xff]
                %480 = vst [vmem:[%s476 + $0x10] sm:$0xff] %v479
                %v481 = vld [vmem:[%s475 + $0x10] sm:$0xff]
                %482 = vst [vmem:[%s476 + $0x20] sm:$0xff] %v481
                %v483 = vld [vmem:[%s475 + $0x18] sm:$0xff]
                %484 = vst [vmem:[%s476 + $0x30] sm:$0xff] %v483
              $region94: #{conv_trans_forward.11} parent=88 // loop_footer
                %s474 = sadd.s32 1, %s470
              $region95: #{conv_trans_forward.11} parent=88 // loop_footer_branch
                %469 = sbr.rel target = $region91
              $region96: #{conv_trans_forward.11} parent=88 // loop_exit
                _
            $region89: #{conv_trans_forward.11} parent=80 // pred_fallthru
              _
          $region81: #{conv_trans_forward.11} parent=76 // pred_fallthru
            _
          %505 = vnop
        $region77: #{conv_trans_forward.11} parent=68 // pred_fallthru
          _
      $region69: #{conv_trans_forward.11} parent=5 // pred_fallthru
        _
      %p506 = scmp.le.s32.totalorder 2, %s9
      // Predicated region
      $region112: #{conv_trans_forward.11} parent=5 // pred_check
        %p507 = pneg %p506
      $region113: #{conv_trans_forward.11} parent=5 // pred_check_branch
        %509 = sbr.rel (%p507) target = $region115
      $region114: #{conv_trans_forward.11} parent=5 // pred_region
        %s510 = ssub.s32 %s9, 2
        // Predicated region
        $region116: #{conv_trans_forward.11} parent=114 // pred_check
          %p511 = pneg %p106
        $region117: #{conv_trans_forward.11} parent=114 // pred_check_branch
          %513 = sbr.rel (%p511) target = $region119
        $region118: #{conv_trans_forward.11} parent=114 // pred_region
          %s514 = sand.u32 %s91, 1
          %s515 = sand.u32 %s91, 1
          %s516 = smul.addr %s515, 32
          %s517 = scalar_lea.vmem [#allocation3], %s516
        $region119: #{conv_trans_forward.11} parent=114 // pred_fallthru
          _
      $region115: #{conv_trans_forward.11} parent=5 // pred_fallthru
        _
    $region6: #{conv_trans_forward.11} parent=1 // loop_footer
      %s13 = sadd.s32 1, %s9
    $region7: #{conv_trans_forward.11} parent=1 // loop_footer_branch
      %8 = sbr.rel target = $region3
    $region8: #{conv_trans_forward.11} parent=1 // loop_exit
      _

// kernel: conv_trans_forward.12
$region0: #{conv_trans_forward.12}
  #allocation0 [shape = 'u32[]', space=smem, size = 0x4, offset = 0x4, fixed_abs, tag = 'smem constant byte address 0x4 - core index']
  #allocation1 [shape = 'u32[144,128]{1,0:T(1,128)}', space=vmem, size = 0x12000, scoped, tag = 'internal scratch']
  %s0 = inlined_call_operand.vmem [shape: bf16[64,288], index: 0, kind: input, shape index: {}]
  %s1 = inlined_call_operand.vmem [shape: bf16[288,128], index: 1, kind: input, shape index: {}]
  %s2 = inlined_call_operand.vmem [shape: f32[64,1], index: 2, kind: input, shape index: {}]
  %s3 = inlined_call_operand.vmem [shape: f32[64,128], index: 3, kind: output, shape index: {}]
  %s4 = sld [smem:[#allocation0]]
  $region22: #{conv_trans_forward.12} parent=0
    _
  %s6 = ssub.s32 1, %s4
  %s7 = scalar_select 0, %s6, %s4
  // Predicated region
  $region2: #{conv_trans_forward.12} parent=0 // pred_check
    _
  $region3: #{conv_trans_forward.12} parent=0 // pred_check_branch
    %9 = sbr.rel (0) target = $region5
  $region4: #{conv_trans_forward.12} parent=0 // pred_region
    _
  $region5: #{conv_trans_forward.12} parent=0 // pred_fallthru
    _
  // Predicated region
  $region6: #{conv_trans_forward.12} parent=0 // pred_check
    _
  $region7: #{conv_trans_forward.12} parent=0 // pred_check_branch
    %11 = sbr.rel (0) target = $region9
  $region8: #{conv_trans_forward.12} parent=0 // pred_region
    _
  $region9: #{conv_trans_forward.12} parent=0 // pred_fallthru
    _
  // Predicated region
  $region10: #{conv_trans_forward.12} parent=0 // pred_check
    _
  $region11: #{conv_trans_forward.12} parent=0 // pred_check_branch
    %13 = sbr.rel (0) target = $region13
  $region12: #{conv_trans_forward.12} parent=0 // pred_region
    _
  $region13: #{conv_trans_forward.12} parent=0 // pred_fallthru
    _
  %v15 = vld [vmem:[%s0] sm:$0xff]
  %v16 = vld [vmem:[%s0 + $0x8] sm:$0xf]
  %v17 = vld [vmem:[%s0 + $0xc] sm:$0xff]
  %v18 = vld [vmem:[%s0 + $0x14] sm:$0xf]
  %v19 = vld [vmem:[%s0 + $0x18] sm:$0xff]
  %v20 = vld [vmem:[%s0 + $0x20] sm:$0xf]
  %v21 = vld [vmem:[%s0 + $0x24] sm:$0xff]
  %v22 = vld [vmem:[%s0 + $0x2c] sm:$0xf]
  %v23 = vld [vmem:[%s0 + $0x30] sm:$0xff]
  %v24 = vld [vmem:[%s0 + $0x38] sm:$0xf]
  %v25 = vld [vmem:[%s0 + $0x3c] sm:$0xff]
  %v26 = vld [vmem:[%s0 + $0x44] sm:$0xf]
  %v27 = vld [vmem:[%s0 + $0x48] sm:$0xff]
  %v28 = vld [vmem:[%s0 + $0x50] sm:$0xf]
  %v29 = vld [vmem:[%s0 + $0x54] sm:$0xff]
  %v30 = vld [vmem:[%s0 + $0x5c] sm:$0xf]
  %v31 = vld [vmem:[%s1] sm:$0xf]
  %v32 = vld [vmem:[%s1 + $0x4] sm:$0xf]
  %v33 = vld [vmem:[%s1 + $0x8] sm:$0xf]
  %v34 = vld [vmem:[%s1 + $0xc] sm:$0xf]
  %v35 = vld [vmem:[%s1 + $0x10] sm:$0xf]
  %v36 = vld [vmem:[%s1 + $0x14] sm:$0xf]
  %v37 = vld [vmem:[%s1 + $0x18] sm:$0xf]
  %v38 = vld [vmem:[%s1 + $0x1c] sm:$0xf]
  %v39 = vld [vmem:[%s1 + $0x20] sm:$0xf]
  %v40 = vld [vmem:[%s1 + $0x24] sm:$0xf]
  %v41 = vld [vmem:[%s1 + $0x28] sm:$0xf]
  %v42 = vld [vmem:[%s1 + $0x2c] sm:$0xf]
  %v43 = vld [vmem:[%s1 + $0x30] sm:$0xf]
  %v44 = vld [vmem:[%s1 + $0x34] sm:$0xf]
  %v45 = vld [vmem:[%s1 + $0x38] sm:$0xf]
  %v46 = vld [vmem:[%s1 + $0x3c] sm:$0xf]
  %v47 = vld [vmem:[%s1 + $0x40] sm:$0xf]
  %v48 = vld [vmem:[%s1 + $0x44] sm:$0xf]
  %v49 = vld [vmem:[%s1 + $0x48] sm:$0xf]
  %v50 = vld [vmem:[%s1 + $0x4c] sm:$0xf]
  %v51 = vld [vmem:[%s1 + $0x50] sm:$0xf]
  %v52 = vld [vmem:[%s1 + $0x54] sm:$0xf]
  %v53 = vld [vmem:[%s1 + $0x58] sm:$0xf]
  %v54 = vld [vmem:[%s1 + $0x5c] sm:$0xf]
  %v55 = vld [vmem:[%s1 + $0x60] sm:$0xf]
  %v56 = vld [vmem:[%s1 + $0x64] sm:$0xf]
  %v57 = vld [vmem:[%s1 + $0x68] sm:$0xf]
  %v58 = vld [vmem:[%s1 + $0x6c] sm:$0xf]
  %v59 = vld [vmem:[%s1 + $0x70] sm:$0xf]
  %v60 = vld [vmem:[%s1 + $0x74] sm:$0xf]
  %v61 = vld [vmem:[%s1 + $0x78] sm:$0xf]
  %v62 = vld [vmem:[%s1 + $0x7c] sm:$0xf]
  %v63 = vld [vmem:[%s1 + $0x80] sm:$0xf]
  %v64 = vld [vmem:[%s1 + $0x84] sm:$0xf]
  %v65 = vld [vmem:[%s1 + $0x88] sm:$0xf]
  %v66 = vld [vmem:[%s1 + $0x8c] sm:$0xf]
  %v67 = vld [vmem:[%s2] sm:$0xff]
  %v68 = vld [vmem:[%s2 + $0x8] sm:$0xff]
  %v69 = vld [vmem:[%s2 + $0x10] sm:$0xff]
  %v70 = vld [vmem:[%s2 + $0x18] sm:$0xff]
  %v71 = vld [vmem:[%s2 + $0x20] sm:$0xff]
  %v72 = vld [vmem:[%s2 + $0x28] sm:$0xff]
  %v73 = vld [vmem:[%s2 + $0x30] sm:$0xff]
  %v74 = vld [vmem:[%s2 + $0x38] sm:$0xff]
  %76 = vset.pattern.permute.xlu0 0
  %77 = vperm.xlu0 %76, %v67
  %v78 = vpop.permute.xlu0 %77
  %81 = vset.pattern.permute.xlu0 0
  %82 = vperm.xlu0 %81, %v68
  %v83 = vpop.permute.xlu0 %82
  %86 = vset.pattern.permute.xlu0 0
  %87 = vperm.xlu0 %86, %v69
  %v88 = vpop.permute.xlu0 %87
  %91 = vset.pattern.permute.xlu0 0
  %92 = vperm.xlu0 %91, %v70
  %v93 = vpop.permute.xlu0 %92
  %96 = vset.pattern.permute.xlu0 0
  %97 = vperm.xlu0 %96, %v71
  %v98 = vpop.permute.xlu0 %97
  %101 = vset.pattern.permute.xlu0 0
  %102 = vperm.xlu0 %101, %v72
  %v103 = vpop.permute.xlu0 %102
  %106 = vset.pattern.permute.xlu0 0
  %107 = vperm.xlu0 %106, %v73
  %v108 = vpop.permute.xlu0 %107
  %111 = vset.pattern.permute.xlu0 0
  %112 = vperm.xlu0 %111, %v74
  %v113 = vpop.permute.xlu0 %112
  %v131 = vunpack.c.l.b16 %v15
  %v132 = vunpack.c.h.b16 %v15
  %v133 = vunpack.c.l.b16 %v16
  %v134 = vunpack.c.l.b16 %v17
  %v135 = vunpack.c.h.b16 %v17
  %v136 = vunpack.c.l.b16 %v18
  %v137 = vunpack.c.l.b16 %v19
  %v138 = vunpack.c.h.b16 %v19
  %v139 = vunpack.c.l.b16 %v20
  %v140 = vunpack.c.l.b16 %v21
  %v141 = vunpack.c.h.b16 %v21
  %v142 = vunpack.c.l.b16 %v22
  %v143 = vunpack.c.l.b16 %v23
  %v144 = vunpack.c.h.b16 %v23
  %v145 = vunpack.c.l.b16 %v24
  %v146 = vunpack.c.l.b16 %v25
  %v147 = vunpack.c.h.b16 %v25
  %v148 = vunpack.c.l.b16 %v26
  %v149 = vunpack.c.l.b16 %v27
  %v150 = vunpack.c.h.b16 %v27
  %v151 = vunpack.c.l.b16 %v28
  %v152 = vunpack.c.l.b16 %v29
  %v153 = vunpack.c.h.b16 %v29
  %v154 = vunpack.c.l.b16 %v30
  %v155 = vpack.c.b16 %v134, %v131
  %v156 = vpack.c.b16 %v135, %v132
  %v157 = vpack.c.b16 %v136, %v133
  %v158 = vpack.c.b16 %v140, %v137
  %v159 = vpack.c.b16 %v141, %v138
  %v160 = vpack.c.b16 %v142, %v139
  %v161 = vpack.c.b16 %v146, %v143
  %v162 = vpack.c.b16 %v147, %v144
  %v163 = vpack.c.b16 %v148, %v145
  %v164 = vpack.c.b16 %v152, %v149
  %v165 = vpack.c.b16 %v153, %v150
  %v166 = vpack.c.b16 %v154, %v151
  %v211 = vunpack.c.l.b16 %v31
  %v212 = vunpack.c.l.b16 %v32
  %v213 = vunpack.c.l.b16 %v33
  %v214 = vunpack.c.l.b16 %v34
  %v215 = vunpack.c.l.b16 %v35
  %v216 = vunpack.c.l.b16 %v36
  %v217 = vunpack.c.l.b16 %v37
  %v218 = vunpack.c.l.b16 %v38
  %v219 = vunpack.c.l.b16 %v39
  %v220 = vunpack.c.l.b16 %v40
  %v221 = vunpack.c.l.b16 %v41
  %v222 = vunpack.c.l.b16 %v42
  %v223 = vunpack.c.l.b16 %v43
  %v224 = vunpack.c.l.b16 %v44
  %v225 = vunpack.c.l.b16 %v45
  %v226 = vunpack.c.l.b16 %v46
  %v227 = vunpack.c.l.b16 %v47
  %v228 = vunpack.c.l.b16 %v48
  %v229 = vunpack.c.l.b16 %v49
  %v230 = vunpack.c.l.b16 %v50
  %v231 = vunpack.c.l.b16 %v51
  %v232 = vunpack.c.l.b16 %v52
  %v233 = vunpack.c.l.b16 %v53
  %v234 = vunpack.c.l.b16 %v54
  %v235 = vunpack.c.l.b16 %v55
  %v236 = vunpack.c.l.b16 %v56
  %v237 = vunpack.c.l.b16 %v57
  %v238 = vunpack.c.l.b16 %v58
  %v239 = vunpack.c.l.b16 %v59
  %v240 = vunpack.c.l.b16 %v60
  %v241 = vunpack.c.l.b16 %v61
  %v242 = vunpack.c.l.b16 %v62
  %v243 = vunpack.c.l.b16 %v63
  %v244 = vunpack.c.l.b16 %v64
  %v245 = vunpack.c.l.b16 %v65
  %v246 = vunpack.c.l.b16 %v66
  %v247 = vpack.c.b16 %v212, %v211
  %v248 = vpack.c.b16 %v214, %v213
  %v249 = vpack.c.b16 %v216, %v215
  %v250 = vpack.c.b16 %v218, %v217
  %v251 = vpack.c.b16 %v220, %v219
  %v252 = vpack.c.b16 %v222, %v221
  %v253 = vpack.c.b16 %v224, %v223
  %v254 = vpack.c.b16 %v226, %v225
  %v255 = vpack.c.b16 %v228, %v227
  %v256 = vpack.c.b16 %v230, %v229
  %v257 = vpack.c.b16 %v232, %v231
  %v258 = vpack.c.b16 %v234, %v233
  %v259 = vpack.c.b16 %v236, %v235
  %v260 = vpack.c.b16 %v238, %v237
  %v261 = vpack.c.b16 %v240, %v239
  %v262 = vpack.c.b16 %v242, %v241
  %v263 = vpack.c.b16 %v244, %v243
  %v264 = vpack.c.b16 %v246, %v245
  %vm283 = vcmask 261120
  %v285 = vsel %vm283, %v157, 0
  %v288 = vsel %vm283, %v160, 0
  %v291 = vsel %vm283, %v163, 0
  %v294 = vsel %vm283, %v166, 0
  %296 = vmatprep.subr.bf16.mxu0 0
  %297 = vmatpush1.bf16.msra.mxu0 %v247
  %298 = vmatprep.subr.bf16.mxu0 0
  %299 = vmatpush1.bf16.msra.mxu0 %v248
  %300 = vmatprep.subr.bf16.mxu0 0
  %301 = vmatpush1.bf16.msra.mxu0 %v249
  %302 = vmatprep.subr.bf16.mxu0 0
  %303 = vmatpush1.bf16.msra.mxu0 %v250
  %304 = vmatprep.subr.bf16.mxu0 0
  %305 = vmatpush1.bf16.msra.mxu0 %v251
  %306 = vmatprep.subr.bf16.mxu0 0
  %307 = vmatpush1.bf16.msra.mxu0 %v252
  %308 = vmatprep.subr.bf16.mxu0 0
  %309 = vmatpush1.bf16.msra.mxu0 %v253
  %310 = vmatprep.subr.bf16.mxu0 0
  %311 = vmatpush1.bf16.msra.mxu0 %v254
  %312 = vmatprep.subr.bf16.mxu0 0
  %313 = vmatpush1.bf16.msra.mxu0 %v255
  %314 = vmatprep.subr.bf16.mxu0 0
  %315 = vmatpush1.bf16.msra.mxu0 %v256
  %316 = vmatprep.subr.bf16.mxu0 0
  %317 = vmatpush1.bf16.msra.mxu0 %v257
  %318 = vmatprep.subr.bf16.mxu0 0
  %319 = vmatpush1.bf16.msra.mxu0 %v258
  %320 = vmatprep.subr.bf16.mxu0 0
  %321 = vmatpush1.bf16.msra.mxu0 %v259
  %322 = vmatprep.subr.bf16.mxu0 0
  %323 = vmatpush1.bf16.msra.mxu0 %v260
  %324 = vmatprep.subr.bf16.mxu0 0
  %325 = vmatpush1.bf16.msra.mxu0 %v261
  %326 = vmatprep.subr.bf16.mxu0 0
  %327 = vmatpush1.bf16.msra.mxu0 %v262
  %328 = vmatprep.mubr.bf16.mxu0 %v156
  %329 = vmatmul.mubr.bf16.gmra.mrb[0].mxu0 %v155
  %v330 = vpop.f32.mrb[0].mxu0
  %v331 = vadd.f32 %v78, %v330
  %v332 = vpop.f32.mrb[0].mxu0
  %v333 = vpop.f32.mrb[0].mxu0
  %v334 = vadd.f32 %v83, %v333
  %v335 = vpop.f32.mrb[0].mxu0
  %336 = vmatprep.mubr.bf16.mxu0 %v159
  %337 = vmatmul.mubr.bf16.gmra.mrb[0].mxu0 %v158
  %v338 = vpop.f32.mrb[0].mxu0
  %v339 = vadd.f32 %v88, %v338
  %v340 = vpop.f32.mrb[0].mxu0
  %v341 = vpop.f32.mrb[0].mxu0
  %v342 = vadd.f32 %v93, %v341
  %v343 = vpop.f32.mrb[0].mxu0
  %344 = vmatprep.mubr.bf16.mxu0 %v162
  %345 = vmatmul.mubr.bf16.gmra.mrb[0].mxu0 %v161
  %v346 = vpop.f32.mrb[0].mxu0
  %v347 = vadd.f32 %v98, %v346
  %v348 = vpop.f32.mrb[0].mxu0
  %v349 = vpop.f32.mrb[0].mxu0
  %v350 = vadd.f32 %v103, %v349
  %v351 = vpop.f32.mrb[0].mxu0
  %352 = vmatprep.mubr.bf16.mxu0 %v165
  %353 = vmatmul.mubr.bf16.gmra.mrb[0].mxu0 %v164
  %v354 = vpop.f32.mrb[0].mxu0
  %v355 = vadd.f32 %v108, %v354
  %v356 = vpop.f32.mrb[0].mxu0
  %v357 = vpop.f32.mrb[0].mxu0
  %v358 = vadd.f32 %v113, %v357
  %v359 = vpop.f32.mrb[0].mxu0
  %360 = vdwg.mxu0
  %361 = vmatprep.subr.bf16.mxu0 0
  %362 = vmatpush1.bf16.msra.mxu0 %v263
  %363 = vmatprep.subr.bf16.mxu0 0
  %364 = vmatpush1.bf16.msra.mxu0 %v264
  %365 = vmatprep.subr.bf16.mxu0 0
  %366 = vmatpush1.bf16.msra.mxu0 0
  %367 = vmatprep.subr.bf16.mxu0 0
  %368 = vmatpush1.bf16.msra.mxu0 0
  %369 = vmatprep.subr.bf16.mxu0 0
  %370 = vmatpush1.bf16.msra.mxu0 0
  %371 = vmatprep.subr.bf16.mxu0 0
  %372 = vmatpush1.bf16.msra.mxu0 0
  %373 = vmatprep.subr.bf16.mxu0 0
  %374 = vmatpush1.bf16.msra.mxu0 0
  %375 = vmatprep.subr.bf16.mxu0 0
  %376 = vmatpush1.bf16.msra.mxu0 0
  %377 = vmatprep.subr.bf16.mxu0 0
  %378 = vmatpush1.bf16.msra.mxu0 0
  %379 = vmatprep.subr.bf16.mxu0 0
  %380 = vmatpush1.bf16.msra.mxu0 0
  %381 = vmatprep.subr.bf16.mxu0 0
  %382 = vmatpush1.bf16.msra.mxu0 0
  %383 = vmatprep.subr.bf16.mxu0 0
  %384 = vmatpush1.bf16.msra.mxu0 0
  %385 = vmatprep.subr.bf16.mxu0 0
  %386 = vmatpush1.bf16.msra.mxu0 0
  %387 = vmatprep.subr.bf16.mxu0 0
  %388 = vmatpush1.bf16.msra.mxu0 0
  %389 = vmatprep.subr.bf16.mxu0 0
  %390 = vmatpush1.bf16.msra.mxu0 0
  %391 = vmatprep.subr.bf16.mxu0 0
  %392 = vmatpush1.bf16.msra.mxu0 0
  %393 = vmatprep.mubr.bf16.mxu0 0
  %394 = vmatmul.mubr.bf16.gmra.mrb[0].mxu0 %v285
  %v395 = vpop.f32.mrb[0].mxu0
  %v396 = vadd.f32 %v331, %v395
  %v397 = vpop.f32.mrb[0].mxu0
  %v398 = vpop.f32.mrb[0].mxu0
  %v399 = vadd.f32 %v334, %v398
  %v400 = vpop.f32.mrb[0].mxu0
  %401 = vmatprep.mubr.bf16.mxu0 0
  %402 = vmatmul.mubr.bf16.gmra.mrb[0].mxu0 %v288
  %v403 = vpop.f32.mrb[0].mxu0
  %v404 = vadd.f32 %v339, %v403
  %v405 = vpop.f32.mrb[0].mxu0
  %v406 = vpop.f32.mrb[0].mxu0
  %v407 = vadd.f32 %v342, %v406
  %v408 = vpop.f32.mrb[0].mxu0
  %409 = vmatprep.mubr.bf16.mxu0 0
  %410 = vmatmul.mubr.bf16.gmra.mrb[0].mxu0 %v291
  %v411 = vpop.f32.mrb[0].mxu0
  %v412 = vadd.f32 %v347, %v411
  %v413 = vpop.f32.mrb[0].mxu0
  %v414 = vpop.f32.mrb[0].mxu0
  %v415 = vadd.f32 %v350, %v414
  %v416 = vpop.f32.mrb[0].mxu0
  %417 = vmatprep.mubr.bf16.mxu0 0
  %418 = vmatmul.mubr.bf16.gmra.mrb[0].mxu0 %v294
  %v419 = vpop.f32.mrb[0].mxu0
  %v420 = vadd.f32 %v355, %v419
  %v421 = vpop.f32.mrb[0].mxu0
  %v422 = vpop.f32.mrb[0].mxu0
  %v423 = vadd.f32 %v358, %v422
  %v424 = vpop.f32.mrb[0].mxu0
  %425 = vdwg.mxu0
  %426 = vst [vmem:[%s3] sm:$0xff] %v396
  %427 = vst [vmem:[%s3 + $0x8] sm:$0xff] %v399
  %428 = vst [vmem:[%s3 + $0x10] sm:$0xff] %v404
  %429 = vst [vmem:[%s3 + $0x18] sm:$0xff] %v407
  %430 = vst [vmem:[%s3 + $0x20] sm:$0xff] %v412
  %431 = vst [vmem:[%s3 + $0x28] sm:$0xff] %v415
  %432 = vst [vmem:[%s3 + $0x30] sm:$0xff] %v420
  %433 = vst [vmem:[%s3 + $0x38] sm:$0xff] %v423
  // Predicated region
  $region14: #{conv_trans_forward.12} parent=0 // pred_check
    _
  $region15: #{conv_trans_forward.12} parent=0 // pred_check_branch
    %435 = sbr.rel (0) target = $region17
  $region16: #{conv_trans_forward.12} parent=0 // pred_region
    _
  $region17: #{conv_trans_forward.12} parent=0 // pred_fallthru
    _
  // Predicated region
  $region18: #{conv_trans_forward.12} parent=0 // pred_check
    _
  $region19: #{conv_trans_forward.12} parent=0 // pred_check_branch
    %437 = sbr.rel (0) target = $region21
  $region20: #{conv_trans_forward.12} parent=0 // pred_region
    _
  $region21: #{conv_trans_forward.12} parent=0 // pred_fallthru
    _

// kernel: conv_trans_forward.13
$region0: #{conv_trans_forward.13}
  #allocation0 [shape = 'u32[]', space=smem, size = 0x4, offset = 0x4, fixed_abs, tag = 'smem constant byte address 0x4 - core index']
  #allocation1 [shape = 'u32[144,128]{1,0:T(1,128)}', space=vmem, size = 0x12000, scoped, tag = 'internal scratch']
  %s0 = inlined_call_operand.vmem [shape: bf16[128,576], index: 0, kind: input, shape index: {}]
  %s1 = inlined_call_operand.vmem [shape: bf16[576,128], index: 1, kind: input, shape index: {}]
  %s2 = inlined_call_operand.vmem [shape: f32[128,1], index: 2, kind: input, shape index: {}]
  %s3 = inlined_call_operand.vmem [shape: f32[128,128], index: 3, kind: output, shape index: {}]
  %s4 = sld [smem:[#allocation0]]
  $region22: #{conv_trans_forward.13} parent=0
    _
  %s6 = ssub.s32 1, %s4
  %s7 = scalar_select 0, %s6, %s4
  // Predicated region
  $region2: #{conv_trans_forward.13} parent=0 // pred_check
    _
  $region3: #{conv_trans_forward.13} parent=0 // pred_check_branch
    %9 = sbr.rel (0) target = $region5
  $region4: #{conv_trans_forward.13} parent=0 // pred_region
    _
  $region5: #{conv_trans_forward.13} parent=0 // pred_fallthru
    _
  // Predicated region
  $region6: #{conv_trans_forward.13} parent=0 // pred_check
    _
  $region7: #{conv_trans_forward.13} parent=0 // pred_check_branch
    %11 = sbr.rel (0) target = $region9
  $region8: #{conv_trans_forward.13} parent=0 // pred_region
    _
  $region9: #{conv_trans_forward.13} parent=0 // pred_fallthru
    _
  // Predicated region
  $region10: #{conv_trans_forward.13} parent=0 // pred_check
    _
  $region11: #{conv_trans_forward.13} parent=0 // pred_check_branch
    %13 = sbr.rel (0) target = $region13
  $region12: #{conv_trans_forward.13} parent=0 // pred_region
    _
  $region13: #{conv_trans_forward.13} parent=0 // pred_fallthru
    _
  %v15 = vld [vmem:[%s0] sm:$0xff]
  %v16 = vld [vmem:[%s0 + $0x8] sm:$0xff]
  %v17 = vld [vmem:[%s0 + $0x10] sm:$0xf]
  %v18 = vld [vmem:[%s0 + $0x14] sm:$0xff]
  %v19 = vld [vmem:[%s0 + $0x1c] sm:$0xff]
  %v20 = vld [vmem:[%s0 + $0x24] sm:$0xf]
  %v21 = vld [vmem:[%s0 + $0x28] sm:$0xff]
  %v22 = vld [vmem:[%s0 + $0x30] sm:$0xff]
  %v23 = vld [vmem:[%s0 + $0x38] sm:$0xf]
  %v24 = vld [vmem:[%s0 + $0x3c] sm:$0xff]
  %v25 = vld [vmem:[%s0 + $0x44] sm:$0xff]
  %v26 = vld [vmem:[%s0 + $0x4c] sm:$0xf]
  %v27 = vld [vmem:[%s0 + $0x50] sm:$0xff]
  %v28 = vld [vmem:[%s0 + $0x58] sm:$0xff]
  %v29 = vld [vmem:[%s0 + $0x60] sm:$0xf]
  %v30 = vld [vmem:[%s0 + $0x64] sm:$0xff]
  %v31 = vld [vmem:[%s0 + $0x6c] sm:$0xff]
  %v32 = vld [vmem:[%s0 + $0x74] sm:$0xf]
  %v33 = vld [vmem:[%s0 + $0x78] sm:$0xff]
  %v34 = vld [vmem:[%s0 + $0x80] sm:$0xff]
  %v35 = vld [vmem:[%s0 + $0x88] sm:$0xf]
  %v36 = vld [vmem:[%s0 + $0x8c] sm:$0xff]
  %v37 = vld [vmem:[%s0 + $0x94] sm:$0xff]
  %v38 = vld [vmem:[%s0 + $0x9c] sm:$0xf]
  %v39 = vld [vmem:[%s0 + $0xa0] sm:$0xff]
  %v40 = vld [vmem:[%s0 + $0xa8] sm:$0xff]
  %v41 = vld [vmem:[%s0 + $0xb0] sm:$0xf]
  %v42 = vld [vmem:[%s0 + $0xb4] sm:$0xff]
  %v43 = vld [vmem:[%s0 + $0xbc] sm:$0xff]
  %v44 = vld [vmem:[%s0 + $0xc4] sm:$0xf]
  %v45 = vld [vmem:[%s0 + $0xc8] sm:$0xff]
  %v46 = vld [vmem:[%s0 + $0xd0] sm:$0xff]
  %v47 = vld [vmem:[%s0 + $0xd8] sm:$0xf]
  %v48 = vld [vmem:[%s0 + $0xdc] sm:$0xff]
  %v49 = vld [vmem:[%s0 + $0xe4] sm:$0xff]
  %v50 = vld [vmem:[%s0 + $0xec] sm:$0xf]
  %v51 = vld [vmem:[%s0 + $0xf0] sm:$0xff]
  %v52 = vld [vmem:[%s0 + $0xf8] sm:$0xff]
  %v53 = vld [vmem:[%s0 + $0x100] sm:$0xf]
  %v54 = vld [vmem:[%s0 + $0x104] sm:$0xff]
  %v55 = vld [vmem:[%s0 + $0x10c] sm:$0xff]
  %v56 = vld [vmem:[%s0 + $0x114] sm:$0xf]
  %v57 = vld [vmem:[%s0 + $0x118] sm:$0xff]
  %v58 = vld [vmem:[%s0 + $0x120] sm:$0xff]
  %v59 = vld [vmem:[%s0 + $0x128] sm:$0xf]
  %v60 = vld [vmem:[%s0 + $0x12c] sm:$0xff]
  %v61 = vld [vmem:[%s0 + $0x134] sm:$0xff]
  %v62 = vld [vmem:[%s0 + $0x13c] sm:$0xf]
  %v63 = vld [vmem:[%s1] sm:$0xf]
  %v64 = vld [vmem:[%s1 + $0x4] sm:$0xf]
  %v65 = vld [vmem:[%s1 + $0x8] sm:$0xf]
  %v66 = vld [vmem:[%s1 + $0xc] sm:$0xf]
  %v67 = vld [vmem:[%s1 + $0x10] sm:$0xf]
  %v68 = vld [vmem:[%s1 + $0x14] sm:$0xf]
  %v69 = vld [vmem:[%s1 + $0x18] sm:$0xf]
  %v70 = vld [vmem:[%s1 + $0x1c] sm:$0xf]
  %v71 = vld [vmem:[%s1 + $0x20] sm:$0xf]
  %v72 = vld [vmem:[%s1 + $0x24] sm:$0xf]
  %v73 = vld [vmem:[%s1 + $0x28] sm:$0xf]
  %v74 = vld [vmem:[%s1 + $0x2c] sm:$0xf]
  %v75 = vld [vmem:[%s1 + $0x30] sm:$0xf]
  %v76 = vld [vmem:[%s1 + $0x34] sm:$0xf]
  %v77 = vld [vmem:[%s1 + $0x38] sm:$0xf]
  %v78 = vld [vmem:[%s1 + $0x3c] sm:$0xf]
  %v79 = vld [vmem:[%s1 + $0x40] sm:$0xf]
  %v80 = vld [vmem:[%s1 + $0x44] sm:$0xf]
  %v81 = vld [vmem:[%s1 + $0x48] sm:$0xf]
  %v82 = vld [vmem:[%s1 + $0x4c] sm:$0xf]
  %v83 = vld [vmem:[%s1 + $0x50] sm:$0xf]
  %v84 = vld [vmem:[%s1 + $0x54] sm:$0xf]
  %v85 = vld [vmem:[%s1 + $0x58] sm:$0xf]
  %v86 = vld [vmem:[%s1 + $0x5c] sm:$0xf]
  %v87 = vld [vmem:[%s1 + $0x60] sm:$0xf]
  %v88 = vld [vmem:[%s1 + $0x64] sm:$0xf]
  %v89 = vld [vmem:[%s1 + $0x68] sm:$0xf]
  %v90 = vld [vmem:[%s1 + $0x6c] sm:$0xf]
  %v91 = vld [vmem:[%s1 + $0x70] sm:$0xf]
  %v92 = vld [vmem:[%s1 + $0x74] sm:$0xf]
  %v93 = vld [vmem:[%s1 + $0x78] sm:$0xf]
  %v94 = vld [vmem:[%s1 + $0x7c] sm:$0xf]
  %v95 = vld [vmem:[%s1 + $0x80] sm:$0xf]
  %v96 = vld [vmem:[%s1 + $0x84] sm:$0xf]
  %v97 = vld [vmem:[%s1 + $0x88] sm:$0xf]
  %v98 = vld [vmem:[%s1 + $0x8c] sm:$0xf]
  %v99 = vld [vmem:[%s1 + $0x90] sm:$0xf]
  %v100 = vld [vmem:[%s1 + $0x94] sm:$0xf]
  %v101 = vld [vmem:[%s1 + $0x98] sm:$0xf]
  %v102 = vld [vmem:[%s1 + $0x9c] sm:$0xf]
  %v103 = vld [vmem:[%s1 + $0xa0] sm:$0xf]
  %v104 = vld [vmem:[%s1 + $0xa4] sm:$0xf]
  %v105 = vld [vmem:[%s1 + $0xa8] sm:$0xf]
  %v106 = vld [vmem:[%s1 + $0xac] sm:$0xf]
  %v107 = vld [vmem:[%s1 + $0xb0] sm:$0xf]
  %v108 = vld [vmem:[%s1 + $0xb4] sm:$0xf]
  %v109 = vld [vmem:[%s1 + $0xb8] sm:$0xf]
  %v110 = vld [vmem:[%s1 + $0xbc] sm:$0xf]
  %v111 = vld [vmem:[%s1 + $0xc0] sm:$0xf]
  %v112 = vld [vmem:[%s1 + $0xc4] sm:$0xf]
  %v113 = vld [vmem:[%s1 + $0xc8] sm:$0xf]
  %v114 = vld [vmem:[%s1 + $0xcc] sm:$0xf]
  %v115 = vld [vmem:[%s1 + $0xd0] sm:$0xf]
  %v116 = vld [vmem:[%s1 + $0xd4] sm:$0xf]
  %v117 = vld [vmem:[%s1 + $0xd8] sm:$0xf]
  %v118 = vld [vmem:[%s1 + $0xdc] sm:$0xf]
  %v119 = vld [vmem:[%s1 + $0xe0] sm:$0xf]
  %v120 = vld [vmem:[%s1 + $0xe4] sm:$0xf]
  %v121 = vld [vmem:[%s1 + $0xe8] sm:$0xf]
  %v122 = vld [vmem:[%s1 + $0xec] sm:$0xf]
  %v123 = vld [vmem:[%s1 + $0xf0] sm:$0xf]
  %v124 = vld [vmem:[%s1 + $0xf4] sm:$0xf]
  %v125 = vld [vmem:[%s1 + $0xf8] sm:$0xf]
  %v126 = vld [vmem:[%s1 + $0xfc] sm:$0xf]
  %v127 = vld [vmem:[%s1 + $0x100] sm:$0xf]
  %v128 = vld [vmem:[%s1 + $0x104] sm:$0xf]
  %v129 = vld [vmem:[%s1 + $0x108] sm:$0xf]
  %v130 = vld [vmem:[%s1 + $0x10c] sm:$0xf]
  %v131 = vld [vmem:[%s1 + $0x110] sm:$0xf]
  %v132 = vld [vmem:[%s1 + $0x114] sm:$0xf]
  %v133 = vld [vmem:[%s1 + $0x118] sm:$0xf]
  %v134 = vld [vmem:[%s1 + $0x11c] sm:$0xf]
  %v135 = vld [vmem:[%s2] sm:$0xff]
  %v136 = vld [vmem:[%s2 + $0x8] sm:$0xff]
  %v137 = vld [vmem:[%s2 + $0x10] sm:$0xff]
  %v138 = vld [vmem:[%s2 + $0x18] sm:$0xff]
  %v139 = vld [vmem:[%s2 + $0x20] sm:$0xff]
  %v140 = vld [vmem:[%s2 + $0x28] sm:$0xff]
  %v141 = vld [vmem:[%s2 + $0x30] sm:$0xff]
  %v142 = vld [vmem:[%s2 + $0x38] sm:$0xff]
  %v143 = vld [vmem:[%s2 + $0x40] sm:$0xff]
  %v144 = vld [vmem:[%s2 + $0x48] sm:$0xff]
  %v145 = vld [vmem:[%s2 + $0x50] sm:$0xff]
  %v146 = vld [vmem:[%s2 + $0x58] sm:$0xff]
  %v147 = vld [vmem:[%s2 + $0x60] sm:$0xff]
  %v148 = vld [vmem:[%s2 + $0x68] sm:$0xff]
  %v149 = vld [vmem:[%s2 + $0x70] sm:$0xff]
  %v150 = vld [vmem:[%s2 + $0x78] sm:$0xff]
  %152 = vset.pattern.permute.xlu0 0
  %153 = vperm.xlu0 %152, %v135
  %v154 = vpop.permute.xlu0 %153
  %157 = vset.pattern.permute.xlu0 0
  %158 = vperm.xlu0 %157, %v136
  %v159 = vpop.permute.xlu0 %158
  %162 = vset.pattern.permute.xlu0 0
  %163 = vperm.xlu0 %162, %v137
  %v164 = vpop.permute.xlu0 %163
  %167 = vset.pattern.permute.xlu0 0
  %168 = vperm.xlu0 %167, %v138
  %v169 = vpop.permute.xlu0 %168
  %172 = vset.pattern.permute.xlu0 0
  %173 = vperm.xlu0 %172, %v139
  %v174 = vpop.permute.xlu0 %173
  %177 = vset.pattern.permute.xlu0 0
  %178 = vperm.xlu0 %177, %v140
  %v179 = vpop.permute.xlu0 %178
  %182 = vset.pattern.permute.xlu0 0
  %183 = vperm.xlu0 %182, %v141
  %v184 = vpop.permute.xlu0 %183
  %187 = vset.pattern.permute.xlu0 0
  %188 = vperm.xlu0 %187, %v142
  %v189 = vpop.permute.xlu0 %188
  %192 = vset.pattern.permute.xlu0 0
  %193 = vperm.xlu0 %192, %v143
  %v194 = vpop.permute.xlu0 %193
  %197 = vset.pattern.permute.xlu0 0
  %198 = vperm.xlu0 %197, %v144
  %v199 = vpop.permute.xlu0 %198
  %202 = vset.pattern.permute.xlu0 0
  %203 = vperm.xlu0 %202, %v145
  %v204 = vpop.permute.xlu0 %203
  %207 = vset.pattern.permute.xlu0 0
  %208 = vperm.xlu0 %207, %v146
  %v209 = vpop.permute.xlu0 %208
  %212 = vset.pattern.permute.xlu0 0
  %213 = vperm.xlu0 %212, %v147
  %v214 = vpop.permute.xlu0 %213
  %217 = vset.pattern.permute.xlu0 0
  %218 = vperm.xlu0 %217, %v148
  %v219 = vpop.permute.xlu0 %218
  %222 = vset.pattern.permute.xlu0 0
  %223 = vperm.xlu0 %222, %v149
  %v224 = vpop.permute.xlu0 %223
  %227 = vset.pattern.permute.xlu0 0
  %228 = vperm.xlu0 %227, %v150
  %v229 = vpop.permute.xlu0 %228
  %v279 = vunpack.c.l.b16 %v15
  %v280 = vunpack.c.h.b16 %v15
  %v281 = vunpack.c.l.b16 %v16
  %v282 = vunpack.c.h.b16 %v16
  %v283 = vunpack.c.l.b16 %v17
  %v284 = vunpack.c.l.b16 %v18
  %v285 = vunpack.c.h.b16 %v18
  %v286 = vunpack.c.l.b16 %v19
  %v287 = vunpack.c.h.b16 %v19
  %v288 = vunpack.c.l.b16 %v20
  %v289 = vunpack.c.l.b16 %v21
  %v290 = vunpack.c.h.b16 %v21
  %v291 = vunpack.c.l.b16 %v22
  %v292 = vunpack.c.h.b16 %v22
  %v293 = vunpack.c.l.b16 %v23
  %v294 = vunpack.c.l.b16 %v24
  %v295 = vunpack.c.h.b16 %v24
  %v296 = vunpack.c.l.b16 %v25
  %v297 = vunpack.c.h.b16 %v25
  %v298 = vunpack.c.l.b16 %v26
  %v299 = vunpack.c.l.b16 %v27
  %v300 = vunpack.c.h.b16 %v27
  %v301 = vunpack.c.l.b16 %v28
  %v302 = vunpack.c.h.b16 %v28
  %v303 = vunpack.c.l.b16 %v29
  %v304 = vunpack.c.l.b16 %v30
  %v305 = vunpack.c.h.b16 %v30
  %v306 = vunpack.c.l.b16 %v31
  %v307 = vunpack.c.h.b16 %v31
  %v308 = vunpack.c.l.b16 %v32
  %v309 = vunpack.c.l.b16 %v33
  %v310 = vunpack.c.h.b16 %v33
  %v311 = vunpack.c.l.b16 %v34
  %v312 = vunpack.c.h.b16 %v34
  %v313 = vunpack.c.l.b16 %v35
  %v314 = vunpack.c.l.b16 %v36
  %v315 = vunpack.c.h.b16 %v36
  %v316 = vunpack.c.l.b16 %v37
  %v317 = vunpack.c.h.b16 %v37
  %v318 = vunpack.c.l.b16 %v38
  %v319 = vunpack.c.l.b16 %v39
  %v320 = vunpack.c.h.b16 %v39
  %v321 = vunpack.c.l.b16 %v40
  %v322 = vunpack.c.h.b16 %v40
  %v323 = vunpack.c.l.b16 %v41
  %v324 = vunpack.c.l.b16 %v42
  %v325 = vunpack.c.h.b16 %v42
  %v326 = vunpack.c.l.b16 %v43
  %v327 = vunpack.c.h.b16 %v43
  %v328 = vunpack.c.l.b16 %v44
  %v329 = vunpack.c.l.b16 %v45
  %v330 = vunpack.c.h.b16 %v45
  %v331 = vunpack.c.l.b16 %v46
  %v332 = vunpack.c.h.b16 %v46
  %v333 = vunpack.c.l.b16 %v47
  %v334 = vunpack.c.l.b16 %v48
  %v335 = vunpack.c.h.b16 %v48
  %v336 = vunpack.c.l.b16 %v49
  %v337 = vunpack.c.h.b16 %v49
  %v338 = vunpack.c.l.b16 %v50
  %v339 = vunpack.c.l.b16 %v51
  %v340 = vunpack.c.h.b16 %v51
  %v341 = vunpack.c.l.b16 %v52
  %v342 = vunpack.c.h.b16 %v52
  %v343 = vunpack.c.l.b16 %v53
  %v344 = vunpack.c.l.b16 %v54
  %v345 = vunpack.c.h.b16 %v54
  %v346 = vunpack.c.l.b16 %v55
  %v347 = vunpack.c.h.b16 %v55
  %v348 = vunpack.c.l.b16 %v56
  %v349 = vunpack.c.l.b16 %v57
  %v350 = vunpack.c.h.b16 %v57
  %v351 = vunpack.c.l.b16 %v58
  %v352 = vunpack.c.h.b16 %v58
  %v353 = vunpack.c.l.b16 %v59
  %v354 = vunpack.c.l.b16 %v60
  %v355 = vunpack.c.h.b16 %v60
  %v356 = vunpack.c.l.b16 %v61
  %v357 = vunpack.c.h.b16 %v61
  %v358 = vunpack.c.l.b16 %v62
  %v359 = vpack.c.b16 %v284, %v279
  %v360 = vpack.c.b16 %v285, %v280
  %v361 = vpack.c.b16 %v286, %v281
  %v362 = vpack.c.b16 %v287, %v282
  %v363 = vpack.c.b16 %v288, %v283
  %v364 = vpack.c.b16 %v294, %v289
  %v365 = vpack.c.b16 %v295, %v290
  %v366 = vpack.c.b16 %v296, %v291
  %v367 = vpack.c.b16 %v297, %v292
  %v368 = vpack.c.b16 %v298, %v293
  %v369 = vpack.c.b16 %v304, %v299
  %v370 = vpack.c.b16 %v305, %v300
  %v371 = vpack.c.b16 %v306, %v301
  %v372 = vpack.c.b16 %v307, %v302
  %v373 = vpack.c.b16 %v308, %v303
  %v374 = vpack.c.b16 %v314, %v309
  %v375 = vpack.c.b16 %v315, %v310
  %v376 = vpack.c.b16 %v316, %v311
  %v377 = vpack.c.b16 %v317, %v312
  %v378 = vpack.c.b16 %v318, %v313
  %v379 = vpack.c.b16 %v324, %v319
  %v380 = vpack.c.b16 %v325, %v320
  %v381 = vpack.c.b16 %v326, %v321
  %v382 = vpack.c.b16 %v327, %v322
  %v383 = vpack.c.b16 %v328, %v323
  %v384 = vpack.c.b16 %v334, %v329
  %v385 = vpack.c.b16 %v335, %v330
  %v386 = vpack.c.b16 %v336, %v331
  %v387 = vpack.c.b16 %v337, %v332
  %v388 = vpack.c.b16 %v338, %v333
  %v389 = vpack.c.b16 %v344, %v339
  %v390 = vpack.c.b16 %v345, %v340
  %v391 = vpack.c.b16 %v346, %v341
  %v392 = vpack.c.b16 %v347, %v342
  %v393 = vpack.c.b16 %v348, %v343
  %v394 = vpack.c.b16 %v354, %v349
  %v395 = vpack.c.b16 %v355, %v350
  %v396 = vpack.c.b16 %v356, %v351
  %v397 = vpack.c.b16 %v357, %v352
  %v398 = vpack.c.b16 %v358, %v353
  %v503 = vunpack.c.l.b16 %v63
  %v504 = vunpack.c.l.b16 %v64
  %v505 = vunpack.c.l.b16 %v65
  %v506 = vunpack.c.l.b16 %v66
  %v507 = vunpack.c.l.b16 %v67
  %v508 = vunpack.c.l.b16 %v68
  %v509 = vunpack.c.l.b16 %v69
  %v510 = vunpack.c.l.b16 %v70
  %v511 = vunpack.c.l.b16 %v71
  %v512 = vunpack.c.l.b16 %v72
  %v513 = vunpack.c.l.b16 %v73
  %v514 = vunpack.c.l.b16 %v74
  %v515 = vunpack.c.l.b16 %v75
  %v516 = vunpack.c.l.b16 %v76
  %v517 = vunpack.c.l.b16 %v77
  %v518 = vunpack.c.l.b16 %v78
  %v519 = vunpack.c.l.b16 %v79
  %v520 = vunpack.c.l.b16 %v80
  %v521 = vunpack.c.l.b16 %v81
  %v522 = vunpack.c.l.b16 %v82
  %v523 = vunpack.c.l.b16 %v83
  %v524 = vunpack.c.l.b16 %v84
  %v525 = vunpack.c.l.b16 %v85
  %v526 = vunpack.c.l.b16 %v86
  %v527 = vunpack.c.l.b16 %v87
  %v528 = vunpack.c.l.b16 %v88
  %v529 = vunpack.c.l.b16 %v89
  %v530 = vunpack.c.l.b16 %v90
  %v531 = vunpack.c.l.b16 %v91
  %v532 = vunpack.c.l.b16 %v92
  %v533 = vunpack.c.l.b16 %v93
  %v534 = vunpack.c.l.b16 %v94
  %v535 = vunpack.c.l.b16 %v95
  %v536 = vunpack.c.l.b16 %v96
  %v537 = vunpack.c.l.b16 %v97
  %v538 = vunpack.c.l.b16 %v98
  %v539 = vunpack.c.l.b16 %v99
  %v540 = vunpack.c.l.b16 %v100
  %v541 = vunpack.c.l.b16 %v101
  %v542 = vunpack.c.l.b16 %v102
  %v543 = vunpack.c.l.b16 %v103
  %v544 = vunpack.c.l.b16 %v104
  %v545 = vunpack.c.l.b16 %v105
  %v546 = vunpack.c.l.b16 %v106
  %v547 = vunpack.c.l.b16 %v107
  %v548 = vunpack.c.l.b16 %v108
  %v549 = vunpack.c.l.b16 %v109
  %v550 = vunpack.c.l.b16 %v110
  %v551 = vunpack.c.l.b16 %v111
  %v552 = vunpack.c.l.b16 %v112
  %v553 = vunpack.c.l.b16 %v113
  %v554 = vunpack.c.l.b16 %v114
  %v555 = vunpack.c.l.b16 %v115
  %v556 = vunpack.c.l.b16 %v116
  %v557 = vunpack.c.l.b16 %v117
  %v558 = vunpack.c.l.b16 %v118
  %v559 = vunpack.c.l.b16 %v119
  %v560 = vunpack.c.l.b16 %v120
  %v561 = vunpack.c.l.b16 %v121
  %v562 = vunpack.c.l.b16 %v122
  %v563 = vunpack.c.l.b16 %v123
  %v564 = vunpack.c.l.b16 %v124
  %v565 = vunpack.c.l.b16 %v125
  %v566 = vunpack.c.l.b16 %v126
  %v567 = vunpack.c.l.b16 %v127
  %v568 = vunpack.c.l.b16 %v128
  %v569 = vunpack.c.l.b16 %v129
  %v570 = vunpack.c.l.b16 %v130
  %v571 = vunpack.c.l.b16 %v131
  %v572 = vunpack.c.l.b16 %v132
  %v573 = vunpack.c.l.b16 %v133
  %v574 = vunpack.c.l.b16 %v134
  %v575 = vpack.c.b16 %v504, %v503
  %v576 = vpack.c.b16 %v506, %v505
  %v577 = vpack.c.b16 %v508, %v507
  %v578 = vpack.c.b16 %v510, %v509
  %v579 = vpack.c.b16 %v512, %v511
  %v580 = vpack.c.b16 %v514, %v513
  %v581 = vpack.c.b16 %v516, %v515
  %v582 = vpack.c.b16 %v518, %v517
  %v583 = vpack.c.b16 %v520, %v519
  %v584 = vpack.c.b16 %v522, %v521
  %v585 = vpack.c.b16 %v524, %v523
  %v586 = vpack.c.b16 %v526, %v525
  %v587 = vpack.c.b16 %v528, %v527
  %v588 = vpack.c.b16 %v530, %v529
  %v589 = vpack.c.b16 %v532, %v531
  %v590 = vpack.c.b16 %v534, %v533
  %v591 = vpack.c.b16 %v536, %v535
  %v592 = vpack.c.b16 %v538, %v537
  %v593 = vpack.c.b16 %v540, %v539
  %v594 = vpack.c.b16 %v542, %v541
  %v595 = vpack.c.b16 %v544, %v543
  %v596 = vpack.c.b16 %v546, %v545
  %v597 = vpack.c.b16 %v548, %v547
  %v598 = vpack.c.b16 %v550, %v549
  %v599 = vpack.c.b16 %v552, %v551
  %v600 = vpack.c.b16 %v554, %v553
  %v601 = vpack.c.b16 %v556, %v555
  %v602 = vpack.c.b16 %v558, %v557
  %v603 = vpack.c.b16 %v560, %v559
  %v604 = vpack.c.b16 %v562, %v561
  %v605 = vpack.c.b16 %v564, %v563
  %v606 = vpack.c.b16 %v566, %v565
  %v607 = vpack.c.b16 %v568, %v567
  %v608 = vpack.c.b16 %v570, %v569
  %v609 = vpack.c.b16 %v572, %v571
  %v610 = vpack.c.b16 %v574, %v573
  %vm647 = vcmask 523264
  %v649 = vsel %vm647, %v363, 0
  %v652 = vsel %vm647, %v368, 0
  %v655 = vsel %vm647, %v373, 0
  %v658 = vsel %vm647, %v378, 0
  %v661 = vsel %vm647, %v383, 0
  %v664 = vsel %vm647, %v388, 0
  %v667 = vsel %vm647, %v393, 0
  %v670 = vsel %vm647, %v398, 0
  %672 = vmatprep.subr.bf16.mxu0 0
  %673 = vmatpush1.bf16.msra.mxu0 %v575
  %674 = vmatprep.subr.bf16.mxu0 0
  %675 = vmatpush1.bf16.msra.mxu0 %v576
  %676 = vmatprep.subr.bf16.mxu0 0
  %677 = vmatpush1.bf16.msra.mxu0 %v577
  %678 = vmatprep.subr.bf16.mxu0 0
  %679 = vmatpush1.bf16.msra.mxu0 %v578
  %680 = vmatprep.subr.bf16.mxu0 0
  %681 = vmatpush1.bf16.msra.mxu0 %v579
  %682 = vmatprep.subr.bf16.mxu0 0
  %683 = vmatpush1.bf16.msra.mxu0 %v580
  %684 = vmatprep.subr.bf16.mxu0 0
  %685 = vmatpush1.bf16.msra.mxu0 %v581
  %686 = vmatprep.subr.bf16.mxu0 0
  %687 = vmatpush1.bf16.msra.mxu0 %v582
  %688 = vmatprep.subr.bf16.mxu0 0
  %689 = vmatpush1.bf16.msra.mxu0 %v583
  %690 = vmatprep.subr.bf16.mxu0 0
  %691 = vmatpush1.bf16.msra.mxu0 %v584
  %692 = vmatprep.subr.bf16.mxu0 0
  %693 = vmatpush1.bf16.msra.mxu0 %v585
  %694 = vmatprep.subr.bf16.mxu0 0
  %695 = vmatpush1.bf16.msra.mxu0 %v586
  %696 = vmatprep.subr.bf16.mxu0 0
  %697 = vmatpush1.bf16.msra.mxu0 %v587
  %698 = vmatprep.subr.bf16.mxu0 0
  %699 = vmatpush1.bf16.msra.mxu0 %v588
  %700 = vmatprep.subr.bf16.mxu0 0
  %701 = vmatpush1.bf16.msra.mxu0 %v589
  %702 = vmatprep.subr.bf16.mxu0 0
  %703 = vmatpush1.bf16.msra.mxu0 %v590
  %704 = vmatprep.mubr.bf16.mxu0 %v360
  %705 = vmatmul.mubr.bf16.gmra.mrb[0].mxu0 %v359
  %v706 = vpop.f32.mrb[0].mxu0
  %v707 = vadd.f32 %v154, %v706
  %v708 = vpop.f32.mrb[0].mxu0
  %v709 = vpop.f32.mrb[0].mxu0
  %v710 = vadd.f32 %v159, %v709
  %v711 = vpop.f32.mrb[0].mxu0
  %712 = vmatprep.mubr.bf16.mxu0 %v365
  %713 = vmatmul.mubr.bf16.gmra.mrb[0].mxu0 %v364
  %v714 = vpop.f32.mrb[0].mxu0
  %v715 = vadd.f32 %v164, %v714
  %v716 = vpop.f32.mrb[0].mxu0
  %v717 = vpop.f32.mrb[0].mxu0
  %v718 = vadd.f32 %v169, %v717
  %v719 = vpop.f32.mrb[0].mxu0
  %720 = vmatprep.mubr.bf16.mxu0 %v370
  %721 = vmatmul.mubr.bf16.gmra.mrb[0].mxu0 %v369
  %v722 = vpop.f32.mrb[0].mxu0
  %v723 = vadd.f32 %v174, %v722
  %v724 = vpop.f32.mrb[0].mxu0
  %v725 = vpop.f32.mrb[0].mxu0
  %v726 = vadd.f32 %v179, %v725
  %v727 = vpop.f32.mrb[0].mxu0
  %728 = vmatprep.mubr.bf16.mxu0 %v375
  %729 = vmatmul.mubr.bf16.gmra.mrb[0].mxu0 %v374
  %v730 = vpop.f32.mrb[0].mxu0
  %v731 = vadd.f32 %v184, %v730
  %v732 = vpop.f32.mrb[0].mxu0
  %v733 = vpop.f32.mrb[0].mxu0
  %v734 = vadd.f32 %v189, %v733
  %v735 = vpop.f32.mrb[0].mxu0
  %736 = vmatprep.mubr.bf16.mxu0 %v380
  %737 = vmatmul.mubr.bf16.gmra.mrb[0].mxu0 %v379
  %v738 = vpop.f32.mrb[0].mxu0
  %v739 = vadd.f32 %v194, %v738
  %v740 = vpop.f32.mrb[0].mxu0
  %v741 = vpop.f32.mrb[0].mxu0
  %v742 = vadd.f32 %v199, %v741
  %v743 = vpop.f32.mrb[0].mxu0
  %744 = vmatprep.mubr.bf16.mxu0 %v385
  %745 = vmatmul.mubr.bf16.gmra.mrb[0].mxu0 %v384
  %v746 = vpop.f32.mrb[0].mxu0
  %v747 = vadd.f32 %v204, %v746
  %v748 = vpop.f32.mrb[0].mxu0
  %v749 = vpop.f32.mrb[0].mxu0
  %v750 = vadd.f32 %v209, %v749
  %v751 = vpop.f32.mrb[0].mxu0
  %752 = vmatprep.mubr.bf16.mxu0 %v390
  %753 = vmatmul.mubr.bf16.gmra.mrb[0].mxu0 %v389
  %v754 = vpop.f32.mrb[0].mxu0
  %v755 = vadd.f32 %v214, %v754
  %v756 = vpop.f32.mrb[0].mxu0
  %v757 = vpop.f32.mrb[0].mxu0
  %v758 = vadd.f32 %v219, %v757
  %v759 = vpop.f32.mrb[0].mxu0
  %760 = vmatprep.mubr.bf16.mxu0 %v395
  %761 = vmatmul.mubr.bf16.gmra.mrb[0].mxu0 %v394
  %v762 = vpop.f32.mrb[0].mxu0
  %v763 = vadd.f32 %v224, %v762
  %v764 = vpop.f32.mrb[0].mxu0
  %v765 = vpop.f32.mrb[0].mxu0
  %v766 = vadd.f32 %v229, %v765
  %v767 = vpop.f32.mrb[0].mxu0
  %768 = vdwg.mxu0
  %769 = vmatprep.subr.bf16.mxu0 0
  %770 = vmatpush1.bf16.msra.mxu0 %v591
  %771 = vmatprep.subr.bf16.mxu0 0
  %772 = vmatpush1.bf16.msra.mxu0 %v592
  %773 = vmatprep.subr.bf16.mxu0 0
  %774 = vmatpush1.bf16.msra.mxu0 %v593
  %775 = vmatprep.subr.bf16.mxu0 0
  %776 = vmatpush1.bf16.msra.mxu0 %v594
  %777 = vmatprep.subr.bf16.mxu0 0
  %778 = vmatpush1.bf16.msra.mxu0 %v595
  %779 = vmatprep.subr.bf16.mxu0 0
  %780 = vmatpush1.bf16.msra.mxu0 %v596
  %781 = vmatprep.subr.bf16.mxu0 0
  %782 = vmatpush1.bf16.msra.mxu0 %v597
  %783 = vmatprep.subr.bf16.mxu0 0
  %784 = vmatpush1.bf16.msra.mxu0 %v598
  %785 = vmatprep.subr.bf16.mxu0 0
  %786 = vmatpush1.bf16.msra.mxu0 %v599
  %787 = vmatprep.subr.bf16.mxu0 0
  %788 = vmatpush1.bf16.msra.mxu0 %v600
  %789 = vmatprep.subr.bf16.mxu0 0
  %790 = vmatpush1.bf16.msra.mxu0 %v601
  %791 = vmatprep.subr.bf16.mxu0 0
  %792 = vmatpush1.bf16.msra.mxu0 %v602
  %793 = vmatprep.subr.bf16.mxu0 0
  %794 = vmatpush1.bf16.msra.mxu0 %v603
  %795 = vmatprep.subr.bf16.mxu0 0
  %796 = vmatpush1.bf16.msra.mxu0 %v604
  %797 = vmatprep.subr.bf16.mxu0 0
  %798 = vmatpush1.bf16.msra.mxu0 %v605
  %799 = vmatprep.subr.bf16.mxu0 0
  %800 = vmatpush1.bf16.msra.mxu0 %v606
  %801 = vmatprep.mubr.bf16.mxu0 %v362
  %802 = vmatmul.mubr.bf16.gmra.mrb[0].mxu0 %v361
  %v803 = vpop.f32.mrb[0].mxu0
  %v804 = vadd.f32 %v707, %v803
  %v805 = vpop.f32.mrb[0].mxu0
  %v806 = vpop.f32.mrb[0].mxu0
  %v807 = vadd.f32 %v710, %v806
  %v808 = vpop.f32.mrb[0].mxu0
  %809 = vmatprep.mubr.bf16.mxu0 %v367
  %810 = vmatmul.mubr.bf16.gmra.mrb[0].mxu0 %v366
  %v811 = vpop.f32.mrb[0].mxu0
  %v812 = vadd.f32 %v715, %v811
  %v813 = vpop.f32.mrb[0].mxu0
  %v814 = vpop.f32.mrb[0].mxu0
  %v815 = vadd.f32 %v718, %v814
  %v816 = vpop.f32.mrb[0].mxu0
  %817 = vmatprep.mubr.bf16.mxu0 %v372
  %818 = vmatmul.mubr.bf16.gmra.mrb[0].mxu0 %v371
  %v819 = vpop.f32.mrb[0].mxu0
  %v820 = vadd.f32 %v723, %v819
  %v821 = vpop.f32.mrb[0].mxu0
  %v822 = vpop.f32.mrb[0].mxu0
  %v823 = vadd.f32 %v726, %v822
  %v824 = vpop.f32.mrb[0].mxu0
  %825 = vmatprep.mubr.bf16.mxu0 %v377
  %826 = vmatmul.mubr.bf16.gmra.mrb[0].mxu0 %v376
  %v827 = vpop.f32.mrb[0].mxu0
  %v828 = vadd.f32 %v731, %v827
  %v829 = vpop.f32.mrb[0].mxu0
  %v830 = vpop.f32.mrb[0].mxu0
  %v831 = vadd.f32 %v734, %v830
  %v832 = vpop.f32.mrb[0].mxu0
  %833 = vmatprep.mubr.bf16.mxu0 %v382
  %834 = vmatmul.mubr.bf16.gmra.mrb[0].mxu0 %v381
  %v835 = vpop.f32.mrb[0].mxu0
  %v836 = vadd.f32 %v739, %v835
  %v837 = vpop.f32.mrb[0].mxu0
  %v838 = vpop.f32.mrb[0].mxu0
  %v839 = vadd.f32 %v742, %v838
  %v840 = vpop.f32.mrb[0].mxu0
  %841 = vmatprep.mubr.bf16.mxu0 %v387
  %842 = vmatmul.mubr.bf16.gmra.mrb[0].mxu0 %v386
  %v843 = vpop.f32.mrb[0].mxu0
  %v844 = vadd.f32 %v747, %v843
  %v845 = vpop.f32.mrb[0].mxu0
  %v846 = vpop.f32.mrb[0].mxu0
  %v847 = vadd.f32 %v750, %v846
  %v848 = vpop.f32.mrb[0].mxu0
  %849 = vmatprep.mubr.bf16.mxu0 %v392
  %850 = vmatmul.mubr.bf16.gmra.mrb[0].mxu0 %v391
  %v851 = vpop.f32.mrb[0].mxu0
  %v852 = vadd.f32 %v755, %v851
  %v853 = vpop.f32.mrb[0].mxu0
  %v854 = vpop.f32.mrb[0].mxu0
  %v855 = vadd.f32 %v758, %v854
  %v856 = vpop.f32.mrb[0].mxu0
  %857 = vmatprep.mubr.bf16.mxu0 %v397
  %858 = vmatmul.mubr.bf16.gmra.mrb[0].mxu0 %v396
  %v859 = vpop.f32.mrb[0].mxu0
  %v860 = vadd.f32 %v763, %v859
  %v861 = vpop.f32.mrb[0].mxu0
  %v862 = vpop.f32.mrb[0].mxu0
  %v863 = vadd.f32 %v766, %v862
  %v864 = vpop.f32.mrb[0].mxu0
  %865 = vdwg.mxu0
  %866 = vmatprep.subr.bf16.mxu0 0
  %867 = vmatpush1.bf16.msra.mxu0 %v607
  %868 = vmatprep.subr.bf16.mxu0 0
  %869 = vmatpush1.bf16.msra.mxu0 %v608
  %870 = vmatprep.subr.bf16.mxu0 0
  %871 = vmatpush1.bf16.msra.mxu0 %v609
  %872 = vmatprep.subr.bf16.mxu0 0
  %873 = vmatpush1.bf16.msra.mxu0 %v610
  %874 = vmatprep.subr.bf16.mxu0 0
  %875 = vmatpush1.bf16.msra.mxu0 0
  %876 = vmatprep.subr.bf16.mxu0 0
  %877 = vmatpush1.bf16.msra.mxu0 0
  %878 = vmatprep.subr.bf16.mxu0 0
  %879 = vmatpush1.bf16.msra.mxu0 0
  %880 = vmatprep.subr.bf16.mxu0 0
  %881 = vmatpush1.bf16.msra.mxu0 0
  %882 = vmatprep.subr.bf16.mxu0 0
  %883 = vmatpush1.bf16.msra.mxu0 0
  %884 = vmatprep.subr.bf16.mxu0 0
  %885 = vmatpush1.bf16.msra.mxu0 0
  %886 = vmatprep.subr.bf16.mxu0 0
  %887 = vmatpush1.bf16.msra.mxu0 0
  %888 = vmatprep.subr.bf16.mxu0 0
  %889 = vmatpush1.bf16.msra.mxu0 0
  %890 = vmatprep.subr.bf16.mxu0 0
  %891 = vmatpush1.bf16.msra.mxu0 0
  %892 = vmatprep.subr.bf16.mxu0 0
  %893 = vmatpush1.bf16.msra.mxu0 0
  %894 = vmatprep.subr.bf16.mxu0 0
  %895 = vmatpush1.bf16.msra.mxu0 0
  %896 = vmatprep.subr.bf16.mxu0 0
  %897 = vmatpush1.bf16.msra.mxu0 0
  %898 = vmatprep.mubr.bf16.mxu0 0
  %899 = vmatmul.mubr.bf16.gmra.mrb[0].mxu0 %v649
  %v900 = vpop.f32.mrb[0].mxu0
  %v901 = vadd.f32 %v804, %v900
  %v902 = vpop.f32.mrb[0].mxu0
  %v903 = vpop.f32.mrb[0].mxu0
  %v904 = vadd.f32 %v807, %v903
  %v905 = vpop.f32.mrb[0].mxu0
  %906 = vmatprep.mubr.bf16.mxu0 0
  %907 = vmatmul.mubr.bf16.gmra.mrb[0].mxu0 %v652
  %v908 = vpop.f32.mrb[0].mxu0
  %v909 = vadd.f32 %v812, %v908
  %v910 = vpop.f32.mrb[0].mxu0
  %v911 = vpop.f32.mrb[0].mxu0
  %v912 = vadd.f32 %v815, %v911
  %v913 = vpop.f32.mrb[0].mxu0
  %914 = vmatprep.mubr.bf16.mxu0 0
  %915 = vmatmul.mubr.bf16.gmra.mrb[0].mxu0 %v655
  %v916 = vpop.f32.mrb[0].mxu0
  %v917 = vadd.f32 %v820, %v916
  %v918 = vpop.f32.mrb[0].mxu0
  %v919 = vpop.f32.mrb[0].mxu0
  %v920 = vadd.f32 %v823, %v919
  %v921 = vpop.f32.mrb[0].mxu0
  %922 = vmatprep.mubr.bf16.mxu0 0
  %923 = vmatmul.mubr.bf16.gmra.mrb[0].mxu0 %v658
  %v924 = vpop.f32.mrb[0].mxu0
  %v925 = vadd.f32 %v828, %v924
  %v926 = vpop.f32.mrb[0].mxu0
  %v927 = vpop.f32.mrb[0].mxu0
  %v928 = vadd.f32 %v831, %v927
  %v929 = vpop.f32.mrb[0].mxu0
  %930 = vmatprep.mubr.bf16.mxu0 0
  %931 = vmatmul.mubr.bf16.gmra.mrb[0].mxu0 %v661
  %v932 = vpop.f32.mrb[0].mxu0
  %v933 = vadd.f32 %v836, %v932
  %v934 = vpop.f32.mrb[0].mxu0
  %v935 = vpop.f32.mrb[0].mxu0
  %v936 = vadd.f32 %v839, %v935
  %v937 = vpop.f32.mrb[0].mxu0
  %938 = vmatprep.mubr.bf16.mxu0 0
  %939 = vmatmul.mubr.bf16.gmra.mrb[0].mxu0 %v664
  %v940 = vpop.f32.mrb[0].mxu0
  %v941 = vadd.f32 %v844, %v940
  %v942 = vpop.f32.mrb[0].mxu0
  %v943 = vpop.f32.mrb[0].mxu0
  %v944 = vadd.f32 %v847, %v943
  %v945 = vpop.f32.mrb[0].mxu0
  %946 = vmatprep.mubr.bf16.mxu0 0
  %947 = vmatmul.mubr.bf16.gmra.mrb[0].mxu0 %v667
  %v948 = vpop.f32.mrb[0].mxu0
  %v949 = vadd.f32 %v852, %v948
  %v950 = vpop.f32.mrb[0].mxu0
  %v951 = vpop.f32.mrb[0].mxu0
  %v952 = vadd.f32 %v855, %v951
  %v953 = vpop.f32.mrb[0].mxu0
  %954 = vmatprep.mubr.bf16.mxu0 0
  %955 = vmatmul.mubr.bf16.gmra.mrb[0].mxu0 %v670
  %v956 = vpop.f32.mrb[0].mxu0
  %v957 = vadd.f32 %v860, %v956
  %v958 = vpop.f32.mrb[0].mxu0
  %v959 = vpop.f32.mrb[0].mxu0
  %v960 = vadd.f32 %v863, %v959
  %v961 = vpop.f32.mrb[0].mxu0
  %962 = vdwg.mxu0
  %963 = vst [vmem:[%s3] sm:$0xff] %v901
  %964 = vst [vmem:[%s3 + $0x8] sm:$0xff] %v904
  %965 = vst [vmem:[%s3 + $0x10] sm:$0xff] %v909
  %966 = vst [vmem:[%s3 + $0x18] sm:$0xff] %v912
  %967 = vst [vmem:[%s3 + $0x20] sm:$0xff] %v917
  %968 = vst [vmem:[%s3 + $0x28] sm:$0xff] %v920
  %969 = vst [vmem:[%s3 + $0x30] sm:$0xff] %v925
  %970 = vst [vmem:[%s3 + $0x38] sm:$0xff] %v928
  %971 = vst [vmem:[%s3 + $0x40] sm:$0xff] %v933
  %972 = vst [vmem:[%s3 + $0x48] sm:$0xff] %v936
  %973 = vst [vmem:[%s3 + $0x50] sm:$0xff] %v941
  %974 = vst [vmem:[%s3 + $0x58] sm:$0xff] %v944
  %975 = vst [vmem:[%s3 + $0x60] sm:$0xff] %v949
  %976 = vst [vmem:[%s3 + $0x68] sm:$0xff] %v952
  %977 = vst [vmem:[%s3 + $0x70] sm:$0xff] %v957
  %978 = vst [vmem:[%s3 + $0x78] sm:$0xff] %v960
  // Predicated region
  $region14: #{conv_trans_forward.13} parent=0 // pred_check
    _
  $region15: #{conv_trans_forward.13} parent=0 // pred_check_branch
    %980 = sbr.rel (0) target = $region17
  $region16: #{conv_trans_forward.13} parent=0 // pred_region
    _
  $region17: #{conv_trans_forward.13} parent=0 // pred_fallthru
    _
  // Predicated region
  $region18: #{conv_trans_forward.13} parent=0 // pred_check
    _
  $region19: #{conv_trans_forward.13} parent=0 // pred_check_branch
    %982 = sbr.rel (0) target = $region21
  $region20: #{conv_trans_forward.13} parent=0 // pred_region
    _
  $region21: #{conv_trans_forward.13} parent=0 // pred_fallthru
    _

// kernel: conv_trans_forward.14
$region0: #{conv_trans_forward.14}
  #allocation0 [shape = 'u32[]', space=smem, size = 0x4, offset = 0x4, fixed_abs, tag = 'smem constant byte address 0x4 - core index']
  #allocation1 [shape = 'u32[144,128]{1,0:T(1,128)}', space=vmem, size = 0x12000, scoped, tag = 'internal scratch']
  %s0 = inlined_call_operand.vmem [shape: f32[16,128], index: 0, kind: input, shape index: {}]
  %s1 = inlined_call_operand.vmem [shape: f32[16,16], index: 1, kind: input, shape index: {}]
  %s2 = inlined_call_operand.vmem [shape: bf16[128,384], index: 2, kind: input, shape index: {}]
  %s3 = inlined_call_operand.vmem [shape: f32[1,384], index: 3, kind: input, shape index: {}]
  %s4 = inlined_call_operand.vmem [shape: bf16[128,128], index: 4, kind: input, shape index: {}]
  %s5 = inlined_call_operand.vmem [shape: f32[1,128], index: 5, kind: input, shape index: {}]
  %s6 = inlined_call_operand.vmem [shape: f32[1,128], index: 6, kind: input, shape index: {}]
  %s7 = inlined_call_operand.vmem [shape: f32[1,128], index: 7, kind: input, shape index: {}]
  %s8 = inlined_call_operand.vmem [shape: bf16[128,2048], index: 8, kind: input, shape index: {}]
  %s9 = inlined_call_operand.vmem [shape: f32[1,2048], index: 9, kind: input, shape index: {}]
  %s10 = inlined_call_operand.vmem [shape: bf16[2048,128], index: 10, kind: input, shape index: {}]
  %s11 = inlined_call_operand.vmem [shape: f32[1,128], index: 11, kind: input, shape index: {}]
  %s12 = inlined_call_operand.vmem [shape: f32[1,128], index: 12, kind: input, shape index: {}]
  %s13 = inlined_call_operand.vmem [shape: f32[1,128], index: 13, kind: input, shape index: {}]
  %s14 = inlined_call_operand.vmem [shape: f32[16,128], index: 14, kind: output, shape index: {}]
  %s15 = sld [smem:[#allocation0]]
  $region66: #{conv_trans_forward.14} parent=0
    _
  %s17 = ssub.s32 1, %s15
  %s18 = scalar_select 0, %s17, %s15
  // Predicated region
  $region2: #{conv_trans_forward.14} parent=0 // pred_check
    _
  $region3: #{conv_trans_forward.14} parent=0 // pred_check_branch
    %20 = sbr.rel (0) target = $region5
  $region4: #{conv_trans_forward.14} parent=0 // pred_region
    _
  $region5: #{conv_trans_forward.14} parent=0 // pred_fallthru
    _
  // Predicated region
  $region6: #{conv_trans_forward.14} parent=0 // pred_check
    _
  $region7: #{conv_trans_forward.14} parent=0 // pred_check_branch
    %22 = sbr.rel (0) target = $region9
  $region8: #{conv_trans_forward.14} parent=0 // pred_region
    _
  $region9: #{conv_trans_forward.14} parent=0 // pred_fallthru
    _
  // Predicated region
  $region10: #{conv_trans_forward.14} parent=0 // pred_check
    _
  $region11: #{conv_trans_forward.14} parent=0 // pred_check_branch
    %24 = sbr.rel (0) target = $region13
  $region12: #{conv_trans_forward.14} parent=0 // pred_region
    _
  $region13: #{conv_trans_forward.14} parent=0 // pred_fallthru
    _
  // Predicated region
  $region14: #{conv_trans_forward.14} parent=0 // pred_check
    _
  $region15: #{conv_trans_forward.14} parent=0 // pred_check_branch
    %26 = sbr.rel (0) target = $region17
  $region16: #{conv_trans_forward.14} parent=0 // pred_region
    _
  $region17: #{conv_trans_forward.14} parent=0 // pred_fallthru
    _
  // Predicated region
  $region18: #{conv_trans_forward.14} parent=0 // pred_check
    _
  $region19: #{conv_trans_forward.14} parent=0 // pred_check_branch
    %28 = sbr.rel (0) target = $region21
  $region20: #{conv_trans_forward.14} parent=0 // pred_region
    _
  $region21: #{conv_trans_forward.14} parent=0 // pred_fallthru
    _
  // Predicated region
  $region22: #{conv_trans_forward.14} parent=0 // pred_check
    _
  $region23: #{conv_trans_forward.14} parent=0 // pred_check_branch
    %30 = sbr.rel (0) target = $region25
  $region24: #{conv_trans_forward.14} parent=0 // pred_region
    _
  $region25: #{conv_trans_forward.14} parent=0 // pred_fallthru
    _
  // Predicated region
  $region26: #{conv_trans_forward.14} parent=0 // pred_check
    _
  $region27: #{conv_trans_forward.14} parent=0 // pred_check_branch
    %32 = sbr.rel (0) target = $region29
  $region28: #{conv_trans_forward.14} parent=0 // pred_region
    _
  $region29: #{conv_trans_forward.14} parent=0 // pred_fallthru
    _
  // Predicated region
  $region30: #{conv_trans_forward.14} parent=0 // pred_check
    _
  $region31: #{conv_trans_forward.14} parent=0 // pred_check_branch
    %34 = sbr.rel (0) target = $region33
  $region32: #{conv_trans_forward.14} parent=0 // pred_region
    _
  $region33: #{conv_trans_forward.14} parent=0 // pred_fallthru
    _
  // Predicated region
  $region34: #{conv_trans_forward.14} parent=0 // pred_check
    _
  $region35: #{conv_trans_forward.14} parent=0 // pred_check_branch
    %36 = sbr.rel (0) target = $region37
  $region36: #{conv_trans_forward.14} parent=0 // pred_region
    _
  $region37: #{conv_trans_forward.14} parent=0 // pred_fallthru
    _
  // Predicated region
  $region38: #{conv_trans_forward.14} parent=0 // pred_check
    _
  $region39: #{conv_trans_forward.14} parent=0 // pred_check_branch
    %38 = sbr.rel (0) target = $region41
  $region40: #{conv_trans_forward.14} parent=0 // pred_region
    _
  $region41: #{conv_trans_forward.14} parent=0 // pred_fallthru
    _
  // Predicated region
  $region42: #{conv_trans_forward.14} parent=0 // pred_check
    _
  $region43: #{conv_trans_forward.14} parent=0 // pred_check_branch
    %40 = sbr.rel (0) target = $region45
  $region44: #{conv_trans_forward.14} parent=0 // pred_region
    _
  $region45: #{conv_trans_forward.14} parent=0 // pred_fallthru
    _
  // Predicated region
  $region46: #{conv_trans_forward.14} parent=0 // pred_check
    _
  $region47: #{conv_trans_forward.14} parent=0 // pred_check_branch
    %42 = sbr.rel (0) target = $region49
  $region48: #{conv_trans_forward.14} parent=0 // pred_region
    _
  $region49: #{conv_trans_forward.14} parent=0 // pred_fallthru
    _
  // Predicated region
  $region50: #{conv_trans_forward.14} parent=0 // pred_check
    _
  $region51: #{conv_trans_forward.14} parent=0 // pred_check_branch
    %44 = sbr.rel (0) target = $region53
  $region52: #{conv_trans_forward.14} parent=0 // pred_region
    _
  $region53: #{conv_trans_forward.14} parent=0 // pred_fallthru
    _
  // Predicated region
  $region54: #{conv_trans_forward.14} parent=0 // pred_check
    _
  $region55: #{conv_trans_forward.14} parent=0 // pred_check_branch
    %46 = sbr.rel (0) target = $region57
  $region56: #{conv_trans_forward.14} parent=0 // pred_region
    _
  $region57: #{conv_trans_forward.14} parent=0 // pred_fallthru
    _
  %v48 = vld [vmem:[%s0] sm:$0xff]
  %v49 = vld [vmem:[%s0 + $0x8] sm:$0xff]
  %v50 = vpack.c.bf16 %v49, %v48
  %v51 = vld [vmem:[%s2] sm:$0xff]
  %v52 = vld [vmem:[%s2 + $0x8] sm:$0xf]
  %v53 = vld [vmem:[%s2 + $0xc] sm:$0xff]
  %v54 = vld [vmem:[%s2 + $0x14] sm:$0xf]
  %v55 = vld [vmem:[%s2 + $0x18] sm:$0xff]
  %v56 = vld [vmem:[%s2 + $0x20] sm:$0xf]
  %v57 = vld [vmem:[%s2 + $0x24] sm:$0xff]
  %v58 = vld [vmem:[%s2 + $0x2c] sm:$0xf]
  %v59 = vld [vmem:[%s2 + $0x30] sm:$0xff]
  %v60 = vld [vmem:[%s2 + $0x38] sm:$0xf]
  %v61 = vld [vmem:[%s2 + $0x3c] sm:$0xff]
  %v62 = vld [vmem:[%s2 + $0x44] sm:$0xf]
  %v63 = vld [vmem:[%s2 + $0x48] sm:$0xff]
  %v64 = vld [vmem:[%s2 + $0x50] sm:$0xf]
  %v65 = vld [vmem:[%s2 + $0x54] sm:$0xff]
  %v66 = vld [vmem:[%s2 + $0x5c] sm:$0xf]
  %v67 = vld [vmem:[%s2 + $0x60] sm:$0xff]
  %v68 = vld [vmem:[%s2 + $0x68] sm:$0xf]
  %v69 = vld [vmem:[%s2 + $0x6c] sm:$0xff]
  %v70 = vld [vmem:[%s2 + $0x74] sm:$0xf]
  %v71 = vld [vmem:[%s2 + $0x78] sm:$0xff]
  %v72 = vld [vmem:[%s2 + $0x80] sm:$0xf]
  %v73 = vld [vmem:[%s2 + $0x84] sm:$0xff]
  %v74 = vld [vmem:[%s2 + $0x8c] sm:$0xf]
  %v75 = vld [vmem:[%s2 + $0x90] sm:$0xff]
  %v76 = vld [vmem:[%s2 + $0x98] sm:$0xf]
  %v77 = vld [vmem:[%s2 + $0x9c] sm:$0xff]
  %v78 = vld [vmem:[%s2 + $0xa4] sm:$0xf]
  %v79 = vld [vmem:[%s2 + $0xa8] sm:$0xff]
  %v80 = vld [vmem:[%s2 + $0xb0] sm:$0xf]
  %v81 = vld [vmem:[%s2 + $0xb4] sm:$0xff]
  %v82 = vld [vmem:[%s2 + $0xbc] sm:$0xf]
  %v83 = vld [vmem:[%s3] sm:$0x7]
  %v85 = vlaneseq
  %v86 = vshrl.u32 %v85, 7
  %v87 = vsub.s32 0, %v86
  %v88 = vrot.slane %v83, %v87
  %v89 = vlaneseq
  %v90 = vshrl.u32 %v89, 7
  %v91 = vsub.s32 1, %v90
  %v92 = vrot.slane %v83, %v91
  %v93 = vlaneseq
  %v94 = vshrl.u32 %v93, 7
  %v95 = vsub.s32 2, %v94
  %v96 = vrot.slane %v83, %v95
  %v132 = vunpack.c.l.b16 %v51
  %v133 = vunpack.c.h.b16 %v51
  %v134 = vunpack.c.l.b16 %v52
  %v135 = vunpack.c.l.b16 %v53
  %v136 = vunpack.c.h.b16 %v53
  %v137 = vunpack.c.l.b16 %v54
  %v138 = vunpack.c.l.b16 %v55
  %v139 = vunpack.c.h.b16 %v55
  %v140 = vunpack.c.l.b16 %v56
  %v141 = vunpack.c.l.b16 %v57
  %v142 = vunpack.c.h.b16 %v57
  %v143 = vunpack.c.l.b16 %v58
  %v144 = vunpack.c.l.b16 %v59
  %v145 = vunpack.c.h.b16 %v59
  %v146 = vunpack.c.l.b16 %v60
  %v147 = vunpack.c.l.b16 %v61
  %v148 = vunpack.c.h.b16 %v61
  %v149 = vunpack.c.l.b16 %v62
  %v150 = vunpack.c.l.b16 %v63
  %v151 = vunpack.c.h.b16 %v63
  %v152 = vunpack.c.l.b16 %v64
  %v153 = vunpack.c.l.b16 %v65
  %v154 = vunpack.c.h.b16 %v65
  %v155 = vunpack.c.l.b16 %v66
  %v156 = vunpack.c.l.b16 %v67
  %v157 = vunpack.c.h.b16 %v67
  %v158 = vunpack.c.l.b16 %v68
  %v159 = vunpack.c.l.b16 %v69
  %v160 = vunpack.c.h.b16 %v69
  %v161 = vunpack.c.l.b16 %v70
  %v162 = vunpack.c.l.b16 %v71
  %v163 = vunpack.c.h.b16 %v71
  %v164 = vunpack.c.l.b16 %v72
  %v165 = vunpack.c.l.b16 %v73
  %v166 = vunpack.c.h.b16 %v73
  %v167 = vunpack.c.l.b16 %v74
  %v168 = vunpack.c.l.b16 %v75
  %v169 = vunpack.c.h.b16 %v75
  %v170 = vunpack.c.l.b16 %v76
  %v171 = vunpack.c.l.b16 %v77
  %v172 = vunpack.c.h.b16 %v77
  %v173 = vunpack.c.l.b16 %v78
  %v174 = vunpack.c.l.b16 %v79
  %v175 = vunpack.c.h.b16 %v79
  %v176 = vunpack.c.l.b16 %v80
  %v177 = vunpack.c.l.b16 %v81
  %v178 = vunpack.c.h.b16 %v81
  %v179 = vunpack.c.l.b16 %v82
  %v180 = vpack.c.b16 %v135, %v132
  %v181 = vpack.c.b16 %v136, %v133
  %v182 = vpack.c.b16 %v137, %v134
  %v183 = vpack.c.b16 %v141, %v138
  %v184 = vpack.c.b16 %v142, %v139
  %v185 = vpack.c.b16 %v143, %v140
  %v186 = vpack.c.b16 %v147, %v144
  %v187 = vpack.c.b16 %v148, %v145
  %v188 = vpack.c.b16 %v149, %v146
  %v189 = vpack.c.b16 %v153, %v150
  %v190 = vpack.c.b16 %v154, %v151
  %v191 = vpack.c.b16 %v155, %v152
  %v192 = vpack.c.b16 %v159, %v156
  %v193 = vpack.c.b16 %v160, %v157
  %v194 = vpack.c.b16 %v161, %v158
  %v195 = vpack.c.b16 %v165, %v162
  %v196 = vpack.c.b16 %v166, %v163
  %v197 = vpack.c.b16 %v167, %v164
  %v198 = vpack.c.b16 %v171, %v168
  %v199 = vpack.c.b16 %v172, %v169
  %v200 = vpack.c.b16 %v173, %v170
  %v201 = vpack.c.b16 %v177, %v174
  %v202 = vpack.c.b16 %v178, %v175
  %v203 = vpack.c.b16 %v179, %v176
  %228 = vmatprep.subr.bf16.mxu0 %v181
  %229 = vmatpush1.bf16.msra.mxu0 %v180
  %230 = vmatprep.subr.bf16.mxu0 %v184
  %231 = vmatpush1.bf16.msra.mxu0 %v183
  %232 = vmatprep.subr.bf16.mxu0 %v187
  %233 = vmatpush1.bf16.msra.mxu0 %v186
  %234 = vmatprep.subr.bf16.mxu0 %v190
  %235 = vmatpush1.bf16.msra.mxu0 %v189
  %236 = vmatprep.subr.bf16.mxu0 %v193
  %237 = vmatpush1.bf16.msra.mxu0 %v192
  %238 = vmatprep.subr.bf16.mxu0 %v196
  %239 = vmatpush1.bf16.msra.mxu0 %v195
  %240 = vmatprep.subr.bf16.mxu0 %v199
  %241 = vmatpush1.bf16.msra.mxu0 %v198
  %242 = vmatprep.subr.bf16.mxu0 %v202
  %243 = vmatpush1.bf16.msra.mxu0 %v201
  %244 = vmatprep.subr.bf16.mxu0 0
  %245 = vmatpush1.bf16.msra.mxu0 0
  %246 = vmatprep.subr.bf16.mxu0 0
  %247 = vmatpush1.bf16.msra.mxu0 0
  %248 = vmatprep.subr.bf16.mxu0 0
  %249 = vmatpush1.bf16.msra.mxu0 0
  %250 = vmatprep.subr.bf16.mxu0 0
  %251 = vmatpush1.bf16.msra.mxu0 0
  %252 = vmatprep.subr.bf16.mxu0 0
  %253 = vmatpush1.bf16.msra.mxu0 0
  %254 = vmatprep.subr.bf16.mxu0 0
  %255 = vmatpush1.bf16.msra.mxu0 0
  %256 = vmatprep.subr.bf16.mxu0 0
  %257 = vmatpush1.bf16.msra.mxu0 0
  %258 = vmatprep.subr.bf16.mxu0 0
  %259 = vmatpush1.bf16.msra.mxu0 0
  %260 = vmatprep.mubr.bf16.mxu0 0
  %261 = vmatmul.mubr.bf16.gmra.mrb[0].mxu0 %v50
  %v262 = vpop.f32.mrb[0].mxu0
  %v263 = vadd.f32 %v88, %v262
  %v264 = vpop.f32.mrb[0].mxu0
  %v265 = vadd.f32 %v92, %v264
  %v266 = vpop.f32.mrb[0].mxu0
  %v267 = vadd.f32 %v88, %v266
  %v268 = vpop.f32.mrb[0].mxu0
  %v269 = vadd.f32 %v92, %v268
  %270 = vdwg.mxu0
  %271 = vmatprep.subr.bf16.mxu0 0
  %272 = vmatpush1.bf16.msra.mxu0 %v182
  %273 = vmatprep.subr.bf16.mxu0 0
  %274 = vmatpush1.bf16.msra.mxu0 %v185
  %275 = vmatprep.subr.bf16.mxu0 0
  %276 = vmatpush1.bf16.msra.mxu0 %v188
  %277 = vmatprep.subr.bf16.mxu0 0
  %278 = vmatpush1.bf16.msra.mxu0 %v191
  %279 = vmatprep.subr.bf16.mxu0 0
  %280 = vmatpush1.bf16.msra.mxu0 %v194
  %281 = vmatprep.subr.bf16.mxu0 0
  %282 = vmatpush1.bf16.msra.mxu0 %v197
  %283 = vmatprep.subr.bf16.mxu0 0
  %284 = vmatpush1.bf16.msra.mxu0 %v200
  %285 = vmatprep.subr.bf16.mxu0 0
  %286 = vmatpush1.bf16.msra.mxu0 %v203
  %287 = vmatprep.subr.bf16.mxu0 0
  %288 = vmatpush1.bf16.msra.mxu0 0
  %289 = vmatprep.subr.bf16.mxu0 0
  %290 = vmatpush1.bf16.msra.mxu0 0
  %291 = vmatprep.subr.bf16.mxu0 0
  %292 = vmatpush1.bf16.msra.mxu0 0
  %293 = vmatprep.subr.bf16.mxu0 0
  %294 = vmatpush1.bf16.msra.mxu0 0
  %295 = vmatprep.subr.bf16.mxu0 0
  %296 = vmatpush1.bf16.msra.mxu0 0
  %297 = vmatprep.subr.bf16.mxu0 0
  %298 = vmatpush1.bf16.msra.mxu0 0
  %299 = vmatprep.subr.bf16.mxu0 0
  %300 = vmatpush1.bf16.msra.mxu0 0
  %301 = vmatprep.subr.bf16.mxu0 0
  %302 = vmatpush1.bf16.msra.mxu0 0
  %303 = vmatprep.mubr.bf16.mxu0 0
  %304 = vmatmul.mubr.bf16.gmra.mrb[0].mxu0 %v50
  %v305 = vpop.f32.mrb[0].mxu0
  %v306 = vadd.f32 %v96, %v305
  %v307 = vpop.f32.mrb[0].mxu0
  %v308 = vpop.f32.mrb[0].mxu0
  %v309 = vadd.f32 %v96, %v308
  %v310 = vpop.f32.mrb[0].mxu0
  %311 = vdwg.mxu0
  %v312 = vpack.c.bf16 %v267, %v263
  %v313 = vpack.c.bf16 %v269, %v265
  %314 = vmatprep.subr.bf16.mxu0 0
  %315 = vmatpush1.bf16.xpose.msra.mxu0 %v313
  %316 = vmatprep.subr.bf16.mxu0 0
  %317 = vmatpush1.bf16.xpose.msra.mxu0 0
  %318 = vmatprep.subr.bf16.mxu0 0
  %319 = vmatpush1.bf16.xpose.msra.mxu0 0
  %320 = vmatprep.subr.bf16.mxu0 0
  %321 = vmatpush1.bf16.xpose.msra.mxu0 0
  %322 = vmatprep.subr.bf16.mxu0 0
  %323 = vmatpush1.bf16.xpose.msra.mxu0 0
  %324 = vmatprep.subr.bf16.mxu0 0
  %325 = vmatpush1.bf16.xpose.msra.mxu0 0
  %326 = vmatprep.subr.bf16.mxu0 0
  %327 = vmatpush1.bf16.xpose.msra.mxu0 0
  %328 = vmatprep.subr.bf16.mxu0 0
  %329 = vmatpush1.bf16.xpose.msra.mxu0 0
  %330 = vmatprep.subr.bf16.mxu0 0
  %331 = vmatpush1.bf16.xpose.msra.mxu0 0
  %332 = vmatprep.subr.bf16.mxu0 0
  %333 = vmatpush1.bf16.xpose.msra.mxu0 0
  %334 = vmatprep.subr.bf16.mxu0 0
  %335 = vmatpush1.bf16.xpose.msra.mxu0 0
  %336 = vmatprep.subr.bf16.mxu0 0
  %337 = vmatpush1.bf16.xpose.msra.mxu0 0
  %338 = vmatprep.subr.bf16.mxu0 0
  %339 = vmatpush1.bf16.xpose.msra.mxu0 0
  %340 = vmatprep.subr.bf16.mxu0 0
  %341 = vmatpush1.bf16.xpose.msra.mxu0 0
  %342 = vmatprep.subr.bf16.mxu0 0
  %343 = vmatpush1.bf16.xpose.msra.mxu0 0
  %344 = vmatprep.subr.bf16.mxu0 0
  %345 = vmatpush1.bf16.xpose.msra.mxu0 0
  %346 = vmatprep.mubr.bf16.mxu0 0
  %347 = vmatmul.mubr.bf16.gmra.mrb[0].mxu0 %v312
  %v348 = vpop.f32.mrb[0].mxu0
  %v349 = vadd.f32 0.0, %v348
  %v350 = vpop.f32.mrb[0].mxu0
  %v351 = vpop.f32.mrb[0].mxu0
  %v352 = vadd.f32 0.0, %v351
  %v353 = vpop.f32.mrb[0].mxu0
  %354 = vdwg.mxu0
  %v355 = vmul.f32 %v349, 0.088388346
  %v356 = vmul.f32 %v352, 0.088388346
  %v357 = vld [vmem:[%s1] sm:$0xff]
  %v358 = vld [vmem:[%s1 + $0x8] sm:$0xff]
  %v359 = vadd.f32 %v355, %v357
  %v360 = vadd.f32 %v356, %v358
  %vm361 = vcmask 130048
  %v362 = vsel %vm361, %v359, -inf
  %363 = vmax.xlane.f32.xlu0 %v362
  %v364 = vpop.xlane.xlu0 %363
  %v365 = vsel %vm361, %v360, -inf
  %366 = vmax.xlane.f32.xlu0 %v365
  %v367 = vpop.xlane.xlu0 %366
  %v368 = vsub.f32 %v359, %v364
  %v369 = vsub.f32 %v360, %v367
  %v370 = vmul.f32 %v368, 1.442695
  %v371 = vpow.pop %v370
  %v372 = vmul.f32 %v369, 1.442695
  %v373 = vpow.pop %v372
  %v374 = vsel %vm361, %v371, 0.0
  %375 = vadd.xlane.f32.xlu0 %v374
  %v376 = vpop.xlane.xlu0 %375
  %v377 = vsel %vm361, %v373, 0.0
  %378 = vadd.xlane.f32.xlu0 %v377
  %v379 = vpop.xlane.xlu0 %378
  %v380 = vrcp.pop %v376
  %v381 = vrcp.pop %v379
  %v382 = vmul.f32 %v371, %v380
  %v383 = vmul.f32 %v373, %v381
  %v384 = vpack.c.bf16 %v383, %v382
  %v385 = vpack.c.bf16 %v309, %v306
  %v387 = vsel %vm361, %v384, 0
  %389 = vmatprep.subr.bf16.mxu0 0
  %390 = vmatpush1.bf16.msra.mxu0 %v385
  %391 = vmatprep.subr.bf16.mxu0 0
  %392 = vmatpush1.bf16.msra.mxu0 0
  %393 = vmatprep.subr.bf16.mxu0 0
  %394 = vmatpush1.bf16.msra.mxu0 0
  %395 = vmatprep.subr.bf16.mxu0 0
  %396 = vmatpush1.bf16.msra.mxu0 0
  %397 = vmatprep.subr.bf16.mxu0 0
  %398 = vmatpush1.bf16.msra.mxu0 0
  %399 = vmatprep.subr.bf16.mxu0 0
  %400 = vmatpush1.bf16.msra.mxu0 0
  %401 = vmatprep.subr.bf16.mxu0 0
  %402 = vmatpush1.bf16.msra.mxu0 0
  %403 = vmatprep.subr.bf16.mxu0 0
  %404 = vmatpush1.bf16.msra.mxu0 0
  %405 = vmatprep.subr.bf16.mxu0 0
  %406 = vmatpush1.bf16.msra.mxu0 0
  %407 = vmatprep.subr.bf16.mxu0 0
  %408 = vmatpush1.bf16.msra.mxu0 0
  %409 = vmatprep.subr.bf16.mxu0 0
  %410 = vmatpush1.bf16.msra.mxu0 0
  %411 = vmatprep.subr.bf16.mxu0 0
  %412 = vmatpush1.bf16.msra.mxu0 0
  %413 = vmatprep.subr.bf16.mxu0 0
  %414 = vmatpush1.bf16.msra.mxu0 0
  %415 = vmatprep.subr.bf16.mxu0 0
  %416 = vmatpush1.bf16.msra.mxu0 0
  %417 = vmatprep.subr.bf16.mxu0 0
  %418 = vmatpush1.bf16.msra.mxu0 0
  %419 = vmatprep.subr.bf16.mxu0 0
  %420 = vmatpush1.bf16.msra.mxu0 0
  %421 = vmatprep.mubr.bf16.mxu0 0
  %422 = vmatmul.mubr.bf16.gmra.mrb[0].mxu0 %v387
  %v423 = vpop.f32.mrb[0].mxu0
  %v424 = vadd.f32 0.0, %v423
  %v425 = vpop.f32.mrb[0].mxu0
  %v426 = vpop.f32.mrb[0].mxu0
  %v427 = vadd.f32 0.0, %v426
  %v428 = vpop.f32.mrb[0].mxu0
  %429 = vdwg.mxu0
  %v430 = vpack.c.bf16 %v427, %v424
  %v431 = vld [vmem:[%s4] sm:$0xf]
  %v432 = vld [vmem:[%s4 + $0x4] sm:$0xf]
  %v433 = vld [vmem:[%s4 + $0x8] sm:$0xf]
  %v434 = vld [vmem:[%s4 + $0xc] sm:$0xf]
  %v435 = vld [vmem:[%s4 + $0x10] sm:$0xf]
  %v436 = vld [vmem:[%s4 + $0x14] sm:$0xf]
  %v437 = vld [vmem:[%s4 + $0x18] sm:$0xf]
  %v438 = vld [vmem:[%s4 + $0x1c] sm:$0xf]
  %v439 = vld [vmem:[%s4 + $0x20] sm:$0xf]
  %v440 = vld [vmem:[%s4 + $0x24] sm:$0xf]
  %v441 = vld [vmem:[%s4 + $0x28] sm:$0xf]
  %v442 = vld [vmem:[%s4 + $0x2c] sm:$0xf]
  %v443 = vld [vmem:[%s4 + $0x30] sm:$0xf]
  %v444 = vld [vmem:[%s4 + $0x34] sm:$0xf]
  %v445 = vld [vmem:[%s4 + $0x38] sm:$0xf]
  %v446 = vld [vmem:[%s4 + $0x3c] sm:$0xf]
  %v447 = vld [vmem:[%s5] sm:$0x1]
  %v449 = vlaneseq
  %v450 = vshrl.u32 %v449, 7
  %v451 = vsub.s32 0, %v450
  %v452 = vrot.slane %v447, %v451
  %v470 = vunpack.c.l.b16 %v431
  %v471 = vunpack.c.l.b16 %v432
  %v472 = vunpack.c.l.b16 %v433
  %v473 = vunpack.c.l.b16 %v434
  %v474 = vunpack.c.l.b16 %v435
  %v475 = vunpack.c.l.b16 %v436
  %v476 = vunpack.c.l.b16 %v437
  %v477 = vunpack.c.l.b16 %v438
  %v478 = vunpack.c.l.b16 %v439
  %v479 = vunpack.c.l.b16 %v440
  %v480 = vunpack.c.l.b16 %v441
  %v481 = vunpack.c.l.b16 %v442
  %v482 = vunpack.c.l.b16 %v443
  %v483 = vunpack.c.l.b16 %v444
  %v484 = vunpack.c.l.b16 %v445
  %v485 = vunpack.c.l.b16 %v446
  %v486 = vpack.c.b16 %v471, %v470
  %v487 = vpack.c.b16 %v473, %v472
  %v488 = vpack.c.b16 %v475, %v474
  %v489 = vpack.c.b16 %v477, %v476
  %v490 = vpack.c.b16 %v479, %v478
  %v491 = vpack.c.b16 %v481, %v480
  %v492 = vpack.c.b16 %v483, %v482
  %v493 = vpack.c.b16 %v485, %v484
  %502 = vmatprep.subr.bf16.mxu0 0
  %503 = vmatpush1.bf16.msra.mxu0 %v486
  %504 = vmatprep.subr.bf16.mxu0 0
  %505 = vmatpush1.bf16.msra.mxu0 %v487
  %506 = vmatprep.subr.bf16.mxu0 0
  %507 = vmatpush1.bf16.msra.mxu0 %v488
  %508 = vmatprep.subr.bf16.mxu0 0
  %509 = vmatpush1.bf16.msra.mxu0 %v489
  %510 = vmatprep.subr.bf16.mxu0 0
  %511 = vmatpush1.bf16.msra.mxu0 %v490
  %512 = vmatprep.subr.bf16.mxu0 0
  %513 = vmatpush1.bf16.msra.mxu0 %v491
  %514 = vmatprep.subr.bf16.mxu0 0
  %515 = vmatpush1.bf16.msra.mxu0 %v492
  %516 = vmatprep.subr.bf16.mxu0 0
  %517 = vmatpush1.bf16.msra.mxu0 %v493
  %518 = vmatprep.subr.bf16.mxu0 0
  %519 = vmatpush1.bf16.msra.mxu0 0
  %520 = vmatprep.subr.bf16.mxu0 0
  %521 = vmatpush1.bf16.msra.mxu0 0
  %522 = vmatprep.subr.bf16.mxu0 0
  %523 = vmatpush1.bf16.msra.mxu0 0
  %524 = vmatprep.subr.bf16.mxu0 0
  %525 = vmatpush1.bf16.msra.mxu0 0
  %526 = vmatprep.subr.bf16.mxu0 0
  %527 = vmatpush1.bf16.msra.mxu0 0
  %528 = vmatprep.subr.bf16.mxu0 0
  %529 = vmatpush1.bf16.msra.mxu0 0
  %530 = vmatprep.subr.bf16.mxu0 0
  %531 = vmatpush1.bf16.msra.mxu0 0
  %532 = vmatprep.subr.bf16.mxu0 0
  %533 = vmatpush1.bf16.msra.mxu0 0
  %534 = vmatprep.mubr.bf16.mxu0 0
  %535 = vmatmul.mubr.bf16.gmra.mrb[0].mxu0 %v430
  %v536 = vpop.f32.mrb[0].mxu0
  %v537 = vadd.f32 %v452, %v536
  %v538 = vpop.f32.mrb[0].mxu0
  %v539 = vpop.f32.mrb[0].mxu0
  %v540 = vadd.f32 %v452, %v539
  %v541 = vpop.f32.mrb[0].mxu0
  %542 = vdwg.mxu0
  %v543 = vadd.f32 %v48, %v537
  %v544 = vadd.f32 %v49, %v540
  %v545 = vld [vmem:[%s6] sm:$0x1]
  %v546 = vld [vmem:[%s7] sm:$0x1]
  %547 = vadd.xlane.f32.xlu0 %v543
  %v548 = vpop.xlane.xlu0 %547
  %549 = vadd.xlane.f32.xlu0 %v544
  %v550 = vpop.xlane.xlu0 %549
  %v551 = vrcp.pop 128.0
  %v552 = vmul.f32 %v548, %v551
  %v553 = vmul.f32 %v550, %v551
  %v554 = vsub.f32 %v543, %v552
  %v555 = vsub.f32 %v544, %v553
  %v556 = vmul.f32 %v554, %v554
  %v557 = vmul.f32 %v555, %v555
  %558 = vadd.xlane.f32.xlu0 %v556
  %v559 = vpop.xlane.xlu0 %558
  %560 = vadd.xlane.f32.xlu0 %v557
  %v561 = vpop.xlane.xlu0 %560
  %v562 = vmul.f32 %v559, %v551
  %v563 = vmul.f32 %v561, %v551
  %v564 = vadd.f32 %v562, 1e-05
  %v565 = vadd.f32 %v563, 1e-05
  %v566 = vrsqrt.pop %v564
  %v567 = vrsqrt.pop %v565
  %v568 = vmul.f32 %v554, %v566
  %v569 = vmul.f32 %v555, %v567
  %v571 = vlaneseq
  %v572 = vshrl.u32 %v571, 7
  %v573 = vsub.s32 0, %v572
  %v574 = vrot.slane %v545, %v573
  %v576 = vmul.f32 %v568, %v574
  %v577 = vmul.f32 %v569, %v574
  %v579 = vlaneseq
  %v580 = vshrl.u32 %v579, 7
  %v581 = vsub.s32 0, %v580
  %v582 = vrot.slane %v546, %v581
  %v584 = vadd.f32 %v576, %v582
  %v585 = vadd.f32 %v577, %v582
  %v586 = vpack.c.bf16 %v585, %v584
  %v587 = vld [vmem:[%s8] sm:$0xff]
  %v588 = vld [vmem:[%s8 + $0x8] sm:$0xff]
  %v589 = vld [vmem:[%s8 + $0x10] sm:$0xff]
  %v590 = vld [vmem:[%s8 + $0x18] sm:$0xff]
  %v591 = vld [vmem:[%s8 + $0x20] sm:$0xff]
  %v592 = vld [vmem:[%s8 + $0x28] sm:$0xff]
  %v593 = vld [vmem:[%s8 + $0x30] sm:$0xff]
  %v594 = vld [vmem:[%s8 + $0x38] sm:$0xff]
  %v595 = vld [vmem:[%s8 + $0x40] sm:$0xff]
  %v596 = vld [vmem:[%s8 + $0x48] sm:$0xff]
  %v597 = vld [vmem:[%s8 + $0x50] sm:$0xff]
  %v598 = vld [vmem:[%s8 + $0x58] sm:$0xff]
  %v599 = vld [vmem:[%s8 + $0x60] sm:$0xff]
  %v600 = vld [vmem:[%s8 + $0x68] sm:$0xff]
  %v601 = vld [vmem:[%s8 + $0x70] sm:$0xff]
  %v602 = vld [vmem:[%s8 + $0x78] sm:$0xff]
  %v603 = vld [vmem:[%s8 + $0x80] sm:$0xff]
  %v604 = vld [vmem:[%s8 + $0x88] sm:$0xff]
  %v605 = vld [vmem:[%s8 + $0x90] sm:$0xff]
  %v606 = vld [vmem:[%s8 + $0x98] sm:$0xff]
  %v607 = vld [vmem:[%s8 + $0xa0] sm:$0xff]
  %v608 = vld [vmem:[%s8 + $0xa8] sm:$0xff]
  %v609 = vld [vmem:[%s8 + $0xb0] sm:$0xff]
  %v610 = vld [vmem:[%s8 + $0xb8] sm:$0xff]
  %v611 = vld [vmem:[%s8 + $0xc0] sm:$0xff]
  %v612 = vld [vmem:[%s8 + $0xc8] sm:$0xff]
  %v613 = vld [vmem:[%s8 + $0xd0] sm:$0xff]
  %v614 = vld [vmem:[%s8 + $0xd8] sm:$0xff]
  %v615 = vld [vmem:[%s8 + $0xe0] sm:$0xff]
  %v616 = vld [vmem:[%s8 + $0xe8] sm:$0xff]
  %v617 = vld [vmem:[%s8 + $0xf0] sm:$0xff]
  %v618 = vld [vmem:[%s8 + $0xf8] sm:$0xff]
  %v619 = vld [vmem:[%s8 + $0x100] sm:$0xff]
  %v620 = vld [vmem:[%s8 + $0x108] sm:$0xff]
  %v621 = vld [vmem:[%s8 + $0x110] sm:$0xff]
  %v622 = vld [vmem:[%s8 + $0x118] sm:$0xff]
  %v623 = vld [vmem:[%s8 + $0x120] sm:$0xff]
  %v624 = vld [vmem:[%s8 + $0x128] sm:$0xff]
  %v625 = vld [vmem:[%s8 + $0x130] sm:$0xff]
  %v626 = vld [vmem:[%s8 + $0x138] sm:$0xff]
  %v627 = vld [vmem:[%s8 + $0x140] sm:$0xff]
  %v628 = vld [vmem:[%s8 + $0x148] sm:$0xff]
  %v629 = vld [vmem:[%s8 + $0x150] sm:$0xff]
  %v630 = vld [vmem:[%s8 + $0x158] sm:$0xff]
  %v631 = vld [vmem:[%s8 + $0x160] sm:$0xff]
  %v632 = vld [vmem:[%s8 + $0x168] sm:$0xff]
  %v633 = vld [vmem:[%s8 + $0x170] sm:$0xff]
  %v634 = vld [vmem:[%s8 + $0x178] sm:$0xff]
  %v635 = vld [vmem:[%s8 + $0x180] sm:$0xff]
  %v636 = vld [vmem:[%s8 + $0x188] sm:$0xff]
  %v637 = vld [vmem:[%s8 + $0x190] sm:$0xff]
  %v638 = vld [vmem:[%s8 + $0x198] sm:$0xff]
  %v639 = vld [vmem:[%s8 + $0x1a0] sm:$0xff]
  %v640 = vld [vmem:[%s8 + $0x1a8] sm:$0xff]
  %v641 = vld [vmem:[%s8 + $0x1b0] sm:$0xff]
  %v642 = vld [vmem:[%s8 + $0x1b8] sm:$0xff]
  %v643 = vld [vmem:[%s8 + $0x1c0] sm:$0xff]
  %v644 = vld [vmem:[%s8 + $0x1c8] sm:$0xff]
  %v645 = vld [vmem:[%s8 + $0x1d0] sm:$0xff]
  %v646 = vld [vmem:[%s8 + $0x1d8] sm:$0xff]
  %v647 = vld [vmem:[%s8 + $0x1e0] sm:$0xff]
  %v648 = vld [vmem:[%s8 + $0x1e8] sm:$0xff]
  %v649 = vld [vmem:[%s8 + $0x1f0] sm:$0xff]
  %v650 = vld [vmem:[%s8 + $0x1f8] sm:$0xff]
  %v651 = vld [vmem:[%s8 + $0x200] sm:$0xff]
  %v652 = vld [vmem:[%s8 + $0x208] sm:$0xff]
  %v653 = vld [vmem:[%s8 + $0x210] sm:$0xff]
  %v654 = vld [vmem:[%s8 + $0x218] sm:$0xff]
  %v655 = vld [vmem:[%s8 + $0x220] sm:$0xff]
  %v656 = vld [vmem:[%s8 + $0x228] sm:$0xff]
  %v657 = vld [vmem:[%s8 + $0x230] sm:$0xff]
  %v658 = vld [vmem:[%s8 + $0x238] sm:$0xff]
  %v659 = vld [vmem:[%s8 + $0x240] sm:$0xff]
  %v660 = vld [vmem:[%s8 + $0x248] sm:$0xff]
  %v661 = vld [vmem:[%s8 + $0x250] sm:$0xff]
  %v662 = vld [vmem:[%s8 + $0x258] sm:$0xff]
  %v663 = vld [vmem:[%s8 + $0x260] sm:$0xff]
  %v664 = vld [vmem:[%s8 + $0x268] sm:$0xff]
  %v665 = vld [vmem:[%s8 + $0x270] sm:$0xff]
  %v666 = vld [vmem:[%s8 + $0x278] sm:$0xff]
  %v667 = vld [vmem:[%s8 + $0x280] sm:$0xff]
  %v668 = vld [vmem:[%s8 + $0x288] sm:$0xff]
  %v669 = vld [vmem:[%s8 + $0x290] sm:$0xff]
  %v670 = vld [vmem:[%s8 + $0x298] sm:$0xff]
  %v671 = vld [vmem:[%s8 + $0x2a0] sm:$0xff]
  %v672 = vld [vmem:[%s8 + $0x2a8] sm:$0xff]
  %v673 = vld [vmem:[%s8 + $0x2b0] sm:$0xff]
  %v674 = vld [vmem:[%s8 + $0x2b8] sm:$0xff]
  %v675 = vld [vmem:[%s8 + $0x2c0] sm:$0xff]
  %v676 = vld [vmem:[%s8 + $0x2c8] sm:$0xff]
  %v677 = vld [vmem:[%s8 + $0x2d0] sm:$0xff]
  %v678 = vld [vmem:[%s8 + $0x2d8] sm:$0xff]
  %v679 = vld [vmem:[%s8 + $0x2e0] sm:$0xff]
  %v680 = vld [vmem:[%s8 + $0x2e8] sm:$0xff]
  %v681 = vld [vmem:[%s8 + $0x2f0] sm:$0xff]
  %v682 = vld [vmem:[%s8 + $0x2f8] sm:$0xff]
  %v683 = vld [vmem:[%s8 + $0x300] sm:$0xff]
  %v684 = vld [vmem:[%s8 + $0x308] sm:$0xff]
  %v685 = vld [vmem:[%s8 + $0x310] sm:$0xff]
  %v686 = vld [vmem:[%s8 + $0x318] sm:$0xff]
  %v687 = vld [vmem:[%s8 + $0x320] sm:$0xff]
  %v688 = vld [vmem:[%s8 + $0x328] sm:$0xff]
  %v689 = vld [vmem:[%s8 + $0x330] sm:$0xff]
  %v690 = vld [vmem:[%s8 + $0x338] sm:$0xff]
  %v691 = vld [vmem:[%s8 + $0x340] sm:$0xff]
  %v692 = vld [vmem:[%s8 + $0x348] sm:$0xff]
  %v693 = vld [vmem:[%s8 + $0x350] sm:$0xff]
  %v694 = vld [vmem:[%s8 + $0x358] sm:$0xff]
  %v695 = vld [vmem:[%s8 + $0x360] sm:$0xff]
  %v696 = vld [vmem:[%s8 + $0x368] sm:$0xff]
  %v697 = vld [vmem:[%s8 + $0x370] sm:$0xff]
  %v698 = vld [vmem:[%s8 + $0x378] sm:$0xff]
  %v699 = vld [vmem:[%s8 + $0x380] sm:$0xff]
  %v700 = vld [vmem:[%s8 + $0x388] sm:$0xff]
  %v701 = vld [vmem:[%s8 + $0x390] sm:$0xff]
  %v702 = vld [vmem:[%s8 + $0x398] sm:$0xff]
  %v703 = vld [vmem:[%s8 + $0x3a0] sm:$0xff]
  %v704 = vld [vmem:[%s8 + $0x3a8] sm:$0xff]
  %v705 = vld [vmem:[%s8 + $0x3b0] sm:$0xff]
  %v706 = vld [vmem:[%s8 + $0x3b8] sm:$0xff]
  %v707 = vld [vmem:[%s8 + $0x3c0] sm:$0xff]
  %v708 = vld [vmem:[%s8 + $0x3c8] sm:$0xff]
  %v709 = vld [vmem:[%s8 + $0x3d0] sm:$0xff]
  %v710 = vld [vmem:[%s8 + $0x3d8] sm:$0xff]
  %v711 = vld [vmem:[%s8 + $0x3e0] sm:$0xff]
  %v712 = vld [vmem:[%s8 + $0x3e8] sm:$0xff]
  %v713 = vld [vmem:[%s8 + $0x3f0] sm:$0xff]
  %v714 = vld [vmem:[%s8 + $0x3f8] sm:$0xff]
  %v715 = vld [vmem:[%s9] sm:$0xff]
  %v716 = vld [vmem:[%s9 + $0x8] sm:$0xff]
  %v719 = vlaneseq
  %v720 = vshrl.u32 %v719, 7
  %v721 = vsub.s32 0, %v720
  %v722 = vrot.slane %v715, %v721
  %v723 = vlaneseq
  %v724 = vshrl.u32 %v723, 7
  %v725 = vsub.s32 1, %v724
  %v726 = vrot.slane %v715, %v725
  %v727 = vlaneseq
  %v728 = vshrl.u32 %v727, 7
  %v729 = vsub.s32 2, %v728
  %v730 = vrot.slane %v715, %v729
  %v731 = vlaneseq
  %v732 = vshrl.u32 %v731, 7
  %v733 = vsub.s32 3, %v732
  %v734 = vrot.slane %v715, %v733
  %v735 = vlaneseq
  %v736 = vshrl.u32 %v735, 7
  %v737 = vsub.s32 4, %v736
  %v738 = vrot.slane %v715, %v737
  %v739 = vlaneseq
  %v740 = vshrl.u32 %v739, 7
  %v741 = vsub.s32 5, %v740
  %v742 = vrot.slane %v715, %v741
  %v743 = vlaneseq
  %v744 = vshrl.u32 %v743, 7
  %v745 = vsub.s32 6, %v744
  %v746 = vrot.slane %v715, %v745
  %v747 = vlaneseq
  %v748 = vshrl.u32 %v747, 7
  %v749 = vsub.s32 7, %v748
  %v750 = vrot.slane %v715, %v749
  %v751 = vlaneseq
  %v752 = vshrl.u32 %v751, 7
  %v753 = vsub.s32 0, %v752
  %v754 = vrot.slane %v716, %v753
  %v755 = vlaneseq
  %v756 = vshrl.u32 %v755, 7
  %v757 = vsub.s32 1, %v756
  %v758 = vrot.slane %v716, %v757
  %v759 = vlaneseq
  %v760 = vshrl.u32 %v759, 7
  %v761 = vsub.s32 2, %v760
  %v762 = vrot.slane %v716, %v761
  %v763 = vlaneseq
  %v764 = vshrl.u32 %v763, 7
  %v765 = vsub.s32 3, %v764
  %v766 = vrot.slane %v716, %v765
  %v767 = vlaneseq
  %v768 = vshrl.u32 %v767, 7
  %v769 = vsub.s32 4, %v768
  %v770 = vrot.slane %v716, %v769
  %v771 = vlaneseq
  %v772 = vshrl.u32 %v771, 7
  %v773 = vsub.s32 5, %v772
  %v774 = vrot.slane %v716, %v773
  %v775 = vlaneseq
  %v776 = vshrl.u32 %v775, 7
  %v777 = vsub.s32 6, %v776
  %v778 = vrot.slane %v716, %v777
  %v779 = vlaneseq
  %v780 = vshrl.u32 %v779, 7
  %v781 = vsub.s32 7, %v780
  %v782 = vrot.slane %v716, %v781
  %v927 = vunpack.c.l.b16 %v587
  %v928 = vunpack.c.h.b16 %v587
  %v929 = vunpack.c.l.b16 %v588
  %v930 = vunpack.c.h.b16 %v588
  %v931 = vunpack.c.l.b16 %v589
  %v932 = vunpack.c.h.b16 %v589
  %v933 = vunpack.c.l.b16 %v590
  %v934 = vunpack.c.h.b16 %v590
  %v935 = vunpack.c.l.b16 %v591
  %v936 = vunpack.c.h.b16 %v591
  %v937 = vunpack.c.l.b16 %v592
  %v938 = vunpack.c.h.b16 %v592
  %v939 = vunpack.c.l.b16 %v593
  %v940 = vunpack.c.h.b16 %v593
  %v941 = vunpack.c.l.b16 %v594
  %v942 = vunpack.c.h.b16 %v594
  %v943 = vunpack.c.l.b16 %v595
  %v944 = vunpack.c.h.b16 %v595
  %v945 = vunpack.c.l.b16 %v596
  %v946 = vunpack.c.h.b16 %v596
  %v947 = vunpack.c.l.b16 %v597
  %v948 = vunpack.c.h.b16 %v597
  %v949 = vunpack.c.l.b16 %v598
  %v950 = vunpack.c.h.b16 %v598
  %v951 = vunpack.c.l.b16 %v599
  %v952 = vunpack.c.h.b16 %v599
  %v953 = vunpack.c.l.b16 %v600
  %v954 = vunpack.c.h.b16 %v600
  %v955 = vunpack.c.l.b16 %v601
  %v956 = vunpack.c.h.b16 %v601
  %v957 = vunpack.c.l.b16 %v602
  %v958 = vunpack.c.h.b16 %v602
  %v959 = vunpack.c.l.b16 %v603
  %v960 = vunpack.c.h.b16 %v603
  %v961 = vunpack.c.l.b16 %v604
  %v962 = vunpack.c.h.b16 %v604
  %v963 = vunpack.c.l.b16 %v605
  %v964 = vunpack.c.h.b16 %v605
  %v965 = vunpack.c.l.b16 %v606
  %v966 = vunpack.c.h.b16 %v606
  %v967 = vunpack.c.l.b16 %v607
  %v968 = vunpack.c.h.b16 %v607
  %v969 = vunpack.c.l.b16 %v608
  %v970 = vunpack.c.h.b16 %v608
  %v971 = vunpack.c.l.b16 %v609
  %v972 = vunpack.c.h.b16 %v609
  %v973 = vunpack.c.l.b16 %v610
  %v974 = vunpack.c.h.b16 %v610
  %v975 = vunpack.c.l.b16 %v611
  %v976 = vunpack.c.h.b16 %v611
  %v977 = vunpack.c.l.b16 %v612
  %v978 = vunpack.c.h.b16 %v612
  %v979 = vunpack.c.l.b16 %v613
  %v980 = vunpack.c.h.b16 %v613
  %v981 = vunpack.c.l.b16 %v614
  %v982 = vunpack.c.h.b16 %v614
  %v983 = vunpack.c.l.b16 %v615
  %v984 = vunpack.c.h.b16 %v615
  %v985 = vunpack.c.l.b16 %v616
  %v986 = vunpack.c.h.b16 %v616
  %v987 = vunpack.c.l.b16 %v617
  %v988 = vunpack.c.h.b16 %v617
  %v989 = vunpack.c.l.b16 %v618
  %v990 = vunpack.c.h.b16 %v618
  %v991 = vunpack.c.l.b16 %v619
  %v992 = vunpack.c.h.b16 %v619
  %v993 = vunpack.c.l.b16 %v620
  %v994 = vunpack.c.h.b16 %v620
  %v995 = vunpack.c.l.b16 %v621
  %v996 = vunpack.c.h.b16 %v621
  %v997 = vunpack.c.l.b16 %v622
  %v998 = vunpack.c.h.b16 %v622
  %v999 = vunpack.c.l.b16 %v623
  %v1000 = vunpack.c.h.b16 %v623
  %v1001 = vunpack.c.l.b16 %v624
  %v1002 = vunpack.c.h.b16 %v624
  %v1003 = vunpack.c.l.b16 %v625
  %v1004 = vunpack.c.h.b16 %v625
  %v1005 = vunpack.c.l.b16 %v626
  %v1006 = vunpack.c.h.b16 %v626
  %v1007 = vunpack.c.l.b16 %v627
  %v1008 = vunpack.c.h.b16 %v627
  %v1009 = vunpack.c.l.b16 %v628
  %v1010 = vunpack.c.h.b16 %v628
  %v1011 = vunpack.c.l.b16 %v629
  %v1012 = vunpack.c.h.b16 %v629
  %v1013 = vunpack.c.l.b16 %v630
  %v1014 = vunpack.c.h.b16 %v630
  %v1015 = vunpack.c.l.b16 %v631
  %v1016 = vunpack.c.h.b16 %v631
  %v1017 = vunpack.c.l.b16 %v632
  %v1018 = vunpack.c.h.b16 %v632
  %v1019 = vunpack.c.l.b16 %v633
  %v1020 = vunpack.c.h.b16 %v633
  %v1021 = vunpack.c.l.b16 %v634
  %v1022 = vunpack.c.h.b16 %v634
  %v1023 = vunpack.c.l.b16 %v635
  %v1024 = vunpack.c.h.b16 %v635
  %v1025 = vunpack.c.l.b16 %v636
  %v1026 = vunpack.c.h.b16 %v636
  %v1027 = vunpack.c.l.b16 %v637
  %v1028 = vunpack.c.h.b16 %v637
  %v1029 = vunpack.c.l.b16 %v638
  %v1030 = vunpack.c.h.b16 %v638
  %v1031 = vunpack.c.l.b16 %v639
  %v1032 = vunpack.c.h.b16 %v639
  %v1033 = vunpack.c.l.b16 %v640
  %v1034 = vunpack.c.h.b16 %v640
  %v1035 = vunpack.c.l.b16 %v641
  %v1036 = vunpack.c.h.b16 %v641
  %v1037 = vunpack.c.l.b16 %v642
  %v1038 = vunpack.c.h.b16 %v642
  %v1039 = vunpack.c.l.b16 %v643
  %v1040 = vunpack.c.h.b16 %v643
  %v1041 = vunpack.c.l.b16 %v644
  %v1042 = vunpack.c.h.b16 %v644
  %v1043 = vunpack.c.l.b16 %v645
  %v1044 = vunpack.c.h.b16 %v645
  %v1045 = vunpack.c.l.b16 %v646
  %v1046 = vunpack.c.h.b16 %v646
  %v1047 = vunpack.c.l.b16 %v647
  %v1048 = vunpack.c.h.b16 %v647
  %v1049 = vunpack.c.l.b16 %v648
  %v1050 = vunpack.c.h.b16 %v648
  %v1051 = vunpack.c.l.b16 %v649
  %v1052 = vunpack.c.h.b16 %v649
  %v1053 = vunpack.c.l.b16 %v650
  %v1054 = vunpack.c.h.b16 %v650
  %v1055 = vunpack.c.l.b16 %v651
  %v1056 = vunpack.c.h.b16 %v651
  %v1057 = vunpack.c.l.b16 %v652
  %v1058 = vunpack.c.h.b16 %v652
  %v1059 = vunpack.c.l.b16 %v653
  %v1060 = vunpack.c.h.b16 %v653
  %v1061 = vunpack.c.l.b16 %v654
  %v1062 = vunpack.c.h.b16 %v654
  %v1063 = vunpack.c.l.b16 %v655
  %v1064 = vunpack.c.h.b16 %v655
  %v1065 = vunpack.c.l.b16 %v656
  %v1066 = vunpack.c.h.b16 %v656
  %v1067 = vunpack.c.l.b16 %v657
  %v1068 = vunpack.c.h.b16 %v657
  %v1069 = vunpack.c.l.b16 %v658
  %v1070 = vunpack.c.h.b16 %v658
  %v1071 = vunpack.c.l.b16 %v659
  %v1072 = vunpack.c.h.b16 %v659
  %v1073 = vunpack.c.l.b16 %v660
  %v1074 = vunpack.c.h.b16 %v660
  %v1075 = vunpack.c.l.b16 %v661
  %v1076 = vunpack.c.h.b16 %v661
  %v1077 = vunpack.c.l.b16 %v662
  %v1078 = vunpack.c.h.b16 %v662
  %v1079 = vunpack.c.l.b16 %v663
  %v1080 = vunpack.c.h.b16 %v663
  %v1081 = vunpack.c.l.b16 %v664
  %v1082 = vunpack.c.h.b16 %v664
  %v1083 = vunpack.c.l.b16 %v665
  %v1084 = vunpack.c.h.b16 %v665
  %v1085 = vunpack.c.l.b16 %v666
  %v1086 = vunpack.c.h.b16 %v666
  %v1087 = vunpack.c.l.b16 %v667
  %v1088 = vunpack.c.h.b16 %v667
  %v1089 = vunpack.c.l.b16 %v668
  %v1090 = vunpack.c.h.b16 %v668
  %v1091 = vunpack.c.l.b16 %v669
  %v1092 = vunpack.c.h.b16 %v669
  %v1093 = vunpack.c.l.b16 %v670
  %v1094 = vunpack.c.h.b16 %v670
  %v1095 = vunpack.c.l.b16 %v671
  %v1096 = vunpack.c.h.b16 %v671
  %v1097 = vunpack.c.l.b16 %v672
  %v1098 = vunpack.c.h.b16 %v672
  %v1099 = vunpack.c.l.b16 %v673
  %v1100 = vunpack.c.h.b16 %v673
  %v1101 = vunpack.c.l.b16 %v674
  %v1102 = vunpack.c.h.b16 %v674
  %v1103 = vunpack.c.l.b16 %v675
  %v1104 = vunpack.c.h.b16 %v675
  %v1105 = vunpack.c.l.b16 %v676
  %v1106 = vunpack.c.h.b16 %v676
  %v1107 = vunpack.c.l.b16 %v677
  %v1108 = vunpack.c.h.b16 %v677
  %v1109 = vunpack.c.l.b16 %v678
  %v1110 = vunpack.c.h.b16 %v678
  %v1111 = vunpack.c.l.b16 %v679
  %v1112 = vunpack.c.h.b16 %v679
  %v1113 = vunpack.c.l.b16 %v680
  %v1114 = vunpack.c.h.b16 %v680
  %v1115 = vunpack.c.l.b16 %v681
  %v1116 = vunpack.c.h.b16 %v681
  %v1117 = vunpack.c.l.b16 %v682
  %v1118 = vunpack.c.h.b16 %v682
  %v1119 = vunpack.c.l.b16 %v683
  %v1120 = vunpack.c.h.b16 %v683
  %v1121 = vunpack.c.l.b16 %v684
  %v1122 = vunpack.c.h.b16 %v684
  %v1123 = vunpack.c.l.b16 %v685
  %v1124 = vunpack.c.h.b16 %v685
  %v1125 = vunpack.c.l.b16 %v686
  %v1126 = vunpack.c.h.b16 %v686
  %v1127 = vunpack.c.l.b16 %v687
  %v1128 = vunpack.c.h.b16 %v687
  %v1129 = vunpack.c.l.b16 %v688
  %v1130 = vunpack.c.h.b16 %v688
  %v1131 = vunpack.c.l.b16 %v689
  %v1132 = vunpack.c.h.b16 %v689
  %v1133 = vunpack.c.l.b16 %v690
  %v1134 = vunpack.c.h.b16 %v690
  %v1135 = vunpack.c.l.b16 %v691
  %v1136 = vunpack.c.h.b16 %v691
  %v1137 = vunpack.c.l.b16 %v692
  %v1138 = vunpack.c.h.b16 %v692
  %v1139 = vunpack.c.l.b16 %v693
  %v1140 = vunpack.c.h.b16 %v693
  %v1141 = vunpack.c.l.b16 %v694
  %v1142 = vunpack.c.h.b16 %v694
  %v1143 = vunpack.c.l.b16 %v695
  %v1144 = vunpack.c.h.b16 %v695
  %v1145 = vunpack.c.l.b16 %v696
  %v1146 = vunpack.c.h.b16 %v696
  %v1147 = vunpack.c.l.b16 %v697
  %v1148 = vunpack.c.h.b16 %v697
  %v1149 = vunpack.c.l.b16 %v698
  %v1150 = vunpack.c.h.b16 %v698
  %v1151 = vunpack.c.l.b16 %v699
  %v1152 = vunpack.c.h.b16 %v699
  %v1153 = vunpack.c.l.b16 %v700
  %v1154 = vunpack.c.h.b16 %v700
  %v1155 = vunpack.c.l.b16 %v701
  %v1156 = vunpack.c.h.b16 %v701
  %v1157 = vunpack.c.l.b16 %v702
  %v1158 = vunpack.c.h.b16 %v702
  %v1159 = vunpack.c.l.b16 %v703
  %v1160 = vunpack.c.h.b16 %v703
  %v1161 = vunpack.c.l.b16 %v704
  %v1162 = vunpack.c.h.b16 %v704
  %v1163 = vunpack.c.l.b16 %v705
  %v1164 = vunpack.c.h.b16 %v705
  %v1165 = vunpack.c.l.b16 %v706
  %v1166 = vunpack.c.h.b16 %v706
  %v1167 = vunpack.c.l.b16 %v707
  %v1168 = vunpack.c.h.b16 %v707
  %v1169 = vunpack.c.l.b16 %v708
  %v1170 = vunpack.c.h.b16 %v708
  %v1171 = vunpack.c.l.b16 %v709
  %v1172 = vunpack.c.h.b16 %v709
  %v1173 = vunpack.c.l.b16 %v710
  %v1174 = vunpack.c.h.b16 %v710
  %v1175 = vunpack.c.l.b16 %v711
  %v1176 = vunpack.c.h.b16 %v711
  %v1177 = vunpack.c.l.b16 %v712
  %v1178 = vunpack.c.h.b16 %v712
  %v1179 = vunpack.c.l.b16 %v713
  %v1180 = vunpack.c.h.b16 %v713
  %v1181 = vunpack.c.l.b16 %v714
  %v1182 = vunpack.c.h.b16 %v714
  %v1183 = vpack.c.b16 %v943, %v927
  %v1184 = vpack.c.b16 %v944, %v928
  %v1185 = vpack.c.b16 %v945, %v929
  %v1186 = vpack.c.b16 %v946, %v930
  %v1187 = vpack.c.b16 %v947, %v931
  %v1188 = vpack.c.b16 %v948, %v932
  %v1189 = vpack.c.b16 %v949, %v933
  %v1190 = vpack.c.b16 %v950, %v934
  %v1191 = vpack.c.b16 %v951, %v935
  %v1192 = vpack.c.b16 %v952, %v936
  %v1193 = vpack.c.b16 %v953, %v937
  %v1194 = vpack.c.b16 %v954, %v938
  %v1195 = vpack.c.b16 %v955, %v939
  %v1196 = vpack.c.b16 %v956, %v940
  %v1197 = vpack.c.b16 %v957, %v941
  %v1198 = vpack.c.b16 %v958, %v942
  %v1199 = vpack.c.b16 %v975, %v959
  %v1200 = vpack.c.b16 %v976, %v960
  %v1201 = vpack.c.b16 %v977, %v961
  %v1202 = vpack.c.b16 %v978, %v962
  %v1203 = vpack.c.b16 %v979, %v963
  %v1204 = vpack.c.b16 %v980, %v964
  %v1205 = vpack.c.b16 %v981, %v965
  %v1206 = vpack.c.b16 %v982, %v966
  %v1207 = vpack.c.b16 %v983, %v967
  %v1208 = vpack.c.b16 %v984, %v968
  %v1209 = vpack.c.b16 %v985, %v969
  %v1210 = vpack.c.b16 %v986, %v970
  %v1211 = vpack.c.b16 %v987, %v971
  %v1212 = vpack.c.b16 %v988, %v972
  %v1213 = vpack.c.b16 %v989, %v973
  %v1214 = vpack.c.b16 %v990, %v974
  %v1215 = vpack.c.b16 %v1007, %v991
  %v1216 = vpack.c.b16 %v1008, %v992
  %v1217 = vpack.c.b16 %v1009, %v993
  %v1218 = vpack.c.b16 %v1010, %v994
  %v1219 = vpack.c.b16 %v1011, %v995
  %v1220 = vpack.c.b16 %v1012, %v996
  %v1221 = vpack.c.b16 %v1013, %v997
  %v1222 = vpack.c.b16 %v1014, %v998
  %v1223 = vpack.c.b16 %v1015, %v999
  %v1224 = vpack.c.b16 %v1016, %v1000
  %v1225 = vpack.c.b16 %v1017, %v1001
  %v1226 = vpack.c.b16 %v1018, %v1002
  %v1227 = vpack.c.b16 %v1019, %v1003
  %v1228 = vpack.c.b16 %v1020, %v1004
  %v1229 = vpack.c.b16 %v1021, %v1005
  %v1230 = vpack.c.b16 %v1022, %v1006
  %v1231 = vpack.c.b16 %v1039, %v1023
  %v1232 = vpack.c.b16 %v1040, %v1024
  %v1233 = vpack.c.b16 %v1041, %v1025
  %v1234 = vpack.c.b16 %v1042, %v1026
  %v1235 = vpack.c.b16 %v1043, %v1027
  %v1236 = vpack.c.b16 %v1044, %v1028
  %v1237 = vpack.c.b16 %v1045, %v1029
  %v1238 = vpack.c.b16 %v1046, %v1030
  %v1239 = vpack.c.b16 %v1047, %v1031
  %v1240 = vpack.c.b16 %v1048, %v1032
  %v1241 = vpack.c.b16 %v1049, %v1033
  %v1242 = vpack.c.b16 %v1050, %v1034
  %v1243 = vpack.c.b16 %v1051, %v1035
  %v1244 = vpack.c.b16 %v1052, %v1036
  %v1245 = vpack.c.b16 %v1053, %v1037
  %v1246 = vpack.c.b16 %v1054, %v1038
  %v1247 = vpack.c.b16 %v1071, %v1055
  %v1248 = vpack.c.b16 %v1072, %v1056
  %v1249 = vpack.c.b16 %v1073, %v1057
  %v1250 = vpack.c.b16 %v1074, %v1058
  %v1251 = vpack.c.b16 %v1075, %v1059
  %v1252 = vpack.c.b16 %v1076, %v1060
  %v1253 = vpack.c.b16 %v1077, %v1061
  %v1254 = vpack.c.b16 %v1078, %v1062
  %v1255 = vpack.c.b16 %v1079, %v1063
  %v1256 = vpack.c.b16 %v1080, %v1064
  %v1257 = vpack.c.b16 %v1081, %v1065
  %v1258 = vpack.c.b16 %v1082, %v1066
  %v1259 = vpack.c.b16 %v1083, %v1067
  %v1260 = vpack.c.b16 %v1084, %v1068
  %v1261 = vpack.c.b16 %v1085, %v1069
  %v1262 = vpack.c.b16 %v1086, %v1070
  %v1263 = vpack.c.b16 %v1103, %v1087
  %v1264 = vpack.c.b16 %v1104, %v1088
  %v1265 = vpack.c.b16 %v1105, %v1089
  %v1266 = vpack.c.b16 %v1106, %v1090
  %v1267 = vpack.c.b16 %v1107, %v1091
  %v1268 = vpack.c.b16 %v1108, %v1092
  %v1269 = vpack.c.b16 %v1109, %v1093
  %v1270 = vpack.c.b16 %v1110, %v1094
  %v1271 = vpack.c.b16 %v1111, %v1095
  %v1272 = vpack.c.b16 %v1112, %v1096
  %v1273 = vpack.c.b16 %v1113, %v1097
  %v1274 = vpack.c.b16 %v1114, %v1098
  %v1275 = vpack.c.b16 %v1115, %v1099
  %v1276 = vpack.c.b16 %v1116, %v1100
  %v1277 = vpack.c.b16 %v1117, %v1101
  %v1278 = vpack.c.b16 %v1118, %v1102
  %v1279 = vpack.c.b16 %v1135, %v1119
  %v1280 = vpack.c.b16 %v1136, %v1120
  %v1281 = vpack.c.b16 %v1137, %v1121
  %v1282 = vpack.c.b16 %v1138, %v1122
  %v1283 = vpack.c.b16 %v1139, %v1123
  %v1284 = vpack.c.b16 %v1140, %v1124
  %v1285 = vpack.c.b16 %v1141, %v1125
  %v1286 = vpack.c.b16 %v1142, %v1126
  %v1287 = vpack.c.b16 %v1143, %v1127
  %v1288 = vpack.c.b16 %v1144, %v1128
  %v1289 = vpack.c.b16 %v1145, %v1129
  %v1290 = vpack.c.b16 %v1146, %v1130
  %v1291 = vpack.c.b16 %v1147, %v1131
  %v1292 = vpack.c.b16 %v1148, %v1132
  %v1293 = vpack.c.b16 %v1149, %v1133
  %v1294 = vpack.c.b16 %v1150, %v1134
  %v1295 = vpack.c.b16 %v1167, %v1151
  %v1296 = vpack.c.b16 %v1168, %v1152
  %v1297 = vpack.c.b16 %v1169, %v1153
  %v1298 = vpack.c.b16 %v1170, %v1154
  %v1299 = vpack.c.b16 %v1171, %v1155
  %v1300 = vpack.c.b16 %v1172, %v1156
  %v1301 = vpack.c.b16 %v1173, %v1157
  %v1302 = vpack.c.b16 %v1174, %v1158
  %v1303 = vpack.c.b16 %v1175, %v1159
  %v1304 = vpack.c.b16 %v1176, %v1160
  %v1305 = vpack.c.b16 %v1177, %v1161
  %v1306 = vpack.c.b16 %v1178, %v1162
  %v1307 = vpack.c.b16 %v1179, %v1163
  %v1308 = vpack.c.b16 %v1180, %v1164
  %v1309 = vpack.c.b16 %v1181, %v1165
  %v1310 = vpack.c.b16 %v1182, %v1166
  %1439 = vmatprep.subr.bf16.mxu0 %v1184
  %1440 = vmatpush1.bf16.msra.mxu0 %v1183
  %1441 = vmatprep.subr.bf16.mxu0 %v1200
  %1442 = vmatpush1.bf16.msra.mxu0 %v1199
  %1443 = vmatprep.subr.bf16.mxu0 %v1216
  %1444 = vmatpush1.bf16.msra.mxu0 %v1215
  %1445 = vmatprep.subr.bf16.mxu0 %v1232
  %1446 = vmatpush1.bf16.msra.mxu0 %v1231
  %1447 = vmatprep.subr.bf16.mxu0 %v1248
  %1448 = vmatpush1.bf16.msra.mxu0 %v1247
  %1449 = vmatprep.subr.bf16.mxu0 %v1264
  %1450 = vmatpush1.bf16.msra.mxu0 %v1263
  %1451 = vmatprep.subr.bf16.mxu0 %v1280
  %1452 = vmatpush1.bf16.msra.mxu0 %v1279
  %1453 = vmatprep.subr.bf16.mxu0 %v1296
  %1454 = vmatpush1.bf16.msra.mxu0 %v1295
  %1455 = vmatprep.subr.bf16.mxu0 0
  %1456 = vmatpush1.bf16.msra.mxu0 0
  %1457 = vmatprep.subr.bf16.mxu0 0
  %1458 = vmatpush1.bf16.msra.mxu0 0
  %1459 = vmatprep.subr.bf16.mxu0 0
  %1460 = vmatpush1.bf16.msra.mxu0 0
  %1461 = vmatprep.subr.bf16.mxu0 0
  %1462 = vmatpush1.bf16.msra.mxu0 0
  %1463 = vmatprep.subr.bf16.mxu0 0
  %1464 = vmatpush1.bf16.msra.mxu0 0
  %1465 = vmatprep.subr.bf16.mxu0 0
  %1466 = vmatpush1.bf16.msra.mxu0 0
  %1467 = vmatprep.subr.bf16.mxu0 0
  %1468 = vmatpush1.bf16.msra.mxu0 0
  %1469 = vmatprep.subr.bf16.mxu0 0
  %1470 = vmatpush1.bf16.msra.mxu0 0
  %1471 = vmatprep.mubr.bf16.mxu0 0
  %1472 = vmatmul.mubr.bf16.gmra.mrb[0].mxu0 %v586
  %v1473 = vpop.f32.mrb[0].mxu0
  %v1474 = vadd.f32 %v722, %v1473
  %v1475 = vpop.f32.mrb[0].mxu0
  %v1476 = vadd.f32 %v726, %v1475
  %v1477 = vpop.f32.mrb[0].mxu0
  %v1478 = vadd.f32 %v722, %v1477
  %v1479 = vpop.f32.mrb[0].mxu0
  %v1480 = vadd.f32 %v726, %v1479
  %1481 = vdwg.mxu0
  %1482 = vmatprep.subr.bf16.mxu0 %v1186
  %1483 = vmatpush1.bf16.msra.mxu0 %v1185
  %1484 = vmatprep.subr.bf16.mxu0 %v1202
  %1485 = vmatpush1.bf16.msra.mxu0 %v1201
  %1486 = vmatprep.subr.bf16.mxu0 %v1218
  %1487 = vmatpush1.bf16.msra.mxu0 %v1217
  %1488 = vmatprep.subr.bf16.mxu0 %v1234
  %1489 = vmatpush1.bf16.msra.mxu0 %v1233
  %1490 = vmatprep.subr.bf16.mxu0 %v1250
  %1491 = vmatpush1.bf16.msra.mxu0 %v1249
  %1492 = vmatprep.subr.bf16.mxu0 %v1266
  %1493 = vmatpush1.bf16.msra.mxu0 %v1265
  %1494 = vmatprep.subr.bf16.mxu0 %v1282
  %1495 = vmatpush1.bf16.msra.mxu0 %v1281
  %1496 = vmatprep.subr.bf16.mxu0 %v1298
  %1497 = vmatpush1.bf16.msra.mxu0 %v1297
  %1498 = vmatprep.subr.bf16.mxu0 0
  %1499 = vmatpush1.bf16.msra.mxu0 0
  %1500 = vmatprep.subr.bf16.mxu0 0
  %1501 = vmatpush1.bf16.msra.mxu0 0
  %1502 = vmatprep.subr.bf16.mxu0 0
  %1503 = vmatpush1.bf16.msra.mxu0 0
  %1504 = vmatprep.subr.bf16.mxu0 0
  %1505 = vmatpush1.bf16.msra.mxu0 0
  %1506 = vmatprep.subr.bf16.mxu0 0
  %1507 = vmatpush1.bf16.msra.mxu0 0
  %1508 = vmatprep.subr.bf16.mxu0 0
  %1509 = vmatpush1.bf16.msra.mxu0 0
  %1510 = vmatprep.subr.bf16.mxu0 0
  %1511 = vmatpush1.bf16.msra.mxu0 0
  %1512 = vmatprep.subr.bf16.mxu0 0
  %1513 = vmatpush1.bf16.msra.mxu0 0
  %1514 = vmatprep.mubr.bf16.mxu0 0
  %1515 = vmatmul.mubr.bf16.gmra.mrb[0].mxu0 %v586
  %v1516 = vpop.f32.mrb[0].mxu0
  %v1517 = vadd.f32 %v730, %v1516
  %v1518 = vpop.f32.mrb[0].mxu0
  %v1519 = vadd.f32 %v734, %v1518
  %v1520 = vpop.f32.mrb[0].mxu0
  %v1521 = vadd.f32 %v730, %v1520
  %v1522 = vpop.f32.mrb[0].mxu0
  %v1523 = vadd.f32 %v734, %v1522
  %1524 = vdwg.mxu0
  %1525 = vmatprep.subr.bf16.mxu0 %v1188
  %1526 = vmatpush1.bf16.msra.mxu0 %v1187
  %1527 = vmatprep.subr.bf16.mxu0 %v1204
  %1528 = vmatpush1.bf16.msra.mxu0 %v1203
  %1529 = vmatprep.subr.bf16.mxu0 %v1220
  %1530 = vmatpush1.bf16.msra.mxu0 %v1219
  %1531 = vmatprep.subr.bf16.mxu0 %v1236
  %1532 = vmatpush1.bf16.msra.mxu0 %v1235
  %1533 = vmatprep.subr.bf16.mxu0 %v1252
  %1534 = vmatpush1.bf16.msra.mxu0 %v1251
  %1535 = vmatprep.subr.bf16.mxu0 %v1268
  %1536 = vmatpush1.bf16.msra.mxu0 %v1267
  %1537 = vmatprep.subr.bf16.mxu0 %v1284
  %1538 = vmatpush1.bf16.msra.mxu0 %v1283
  %1539 = vmatprep.subr.bf16.mxu0 %v1300
  %1540 = vmatpush1.bf16.msra.mxu0 %v1299
  %1541 = vmatprep.subr.bf16.mxu0 0
  %1542 = vmatpush1.bf16.msra.mxu0 0
  %1543 = vmatprep.subr.bf16.mxu0 0
  %1544 = vmatpush1.bf16.msra.mxu0 0
  %1545 = vmatprep.subr.bf16.mxu0 0
  %1546 = vmatpush1.bf16.msra.mxu0 0
  %1547 = vmatprep.subr.bf16.mxu0 0
  %1548 = vmatpush1.bf16.msra.mxu0 0
  %1549 = vmatprep.subr.bf16.mxu0 0
  %1550 = vmatpush1.bf16.msra.mxu0 0
  %1551 = vmatprep.subr.bf16.mxu0 0
  %1552 = vmatpush1.bf16.msra.mxu0 0
  %1553 = vmatprep.subr.bf16.mxu0 0
  %1554 = vmatpush1.bf16.msra.mxu0 0
  %1555 = vmatprep.subr.bf16.mxu0 0
  %1556 = vmatpush1.bf16.msra.mxu0 0
  %1557 = vmatprep.mubr.bf16.mxu0 0
  %1558 = vmatmul.mubr.bf16.gmra.mrb[0].mxu0 %v586
  %v1559 = vpop.f32.mrb[0].mxu0
  %v1560 = vadd.f32 %v738, %v1559
  %v1561 = vpop.f32.mrb[0].mxu0
  %v1562 = vadd.f32 %v742, %v1561
  %v1563 = vpop.f32.mrb[0].mxu0
  %v1564 = vadd.f32 %v738, %v1563
  %v1565 = vpop.f32.mrb[0].mxu0
  %v1566 = vadd.f32 %v742, %v1565
  %1567 = vdwg.mxu0
  %1568 = vmatprep.subr.bf16.mxu0 %v1190
  %1569 = vmatpush1.bf16.msra.mxu0 %v1189
  %1570 = vmatprep.subr.bf16.mxu0 %v1206
  %1571 = vmatpush1.bf16.msra.mxu0 %v1205
  %1572 = vmatprep.subr.bf16.mxu0 %v1222
  %1573 = vmatpush1.bf16.msra.mxu0 %v1221
  %1574 = vmatprep.subr.bf16.mxu0 %v1238
  %1575 = vmatpush1.bf16.msra.mxu0 %v1237
  %1576 = vmatprep.subr.bf16.mxu0 %v1254
  %1577 = vmatpush1.bf16.msra.mxu0 %v1253
  %1578 = vmatprep.subr.bf16.mxu0 %v1270
  %1579 = vmatpush1.bf16.msra.mxu0 %v1269
  %1580 = vmatprep.subr.bf16.mxu0 %v1286
  %1581 = vmatpush1.bf16.msra.mxu0 %v1285
  %1582 = vmatprep.subr.bf16.mxu0 %v1302
  %1583 = vmatpush1.bf16.msra.mxu0 %v1301
  %1584 = vmatprep.subr.bf16.mxu0 0
  %1585 = vmatpush1.bf16.msra.mxu0 0
  %1586 = vmatprep.subr.bf16.mxu0 0
  %1587 = vmatpush1.bf16.msra.mxu0 0
  %1588 = vmatprep.subr.bf16.mxu0 0
  %1589 = vmatpush1.bf16.msra.mxu0 0
  %1590 = vmatprep.subr.bf16.mxu0 0
  %1591 = vmatpush1.bf16.msra.mxu0 0
  %1592 = vmatprep.subr.bf16.mxu0 0
  %1593 = vmatpush1.bf16.msra.mxu0 0
  %1594 = vmatprep.subr.bf16.mxu0 0
  %1595 = vmatpush1.bf16.msra.mxu0 0
  %1596 = vmatprep.subr.bf16.mxu0 0
  %1597 = vmatpush1.bf16.msra.mxu0 0
  %1598 = vmatprep.subr.bf16.mxu0 0
  %1599 = vmatpush1.bf16.msra.mxu0 0
  %1600 = vmatprep.mubr.bf16.mxu0 0
  %1601 = vmatmul.mubr.bf16.gmra.mrb[0].mxu0 %v586
  %v1602 = vpop.f32.mrb[0].mxu0
  %v1603 = vadd.f32 %v746, %v1602
  %v1604 = vpop.f32.mrb[0].mxu0
  %v1605 = vadd.f32 %v750, %v1604
  %v1606 = vpop.f32.mrb[0].mxu0
  %v1607 = vadd.f32 %v746, %v1606
  %v1608 = vpop.f32.mrb[0].mxu0
  %v1609 = vadd.f32 %v750, %v1608
  %1610 = vdwg.mxu0
  %1611 = vmatprep.subr.bf16.mxu0 %v1192
  %1612 = vmatpush1.bf16.msra.mxu0 %v1191
  %1613 = vmatprep.subr.bf16.mxu0 %v1208
  %1614 = vmatpush1.bf16.msra.mxu0 %v1207
  %1615 = vmatprep.subr.bf16.mxu0 %v1224
  %1616 = vmatpush1.bf16.msra.mxu0 %v1223
  %1617 = vmatprep.subr.bf16.mxu0 %v1240
  %1618 = vmatpush1.bf16.msra.mxu0 %v1239
  %1619 = vmatprep.subr.bf16.mxu0 %v1256
  %1620 = vmatpush1.bf16.msra.mxu0 %v1255
  %1621 = vmatprep.subr.bf16.mxu0 %v1272
  %1622 = vmatpush1.bf16.msra.mxu0 %v1271
  %1623 = vmatprep.subr.bf16.mxu0 %v1288
  %1624 = vmatpush1.bf16.msra.mxu0 %v1287
  %1625 = vmatprep.subr.bf16.mxu0 %v1304
  %1626 = vmatpush1.bf16.msra.mxu0 %v1303
  %1627 = vmatprep.subr.bf16.mxu0 0
  %1628 = vmatpush1.bf16.msra.mxu0 0
  %1629 = vmatprep.subr.bf16.mxu0 0
  %1630 = vmatpush1.bf16.msra.mxu0 0
  %1631 = vmatprep.subr.bf16.mxu0 0
  %1632 = vmatpush1.bf16.msra.mxu0 0
  %1633 = vmatprep.subr.bf16.mxu0 0
  %1634 = vmatpush1.bf16.msra.mxu0 0
  %1635 = vmatprep.subr.bf16.mxu0 0
  %1636 = vmatpush1.bf16.msra.mxu0 0
  %1637 = vmatprep.subr.bf16.mxu0 0
  %1638 = vmatpush1.bf16.msra.mxu0 0
  %1639 = vmatprep.subr.bf16.mxu0 0
  %1640 = vmatpush1.bf16.msra.mxu0 0
  %1641 = vmatprep.subr.bf16.mxu0 0
  %1642 = vmatpush1.bf16.msra.mxu0 0
  %1643 = vmatprep.mubr.bf16.mxu0 0
  %1644 = vmatmul.mubr.bf16.gmra.mrb[0].mxu0 %v586
  %v1645 = vpop.f32.mrb[0].mxu0
  %v1646 = vadd.f32 %v754, %v1645
  %v1647 = vpop.f32.mrb[0].mxu0
  %v1648 = vadd.f32 %v758, %v1647
  %v1649 = vpop.f32.mrb[0].mxu0
  %v1650 = vadd.f32 %v754, %v1649
  %v1651 = vpop.f32.mrb[0].mxu0
  %v1652 = vadd.f32 %v758, %v1651
  %1653 = vdwg.mxu0
  %1654 = vmatprep.subr.bf16.mxu0 %v1194
  %1655 = vmatpush1.bf16.msra.mxu0 %v1193
  %1656 = vmatprep.subr.bf16.mxu0 %v1210
  %1657 = vmatpush1.bf16.msra.mxu0 %v1209
  %1658 = vmatprep.subr.bf16.mxu0 %v1226
  %1659 = vmatpush1.bf16.msra.mxu0 %v1225
  %1660 = vmatprep.subr.bf16.mxu0 %v1242
  %1661 = vmatpush1.bf16.msra.mxu0 %v1241
  %1662 = vmatprep.subr.bf16.mxu0 %v1258
  %1663 = vmatpush1.bf16.msra.mxu0 %v1257
  %1664 = vmatprep.subr.bf16.mxu0 %v1274
  %1665 = vmatpush1.bf16.msra.mxu0 %v1273
  %1666 = vmatprep.subr.bf16.mxu0 %v1290
  %1667 = vmatpush1.bf16.msra.mxu0 %v1289
  %1668 = vmatprep.subr.bf16.mxu0 %v1306
  %1669 = vmatpush1.bf16.msra.mxu0 %v1305
  %1670 = vmatprep.subr.bf16.mxu0 0
  %1671 = vmatpush1.bf16.msra.mxu0 0
  %1672 = vmatprep.subr.bf16.mxu0 0
  %1673 = vmatpush1.bf16.msra.mxu0 0
  %1674 = vmatprep.subr.bf16.mxu0 0
  %1675 = vmatpush1.bf16.msra.mxu0 0
  %1676 = vmatprep.subr.bf16.mxu0 0
  %1677 = vmatpush1.bf16.msra.mxu0 0
  %1678 = vmatprep.subr.bf16.mxu0 0
  %1679 = vmatpush1.bf16.msra.mxu0 0
  %1680 = vmatprep.subr.bf16.mxu0 0
  %1681 = vmatpush1.bf16.msra.mxu0 0
  %1682 = vmatprep.subr.bf16.mxu0 0
  %1683 = vmatpush1.bf16.msra.mxu0 0
  %1684 = vmatprep.subr.bf16.mxu0 0
  %1685 = vmatpush1.bf16.msra.mxu0 0
  %1686 = vmatprep.mubr.bf16.mxu0 0
  %1687 = vmatmul.mubr.bf16.gmra.mrb[0].mxu0 %v586
  %v1688 = vpop.f32.mrb[0].mxu0
  %v1689 = vadd.f32 %v762, %v1688
  %v1690 = vpop.f32.mrb[0].mxu0
  %v1691 = vadd.f32 %v766, %v1690
  %v1692 = vpop.f32.mrb[0].mxu0
  %v1693 = vadd.f32 %v762, %v1692
  %v1694 = vpop.f32.mrb[0].mxu0
  %v1695 = vadd.f32 %v766, %v1694
  %1696 = vdwg.mxu0
  %1697 = vmatprep.subr.bf16.mxu0 %v1196
  %1698 = vmatpush1.bf16.msra.mxu0 %v1195
  %1699 = vmatprep.subr.bf16.mxu0 %v1212
  %1700 = vmatpush1.bf16.msra.mxu0 %v1211
  %1701 = vmatprep.subr.bf16.mxu0 %v1228
  %1702 = vmatpush1.bf16.msra.mxu0 %v1227
  %1703 = vmatprep.subr.bf16.mxu0 %v1244
  %1704 = vmatpush1.bf16.msra.mxu0 %v1243
  %1705 = vmatprep.subr.bf16.mxu0 %v1260
  %1706 = vmatpush1.bf16.msra.mxu0 %v1259
  %1707 = vmatprep.subr.bf16.mxu0 %v1276
  %1708 = vmatpush1.bf16.msra.mxu0 %v1275
  %1709 = vmatprep.subr.bf16.mxu0 %v1292
  %1710 = vmatpush1.bf16.msra.mxu0 %v1291
  %1711 = vmatprep.subr.bf16.mxu0 %v1308
  %1712 = vmatpush1.bf16.msra.mxu0 %v1307
  %1713 = vmatprep.subr.bf16.mxu0 0
  %1714 = vmatpush1.bf16.msra.mxu0 0
  %1715 = vmatprep.subr.bf16.mxu0 0
  %1716 = vmatpush1.bf16.msra.mxu0 0
  %1717 = vmatprep.subr.bf16.mxu0 0
  %1718 = vmatpush1.bf16.msra.mxu0 0
  %1719 = vmatprep.subr.bf16.mxu0 0
  %1720 = vmatpush1.bf16.msra.mxu0 0
  %1721 = vmatprep.subr.bf16.mxu0 0
  %1722 = vmatpush1.bf16.msra.mxu0 0
  %1723 = vmatprep.subr.bf16.mxu0 0
  %1724 = vmatpush1.bf16.msra.mxu0 0
  %1725 = vmatprep.subr.bf16.mxu0 0
  %1726 = vmatpush1.bf16.msra.mxu0 0
  %1727 = vmatprep.subr.bf16.mxu0 0
  %1728 = vmatpush1.bf16.msra.mxu0 0
  %1729 = vmatprep.mubr.bf16.mxu0 0
  %1730 = vmatmul.mubr.bf16.gmra.mrb[0].mxu0 %v586
  %v1731 = vpop.f32.mrb[0].mxu0
  %v1732 = vadd.f32 %v770, %v1731
  %v1733 = vpop.f32.mrb[0].mxu0
  %v1734 = vadd.f32 %v774, %v1733
  %v1735 = vpop.f32.mrb[0].mxu0
  %v1736 = vadd.f32 %v770, %v1735
  %v1737 = vpop.f32.mrb[0].mxu0
  %v1738 = vadd.f32 %v774, %v1737
  %1739 = vdwg.mxu0
  %1740 = vmatprep.subr.bf16.mxu0 %v1198
  %1741 = vmatpush1.bf16.msra.mxu0 %v1197
  %1742 = vmatprep.subr.bf16.mxu0 %v1214
  %1743 = vmatpush1.bf16.msra.mxu0 %v1213
  %1744 = vmatprep.subr.bf16.mxu0 %v1230
  %1745 = vmatpush1.bf16.msra.mxu0 %v1229
  %1746 = vmatprep.subr.bf16.mxu0 %v1246
  %1747 = vmatpush1.bf16.msra.mxu0 %v1245
  %1748 = vmatprep.subr.bf16.mxu0 %v1262
  %1749 = vmatpush1.bf16.msra.mxu0 %v1261
  %1750 = vmatprep.subr.bf16.mxu0 %v1278
  %1751 = vmatpush1.bf16.msra.mxu0 %v1277
  %1752 = vmatprep.subr.bf16.mxu0 %v1294
  %1753 = vmatpush1.bf16.msra.mxu0 %v1293
  %1754 = vmatprep.subr.bf16.mxu0 %v1310
  %1755 = vmatpush1.bf16.msra.mxu0 %v1309
  %1756 = vmatprep.subr.bf16.mxu0 0
  %1757 = vmatpush1.bf16.msra.mxu0 0
  %1758 = vmatprep.subr.bf16.mxu0 0
  %1759 = vmatpush1.bf16.msra.mxu0 0
  %1760 = vmatprep.subr.bf16.mxu0 0
  %1761 = vmatpush1.bf16.msra.mxu0 0
  %1762 = vmatprep.subr.bf16.mxu0 0
  %1763 = vmatpush1.bf16.msra.mxu0 0
  %1764 = vmatprep.subr.bf16.mxu0 0
  %1765 = vmatpush1.bf16.msra.mxu0 0
  %1766 = vmatprep.subr.bf16.mxu0 0
  %1767 = vmatpush1.bf16.msra.mxu0 0
  %1768 = vmatprep.subr.bf16.mxu0 0
  %1769 = vmatpush1.bf16.msra.mxu0 0
  %1770 = vmatprep.subr.bf16.mxu0 0
  %1771 = vmatpush1.bf16.msra.mxu0 0
  %1772 = vmatprep.mubr.bf16.mxu0 0
  %1773 = vmatmul.mubr.bf16.gmra.mrb[0].mxu0 %v586
  %v1774 = vpop.f32.mrb[0].mxu0
  %v1775 = vadd.f32 %v778, %v1774
  %v1776 = vpop.f32.mrb[0].mxu0
  %v1777 = vadd.f32 %v782, %v1776
  %v1778 = vpop.f32.mrb[0].mxu0
  %v1779 = vadd.f32 %v778, %v1778
  %v1780 = vpop.f32.mrb[0].mxu0
  %v1781 = vadd.f32 %v782, %v1780
  %1782 = vdwg.mxu0
  %v1783 = vmax.f32 %v1474, 0.0
  %v1784 = vmax.f32 %v1476, 0.0
  %v1785 = vmax.f32 %v1517, 0.0
  %v1786 = vmax.f32 %v1519, 0.0
  %v1787 = vmax.f32 %v1560, 0.0
  %v1788 = vmax.f32 %v1562, 0.0
  %v1789 = vmax.f32 %v1603, 0.0
  %v1790 = vmax.f32 %v1605, 0.0
  %v1791 = vmax.f32 %v1646, 0.0
  %v1792 = vmax.f32 %v1648, 0.0
  %v1793 = vmax.f32 %v1689, 0.0
  %v1794 = vmax.f32 %v1691, 0.0
  %v1795 = vmax.f32 %v1732, 0.0
  %v1796 = vmax.f32 %v1734, 0.0
  %v1797 = vmax.f32 %v1775, 0.0
  %v1798 = vmax.f32 %v1777, 0.0
  %v1799 = vmax.f32 %v1478, 0.0
  %v1800 = vmax.f32 %v1480, 0.0
  %v1801 = vmax.f32 %v1521, 0.0
  %v1802 = vmax.f32 %v1523, 0.0
  %v1803 = vmax.f32 %v1564, 0.0
  %v1804 = vmax.f32 %v1566, 0.0
  %v1805 = vmax.f32 %v1607, 0.0
  %v1806 = vmax.f32 %v1609, 0.0
  %v1807 = vmax.f32 %v1650, 0.0
  %v1808 = vmax.f32 %v1652, 0.0
  %v1809 = vmax.f32 %v1693, 0.0
  %v1810 = vmax.f32 %v1695, 0.0
  %v1811 = vmax.f32 %v1736, 0.0
  %v1812 = vmax.f32 %v1738, 0.0
  %v1813 = vmax.f32 %v1779, 0.0
  %v1814 = vmax.f32 %v1781, 0.0
  %v1815 = vpack.c.bf16 %v1799, %v1783
  %v1816 = vpack.c.bf16 %v1800, %v1784
  %v1817 = vpack.c.bf16 %v1801, %v1785
  %v1818 = vpack.c.bf16 %v1802, %v1786
  %v1819 = vpack.c.bf16 %v1803, %v1787
  %v1820 = vpack.c.bf16 %v1804, %v1788
  %v1821 = vpack.c.bf16 %v1805, %v1789
  %v1822 = vpack.c.bf16 %v1806, %v1790
  %v1823 = vpack.c.bf16 %v1807, %v1791
  %v1824 = vpack.c.bf16 %v1808, %v1792
  %v1825 = vpack.c.bf16 %v1809, %v1793
  %v1826 = vpack.c.bf16 %v1810, %v1794
  %v1827 = vpack.c.bf16 %v1811, %v1795
  %v1828 = vpack.c.bf16 %v1812, %v1796
  %v1829 = vpack.c.bf16 %v1813, %v1797
  %v1830 = vpack.c.bf16 %v1814, %v1798
  %v1831 = vld [vmem:[%s10] sm:$0xf]
  %v1832 = vld [vmem:[%s10 + $0x4] sm:$0xf]
  %v1833 = vld [vmem:[%s10 + $0x8] sm:$0xf]
  %v1834 = vld [vmem:[%s10 + $0xc] sm:$0xf]
  %v1835 = vld [vmem:[%s10 + $0x10] sm:$0xf]
  %v1836 = vld [vmem:[%s10 + $0x14] sm:$0xf]
  %v1837 = vld [vmem:[%s10 + $0x18] sm:$0xf]
  %v1838 = vld [vmem:[%s10 + $0x1c] sm:$0xf]
  %v1839 = vld [vmem:[%s10 + $0x20] sm:$0xf]
  %v1840 = vld [vmem:[%s10 + $0x24] sm:$0xf]
  %v1841 = vld [vmem:[%s10 + $0x28] sm:$0xf]
  %v1842 = vld [vmem:[%s10 + $0x2c] sm:$0xf]
  %v1843 = vld [vmem:[%s10 + $0x30] sm:$0xf]
  %v1844 = vld [vmem:[%s10 + $0x34] sm:$0xf]
  %v1845 = vld [vmem:[%s10 + $0x38] sm:$0xf]
  %v1846 = vld [vmem:[%s10 + $0x3c] sm:$0xf]
  %v1847 = vld [vmem:[%s10 + $0x40] sm:$0xf]
  %v1848 = vld [vmem:[%s10 + $0x44] sm:$0xf]
  %v1849 = vld [vmem:[%s10 + $0x48] sm:$0xf]
  %v1850 = vld [vmem:[%s10 + $0x4c] sm:$0xf]
  %v1851 = vld [vmem:[%s10 + $0x50] sm:$0xf]
  %v1852 = vld [vmem:[%s10 + $0x54] sm:$0xf]
  %v1853 = vld [vmem:[%s10 + $0x58] sm:$0xf]
  %v1854 = vld [vmem:[%s10 + $0x5c] sm:$0xf]
  %v1855 = vld [vmem:[%s10 + $0x60] sm:$0xf]
  %v1856 = vld [vmem:[%s10 + $0x64] sm:$0xf]
  %v1857 = vld [vmem:[%s10 + $0x68] sm:$0xf]
  %v1858 = vld [vmem:[%s10 + $0x6c] sm:$0xf]
  %v1859 = vld [vmem:[%s10 + $0x70] sm:$0xf]
  %v1860 = vld [vmem:[%s10 + $0x74] sm:$0xf]
  %v1861 = vld [vmem:[%s10 + $0x78] sm:$0xf]
  %v1862 = vld [vmem:[%s10 + $0x7c] sm:$0xf]
  %v1863 = vld [vmem:[%s10 + $0x80] sm:$0xf]
  %v1864 = vld [vmem:[%s10 + $0x84] sm:$0xf]
  %v1865 = vld [vmem:[%s10 + $0x88] sm:$0xf]
  %v1866 = vld [vmem:[%s10 + $0x8c] sm:$0xf]
  %v1867 = vld [vmem:[%s10 + $0x90] sm:$0xf]
  %v1868 = vld [vmem:[%s10 + $0x94] sm:$0xf]
  %v1869 = vld [vmem:[%s10 + $0x98] sm:$0xf]
  %v1870 = vld [vmem:[%s10 + $0x9c] sm:$0xf]
  %v1871 = vld [vmem:[%s10 + $0xa0] sm:$0xf]
  %v1872 = vld [vmem:[%s10 + $0xa4] sm:$0xf]
  %v1873 = vld [vmem:[%s10 + $0xa8] sm:$0xf]
  %v1874 = vld [vmem:[%s10 + $0xac] sm:$0xf]
  %v1875 = vld [vmem:[%s10 + $0xb0] sm:$0xf]
  %v1876 = vld [vmem:[%s10 + $0xb4] sm:$0xf]
  %v1877 = vld [vmem:[%s10 + $0xb8] sm:$0xf]
  %v1878 = vld [vmem:[%s10 + $0xbc] sm:$0xf]
  %v1879 = vld [vmem:[%s10 + $0xc0] sm:$0xf]
  %v1880 = vld [vmem:[%s10 + $0xc4] sm:$0xf]
  %v1881 = vld [vmem:[%s10 + $0xc8] sm:$0xf]
  %v1882 = vld [vmem:[%s10 + $0xcc] sm:$0xf]
  %v1883 = vld [vmem:[%s10 + $0xd0] sm:$0xf]
  %v1884 = vld [vmem:[%s10 + $0xd4] sm:$0xf]
  %v1885 = vld [vmem:[%s10 + $0xd8] sm:$0xf]
  %v1886 = vld [vmem:[%s10 + $0xdc] sm:$0xf]
  %v1887 = vld [vmem:[%s10 + $0xe0] sm:$0xf]
  %v1888 = vld [vmem:[%s10 + $0xe4] sm:$0xf]
  %v1889 = vld [vmem:[%s10 + $0xe8] sm:$0xf]
  %v1890 = vld [vmem:[%s10 + $0xec] sm:$0xf]
  %v1891 = vld [vmem:[%s10 + $0xf0] sm:$0xf]
  %v1892 = vld [vmem:[%s10 + $0xf4] sm:$0xf]
  %v1893 = vld [vmem:[%s10 + $0xf8] sm:$0xf]
  %v1894 = vld [vmem:[%s10 + $0xfc] sm:$0xf]
  %v1895 = vld [vmem:[%s10 + $0x100] sm:$0xf]
  %v1896 = vld [vmem:[%s10 + $0x104] sm:$0xf]
  %v1897 = vld [vmem:[%s10 + $0x108] sm:$0xf]
  %v1898 = vld [vmem:[%s10 + $0x10c] sm:$0xf]
  %v1899 = vld [vmem:[%s10 + $0x110] sm:$0xf]
  %v1900 = vld [vmem:[%s10 + $0x114] sm:$0xf]
  %v1901 = vld [vmem:[%s10 + $0x118] sm:$0xf]
  %v1902 = vld [vmem:[%s10 + $0x11c] sm:$0xf]
  %v1903 = vld [vmem:[%s10 + $0x120] sm:$0xf]
  %v1904 = vld [vmem:[%s10 + $0x124] sm:$0xf]
  %v1905 = vld [vmem:[%s10 + $0x128] sm:$0xf]
  %v1906 = vld [vmem:[%s10 + $0x12c] sm:$0xf]
  %v1907 = vld [vmem:[%s10 + $0x130] sm:$0xf]
  %v1908 = vld [vmem:[%s10 + $0x134] sm:$0xf]
  %v1909 = vld [vmem:[%s10 + $0x138] sm:$0xf]
  %v1910 = vld [vmem:[%s10 + $0x13c] sm:$0xf]
  %v1911 = vld [vmem:[%s10 + $0x140] sm:$0xf]
  %v1912 = vld [vmem:[%s10 + $0x144] sm:$0xf]
  %v1913 = vld [vmem:[%s10 + $0x148] sm:$0xf]
  %v1914 = vld [vmem:[%s10 + $0x14c] sm:$0xf]
  %v1915 = vld [vmem:[%s10 + $0x150] sm:$0xf]
  %v1916 = vld [vmem:[%s10 + $0x154] sm:$0xf]
  %v1917 = vld [vmem:[%s10 + $0x158] sm:$0xf]
  %v1918 = vld [vmem:[%s10 + $0x15c] sm:$0xf]
  %v1919 = vld [vmem:[%s10 + $0x160] sm:$0xf]
  %v1920 = vld [vmem:[%s10 + $0x164] sm:$0xf]
  %v1921 = vld [vmem:[%s10 + $0x168] sm:$0xf]
  %v1922 = vld [vmem:[%s10 + $0x16c] sm:$0xf]
  %v1923 = vld [vmem:[%s10 + $0x170] sm:$0xf]
  %v1924 = vld [vmem:[%s10 + $0x174] sm:$0xf]
  %v1925 = vld [vmem:[%s10 + $0x178] sm:$0xf]
  %v1926 = vld [vmem:[%s10 + $0x17c] sm:$0xf]
  %v1927 = vld [vmem:[%s10 + $0x180] sm:$0xf]
  %v1928 = vld [vmem:[%s10 + $0x184] sm:$0xf]
  %v1929 = vld [vmem:[%s10 + $0x188] sm:$0xf]
  %v1930 = vld [vmem:[%s10 + $0x18c] sm:$0xf]
  %v1931 = vld [vmem:[%s10 + $0x190] sm:$0xf]
  %v1932 = vld [vmem:[%s10 + $0x194] sm:$0xf]
  %v1933 = vld [vmem:[%s10 + $0x198] sm:$0xf]
  %v1934 = vld [vmem:[%s10 + $0x19c] sm:$0xf]
  %v1935 = vld [vmem:[%s10 + $0x1a0] sm:$0xf]
  %v1936 = vld [vmem:[%s10 + $0x1a4] sm:$0xf]
  %v1937 = vld [vmem:[%s10 + $0x1a8] sm:$0xf]
  %v1938 = vld [vmem:[%s10 + $0x1ac] sm:$0xf]
  %v1939 = vld [vmem:[%s10 + $0x1b0] sm:$0xf]
  %v1940 = vld [vmem:[%s10 + $0x1b4] sm:$0xf]
  %v1941 = vld [vmem:[%s10 + $0x1b8] sm:$0xf]
  %v1942 = vld [vmem:[%s10 + $0x1bc] sm:$0xf]
  %v1943 = vld [vmem:[%s10 + $0x1c0] sm:$0xf]
  %v1944 = vld [vmem:[%s10 + $0x1c4] sm:$0xf]
  %v1945 = vld [vmem:[%s10 + $0x1c8] sm:$0xf]
  %v1946 = vld [vmem:[%s10 + $0x1cc] sm:$0xf]
  %v1947 = vld [vmem:[%s10 + $0x1d0] sm:$0xf]
  %v1948 = vld [vmem:[%s10 + $0x1d4] sm:$0xf]
  %v1949 = vld [vmem:[%s10 + $0x1d8] sm:$0xf]
  %v1950 = vld [vmem:[%s10 + $0x1dc] sm:$0xf]
  %v1951 = vld [vmem:[%s10 + $0x1e0] sm:$0xf]
  %v1952 = vld [vmem:[%s10 + $0x1e4] sm:$0xf]
  %v1953 = vld [vmem:[%s10 + $0x1e8] sm:$0xf]
  %v1954 = vld [vmem:[%s10 + $0x1ec] sm:$0xf]
  %v1955 = vld [vmem:[%s10 + $0x1f0] sm:$0xf]
  %v1956 = vld [vmem:[%s10 + $0x1f4] sm:$0xf]
  %v1957 = vld [vmem:[%s10 + $0x1f8] sm:$0xf]
  %v1958 = vld [vmem:[%s10 + $0x1fc] sm:$0xf]
  %v1959 = vld [vmem:[%s10 + $0x200] sm:$0xf]
  %v1960 = vld [vmem:[%s10 + $0x204] sm:$0xf]
  %v1961 = vld [vmem:[%s10 + $0x208] sm:$0xf]
  %v1962 = vld [vmem:[%s10 + $0x20c] sm:$0xf]
  %v1963 = vld [vmem:[%s10 + $0x210] sm:$0xf]
  %v1964 = vld [vmem:[%s10 + $0x214] sm:$0xf]
  %v1965 = vld [vmem:[%s10 + $0x218] sm:$0xf]
  %v1966 = vld [vmem:[%s10 + $0x21c] sm:$0xf]
  %v1967 = vld [vmem:[%s10 + $0x220] sm:$0xf]
  %v1968 = vld [vmem:[%s10 + $0x224] sm:$0xf]
  %v1969 = vld [vmem:[%s10 + $0x228] sm:$0xf]
  %v1970 = vld [vmem:[%s10 + $0x22c] sm:$0xf]
  %v1971 = vld [vmem:[%s10 + $0x230] sm:$0xf]
  %v1972 = vld [vmem:[%s10 + $0x234] sm:$0xf]
  %v1973 = vld [vmem:[%s10 + $0x238] sm:$0xf]
  %v1974 = vld [vmem:[%s10 + $0x23c] sm:$0xf]
  %v1975 = vld [vmem:[%s10 + $0x240] sm:$0xf]
  %v1976 = vld [vmem:[%s10 + $0x244] sm:$0xf]
  %v1977 = vld [vmem:[%s10 + $0x248] sm:$0xf]
  %v1978 = vld [vmem:[%s10 + $0x24c] sm:$0xf]
  %v1979 = vld [vmem:[%s10 + $0x250] sm:$0xf]
  %v1980 = vld [vmem:[%s10 + $0x254] sm:$0xf]
  %v1981 = vld [vmem:[%s10 + $0x258] sm:$0xf]
  %v1982 = vld [vmem:[%s10 + $0x25c] sm:$0xf]
  %v1983 = vld [vmem:[%s10 + $0x260] sm:$0xf]
  %v1984 = vld [vmem:[%s10 + $0x264] sm:$0xf]
  %v1985 = vld [vmem:[%s10 + $0x268] sm:$0xf]
  %v1986 = vld [vmem:[%s10 + $0x26c] sm:$0xf]
  %v1987 = vld [vmem:[%s10 + $0x270] sm:$0xf]
  %v1988 = vld [vmem:[%s10 + $0x274] sm:$0xf]
  %v1989 = vld [vmem:[%s10 + $0x278] sm:$0xf]
  %v1990 = vld [vmem:[%s10 + $0x27c] sm:$0xf]
  %v1991 = vld [vmem:[%s10 + $0x280] sm:$0xf]
  %v1992 = vld [vmem:[%s10 + $0x284] sm:$0xf]
  %v1993 = vld [vmem:[%s10 + $0x288] sm:$0xf]
  %v1994 = vld [vmem:[%s10 + $0x28c] sm:$0xf]
  %v1995 = vld [vmem:[%s10 + $0x290] sm:$0xf]
  %v1996 = vld [vmem:[%s10 + $0x294] sm:$0xf]
  %v1997 = vld [vmem:[%s10 + $0x298] sm:$0xf]
  %v1998 = vld [vmem:[%s10 + $0x29c] sm:$0xf]
  %v1999 = vld [vmem:[%s10 + $0x2a0] sm:$0xf]
  %v2000 = vld [vmem:[%s10 + $0x2a4] sm:$0xf]
  %v2001 = vld [vmem:[%s10 + $0x2a8] sm:$0xf]
  %v2002 = vld [vmem:[%s10 + $0x2ac] sm:$0xf]
  %v2003 = vld [vmem:[%s10 + $0x2b0] sm:$0xf]
  %v2004 = vld [vmem:[%s10 + $0x2b4] sm:$0xf]
  %v2005 = vld [vmem:[%s10 + $0x2b8] sm:$0xf]
  %v2006 = vld [vmem:[%s10 + $0x2bc] sm:$0xf]
  %v2007 = vld [vmem:[%s10 + $0x2c0] sm:$0xf]
  %v2008 = vld [vmem:[%s10 + $0x2c4] sm:$0xf]
  %v2009 = vld [vmem:[%s10 + $0x2c8] sm:$0xf]
  %v2010 = vld [vmem:[%s10 + $0x2cc] sm:$0xf]
  %v2011 = vld [vmem:[%s10 + $0x2d0] sm:$0xf]
  %v2012 = vld [vmem:[%s10 + $0x2d4] sm:$0xf]
  %v2013 = vld [vmem:[%s10 + $0x2d8] sm:$0xf]
  %v2014 = vld [vmem:[%s10 + $0x2dc] sm:$0xf]
  %v2015 = vld [vmem:[%s10 + $0x2e0] sm:$0xf]
  %v2016 = vld [vmem:[%s10 + $0x2e4] sm:$0xf]
  %v2017 = vld [vmem:[%s10 + $0x2e8] sm:$0xf]
  %v2018 = vld [vmem:[%s10 + $0x2ec] sm:$0xf]
  %v2019 = vld [vmem:[%s10 + $0x2f0] sm:$0xf]
  %v2020 = vld [vmem:[%s10 + $0x2f4] sm:$0xf]
  %v2021 = vld [vmem:[%s10 + $0x2f8] sm:$0xf]
  %v2022 = vld [vmem:[%s10 + $0x2fc] sm:$0xf]
  %v2023 = vld [vmem:[%s10 + $0x300] sm:$0xf]
  %v2024 = vld [vmem:[%s10 + $0x304] sm:$0xf]
  %v2025 = vld [vmem:[%s10 + $0x308] sm:$0xf]
  %v2026 = vld [vmem:[%s10 + $0x30c] sm:$0xf]
  %v2027 = vld [vmem:[%s10 + $0x310] sm:$0xf]
  %v2028 = vld [vmem:[%s10 + $0x314] sm:$0xf]
  %v2029 = vld [vmem:[%s10 + $0x318] sm:$0xf]
  %v2030 = vld [vmem:[%s10 + $0x31c] sm:$0xf]
  %v2031 = vld [vmem:[%s10 + $0x320] sm:$0xf]
  %v2032 = vld [vmem:[%s10 + $0x324] sm:$0xf]
  %v2033 = vld [vmem:[%s10 + $0x328] sm:$0xf]
  %v2034 = vld [vmem:[%s10 + $0x32c] sm:$0xf]
  %v2035 = vld [vmem:[%s10 + $0x330] sm:$0xf]
  %v2036 = vld [vmem:[%s10 + $0x334] sm:$0xf]
  %v2037 = vld [vmem:[%s10 + $0x338] sm:$0xf]
  %v2038 = vld [vmem:[%s10 + $0x33c] sm:$0xf]
  %v2039 = vld [vmem:[%s10 + $0x340] sm:$0xf]
  %v2040 = vld [vmem:[%s10 + $0x344] sm:$0xf]
  %v2041 = vld [vmem:[%s10 + $0x348] sm:$0xf]
  %v2042 = vld [vmem:[%s10 + $0x34c] sm:$0xf]
  %v2043 = vld [vmem:[%s10 + $0x350] sm:$0xf]
  %v2044 = vld [vmem:[%s10 + $0x354] sm:$0xf]
  %v2045 = vld [vmem:[%s10 + $0x358] sm:$0xf]
  %v2046 = vld [vmem:[%s10 + $0x35c] sm:$0xf]
  %v2047 = vld [vmem:[%s10 + $0x360] sm:$0xf]
  %v2048 = vld [vmem:[%s10 + $0x364] sm:$0xf]
  %v2049 = vld [vmem:[%s10 + $0x368] sm:$0xf]
  %v2050 = vld [vmem:[%s10 + $0x36c] sm:$0xf]
  %v2051 = vld [vmem:[%s10 + $0x370] sm:$0xf]
  %v2052 = vld [vmem:[%s10 + $0x374] sm:$0xf]
  %v2053 = vld [vmem:[%s10 + $0x378] sm:$0xf]
  %v2054 = vld [vmem:[%s10 + $0x37c] sm:$0xf]
  %v2055 = vld [vmem:[%s10 + $0x380] sm:$0xf]
  %v2056 = vld [vmem:[%s10 + $0x384] sm:$0xf]
  %v2057 = vld [vmem:[%s10 + $0x388] sm:$0xf]
  %v2058 = vld [vmem:[%s10 + $0x38c] sm:$0xf]
  %v2059 = vld [vmem:[%s10 + $0x390] sm:$0xf]
  %v2060 = vld [vmem:[%s10 + $0x394] sm:$0xf]
  %v2061 = vld [vmem:[%s10 + $0x398] sm:$0xf]
  %v2062 = vld [vmem:[%s10 + $0x39c] sm:$0xf]
  %v2063 = vld [vmem:[%s10 + $0x3a0] sm:$0xf]
  %v2064 = vld [vmem:[%s10 + $0x3a4] sm:$0xf]
  %v2065 = vld [vmem:[%s10 + $0x3a8] sm:$0xf]
  %v2066 = vld [vmem:[%s10 + $0x3ac] sm:$0xf]
  %v2067 = vld [vmem:[%s10 + $0x3b0] sm:$0xf]
  %v2068 = vld [vmem:[%s10 + $0x3b4] sm:$0xf]
  %v2069 = vld [vmem:[%s10 + $0x3b8] sm:$0xf]
  %v2070 = vld [vmem:[%s10 + $0x3bc] sm:$0xf]
  %v2071 = vld [vmem:[%s10 + $0x3c0] sm:$0xf]
  %v2072 = vld [vmem:[%s10 + $0x3c4] sm:$0xf]
  %v2073 = vld [vmem:[%s10 + $0x3c8] sm:$0xf]
  %v2074 = vld [vmem:[%s10 + $0x3cc] sm:$0xf]
  %v2075 = vld [vmem:[%s10 + $0x3d0] sm:$0xf]
  %v2076 = vld [vmem:[%s10 + $0x3d4] sm:$0xf]
  %v2077 = vld [vmem:[%s10 + $0x3d8] sm:$0xf]
  %v2078 = vld [vmem:[%s10 + $0x3dc] sm:$0xf]
  %v2079 = vld [vmem:[%s10 + $0x3e0] sm:$0xf]
  %v2080 = vld [vmem:[%s10 + $0x3e4] sm:$0xf]
  %v2081 = vld [vmem:[%s10 + $0x3e8] sm:$0xf]
  %v2082 = vld [vmem:[%s10 + $0x3ec] sm:$0xf]
  %v2083 = vld [vmem:[%s10 + $0x3f0] sm:$0xf]
  %v2084 = vld [vmem:[%s10 + $0x3f4] sm:$0xf]
  %v2085 = vld [vmem:[%s10 + $0x3f8] sm:$0xf]
  %v2086 = vld [vmem:[%s10 + $0x3fc] sm:$0xf]
  %v2087 = vld [vmem:[%s11] sm:$0x1]
  %v2089 = vlaneseq
  %v2090 = vshrl.u32 %v2089, 7
  %v2091 = vsub.s32 0, %v2090
  %v2092 = vrot.slane %v2087, %v2091
  %v2350 = vunpack.c.l.b16 %v1831
  %v2351 = vunpack.c.l.b16 %v1832
  %v2352 = vunpack.c.l.b16 %v1833
  %v2353 = vunpack.c.l.b16 %v1834
  %v2354 = vunpack.c.l.b16 %v1835
  %v2355 = vunpack.c.l.b16 %v1836
  %v2356 = vunpack.c.l.b16 %v1837
  %v2357 = vunpack.c.l.b16 %v1838
  %v2358 = vunpack.c.l.b16 %v1839
  %v2359 = vunpack.c.l.b16 %v1840
  %v2360 = vunpack.c.l.b16 %v1841
  %v2361 = vunpack.c.l.b16 %v1842
  %v2362 = vunpack.c.l.b16 %v1843
  %v2363 = vunpack.c.l.b16 %v1844
  %v2364 = vunpack.c.l.b16 %v1845
  %v2365 = vunpack.c.l.b16 %v1846
  %v2366 = vunpack.c.l.b16 %v1847
  %v2367 = vunpack.c.l.b16 %v1848
  %v2368 = vunpack.c.l.b16 %v1849
  %v2369 = vunpack.c.l.b16 %v1850
  %v2370 = vunpack.c.l.b16 %v1851
  %v2371 = vunpack.c.l.b16 %v1852
  %v2372 = vunpack.c.l.b16 %v1853
  %v2373 = vunpack.c.l.b16 %v1854
  %v2374 = vunpack.c.l.b16 %v1855
  %v2375 = vunpack.c.l.b16 %v1856
  %v2376 = vunpack.c.l.b16 %v1857
  %v2377 = vunpack.c.l.b16 %v1858
  %v2378 = vunpack.c.l.b16 %v1859
  %v2379 = vunpack.c.l.b16 %v1860
  %v2380 = vunpack.c.l.b16 %v1861
  %v2381 = vunpack.c.l.b16 %v1862
  %v2382 = vunpack.c.l.b16 %v1863
  %v2383 = vunpack.c.l.b16 %v1864
  %v2384 = vunpack.c.l.b16 %v1865
  %v2385 = vunpack.c.l.b16 %v1866
  %v2386 = vunpack.c.l.b16 %v1867
  %v2387 = vunpack.c.l.b16 %v1868
  %v2388 = vunpack.c.l.b16 %v1869
  %v2389 = vunpack.c.l.b16 %v1870
  %v2390 = vunpack.c.l.b16 %v1871
  %v2391 = vunpack.c.l.b16 %v1872
  %v2392 = vunpack.c.l.b16 %v1873
  %v2393 = vunpack.c.l.b16 %v1874
  %v2394 = vunpack.c.l.b16 %v1875
  %v2395 = vunpack.c.l.b16 %v1876
  %v2396 = vunpack.c.l.b16 %v1877
  %v2397 = vunpack.c.l.b16 %v1878
  %v2398 = vunpack.c.l.b16 %v1879
  %v2399 = vunpack.c.l.b16 %v1880
  %v2400 = vunpack.c.l.b16 %v1881
  %v2401 = vunpack.c.l.b16 %v1882
  %v2402 = vunpack.c.l.b16 %v1883
  %v2403 = vunpack.c.l.b16 %v1884
  %v2404 = vunpack.c.l.b16 %v1885
  %v2405 = vunpack.c.l.b16 %v1886
  %v2406 = vunpack.c.l.b16 %v1887
  %v2407 = vunpack.c.l.b16 %v1888
  %v2408 = vunpack.c.l.b16 %v1889
  %v2409 = vunpack.c.l.b16 %v1890
  %v2410 = vunpack.c.l.b16 %v1891
  %v2411 = vunpack.c.l.b16 %v1892
  %v2412 = vunpack.c.l.b16 %v1893
  %v2413 = vunpack.c.l.b16 %v1894
  %v2414 = vunpack.c.l.b16 %v1895
  %v2415 = vunpack.c.l.b16 %v1896
  %v2416 = vunpack.c.l.b16 %v1897
  %v2417 = vunpack.c.l.b16 %v1898
  %v2418 = vunpack.c.l.b16 %v1899
  %v2419 = vunpack.c.l.b16 %v1900
  %v2420 = vunpack.c.l.b16 %v1901
  %v2421 = vunpack.c.l.b16 %v1902
  %v2422 = vunpack.c.l.b16 %v1903
  %v2423 = vunpack.c.l.b16 %v1904
  %v2424 = vunpack.c.l.b16 %v1905
  %v2425 = vunpack.c.l.b16 %v1906
  %v2426 = vunpack.c.l.b16 %v1907
  %v2427 = vunpack.c.l.b16 %v1908
  %v2428 = vunpack.c.l.b16 %v1909
  %v2429 = vunpack.c.l.b16 %v1910
  %v2430 = vunpack.c.l.b16 %v1911
  %v2431 = vunpack.c.l.b16 %v1912
  %v2432 = vunpack.c.l.b16 %v1913
  %v2433 = vunpack.c.l.b16 %v1914
  %v2434 = vunpack.c.l.b16 %v1915
  %v2435 = vunpack.c.l.b16 %v1916
  %v2436 = vunpack.c.l.b16 %v1917
  %v2437 = vunpack.c.l.b16 %v1918
  %v2438 = vunpack.c.l.b16 %v1919
  %v2439 = vunpack.c.l.b16 %v1920
  %v2440 = vunpack.c.l.b16 %v1921
  %v2441 = vunpack.c.l.b16 %v1922
  %v2442 = vunpack.c.l.b16 %v1923
  %v2443 = vunpack.c.l.b16 %v1924
  %v2444 = vunpack.c.l.b16 %v1925
  %v2445 = vunpack.c.l.b16 %v1926
  %v2446 = vunpack.c.l.b16 %v1927
  %v2447 = vunpack.c.l.b16 %v1928
  %v2448 = vunpack.c.l.b16 %v1929
  %v2449 = vunpack.c.l.b16 %v1930
  %v2450 = vunpack.c.l.b16 %v1931
  %v2451 = vunpack.c.l.b16 %v1932
  %v2452 = vunpack.c.l.b16 %v1933
  %v2453 = vunpack.c.l.b16 %v1934
  %v2454 = vunpack.c.l.b16 %v1935
  %v2455 = vunpack.c.l.b16 %v1936
  %v2456 = vunpack.c.l.b16 %v1937
  %v2457 = vunpack.c.l.b16 %v1938
  %v2458 = vunpack.c.l.b16 %v1939
  %v2459 = vunpack.c.l.b16 %v1940
  %v2460 = vunpack.c.l.b16 %v1941
  %v2461 = vunpack.c.l.b16 %v1942
  %v2462 = vunpack.c.l.b16 %v1943
  %v2463 = vunpack.c.l.b16 %v1944
  %v2464 = vunpack.c.l.b16 %v1945
  %v2465 = vunpack.c.l.b16 %v1946
  %v2466 = vunpack.c.l.b16 %v1947
  %v2467 = vunpack.c.l.b16 %v1948
  %v2468 = vunpack.c.l.b16 %v1949
  %v2469 = vunpack.c.l.b16 %v1950
  %v2470 = vunpack.c.l.b16 %v1951
  %v2471 = vunpack.c.l.b16 %v1952
  %v2472 = vunpack.c.l.b16 %v1953
  %v2473 = vunpack.c.l.b16 %v1954
  %v2474 = vunpack.c.l.b16 %v1955
  %v2475 = vunpack.c.l.b16 %v1956
  %v2476 = vunpack.c.l.b16 %v1957
  %v2477 = vunpack.c.l.b16 %v1958
  %v2478 = vunpack.c.l.b16 %v1959
  %v2479 = vunpack.c.l.b16 %v1960
  %v2480 = vunpack.c.l.b16 %v1961
  %v2481 = vunpack.c.l.b16 %v1962
  %v2482 = vunpack.c.l.b16 %v1963
  %v2483 = vunpack.c.l.b16 %v1964
  %v2484 = vunpack.c.l.b16 %v1965
  %v2485 = vunpack.c.l.b16 %v1966
  %v2486 = vunpack.c.l.b16 %v1967
  %v2487 = vunpack.c.l.b16 %v1968
  %v2488 = vunpack.c.l.b16 %v1969
  %v2489 = vunpack.c.l.b16 %v1970
  %v2490 = vunpack.c.l.b16 %v1971
  %v2491 = vunpack.c.l.b16 %v1972
  %v2492 = vunpack.c.l.b16 %v1973
  %v2493 = vunpack.c.l.b16 %v1974
  %v2494 = vunpack.c.l.b16 %v1975
  %v2495 = vunpack.c.l.b16 %v1976
  %v2496 = vunpack.c.l.b16 %v1977
  %v2497 = vunpack.c.l.b16 %v1978
  %v2498 = vunpack.c.l.b16 %v1979
  %v2499 = vunpack.c.l.b16 %v1980
  %v2500 = vunpack.c.l.b16 %v1981
  %v2501 = vunpack.c.l.b16 %v1982
  %v2502 = vunpack.c.l.b16 %v1983
  %v2503 = vunpack.c.l.b16 %v1984
  %v2504 = vunpack.c.l.b16 %v1985
  %v2505 = vunpack.c.l.b16 %v1986
  %v2506 = vunpack.c.l.b16 %v1987
  %v2507 = vunpack.c.l.b16 %v1988
  %v2508 = vunpack.c.l.b16 %v1989
  %v2509 = vunpack.c.l.b16 %v1990
  %v2510 = vunpack.c.l.b16 %v1991
  %v2511 = vunpack.c.l.b16 %v1992
  %v2512 = vunpack.c.l.b16 %v1993
  %v2513 = vunpack.c.l.b16 %v1994
  %v2514 = vunpack.c.l.b16 %v1995
  %v2515 = vunpack.c.l.b16 %v1996
  %v2516 = vunpack.c.l.b16 %v1997
  %v2517 = vunpack.c.l.b16 %v1998
  %v2518 = vunpack.c.l.b16 %v1999
  %v2519 = vunpack.c.l.b16 %v2000
  %v2520 = vunpack.c.l.b16 %v2001
  %v2521 = vunpack.c.l.b16 %v2002
  %v2522 = vunpack.c.l.b16 %v2003
  %v2523 = vunpack.c.l.b16 %v2004
  %v2524 = vunpack.c.l.b16 %v2005
  %v2525 = vunpack.c.l.b16 %v2006
  %v2526 = vunpack.c.l.b16 %v2007
  %v2527 = vunpack.c.l.b16 %v2008
  %v2528 = vunpack.c.l.b16 %v2009
  %v2529 = vunpack.c.l.b16 %v2010
  %v2530 = vunpack.c.l.b16 %v2011
  %v2531 = vunpack.c.l.b16 %v2012
  %v2532 = vunpack.c.l.b16 %v2013
  %v2533 = vunpack.c.l.b16 %v2014
  %v2534 = vunpack.c.l.b16 %v2015
  %v2535 = vunpack.c.l.b16 %v2016
  %v2536 = vunpack.c.l.b16 %v2017
  %v2537 = vunpack.c.l.b16 %v2018
  %v2538 = vunpack.c.l.b16 %v2019
  %v2539 = vunpack.c.l.b16 %v2020
  %v2540 = vunpack.c.l.b16 %v2021
  %v2541 = vunpack.c.l.b16 %v2022
  %v2542 = vunpack.c.l.b16 %v2023
  %v2543 = vunpack.c.l.b16 %v2024
  %v2544 = vunpack.c.l.b16 %v2025
  %v2545 = vunpack.c.l.b16 %v2026
  %v2546 = vunpack.c.l.b16 %v2027
  %v2547 = vunpack.c.l.b16 %v2028
  %v2548 = vunpack.c.l.b16 %v2029
  %v2549 = vunpack.c.l.b16 %v2030
  %v2550 = vunpack.c.l.b16 %v2031
  %v2551 = vunpack.c.l.b16 %v2032
  %v2552 = vunpack.c.l.b16 %v2033
  %v2553 = vunpack.c.l.b16 %v2034
  %v2554 = vunpack.c.l.b16 %v2035
  %v2555 = vunpack.c.l.b16 %v2036
  %v2556 = vunpack.c.l.b16 %v2037
  %v2557 = vunpack.c.l.b16 %v2038
  %v2558 = vunpack.c.l.b16 %v2039
  %v2559 = vunpack.c.l.b16 %v2040
  %v2560 = vunpack.c.l.b16 %v2041
  %v2561 = vunpack.c.l.b16 %v2042
  %v2562 = vunpack.c.l.b16 %v2043
  %v2563 = vunpack.c.l.b16 %v2044
  %v2564 = vunpack.c.l.b16 %v2045
  %v2565 = vunpack.c.l.b16 %v2046
  %v2566 = vunpack.c.l.b16 %v2047
  %v2567 = vunpack.c.l.b16 %v2048
  %v2568 = vunpack.c.l.b16 %v2049
  %v2569 = vunpack.c.l.b16 %v2050
  %v2570 = vunpack.c.l.b16 %v2051
  %v2571 = vunpack.c.l.b16 %v2052
  %v2572 = vunpack.c.l.b16 %v2053
  %v2573 = vunpack.c.l.b16 %v2054
  %v2574 = vunpack.c.l.b16 %v2055
  %v2575 = vunpack.c.l.b16 %v2056
  %v2576 = vunpack.c.l.b16 %v2057
  %v2577 = vunpack.c.l.b16 %v2058
  %v2578 = vunpack.c.l.b16 %v2059
  %v2579 = vunpack.c.l.b16 %v2060
  %v2580 = vunpack.c.l.b16 %v2061
  %v2581 = vunpack.c.l.b16 %v2062
  %v2582 = vunpack.c.l.b16 %v2063
  %v2583 = vunpack.c.l.b16 %v2064
  %v2584 = vunpack.c.l.b16 %v2065
  %v2585 = vunpack.c.l.b16 %v2066
  %v2586 = vunpack.c.l.b16 %v2067
  %v2587 = vunpack.c.l.b16 %v2068
  %v2588 = vunpack.c.l.b16 %v2069
  %v2589 = vunpack.c.l.b16 %v2070
  %v2590 = vunpack.c.l.b16 %v2071
  %v2591 = vunpack.c.l.b16 %v2072
  %v2592 = vunpack.c.l.b16 %v2073
  %v2593 = vunpack.c.l.b16 %v2074
  %v2594 = vunpack.c.l.b16 %v2075
  %v2595 = vunpack.c.l.b16 %v2076
  %v2596 = vunpack.c.l.b16 %v2077
  %v2597 = vunpack.c.l.b16 %v2078
  %v2598 = vunpack.c.l.b16 %v2079
  %v2599 = vunpack.c.l.b16 %v2080
  %v2600 = vunpack.c.l.b16 %v2081
  %v2601 = vunpack.c.l.b16 %v2082
  %v2602 = vunpack.c.l.b16 %v2083
  %v2603 = vunpack.c.l.b16 %v2084
  %v2604 = vunpack.c.l.b16 %v2085
  %v2605 = vunpack.c.l.b16 %v2086
  %v2606 = vpack.c.b16 %v2351, %v2350
  %v2607 = vpack.c.b16 %v2353, %v2352
  %v2608 = vpack.c.b16 %v2355, %v2354
  %v2609 = vpack.c.b16 %v2357, %v2356
  %v2610 = vpack.c.b16 %v2359, %v2358
  %v2611 = vpack.c.b16 %v2361, %v2360
  %v2612 = vpack.c.b16 %v2363, %v2362
  %v2613 = vpack.c.b16 %v2365, %v2364
  %v2614 = vpack.c.b16 %v2367, %v2366
  %v2615 = vpack.c.b16 %v2369, %v2368
  %v2616 = vpack.c.b16 %v2371, %v2370
  %v2617 = vpack.c.b16 %v2373, %v2372
  %v2618 = vpack.c.b16 %v2375, %v2374
  %v2619 = vpack.c.b16 %v2377, %v2376
  %v2620 = vpack.c.b16 %v2379, %v2378
  %v2621 = vpack.c.b16 %v2381, %v2380
  %v2622 = vpack.c.b16 %v2383, %v2382
  %v2623 = vpack.c.b16 %v2385, %v2384
  %v2624 = vpack.c.b16 %v2387, %v2386
  %v2625 = vpack.c.b16 %v2389, %v2388
  %v2626 = vpack.c.b16 %v2391, %v2390
  %v2627 = vpack.c.b16 %v2393, %v2392
  %v2628 = vpack.c.b16 %v2395, %v2394
  %v2629 = vpack.c.b16 %v2397, %v2396
  %v2630 = vpack.c.b16 %v2399, %v2398
  %v2631 = vpack.c.b16 %v2401, %v2400
  %v2632 = vpack.c.b16 %v2403, %v2402
  %v2633 = vpack.c.b16 %v2405, %v2404
  %v2634 = vpack.c.b16 %v2407, %v2406
  %v2635 = vpack.c.b16 %v2409, %v2408
  %v2636 = vpack.c.b16 %v2411, %v2410
  %v2637 = vpack.c.b16 %v2413, %v2412
  %v2638 = vpack.c.b16 %v2415, %v2414
  %v2639 = vpack.c.b16 %v2417, %v2416
  %v2640 = vpack.c.b16 %v2419, %v2418
  %v2641 = vpack.c.b16 %v2421, %v2420
  %v2642 = vpack.c.b16 %v2423, %v2422
  %v2643 = vpack.c.b16 %v2425, %v2424
  %v2644 = vpack.c.b16 %v2427, %v2426
  %v2645 = vpack.c.b16 %v2429, %v2428
  %v2646 = vpack.c.b16 %v2431, %v2430
  %v2647 = vpack.c.b16 %v2433, %v2432
  %v2648 = vpack.c.b16 %v2435, %v2434
  %v2649 = vpack.c.b16 %v2437, %v2436
  %v2650 = vpack.c.b16 %v2439, %v2438
  %v2651 = vpack.c.b16 %v2441, %v2440
  %v2652 = vpack.c.b16 %v2443, %v2442
  %v2653 = vpack.c.b16 %v2445, %v2444
  %v2654 = vpack.c.b16 %v2447, %v2446
  %v2655 = vpack.c.b16 %v2449, %v2448
  %v2656 = vpack.c.b16 %v2451, %v2450
  %v2657 = vpack.c.b16 %v2453, %v2452
  %v2658 = vpack.c.b16 %v2455, %v2454
  %v2659 = vpack.c.b16 %v2457, %v2456
  %v2660 = vpack.c.b16 %v2459, %v2458
  %v2661 = vpack.c.b16 %v2461, %v2460
  %v2662 = vpack.c.b16 %v2463, %v2462
  %v2663 = vpack.c.b16 %v2465, %v2464
  %v2664 = vpack.c.b16 %v2467, %v2466
  %v2665 = vpack.c.b16 %v2469, %v2468
  %v2666 = vpack.c.b16 %v2471, %v2470
  %v2667 = vpack.c.b16 %v2473, %v2472
  %v2668 = vpack.c.b16 %v2475, %v2474
  %v2669 = vpack.c.b16 %v2477, %v2476
  %v2670 = vpack.c.b16 %v2479, %v2478
  %v2671 = vpack.c.b16 %v2481, %v2480
  %v2672 = vpack.c.b16 %v2483, %v2482
  %v2673 = vpack.c.b16 %v2485, %v2484
  %v2674 = vpack.c.b16 %v2487, %v2486
  %v2675 = vpack.c.b16 %v2489, %v2488
  %v2676 = vpack.c.b16 %v2491, %v2490
  %v2677 = vpack.c.b16 %v2493, %v2492
  %v2678 = vpack.c.b16 %v2495, %v2494
  %v2679 = vpack.c.b16 %v2497, %v2496
  %v2680 = vpack.c.b16 %v2499, %v2498
  %v2681 = vpack.c.b16 %v2501, %v2500
  %v2682 = vpack.c.b16 %v2503, %v2502
  %v2683 = vpack.c.b16 %v2505, %v2504
  %v2684 = vpack.c.b16 %v2507, %v2506
  %v2685 = vpack.c.b16 %v2509, %v2508
  %v2686 = vpack.c.b16 %v2511, %v2510
  %v2687 = vpack.c.b16 %v2513, %v2512
  %v2688 = vpack.c.b16 %v2515, %v2514
  %v2689 = vpack.c.b16 %v2517, %v2516
  %v2690 = vpack.c.b16 %v2519, %v2518
  %v2691 = vpack.c.b16 %v2521, %v2520
  %v2692 = vpack.c.b16 %v2523, %v2522
  %v2693 = vpack.c.b16 %v2525, %v2524
  %v2694 = vpack.c.b16 %v2527, %v2526
  %v2695 = vpack.c.b16 %v2529, %v2528
  %v2696 = vpack.c.b16 %v2531, %v2530
  %v2697 = vpack.c.b16 %v2533, %v2532
  %v2698 = vpack.c.b16 %v2535, %v2534
  %v2699 = vpack.c.b16 %v2537, %v2536
  %v2700 = vpack.c.b16 %v2539, %v2538
  %v2701 = vpack.c.b16 %v2541, %v2540
  %v2702 = vpack.c.b16 %v2543, %v2542
  %v2703 = vpack.c.b16 %v2545, %v2544
  %v2704 = vpack.c.b16 %v2547, %v2546
  %v2705 = vpack.c.b16 %v2549, %v2548
  %v2706 = vpack.c.b16 %v2551, %v2550
  %v2707 = vpack.c.b16 %v2553, %v2552
  %v2708 = vpack.c.b16 %v2555, %v2554
  %v2709 = vpack.c.b16 %v2557, %v2556
  %v2710 = vpack.c.b16 %v2559, %v2558
  %v2711 = vpack.c.b16 %v2561, %v2560
  %v2712 = vpack.c.b16 %v2563, %v2562
  %v2713 = vpack.c.b16 %v2565, %v2564
  %v2714 = vpack.c.b16 %v2567, %v2566
  %v2715 = vpack.c.b16 %v2569, %v2568
  %v2716 = vpack.c.b16 %v2571, %v2570
  %v2717 = vpack.c.b16 %v2573, %v2572
  %v2718 = vpack.c.b16 %v2575, %v2574
  %v2719 = vpack.c.b16 %v2577, %v2576
  %v2720 = vpack.c.b16 %v2579, %v2578
  %v2721 = vpack.c.b16 %v2581, %v2580
  %v2722 = vpack.c.b16 %v2583, %v2582
  %v2723 = vpack.c.b16 %v2585, %v2584
  %v2724 = vpack.c.b16 %v2587, %v2586
  %v2725 = vpack.c.b16 %v2589, %v2588
  %v2726 = vpack.c.b16 %v2591, %v2590
  %v2727 = vpack.c.b16 %v2593, %v2592
  %v2728 = vpack.c.b16 %v2595, %v2594
  %v2729 = vpack.c.b16 %v2597, %v2596
  %v2730 = vpack.c.b16 %v2599, %v2598
  %v2731 = vpack.c.b16 %v2601, %v2600
  %v2732 = vpack.c.b16 %v2603, %v2602
  %v2733 = vpack.c.b16 %v2605, %v2604
  %2862 = vmatprep.subr.bf16.mxu0 0
  %2863 = vmatpush1.bf16.msra.mxu0 %v2606
  %2864 = vmatprep.subr.bf16.mxu0 0
  %2865 = vmatpush1.bf16.msra.mxu0 %v2607
  %2866 = vmatprep.subr.bf16.mxu0 0
  %2867 = vmatpush1.bf16.msra.mxu0 %v2608
  %2868 = vmatprep.subr.bf16.mxu0 0
  %2869 = vmatpush1.bf16.msra.mxu0 %v2609
  %2870 = vmatprep.subr.bf16.mxu0 0
  %2871 = vmatpush1.bf16.msra.mxu0 %v2610
  %2872 = vmatprep.subr.bf16.mxu0 0
  %2873 = vmatpush1.bf16.msra.mxu0 %v2611
  %2874 = vmatprep.subr.bf16.mxu0 0
  %2875 = vmatpush1.bf16.msra.mxu0 %v2612
  %2876 = vmatprep.subr.bf16.mxu0 0
  %2877 = vmatpush1.bf16.msra.mxu0 %v2613
  %2878 = vmatprep.subr.bf16.mxu0 0
  %2879 = vmatpush1.bf16.msra.mxu0 %v2614
  %2880 = vmatprep.subr.bf16.mxu0 0
  %2881 = vmatpush1.bf16.msra.mxu0 %v2615
  %2882 = vmatprep.subr.bf16.mxu0 0
  %2883 = vmatpush1.bf16.msra.mxu0 %v2616
  %2884 = vmatprep.subr.bf16.mxu0 0
  %2885 = vmatpush1.bf16.msra.mxu0 %v2617
  %2886 = vmatprep.subr.bf16.mxu0 0
  %2887 = vmatpush1.bf16.msra.mxu0 %v2618
  %2888 = vmatprep.subr.bf16.mxu0 0
  %2889 = vmatpush1.bf16.msra.mxu0 %v2619
  %2890 = vmatprep.subr.bf16.mxu0 0
  %2891 = vmatpush1.bf16.msra.mxu0 %v2620
  %2892 = vmatprep.subr.bf16.mxu0 0
  %2893 = vmatpush1.bf16.msra.mxu0 %v2621
  %2894 = vmatprep.mubr.bf16.mxu0 %v1816
  %2895 = vmatmul.mubr.bf16.gmra.mrb[0].mxu0 %v1815
  %v2896 = vpop.f32.mrb[0].mxu0
  %v2897 = vadd.f32 %v2092, %v2896
  %v2898 = vpop.f32.mrb[0].mxu0
  %v2899 = vpop.f32.mrb[0].mxu0
  %v2900 = vadd.f32 %v2092, %v2899
  %v2901 = vpop.f32.mrb[0].mxu0
  %2902 = vdwg.mxu0
  %2903 = vmatprep.subr.bf16.mxu0 0
  %2904 = vmatpush1.bf16.msra.mxu0 %v2622
  %2905 = vmatprep.subr.bf16.mxu0 0
  %2906 = vmatpush1.bf16.msra.mxu0 %v2623
  %2907 = vmatprep.subr.bf16.mxu0 0
  %2908 = vmatpush1.bf16.msra.mxu0 %v2624
  %2909 = vmatprep.subr.bf16.mxu0 0
  %2910 = vmatpush1.bf16.msra.mxu0 %v2625
  %2911 = vmatprep.subr.bf16.mxu0 0
  %2912 = vmatpush1.bf16.msra.mxu0 %v2626
  %2913 = vmatprep.subr.bf16.mxu0 0
  %2914 = vmatpush1.bf16.msra.mxu0 %v2627
  %2915 = vmatprep.subr.bf16.mxu0 0
  %2916 = vmatpush1.bf16.msra.mxu0 %v2628
  %2917 = vmatprep.subr.bf16.mxu0 0
  %2918 = vmatpush1.bf16.msra.mxu0 %v2629
  %2919 = vmatprep.subr.bf16.mxu0 0
  %2920 = vmatpush1.bf16.msra.mxu0 %v2630
  %2921 = vmatprep.subr.bf16.mxu0 0
  %2922 = vmatpush1.bf16.msra.mxu0 %v2631
  %2923 = vmatprep.subr.bf16.mxu0 0
  %2924 = vmatpush1.bf16.msra.mxu0 %v2632
  %2925 = vmatprep.subr.bf16.mxu0 0
  %2926 = vmatpush1.bf16.msra.mxu0 %v2633
  %2927 = vmatprep.subr.bf16.mxu0 0
  %2928 = vmatpush1.bf16.msra.mxu0 %v2634
  %2929 = vmatprep.subr.bf16.mxu0 0
  %2930 = vmatpush1.bf16.msra.mxu0 %v2635
  %2931 = vmatprep.subr.bf16.mxu0 0
  %2932 = vmatpush1.bf16.msra.mxu0 %v2636
  %2933 = vmatprep.subr.bf16.mxu0 0
  %2934 = vmatpush1.bf16.msra.mxu0 %v2637
  %2935 = vmatprep.mubr.bf16.mxu0 %v1818
  %2936 = vmatmul.mubr.bf16.gmra.mrb[0].mxu0 %v1817
  %v2937 = vpop.f32.mrb[0].mxu0
  %v2938 = vadd.f32 %v2897, %v2937
  %v2939 = vpop.f32.mrb[0].mxu0
  %v2940 = vpop.f32.mrb[0].mxu0
  %v2941 = vadd.f32 %v2900, %v2940
  %v2942 = vpop.f32.mrb[0].mxu0
  %2943 = vdwg.mxu0
  %2944 = vmatprep.subr.bf16.mxu0 0
  %2945 = vmatpush1.bf16.msra.mxu0 %v2638
  %2946 = vmatprep.subr.bf16.mxu0 0
  %2947 = vmatpush1.bf16.msra.mxu0 %v2639
  %2948 = vmatprep.subr.bf16.mxu0 0
  %2949 = vmatpush1.bf16.msra.mxu0 %v2640
  %2950 = vmatprep.subr.bf16.mxu0 0
  %2951 = vmatpush1.bf16.msra.mxu0 %v2641
  %2952 = vmatprep.subr.bf16.mxu0 0
  %2953 = vmatpush1.bf16.msra.mxu0 %v2642
  %2954 = vmatprep.subr.bf16.mxu0 0
  %2955 = vmatpush1.bf16.msra.mxu0 %v2643
  %2956 = vmatprep.subr.bf16.mxu0 0
  %2957 = vmatpush1.bf16.msra.mxu0 %v2644
  %2958 = vmatprep.subr.bf16.mxu0 0
  %2959 = vmatpush1.bf16.msra.mxu0 %v2645
  %2960 = vmatprep.subr.bf16.mxu0 0
  %2961 = vmatpush1.bf16.msra.mxu0 %v2646
  %2962 = vmatprep.subr.bf16.mxu0 0
  %2963 = vmatpush1.bf16.msra.mxu0 %v2647
  %2964 = vmatprep.subr.bf16.mxu0 0
  %2965 = vmatpush1.bf16.msra.mxu0 %v2648
  %2966 = vmatprep.subr.bf16.mxu0 0
  %2967 = vmatpush1.bf16.msra.mxu0 %v2649
  %2968 = vmatprep.subr.bf16.mxu0 0
  %2969 = vmatpush1.bf16.msra.mxu0 %v2650
  %2970 = vmatprep.subr.bf16.mxu0 0
  %2971 = vmatpush1.bf16.msra.mxu0 %v2651
  %2972 = vmatprep.subr.bf16.mxu0 0
  %2973 = vmatpush1.bf16.msra.mxu0 %v2652
  %2974 = vmatprep.subr.bf16.mxu0 0
  %2975 = vmatpush1.bf16.msra.mxu0 %v2653
  %2976 = vmatprep.mubr.bf16.mxu0 %v1820
  %2977 = vmatmul.mubr.bf16.gmra.mrb[0].mxu0 %v1819
  %v2978 = vpop.f32.mrb[0].mxu0
  %v2979 = vadd.f32 %v2938, %v2978
  %v2980 = vpop.f32.mrb[0].mxu0
  %v2981 = vpop.f32.mrb[0].mxu0
  %v2982 = vadd.f32 %v2941, %v2981
  %v2983 = vpop.f32.mrb[0].mxu0
  %2984 = vdwg.mxu0
  %2985 = vmatprep.subr.bf16.mxu0 0
  %2986 = vmatpush1.bf16.msra.mxu0 %v2654
  %2987 = vmatprep.subr.bf16.mxu0 0
  %2988 = vmatpush1.bf16.msra.mxu0 %v2655
  %2989 = vmatprep.subr.bf16.mxu0 0
  %2990 = vmatpush1.bf16.msra.mxu0 %v2656
  %2991 = vmatprep.subr.bf16.mxu0 0
  %2992 = vmatpush1.bf16.msra.mxu0 %v2657
  %2993 = vmatprep.subr.bf16.mxu0 0
  %2994 = vmatpush1.bf16.msra.mxu0 %v2658
  %2995 = vmatprep.subr.bf16.mxu0 0
  %2996 = vmatpush1.bf16.msra.mxu0 %v2659
  %2997 = vmatprep.subr.bf16.mxu0 0
  %2998 = vmatpush1.bf16.msra.mxu0 %v2660
  %2999 = vmatprep.subr.bf16.mxu0 0
  %3000 = vmatpush1.bf16.msra.mxu0 %v2661
  %3001 = vmatprep.subr.bf16.mxu0 0
  %3002 = vmatpush1.bf16.msra.mxu0 %v2662
  %3003 = vmatprep.subr.bf16.mxu0 0
  %3004 = vmatpush1.bf16.msra.mxu0 %v2663
  %3005 = vmatprep.subr.bf16.mxu0 0
  %3006 = vmatpush1.bf16.msra.mxu0 %v2664
  %3007 = vmatprep.subr.bf16.mxu0 0
  %3008 = vmatpush1.bf16.msra.mxu0 %v2665
  %3009 = vmatprep.subr.bf16.mxu0 0
  %3010 = vmatpush1.bf16.msra.mxu0 %v2666
  %3011 = vmatprep.subr.bf16.mxu0 0
  %3012 = vmatpush1.bf16.msra.mxu0 %v2667
  %3013 = vmatprep.subr.bf16.mxu0 0
  %3014 = vmatpush1.bf16.msra.mxu0 %v2668
  %3015 = vmatprep.subr.bf16.mxu0 0
  %3016 = vmatpush1.bf16.msra.mxu0 %v2669
  %3017 = vmatprep.mubr.bf16.mxu0 %v1822
  %3018 = vmatmul.mubr.bf16.gmra.mrb[0].mxu0 %v1821
  %v3019 = vpop.f32.mrb[0].mxu0
  %v3020 = vadd.f32 %v2979, %v3019
  %v3021 = vpop.f32.mrb[0].mxu0
  %v3022 = vpop.f32.mrb[0].mxu0
  %v3023 = vadd.f32 %v2982, %v3022
  %v3024 = vpop.f32.mrb[0].mxu0
  %3025 = vdwg.mxu0
  %3026 = vmatprep.subr.bf16.mxu0 0
  %3027 = vmatpush1.bf16.msra.mxu0 %v2670
  %3028 = vmatprep.subr.bf16.mxu0 0
  %3029 = vmatpush1.bf16.msra.mxu0 %v2671
  %3030 = vmatprep.subr.bf16.mxu0 0
  %3031 = vmatpush1.bf16.msra.mxu0 %v2672
  %3032 = vmatprep.subr.bf16.mxu0 0
  %3033 = vmatpush1.bf16.msra.mxu0 %v2673
  %3034 = vmatprep.subr.bf16.mxu0 0
  %3035 = vmatpush1.bf16.msra.mxu0 %v2674
  %3036 = vmatprep.subr.bf16.mxu0 0
  %3037 = vmatpush1.bf16.msra.mxu0 %v2675
  %3038 = vmatprep.subr.bf16.mxu0 0
  %3039 = vmatpush1.bf16.msra.mxu0 %v2676
  %3040 = vmatprep.subr.bf16.mxu0 0
  %3041 = vmatpush1.bf16.msra.mxu0 %v2677
  %3042 = vmatprep.subr.bf16.mxu0 0
  %3043 = vmatpush1.bf16.msra.mxu0 %v2678
  %3044 = vmatprep.subr.bf16.mxu0 0
  %3045 = vmatpush1.bf16.msra.mxu0 %v2679
  %3046 = vmatprep.subr.bf16.mxu0 0
  %3047 = vmatpush1.bf16.msra.mxu0 %v2680
  %3048 = vmatprep.subr.bf16.mxu0 0
  %3049 = vmatpush1.bf16.msra.mxu0 %v2681
  %3050 = vmatprep.subr.bf16.mxu0 0
  %3051 = vmatpush1.bf16.msra.mxu0 %v2682
  %3052 = vmatprep.subr.bf16.mxu0 0
  %3053 = vmatpush1.bf16.msra.mxu0 %v2683
  %3054 = vmatprep.subr.bf16.mxu0 0
  %3055 = vmatpush1.bf16.msra.mxu0 %v2684
  %3056 = vmatprep.subr.bf16.mxu0 0
  %3057 = vmatpush1.bf16.msra.mxu0 %v2685
  %3058 = vmatprep.mubr.bf16.mxu0 %v1824
  %3059 = vmatmul.mubr.bf16.gmra.mrb[0].mxu0 %v1823
  %v3060 = vpop.f32.mrb[0].mxu0
  %v3061 = vadd.f32 %v3020, %v3060
  %v3062 = vpop.f32.mrb[0].mxu0
  %v3063 = vpop.f32.mrb[0].mxu0
  %v3064 = vadd.f32 %v3023, %v3063
  %v3065 = vpop.f32.mrb[0].mxu0
  %3066 = vdwg.mxu0
  %3067 = vmatprep.subr.bf16.mxu0 0
  %3068 = vmatpush1.bf16.msra.mxu0 %v2686
  %3069 = vmatprep.subr.bf16.mxu0 0
  %3070 = vmatpush1.bf16.msra.mxu0 %v2687
  %3071 = vmatprep.subr.bf16.mxu0 0
  %3072 = vmatpush1.bf16.msra.mxu0 %v2688
  %3073 = vmatprep.subr.bf16.mxu0 0
  %3074 = vmatpush1.bf16.msra.mxu0 %v2689
  %3075 = vmatprep.subr.bf16.mxu0 0
  %3076 = vmatpush1.bf16.msra.mxu0 %v2690
  %3077 = vmatprep.subr.bf16.mxu0 0
  %3078 = vmatpush1.bf16.msra.mxu0 %v2691
  %3079 = vmatprep.subr.bf16.mxu0 0
  %3080 = vmatpush1.bf16.msra.mxu0 %v2692
  %3081 = vmatprep.subr.bf16.mxu0 0
  %3082 = vmatpush1.bf16.msra.mxu0 %v2693
  %3083 = vmatprep.subr.bf16.mxu0 0
  %3084 = vmatpush1.bf16.msra.mxu0 %v2694
  %3085 = vmatprep.subr.bf16.mxu0 0
  %3086 = vmatpush1.bf16.msra.mxu0 %v2695
  %3087 = vmatprep.subr.bf16.mxu0 0
  %3088 = vmatpush1.bf16.msra.mxu0 %v2696
  %3089 = vmatprep.subr.bf16.mxu0 0
  %3090 = vmatpush1.bf16.msra.mxu0 %v2697
  %3091 = vmatprep.subr.bf16.mxu0 0
  %3092 = vmatpush1.bf16.msra.mxu0 %v2698
  %3093 = vmatprep.subr.bf16.mxu0 0
  %3094 = vmatpush1.bf16.msra.mxu0 %v2699
  %3095 = vmatprep.subr.bf16.mxu0 0
  %3096 = vmatpush1.bf16.msra.mxu0 %v2700
  %3097 = vmatprep.subr.bf16.mxu0 0
  %3098 = vmatpush1.bf16.msra.mxu0 %v2701
  %3099 = vmatprep.mubr.bf16.mxu0 %v1826
  %3100 = vmatmul.mubr.bf16.gmra.mrb[0].mxu0 %v1825
  %v3101 = vpop.f32.mrb[0].mxu0
  %v3102 = vadd.f32 %v3061, %v3101
  %v3103 = vpop.f32.mrb[0].mxu0
  %v3104 = vpop.f32.mrb[0].mxu0
  %v3105 = vadd.f32 %v3064, %v3104
  %v3106 = vpop.f32.mrb[0].mxu0
  %3107 = vdwg.mxu0
  %3108 = vmatprep.subr.bf16.mxu0 0
  %3109 = vmatpush1.bf16.msra.mxu0 %v2702
  %3110 = vmatprep.subr.bf16.mxu0 0
  %3111 = vmatpush1.bf16.msra.mxu0 %v2703
  %3112 = vmatprep.subr.bf16.mxu0 0
  %3113 = vmatpush1.bf16.msra.mxu0 %v2704
  %3114 = vmatprep.subr.bf16.mxu0 0
  %3115 = vmatpush1.bf16.msra.mxu0 %v2705
  %3116 = vmatprep.subr.bf16.mxu0 0
  %3117 = vmatpush1.bf16.msra.mxu0 %v2706
  %3118 = vmatprep.subr.bf16.mxu0 0
  %3119 = vmatpush1.bf16.msra.mxu0 %v2707
  %3120 = vmatprep.subr.bf16.mxu0 0
  %3121 = vmatpush1.bf16.msra.mxu0 %v2708
  %3122 = vmatprep.subr.bf16.mxu0 0
  %3123 = vmatpush1.bf16.msra.mxu0 %v2709
  %3124 = vmatprep.subr.bf16.mxu0 0
  %3125 = vmatpush1.bf16.msra.mxu0 %v2710
  %3126 = vmatprep.subr.bf16.mxu0 0
  %3127 = vmatpush1.bf16.msra.mxu0 %v2711
  %3128 = vmatprep.subr.bf16.mxu0 0
  %3129 = vmatpush1.bf16.msra.mxu0 %v2712
  %3130 = vmatprep.subr.bf16.mxu0 0
  %3131 = vmatpush1.bf16.msra.mxu0 %v2713
  %3132 = vmatprep.subr.bf16.mxu0 0
  %3133 = vmatpush1.bf16.msra.mxu0 %v2714
  %3134 = vmatprep.subr.bf16.mxu0 0
  %3135 = vmatpush1.bf16.msra.mxu0 %v2715
  %3136 = vmatprep.subr.bf16.mxu0 0
  %3137 = vmatpush1.bf16.msra.mxu0 %v2716
  %3138 = vmatprep.subr.bf16.mxu0 0
  %3139 = vmatpush1.bf16.msra.mxu0 %v2717
  %3140 = vmatprep.mubr.bf16.mxu0 %v1828
  %3141 = vmatmul.mubr.bf16.gmra.mrb[0].mxu0 %v1827
  %v3142 = vpop.f32.mrb[0].mxu0
  %v3143 = vadd.f32 %v3102, %v3142
  %v3144 = vpop.f32.mrb[0].mxu0
  %v3145 = vpop.f32.mrb[0].mxu0
  %v3146 = vadd.f32 %v3105, %v3145
  %v3147 = vpop.f32.mrb[0].mxu0
  %3148 = vdwg.mxu0
  %3149 = vmatprep.subr.bf16.mxu0 0
  %3150 = vmatpush1.bf16.msra.mxu0 %v2718
  %3151 = vmatprep.subr.bf16.mxu0 0
  %3152 = vmatpush1.bf16.msra.mxu0 %v2719
  %3153 = vmatprep.subr.bf16.mxu0 0
  %3154 = vmatpush1.bf16.msra.mxu0 %v2720
  %3155 = vmatprep.subr.bf16.mxu0 0
  %3156 = vmatpush1.bf16.msra.mxu0 %v2721
  %3157 = vmatprep.subr.bf16.mxu0 0
  %3158 = vmatpush1.bf16.msra.mxu0 %v2722
  %3159 = vmatprep.subr.bf16.mxu0 0
  %3160 = vmatpush1.bf16.msra.mxu0 %v2723
  %3161 = vmatprep.subr.bf16.mxu0 0
  %3162 = vmatpush1.bf16.msra.mxu0 %v2724
  %3163 = vmatprep.subr.bf16.mxu0 0
  %3164 = vmatpush1.bf16.msra.mxu0 %v2725
  %3165 = vmatprep.subr.bf16.mxu0 0
  %3166 = vmatpush1.bf16.msra.mxu0 %v2726
  %3167 = vmatprep.subr.bf16.mxu0 0
  %3168 = vmatpush1.bf16.msra.mxu0 %v2727
  %3169 = vmatprep.subr.bf16.mxu0 0
  %3170 = vmatpush1.bf16.msra.mxu0 %v2728
  %3171 = vmatprep.subr.bf16.mxu0 0
  %3172 = vmatpush1.bf16.msra.mxu0 %v2729
  %3173 = vmatprep.subr.bf16.mxu0 0
  %3174 = vmatpush1.bf16.msra.mxu0 %v2730
  %3175 = vmatprep.subr.bf16.mxu0 0
  %3176 = vmatpush1.bf16.msra.mxu0 %v2731
  %3177 = vmatprep.subr.bf16.mxu0 0
  %3178 = vmatpush1.bf16.msra.mxu0 %v2732
  %3179 = vmatprep.subr.bf16.mxu0 0
  %3180 = vmatpush1.bf16.msra.mxu0 %v2733
  %3181 = vmatprep.mubr.bf16.mxu0 %v1830
  %3182 = vmatmul.mubr.bf16.gmra.mrb[0].mxu0 %v1829
  %v3183 = vpop.f32.mrb[0].mxu0
  %v3184 = vadd.f32 %v3143, %v3183
  %v3185 = vpop.f32.mrb[0].mxu0
  %v3186 = vpop.f32.mrb[0].mxu0
  %v3187 = vadd.f32 %v3146, %v3186
  %v3188 = vpop.f32.mrb[0].mxu0
  %3189 = vdwg.mxu0
  %v3190 = vadd.f32 %v584, %v3184
  %v3191 = vadd.f32 %v585, %v3187
  %v3192 = vld [vmem:[%s12] sm:$0x1]
  %v3193 = vld [vmem:[%s13] sm:$0x1]
  %3194 = vadd.xlane.f32.xlu0 %v3190
  %v3195 = vpop.xlane.xlu0 %3194
  %3196 = vadd.xlane.f32.xlu0 %v3191
  %v3197 = vpop.xlane.xlu0 %3196
  %v3198 = vmul.f32 %v3195, %v551
  %v3199 = vmul.f32 %v3197, %v551
  %v3200 = vsub.f32 %v3190, %v3198
  %v3201 = vsub.f32 %v3191, %v3199
  %v3202 = vmul.f32 %v3200, %v3200
  %v3203 = vmul.f32 %v3201, %v3201
  %3204 = vadd.xlane.f32.xlu0 %v3202
  %v3205 = vpop.xlane.xlu0 %3204
  %3206 = vadd.xlane.f32.xlu0 %v3203
  %v3207 = vpop.xlane.xlu0 %3206
  %v3208 = vmul.f32 %v3205, %v551
  %v3209 = vmul.f32 %v3207, %v551
  %v3210 = vadd.f32 %v3208, 1e-05
  %v3211 = vadd.f32 %v3209, 1e-05
  %v3212 = vrsqrt.pop %v3210
  %v3213 = vrsqrt.pop %v3211
  %v3214 = vmul.f32 %v3200, %v3212
  %v3215 = vmul.f32 %v3201, %v3213
  %v3217 = vlaneseq
  %v3218 = vshrl.u32 %v3217, 7
  %v3219 = vsub.s32 0, %v3218
  %v3220 = vrot.slane %v3192, %v3219
  %v3222 = vmul.f32 %v3214, %v3220
  %v3223 = vmul.f32 %v3215, %v3220
  %v3225 = vlaneseq
  %v3226 = vshrl.u32 %v3225, 7
  %v3227 = vsub.s32 0, %v3226
  %v3228 = vrot.slane %v3193, %v3227
  %v3230 = vadd.f32 %v3222, %v3228
  %v3231 = vadd.f32 %v3223, %v3228
  %3232 = vst [vmem:[%s14] sm:$0xff] %v3230
  %3233 = vst [vmem:[%s14 + $0x8] sm:$0xff] %v3231
  // Predicated region
  $region58: #{conv_trans_forward.14} parent=0 // pred_check
    _
  $region59: #{conv_trans_forward.14} parent=0 // pred_check_branch
    %3235 = sbr.rel (0) target = $region61
  $region60: #{conv_trans_forward.14} parent=0 // pred_region
    _
  $region61: #{conv_trans_forward.14} parent=0 // pred_fallthru
    _
  // Predicated region
  $region62: #{conv_trans_forward.14} parent=0 // pred_check
    _
  $region63: #{conv_trans_forward.14} parent=0 // pred_check_branch
    %3237 = sbr.rel (0) target = $region65
  $region64: #{conv_trans_forward.14} parent=0 // pred_region
    _
  $region65: #{conv_trans_forward.14} parent=0 // pred_fallthru
    _

// kernel: conv_trans_forward.15
$region0: #{conv_trans_forward.15}
  #allocation0 [shape = 'u32[]', space=smem, size = 0x4, offset = 0x4, fixed_abs, tag = 'smem constant byte address 0x4 - core index']
  #allocation1 [shape = 'u32[144,128]{1,0:T(1,128)}', space=vmem, size = 0x12000, scoped, tag = 'internal scratch']
  %s0 = inlined_call_operand.vmem [shape: bf16[64,1152], index: 0, kind: input, shape index: {}]
  %s1 = inlined_call_operand.vmem [shape: bf16[1152,128], index: 1, kind: input, shape index: {}]
  %s2 = inlined_call_operand.vmem [shape: f32[64,1], index: 2, kind: input, shape index: {}]
  %s3 = inlined_call_operand.vmem [shape: f32[64,128], index: 3, kind: output, shape index: {}]
  %s4 = sld [smem:[#allocation0]]
  $region22: #{conv_trans_forward.15} parent=0
    _
  %s6 = ssub.s32 1, %s4
  %s7 = scalar_select 0, %s6, %s4
  // Predicated region
  $region2: #{conv_trans_forward.15} parent=0 // pred_check
    _
  $region3: #{conv_trans_forward.15} parent=0 // pred_check_branch
    %9 = sbr.rel (0) target = $region5
  $region4: #{conv_trans_forward.15} parent=0 // pred_region
    _
  $region5: #{conv_trans_forward.15} parent=0 // pred_fallthru
    _
  // Predicated region
  $region6: #{conv_trans_forward.15} parent=0 // pred_check
    _
  $region7: #{conv_trans_forward.15} parent=0 // pred_check_branch
    %11 = sbr.rel (0) target = $region9
  $region8: #{conv_trans_forward.15} parent=0 // pred_region
    _
  $region9: #{conv_trans_forward.15} parent=0 // pred_fallthru
    _
  // Predicated region
  $region10: #{conv_trans_forward.15} parent=0 // pred_check
    _
  $region11: #{conv_trans_forward.15} parent=0 // pred_check_branch
    %13 = sbr.rel (0) target = $region13
  $region12: #{conv_trans_forward.15} parent=0 // pred_region
    _
  $region13: #{conv_trans_forward.15} parent=0 // pred_fallthru
    _
  %v15 = vld [vmem:[%s0] sm:$0xff]
  %v16 = vld [vmem:[%s0 + $0x8] sm:$0xff]
  %v17 = vld [vmem:[%s0 + $0x10] sm:$0xff]
  %v18 = vld [vmem:[%s0 + $0x18] sm:$0xff]
  %v19 = vld [vmem:[%s0 + $0x20] sm:$0xf]
  %v20 = vld [vmem:[%s0 + $0x24] sm:$0xff]
  %v21 = vld [vmem:[%s0 + $0x2c] sm:$0xff]
  %v22 = vld [vmem:[%s0 + $0x34] sm:$0xff]
  %v23 = vld [vmem:[%s0 + $0x3c] sm:$0xff]
  %v24 = vld [vmem:[%s0 + $0x44] sm:$0xf]
  %v25 = vld [vmem:[%s0 + $0x48] sm:$0xff]
  %v26 = vld [vmem:[%s0 + $0x50] sm:$0xff]
  %v27 = vld [vmem:[%s0 + $0x58] sm:$0xff]
  %v28 = vld [vmem:[%s0 + $0x60] sm:$0xff]
  %v29 = vld [vmem:[%s0 + $0x68] sm:$0xf]
  %v30 = vld [vmem:[%s0 + $0x6c] sm:$0xff]
  %v31 = vld [vmem:[%s0 + $0x74] sm:$0xff]
  %v32 = vld [vmem:[%s0 + $0x7c] sm:$0xff]
  %v33 = vld [vmem:[%s0 + $0x84] sm:$0xff]
  %v34 = vld [vmem:[%s0 + $0x8c] sm:$0xf]
  %v35 = vld [vmem:[%s0 + $0x90] sm:$0xff]
  %v36 = vld [vmem:[%s0 + $0x98] sm:$0xff]
  %v37 = vld [vmem:[%s0 + $0xa0] sm:$0xff]
  %v38 = vld [vmem:[%s0 + $0xa8] sm:$0xff]
  %v39 = vld [vmem:[%s0 + $0xb0] sm:$0xf]
  %v40 = vld [vmem:[%s0 + $0xb4] sm:$0xff]
  %v41 = vld [vmem:[%s0 + $0xbc] sm:$0xff]
  %v42 = vld [vmem:[%s0 + $0xc4] sm:$0xff]
  %v43 = vld [vmem:[%s0 + $0xcc] sm:$0xff]
  %v44 = vld [vmem:[%s0 + $0xd4] sm:$0xf]
  %v45 = vld [vmem:[%s0 + $0xd8] sm:$0xff]
  %v46 = vld [vmem:[%s0 + $0xe0] sm:$0xff]
  %v47 = vld [vmem:[%s0 + $0xe8] sm:$0xff]
  %v48 = vld [vmem:[%s0 + $0xf0] sm:$0xff]
  %v49 = vld [vmem:[%s0 + $0xf8] sm:$0xf]
  %v50 = vld [vmem:[%s0 + $0xfc] sm:$0xff]
  %v51 = vld [vmem:[%s0 + $0x104] sm:$0xff]
  %v52 = vld [vmem:[%s0 + $0x10c] sm:$0xff]
  %v53 = vld [vmem:[%s0 + $0x114] sm:$0xff]
  %v54 = vld [vmem:[%s0 + $0x11c] sm:$0xf]
  %v55 = vld [vmem:[%s1] sm:$0xf]
  %v56 = vld [vmem:[%s1 + $0x4] sm:$0xf]
  %v57 = vld [vmem:[%s1 + $0x8] sm:$0xf]
  %v58 = vld [vmem:[%s1 + $0xc] sm:$0xf]
  %v59 = vld [vmem:[%s1 + $0x10] sm:$0xf]
  %v60 = vld [vmem:[%s1 + $0x14] sm:$0xf]
  %v61 = vld [vmem:[%s1 + $0x18] sm:$0xf]
  %v62 = vld [vmem:[%s1 + $0x1c] sm:$0xf]
  %v63 = vld [vmem:[%s1 + $0x20] sm:$0xf]
  %v64 = vld [vmem:[%s1 + $0x24] sm:$0xf]
  %v65 = vld [vmem:[%s1 + $0x28] sm:$0xf]
  %v66 = vld [vmem:[%s1 + $0x2c] sm:$0xf]
  %v67 = vld [vmem:[%s1 + $0x30] sm:$0xf]
  %v68 = vld [vmem:[%s1 + $0x34] sm:$0xf]
  %v69 = vld [vmem:[%s1 + $0x38] sm:$0xf]
  %v70 = vld [vmem:[%s1 + $0x3c] sm:$0xf]
  %v71 = vld [vmem:[%s1 + $0x40] sm:$0xf]
  %v72 = vld [vmem:[%s1 + $0x44] sm:$0xf]
  %v73 = vld [vmem:[%s1 + $0x48] sm:$0xf]
  %v74 = vld [vmem:[%s1 + $0x4c] sm:$0xf]
  %v75 = vld [vmem:[%s1 + $0x50] sm:$0xf]
  %v76 = vld [vmem:[%s1 + $0x54] sm:$0xf]
  %v77 = vld [vmem:[%s1 + $0x58] sm:$0xf]
  %v78 = vld [vmem:[%s1 + $0x5c] sm:$0xf]
  %v79 = vld [vmem:[%s1 + $0x60] sm:$0xf]
  %v80 = vld [vmem:[%s1 + $0x64] sm:$0xf]
  %v81 = vld [vmem:[%s1 + $0x68] sm:$0xf]
  %v82 = vld [vmem:[%s1 + $0x6c] sm:$0xf]
  %v83 = vld [vmem:[%s1 + $0x70] sm:$0xf]
  %v84 = vld [vmem:[%s1 + $0x74] sm:$0xf]
  %v85 = vld [vmem:[%s1 + $0x78] sm:$0xf]
  %v86 = vld [vmem:[%s1 + $0x7c] sm:$0xf]
  %v87 = vld [vmem:[%s1 + $0x80] sm:$0xf]
  %v88 = vld [vmem:[%s1 + $0x84] sm:$0xf]
  %v89 = vld [vmem:[%s1 + $0x88] sm:$0xf]
  %v90 = vld [vmem:[%s1 + $0x8c] sm:$0xf]
  %v91 = vld [vmem:[%s1 + $0x90] sm:$0xf]
  %v92 = vld [vmem:[%s1 + $0x94] sm:$0xf]
  %v93 = vld [vmem:[%s1 + $0x98] sm:$0xf]
  %v94 = vld [vmem:[%s1 + $0x9c] sm:$0xf]
  %v95 = vld [vmem:[%s1 + $0xa0] sm:$0xf]
  %v96 = vld [vmem:[%s1 + $0xa4] sm:$0xf]
  %v97 = vld [vmem:[%s1 + $0xa8] sm:$0xf]
  %v98 = vld [vmem:[%s1 + $0xac] sm:$0xf]
  %v99 = vld [vmem:[%s1 + $0xb0] sm:$0xf]
  %v100 = vld [vmem:[%s1 + $0xb4] sm:$0xf]
  %v101 = vld [vmem:[%s1 + $0xb8] sm:$0xf]
  %v102 = vld [vmem:[%s1 + $0xbc] sm:$0xf]
  %v103 = vld [vmem:[%s1 + $0xc0] sm:$0xf]
  %v104 = vld [vmem:[%s1 + $0xc4] sm:$0xf]
  %v105 = vld [vmem:[%s1 + $0xc8] sm:$0xf]
  %v106 = vld [vmem:[%s1 + $0xcc] sm:$0xf]
  %v107 = vld [vmem:[%s1 + $0xd0] sm:$0xf]
  %v108 = vld [vmem:[%s1 + $0xd4] sm:$0xf]
  %v109 = vld [vmem:[%s1 + $0xd8] sm:$0xf]
  %v110 = vld [vmem:[%s1 + $0xdc] sm:$0xf]
  %v111 = vld [vmem:[%s1 + $0xe0] sm:$0xf]
  %v112 = vld [vmem:[%s1 + $0xe4] sm:$0xf]
  %v113 = vld [vmem:[%s1 + $0xe8] sm:$0xf]
  %v114 = vld [vmem:[%s1 + $0xec] sm:$0xf]
  %v115 = vld [vmem:[%s1 + $0xf0] sm:$0xf]
  %v116 = vld [vmem:[%s1 + $0xf4] sm:$0xf]
  %v117 = vld [vmem:[%s1 + $0xf8] sm:$0xf]
  %v118 = vld [vmem:[%s1 + $0xfc] sm:$0xf]
  %v119 = vld [vmem:[%s1 + $0x100] sm:$0xf]
  %v120 = vld [vmem:[%s1 + $0x104] sm:$0xf]
  %v121 = vld [vmem:[%s1 + $0x108] sm:$0xf]
  %v122 = vld [vmem:[%s1 + $0x10c] sm:$0xf]
  %v123 = vld [vmem:[%s1 + $0x110] sm:$0xf]
  %v124 = vld [vmem:[%s1 + $0x114] sm:$0xf]
  %v125 = vld [vmem:[%s1 + $0x118] sm:$0xf]
  %v126 = vld [vmem:[%s1 + $0x11c] sm:$0xf]
  %v127 = vld [vmem:[%s1 + $0x120] sm:$0xf]
  %v128 = vld [vmem:[%s1 + $0x124] sm:$0xf]
  %v129 = vld [vmem:[%s1 + $0x128] sm:$0xf]
  %v130 = vld [vmem:[%s1 + $0x12c] sm:$0xf]
  %v131 = vld [vmem:[%s1 + $0x130] sm:$0xf]
  %v132 = vld [vmem:[%s1 + $0x134] sm:$0xf]
  %v133 = vld [vmem:[%s1 + $0x138] sm:$0xf]
  %v134 = vld [vmem:[%s1 + $0x13c] sm:$0xf]
  %v135 = vld [vmem:[%s1 + $0x140] sm:$0xf]
  %v136 = vld [vmem:[%s1 + $0x144] sm:$0xf]
  %v137 = vld [vmem:[%s1 + $0x148] sm:$0xf]
  %v138 = vld [vmem:[%s1 + $0x14c] sm:$0xf]
  %v139 = vld [vmem:[%s1 + $0x150] sm:$0xf]
  %v140 = vld [vmem:[%s1 + $0x154] sm:$0xf]
  %v141 = vld [vmem:[%s1 + $0x158] sm:$0xf]
  %v142 = vld [vmem:[%s1 + $0x15c] sm:$0xf]
  %v143 = vld [vmem:[%s1 + $0x160] sm:$0xf]
  %v144 = vld [vmem:[%s1 + $0x164] sm:$0xf]
  %v145 = vld [vmem:[%s1 + $0x168] sm:$0xf]
  %v146 = vld [vmem:[%s1 + $0x16c] sm:$0xf]
  %v147 = vld [vmem:[%s1 + $0x170] sm:$0xf]
  %v148 = vld [vmem:[%s1 + $0x174] sm:$0xf]
  %v149 = vld [vmem:[%s1 + $0x178] sm:$0xf]
  %v150 = vld [vmem:[%s1 + $0x17c] sm:$0xf]
  %v151 = vld [vmem:[%s1 + $0x180] sm:$0xf]
  %v152 = vld [vmem:[%s1 + $0x184] sm:$0xf]
  %v153 = vld [vmem:[%s1 + $0x188] sm:$0xf]
  %v154 = vld [vmem:[%s1 + $0x18c] sm:$0xf]
  %v155 = vld [vmem:[%s1 + $0x190] sm:$0xf]
  %v156 = vld [vmem:[%s1 + $0x194] sm:$0xf]
  %v157 = vld [vmem:[%s1 + $0x198] sm:$0xf]
  %v158 = vld [vmem:[%s1 + $0x19c] sm:$0xf]
  %v159 = vld [vmem:[%s1 + $0x1a0] sm:$0xf]
  %v160 = vld [vmem:[%s1 + $0x1a4] sm:$0xf]
  %v161 = vld [vmem:[%s1 + $0x1a8] sm:$0xf]
  %v162 = vld [vmem:[%s1 + $0x1ac] sm:$0xf]
  %v163 = vld [vmem:[%s1 + $0x1b0] sm:$0xf]
  %v164 = vld [vmem:[%s1 + $0x1b4] sm:$0xf]
  %v165 = vld [vmem:[%s1 + $0x1b8] sm:$0xf]
  %v166 = vld [vmem:[%s1 + $0x1bc] sm:$0xf]
  %v167 = vld [vmem:[%s1 + $0x1c0] sm:$0xf]
  %v168 = vld [vmem:[%s1 + $0x1c4] sm:$0xf]
  %v169 = vld [vmem:[%s1 + $0x1c8] sm:$0xf]
  %v170 = vld [vmem:[%s1 + $0x1cc] sm:$0xf]
  %v171 = vld [vmem:[%s1 + $0x1d0] sm:$0xf]
  %v172 = vld [vmem:[%s1 + $0x1d4] sm:$0xf]
  %v173 = vld [vmem:[%s1 + $0x1d8] sm:$0xf]
  %v174 = vld [vmem:[%s1 + $0x1dc] sm:$0xf]
  %v175 = vld [vmem:[%s1 + $0x1e0] sm:$0xf]
  %v176 = vld [vmem:[%s1 + $0x1e4] sm:$0xf]
  %v177 = vld [vmem:[%s1 + $0x1e8] sm:$0xf]
  %v178 = vld [vmem:[%s1 + $0x1ec] sm:$0xf]
  %v179 = vld [vmem:[%s1 + $0x1f0] sm:$0xf]
  %v180 = vld [vmem:[%s1 + $0x1f4] sm:$0xf]
  %v181 = vld [vmem:[%s1 + $0x1f8] sm:$0xf]
  %v182 = vld [vmem:[%s1 + $0x1fc] sm:$0xf]
  %v183 = vld [vmem:[%s1 + $0x200] sm:$0xf]
  %v184 = vld [vmem:[%s1 + $0x204] sm:$0xf]
  %v185 = vld [vmem:[%s1 + $0x208] sm:$0xf]
  %v186 = vld [vmem:[%s1 + $0x20c] sm:$0xf]
  %v187 = vld [vmem:[%s1 + $0x210] sm:$0xf]
  %v188 = vld [vmem:[%s1 + $0x214] sm:$0xf]
  %v189 = vld [vmem:[%s1 + $0x218] sm:$0xf]
  %v190 = vld [vmem:[%s1 + $0x21c] sm:$0xf]
  %v191 = vld [vmem:[%s1 + $0x220] sm:$0xf]
  %v192 = vld [vmem:[%s1 + $0x224] sm:$0xf]
  %v193 = vld [vmem:[%s1 + $0x228] sm:$0xf]
  %v194 = vld [vmem:[%s1 + $0x22c] sm:$0xf]
  %v195 = vld [vmem:[%s1 + $0x230] sm:$0xf]
  %v196 = vld [vmem:[%s1 + $0x234] sm:$0xf]
  %v197 = vld [vmem:[%s1 + $0x238] sm:$0xf]
  %v198 = vld [vmem:[%s1 + $0x23c] sm:$0xf]
  %v199 = vld [vmem:[%s2] sm:$0xff]
  %v200 = vld [vmem:[%s2 + $0x8] sm:$0xff]
  %v201 = vld [vmem:[%s2 + $0x10] sm:$0xff]
  %v202 = vld [vmem:[%s2 + $0x18] sm:$0xff]
  %v203 = vld [vmem:[%s2 + $0x20] sm:$0xff]
  %v204 = vld [vmem:[%s2 + $0x28] sm:$0xff]
  %v205 = vld [vmem:[%s2 + $0x30] sm:$0xff]
  %v206 = vld [vmem:[%s2 + $0x38] sm:$0xff]
  %208 = vset.pattern.permute.xlu0 0
  %209 = vperm.xlu0 %208, %v199
  %v210 = vpop.permute.xlu0 %209
  %213 = vset.pattern.permute.xlu0 0
  %214 = vperm.xlu0 %213, %v200
  %v215 = vpop.permute.xlu0 %214
  %218 = vset.pattern.permute.xlu0 0
  %219 = vperm.xlu0 %218, %v201
  %v220 = vpop.permute.xlu0 %219
  %223 = vset.pattern.permute.xlu0 0
  %224 = vperm.xlu0 %223, %v202
  %v225 = vpop.permute.xlu0 %224
  %228 = vset.pattern.permute.xlu0 0
  %229 = vperm.xlu0 %228, %v203
  %v230 = vpop.permute.xlu0 %229
  %233 = vset.pattern.permute.xlu0 0
  %234 = vperm.xlu0 %233, %v204
  %v235 = vpop.permute.xlu0 %234
  %238 = vset.pattern.permute.xlu0 0
  %239 = vperm.xlu0 %238, %v205
  %v240 = vpop.permute.xlu0 %239
  %243 = vset.pattern.permute.xlu0 0
  %244 = vperm.xlu0 %243, %v206
  %v245 = vpop.permute.xlu0 %244
  %v287 = vunpack.c.l.b16 %v15
  %v288 = vunpack.c.h.b16 %v15
  %v289 = vunpack.c.l.b16 %v16
  %v290 = vunpack.c.h.b16 %v16
  %v291 = vunpack.c.l.b16 %v17
  %v292 = vunpack.c.h.b16 %v17
  %v293 = vunpack.c.l.b16 %v18
  %v294 = vunpack.c.h.b16 %v18
  %v295 = vunpack.c.l.b16 %v19
  %v296 = vunpack.c.l.b16 %v20
  %v297 = vunpack.c.h.b16 %v20
  %v298 = vunpack.c.l.b16 %v21
  %v299 = vunpack.c.h.b16 %v21
  %v300 = vunpack.c.l.b16 %v22
  %v301 = vunpack.c.h.b16 %v22
  %v302 = vunpack.c.l.b16 %v23
  %v303 = vunpack.c.h.b16 %v23
  %v304 = vunpack.c.l.b16 %v24
  %v305 = vunpack.c.l.b16 %v25
  %v306 = vunpack.c.h.b16 %v25
  %v307 = vunpack.c.l.b16 %v26
  %v308 = vunpack.c.h.b16 %v26
  %v309 = vunpack.c.l.b16 %v27
  %v310 = vunpack.c.h.b16 %v27
  %v311 = vunpack.c.l.b16 %v28
  %v312 = vunpack.c.h.b16 %v28
  %v313 = vunpack.c.l.b16 %v29
  %v314 = vunpack.c.l.b16 %v30
  %v315 = vunpack.c.h.b16 %v30
  %v316 = vunpack.c.l.b16 %v31
  %v317 = vunpack.c.h.b16 %v31
  %v318 = vunpack.c.l.b16 %v32
  %v319 = vunpack.c.h.b16 %v32
  %v320 = vunpack.c.l.b16 %v33
  %v321 = vunpack.c.h.b16 %v33
  %v322 = vunpack.c.l.b16 %v34
  %v323 = vunpack.c.l.b16 %v35
  %v324 = vunpack.c.h.b16 %v35
  %v325 = vunpack.c.l.b16 %v36
  %v326 = vunpack.c.h.b16 %v36
  %v327 = vunpack.c.l.b16 %v37
  %v328 = vunpack.c.h.b16 %v37
  %v329 = vunpack.c.l.b16 %v38
  %v330 = vunpack.c.h.b16 %v38
  %v331 = vunpack.c.l.b16 %v39
  %v332 = vunpack.c.l.b16 %v40
  %v333 = vunpack.c.h.b16 %v40
  %v334 = vunpack.c.l.b16 %v41
  %v335 = vunpack.c.h.b16 %v41
  %v336 = vunpack.c.l.b16 %v42
  %v337 = vunpack.c.h.b16 %v42
  %v338 = vunpack.c.l.b16 %v43
  %v339 = vunpack.c.h.b16 %v43
  %v340 = vunpack.c.l.b16 %v44
  %v341 = vunpack.c.l.b16 %v45
  %v342 = vunpack.c.h.b16 %v45
  %v343 = vunpack.c.l.b16 %v46
  %v344 = vunpack.c.h.b16 %v46
  %v345 = vunpack.c.l.b16 %v47
  %v346 = vunpack.c.h.b16 %v47
  %v347 = vunpack.c.l.b16 %v48
  %v348 = vunpack.c.h.b16 %v48
  %v349 = vunpack.c.l.b16 %v49
  %v350 = vunpack.c.l.b16 %v50
  %v351 = vunpack.c.h.b16 %v50
  %v352 = vunpack.c.l.b16 %v51
  %v353 = vunpack.c.h.b16 %v51
  %v354 = vunpack.c.l.b16 %v52
  %v355 = vunpack.c.h.b16 %v52
  %v356 = vunpack.c.l.b16 %v53
  %v357 = vunpack.c.h.b16 %v53
  %v358 = vunpack.c.l.b16 %v54
  %v359 = vpack.c.b16 %v296, %v287
  %v360 = vpack.c.b16 %v297, %v288
  %v361 = vpack.c.b16 %v298, %v289
  %v362 = vpack.c.b16 %v299, %v290
  %v363 = vpack.c.b16 %v300, %v291
  %v364 = vpack.c.b16 %v301, %v292
  %v365 = vpack.c.b16 %v302, %v293
  %v366 = vpack.c.b16 %v303, %v294
  %v367 = vpack.c.b16 %v304, %v295
  %v368 = vpack.c.b16 %v314, %v305
  %v369 = vpack.c.b16 %v315, %v306
  %v370 = vpack.c.b16 %v316, %v307
  %v371 = vpack.c.b16 %v317, %v308
  %v372 = vpack.c.b16 %v318, %v309
  %v373 = vpack.c.b16 %v319, %v310
  %v374 = vpack.c.b16 %v320, %v311
  %v375 = vpack.c.b16 %v321, %v312
  %v376 = vpack.c.b16 %v322, %v313
  %v377 = vpack.c.b16 %v332, %v323
  %v378 = vpack.c.b16 %v333, %v324
  %v379 = vpack.c.b16 %v334, %v325
  %v380 = vpack.c.b16 %v335, %v326
  %v381 = vpack.c.b16 %v336, %v327
  %v382 = vpack.c.b16 %v337, %v328
  %v383 = vpack.c.b16 %v338, %v329
  %v384 = vpack.c.b16 %v339, %v330
  %v385 = vpack.c.b16 %v340, %v331
  %v386 = vpack.c.b16 %v350, %v341
  %v387 = vpack.c.b16 %v351, %v342
  %v388 = vpack.c.b16 %v352, %v343
  %v389 = vpack.c.b16 %v353, %v344
  %v390 = vpack.c.b16 %v354, %v345
  %v391 = vpack.c.b16 %v355, %v346
  %v392 = vpack.c.b16 %v356, %v347
  %v393 = vpack.c.b16 %v357, %v348
  %v394 = vpack.c.b16 %v358, %v349
  %v575 = vunpack.c.l.b16 %v55
  %v576 = vunpack.c.l.b16 %v56
  %v577 = vunpack.c.l.b16 %v57
  %v578 = vunpack.c.l.b16 %v58
  %v579 = vunpack.c.l.b16 %v59
  %v580 = vunpack.c.l.b16 %v60
  %v581 = vunpack.c.l.b16 %v61
  %v582 = vunpack.c.l.b16 %v62
  %v583 = vunpack.c.l.b16 %v63
  %v584 = vunpack.c.l.b16 %v64
  %v585 = vunpack.c.l.b16 %v65
  %v586 = vunpack.c.l.b16 %v66
  %v587 = vunpack.c.l.b16 %v67
  %v588 = vunpack.c.l.b16 %v68
  %v589 = vunpack.c.l.b16 %v69
  %v590 = vunpack.c.l.b16 %v70
  %v591 = vunpack.c.l.b16 %v71
  %v592 = vunpack.c.l.b16 %v72
  %v593 = vunpack.c.l.b16 %v73
  %v594 = vunpack.c.l.b16 %v74
  %v595 = vunpack.c.l.b16 %v75
  %v596 = vunpack.c.l.b16 %v76
  %v597 = vunpack.c.l.b16 %v77
  %v598 = vunpack.c.l.b16 %v78
  %v599 = vunpack.c.l.b16 %v79
  %v600 = vunpack.c.l.b16 %v80
  %v601 = vunpack.c.l.b16 %v81
  %v602 = vunpack.c.l.b16 %v82
  %v603 = vunpack.c.l.b16 %v83
  %v604 = vunpack.c.l.b16 %v84
  %v605 = vunpack.c.l.b16 %v85
  %v606 = vunpack.c.l.b16 %v86
  %v607 = vunpack.c.l.b16 %v87
  %v608 = vunpack.c.l.b16 %v88
  %v609 = vunpack.c.l.b16 %v89
  %v610 = vunpack.c.l.b16 %v90
  %v611 = vunpack.c.l.b16 %v91
  %v612 = vunpack.c.l.b16 %v92
  %v613 = vunpack.c.l.b16 %v93
  %v614 = vunpack.c.l.b16 %v94
  %v615 = vunpack.c.l.b16 %v95
  %v616 = vunpack.c.l.b16 %v96
  %v617 = vunpack.c.l.b16 %v97
  %v618 = vunpack.c.l.b16 %v98
  %v619 = vunpack.c.l.b16 %v99
  %v620 = vunpack.c.l.b16 %v100
  %v621 = vunpack.c.l.b16 %v101
  %v622 = vunpack.c.l.b16 %v102
  %v623 = vunpack.c.l.b16 %v103
  %v624 = vunpack.c.l.b16 %v104
  %v625 = vunpack.c.l.b16 %v105
  %v626 = vunpack.c.l.b16 %v106
  %v627 = vunpack.c.l.b16 %v107
  %v628 = vunpack.c.l.b16 %v108
  %v629 = vunpack.c.l.b16 %v109
  %v630 = vunpack.c.l.b16 %v110
  %v631 = vunpack.c.l.b16 %v111
  %v632 = vunpack.c.l.b16 %v112
  %v633 = vunpack.c.l.b16 %v113
  %v634 = vunpack.c.l.b16 %v114
  %v635 = vunpack.c.l.b16 %v115
  %v636 = vunpack.c.l.b16 %v116
  %v637 = vunpack.c.l.b16 %v117
  %v638 = vunpack.c.l.b16 %v118
  %v639 = vunpack.c.l.b16 %v119
  %v640 = vunpack.c.l.b16 %v120
  %v641 = vunpack.c.l.b16 %v121
  %v642 = vunpack.c.l.b16 %v122
  %v643 = vunpack.c.l.b16 %v123
  %v644 = vunpack.c.l.b16 %v124
  %v645 = vunpack.c.l.b16 %v125
  %v646 = vunpack.c.l.b16 %v126
  %v647 = vunpack.c.l.b16 %v127
  %v648 = vunpack.c.l.b16 %v128
  %v649 = vunpack.c.l.b16 %v129
  %v650 = vunpack.c.l.b16 %v130
  %v651 = vunpack.c.l.b16 %v131
  %v652 = vunpack.c.l.b16 %v132
  %v653 = vunpack.c.l.b16 %v133
  %v654 = vunpack.c.l.b16 %v134
  %v655 = vunpack.c.l.b16 %v135
  %v656 = vunpack.c.l.b16 %v136
  %v657 = vunpack.c.l.b16 %v137
  %v658 = vunpack.c.l.b16 %v138
  %v659 = vunpack.c.l.b16 %v139
  %v660 = vunpack.c.l.b16 %v140
  %v661 = vunpack.c.l.b16 %v141
  %v662 = vunpack.c.l.b16 %v142
  %v663 = vunpack.c.l.b16 %v143
  %v664 = vunpack.c.l.b16 %v144
  %v665 = vunpack.c.l.b16 %v145
  %v666 = vunpack.c.l.b16 %v146
  %v667 = vunpack.c.l.b16 %v147
  %v668 = vunpack.c.l.b16 %v148
  %v669 = vunpack.c.l.b16 %v149
  %v670 = vunpack.c.l.b16 %v150
  %v671 = vunpack.c.l.b16 %v151
  %v672 = vunpack.c.l.b16 %v152
  %v673 = vunpack.c.l.b16 %v153
  %v674 = vunpack.c.l.b16 %v154
  %v675 = vunpack.c.l.b16 %v155
  %v676 = vunpack.c.l.b16 %v156
  %v677 = vunpack.c.l.b16 %v157
  %v678 = vunpack.c.l.b16 %v158
  %v679 = vunpack.c.l.b16 %v159
  %v680 = vunpack.c.l.b16 %v160
  %v681 = vunpack.c.l.b16 %v161
  %v682 = vunpack.c.l.b16 %v162
  %v683 = vunpack.c.l.b16 %v163
  %v684 = vunpack.c.l.b16 %v164
  %v685 = vunpack.c.l.b16 %v165
  %v686 = vunpack.c.l.b16 %v166
  %v687 = vunpack.c.l.b16 %v167
  %v688 = vunpack.c.l.b16 %v168
  %v689 = vunpack.c.l.b16 %v169
  %v690 = vunpack.c.l.b16 %v170
  %v691 = vunpack.c.l.b16 %v171
  %v692 = vunpack.c.l.b16 %v172
  %v693 = vunpack.c.l.b16 %v173
  %v694 = vunpack.c.l.b16 %v174
  %v695 = vunpack.c.l.b16 %v175
  %v696 = vunpack.c.l.b16 %v176
  %v697 = vunpack.c.l.b16 %v177
  %v698 = vunpack.c.l.b16 %v178
  %v699 = vunpack.c.l.b16 %v179
  %v700 = vunpack.c.l.b16 %v180
  %v701 = vunpack.c.l.b16 %v181
  %v702 = vunpack.c.l.b16 %v182
  %v703 = vunpack.c.l.b16 %v183
  %v704 = vunpack.c.l.b16 %v184
  %v705 = vunpack.c.l.b16 %v185
  %v706 = vunpack.c.l.b16 %v186
  %v707 = vunpack.c.l.b16 %v187
  %v708 = vunpack.c.l.b16 %v188
  %v709 = vunpack.c.l.b16 %v189
  %v710 = vunpack.c.l.b16 %v190
  %v711 = vunpack.c.l.b16 %v191
  %v712 = vunpack.c.l.b16 %v192
  %v713 = vunpack.c.l.b16 %v193
  %v714 = vunpack.c.l.b16 %v194
  %v715 = vunpack.c.l.b16 %v195
  %v716 = vunpack.c.l.b16 %v196
  %v717 = vunpack.c.l.b16 %v197
  %v718 = vunpack.c.l.b16 %v198
  %v719 = vpack.c.b16 %v576, %v575
  %v720 = vpack.c.b16 %v578, %v577
  %v721 = vpack.c.b16 %v580, %v579
  %v722 = vpack.c.b16 %v582, %v581
  %v723 = vpack.c.b16 %v584, %v583
  %v724 = vpack.c.b16 %v586, %v585
  %v725 = vpack.c.b16 %v588, %v587
  %v726 = vpack.c.b16 %v590, %v589
  %v727 = vpack.c.b16 %v592, %v591
  %v728 = vpack.c.b16 %v594, %v593
  %v729 = vpack.c.b16 %v596, %v595
  %v730 = vpack.c.b16 %v598, %v597
  %v731 = vpack.c.b16 %v600, %v599
  %v732 = vpack.c.b16 %v602, %v601
  %v733 = vpack.c.b16 %v604, %v603
  %v734 = vpack.c.b16 %v606, %v605
  %v735 = vpack.c.b16 %v608, %v607
  %v736 = vpack.c.b16 %v610, %v609
  %v737 = vpack.c.b16 %v612, %v611
  %v738 = vpack.c.b16 %v614, %v613
  %v739 = vpack.c.b16 %v616, %v615
  %v740 = vpack.c.b16 %v618, %v617
  %v741 = vpack.c.b16 %v620, %v619
  %v742 = vpack.c.b16 %v622, %v621
  %v743 = vpack.c.b16 %v624, %v623
  %v744 = vpack.c.b16 %v626, %v625
  %v745 = vpack.c.b16 %v628, %v627
  %v746 = vpack.c.b16 %v630, %v629
  %v747 = vpack.c.b16 %v632, %v631
  %v748 = vpack.c.b16 %v634, %v633
  %v749 = vpack.c.b16 %v636, %v635
  %v750 = vpack.c.b16 %v638, %v637
  %v751 = vpack.c.b16 %v640, %v639
  %v752 = vpack.c.b16 %v642, %v641
  %v753 = vpack.c.b16 %v644, %v643
  %v754 = vpack.c.b16 %v646, %v645
  %v755 = vpack.c.b16 %v648, %v647
  %v756 = vpack.c.b16 %v650, %v649
  %v757 = vpack.c.b16 %v652, %v651
  %v758 = vpack.c.b16 %v654, %v653
  %v759 = vpack.c.b16 %v656, %v655
  %v760 = vpack.c.b16 %v658, %v657
  %v761 = vpack.c.b16 %v660, %v659
  %v762 = vpack.c.b16 %v662, %v661
  %v763 = vpack.c.b16 %v664, %v663
  %v764 = vpack.c.b16 %v666, %v665
  %v765 = vpack.c.b16 %v668, %v667
  %v766 = vpack.c.b16 %v670, %v669
  %v767 = vpack.c.b16 %v672, %v671
  %v768 = vpack.c.b16 %v674, %v673
  %v769 = vpack.c.b16 %v676, %v675
  %v770 = vpack.c.b16 %v678, %v677
  %v771 = vpack.c.b16 %v680, %v679
  %v772 = vpack.c.b16 %v682, %v681
  %v773 = vpack.c.b16 %v684, %v683
  %v774 = vpack.c.b16 %v686, %v685
  %v775 = vpack.c.b16 %v688, %v687
  %v776 = vpack.c.b16 %v690, %v689
  %v777 = vpack.c.b16 %v692, %v691
  %v778 = vpack.c.b16 %v694, %v693
  %v779 = vpack.c.b16 %v696, %v695
  %v780 = vpack.c.b16 %v698, %v697
  %v781 = vpack.c.b16 %v700, %v699
  %v782 = vpack.c.b16 %v702, %v701
  %v783 = vpack.c.b16 %v704, %v703
  %v784 = vpack.c.b16 %v706, %v705
  %v785 = vpack.c.b16 %v708, %v707
  %v786 = vpack.c.b16 %v710, %v709
  %v787 = vpack.c.b16 %v712, %v711
  %v788 = vpack.c.b16 %v714, %v713
  %v789 = vpack.c.b16 %v716, %v715
  %v790 = vpack.c.b16 %v718, %v717
  %863 = vmatprep.subr.bf16.mxu0 0
  %864 = vmatpush1.bf16.msra.mxu0 %v719
  %865 = vmatprep.subr.bf16.mxu0 0
  %866 = vmatpush1.bf16.msra.mxu0 %v720
  %867 = vmatprep.subr.bf16.mxu0 0
  %868 = vmatpush1.bf16.msra.mxu0 %v721
  %869 = vmatprep.subr.bf16.mxu0 0
  %870 = vmatpush1.bf16.msra.mxu0 %v722
  %871 = vmatprep.subr.bf16.mxu0 0
  %872 = vmatpush1.bf16.msra.mxu0 %v723
  %873 = vmatprep.subr.bf16.mxu0 0
  %874 = vmatpush1.bf16.msra.mxu0 %v724
  %875 = vmatprep.subr.bf16.mxu0 0
  %876 = vmatpush1.bf16.msra.mxu0 %v725
  %877 = vmatprep.subr.bf16.mxu0 0
  %878 = vmatpush1.bf16.msra.mxu0 %v726
  %879 = vmatprep.subr.bf16.mxu0 0
  %880 = vmatpush1.bf16.msra.mxu0 %v727
  %881 = vmatprep.subr.bf16.mxu0 0
  %882 = vmatpush1.bf16.msra.mxu0 %v728
  %883 = vmatprep.subr.bf16.mxu0 0
  %884 = vmatpush1.bf16.msra.mxu0 %v729
  %885 = vmatprep.subr.bf16.mxu0 0
  %886 = vmatpush1.bf16.msra.mxu0 %v730
  %887 = vmatprep.subr.bf16.mxu0 0
  %888 = vmatpush1.bf16.msra.mxu0 %v731
  %889 = vmatprep.subr.bf16.mxu0 0
  %890 = vmatpush1.bf16.msra.mxu0 %v732
  %891 = vmatprep.subr.bf16.mxu0 0
  %892 = vmatpush1.bf16.msra.mxu0 %v733
  %893 = vmatprep.subr.bf16.mxu0 0
  %894 = vmatpush1.bf16.msra.mxu0 %v734
  %895 = vmatprep.mubr.bf16.mxu0 %v360
  %896 = vmatmul.mubr.bf16.gmra.mrb[0].mxu0 %v359
  %v897 = vpop.f32.mrb[0].mxu0
  %v898 = vadd.f32 %v210, %v897
  %v899 = vpop.f32.mrb[0].mxu0
  %v900 = vpop.f32.mrb[0].mxu0
  %v901 = vadd.f32 %v215, %v900
  %v902 = vpop.f32.mrb[0].mxu0
  %903 = vmatprep.mubr.bf16.mxu0 %v369
  %904 = vmatmul.mubr.bf16.gmra.mrb[0].mxu0 %v368
  %v905 = vpop.f32.mrb[0].mxu0
  %v906 = vadd.f32 %v220, %v905
  %v907 = vpop.f32.mrb[0].mxu0
  %v908 = vpop.f32.mrb[0].mxu0
  %v909 = vadd.f32 %v225, %v908
  %v910 = vpop.f32.mrb[0].mxu0
  %911 = vmatprep.mubr.bf16.mxu0 %v378
  %912 = vmatmul.mubr.bf16.gmra.mrb[0].mxu0 %v377
  %v913 = vpop.f32.mrb[0].mxu0
  %v914 = vadd.f32 %v230, %v913
  %v915 = vpop.f32.mrb[0].mxu0
  %v916 = vpop.f32.mrb[0].mxu0
  %v917 = vadd.f32 %v235, %v916
  %v918 = vpop.f32.mrb[0].mxu0
  %919 = vmatprep.mubr.bf16.mxu0 %v387
  %920 = vmatmul.mubr.bf16.gmra.mrb[0].mxu0 %v386
  %v921 = vpop.f32.mrb[0].mxu0
  %v922 = vadd.f32 %v240, %v921
  %v923 = vpop.f32.mrb[0].mxu0
  %v924 = vpop.f32.mrb[0].mxu0
  %v925 = vadd.f32 %v245, %v924
  %v926 = vpop.f32.mrb[0].mxu0
  %927 = vdwg.mxu0
  %928 = vmatprep.subr.bf16.mxu0 0
  %929 = vmatpush1.bf16.msra.mxu0 %v735
  %930 = vmatprep.subr.bf16.mxu0 0
  %931 = vmatpush1.bf16.msra.mxu0 %v736
  %932 = vmatprep.subr.bf16.mxu0 0
  %933 = vmatpush1.bf16.msra.mxu0 %v737
  %934 = vmatprep.subr.bf16.mxu0 0
  %935 = vmatpush1.bf16.msra.mxu0 %v738
  %936 = vmatprep.subr.bf16.mxu0 0
  %937 = vmatpush1.bf16.msra.mxu0 %v739
  %938 = vmatprep.subr.bf16.mxu0 0
  %939 = vmatpush1.bf16.msra.mxu0 %v740
  %940 = vmatprep.subr.bf16.mxu0 0
  %941 = vmatpush1.bf16.msra.mxu0 %v741
  %942 = vmatprep.subr.bf16.mxu0 0
  %943 = vmatpush1.bf16.msra.mxu0 %v742
  %944 = vmatprep.subr.bf16.mxu0 0
  %945 = vmatpush1.bf16.msra.mxu0 %v743
  %946 = vmatprep.subr.bf16.mxu0 0
  %947 = vmatpush1.bf16.msra.mxu0 %v744
  %948 = vmatprep.subr.bf16.mxu0 0
  %949 = vmatpush1.bf16.msra.mxu0 %v745
  %950 = vmatprep.subr.bf16.mxu0 0
  %951 = vmatpush1.bf16.msra.mxu0 %v746
  %952 = vmatprep.subr.bf16.mxu0 0
  %953 = vmatpush1.bf16.msra.mxu0 %v747
  %954 = vmatprep.subr.bf16.mxu0 0
  %955 = vmatpush1.bf16.msra.mxu0 %v748
  %956 = vmatprep.subr.bf16.mxu0 0
  %957 = vmatpush1.bf16.msra.mxu0 %v749
  %958 = vmatprep.subr.bf16.mxu0 0
  %959 = vmatpush1.bf16.msra.mxu0 %v750
  %960 = vmatprep.mubr.bf16.mxu0 %v362
  %961 = vmatmul.mubr.bf16.gmra.mrb[0].mxu0 %v361
  %v962 = vpop.f32.mrb[0].mxu0
  %v963 = vadd.f32 %v898, %v962
  %v964 = vpop.f32.mrb[0].mxu0
  %v965 = vpop.f32.mrb[0].mxu0
  %v966 = vadd.f32 %v901, %v965
  %v967 = vpop.f32.mrb[0].mxu0
  %968 = vmatprep.mubr.bf16.mxu0 %v371
  %969 = vmatmul.mubr.bf16.gmra.mrb[0].mxu0 %v370
  %v970 = vpop.f32.mrb[0].mxu0
  %v971 = vadd.f32 %v906, %v970
  %v972 = vpop.f32.mrb[0].mxu0
  %v973 = vpop.f32.mrb[0].mxu0
  %v974 = vadd.f32 %v909, %v973
  %v975 = vpop.f32.mrb[0].mxu0
  %976 = vmatprep.mubr.bf16.mxu0 %v380
  %977 = vmatmul.mubr.bf16.gmra.mrb[0].mxu0 %v379
  %v978 = vpop.f32.mrb[0].mxu0
  %v979 = vadd.f32 %v914, %v978
  %v980 = vpop.f32.mrb[0].mxu0
  %v981 = vpop.f32.mrb[0].mxu0
  %v982 = vadd.f32 %v917, %v981
  %v983 = vpop.f32.mrb[0].mxu0
  %984 = vmatprep.mubr.bf16.mxu0 %v389
  %985 = vmatmul.mubr.bf16.gmra.mrb[0].mxu0 %v388
  %v986 = vpop.f32.mrb[0].mxu0
  %v987 = vadd.f32 %v922, %v986
  %v988 = vpop.f32.mrb[0].mxu0
  %v989 = vpop.f32.mrb[0].mxu0
  %v990 = vadd.f32 %v925, %v989
  %v991 = vpop.f32.mrb[0].mxu0
  %992 = vdwg.mxu0
  %993 = vmatprep.subr.bf16.mxu0 0
  %994 = vmatpush1.bf16.msra.mxu0 %v751
  %995 = vmatprep.subr.bf16.mxu0 0
  %996 = vmatpush1.bf16.msra.mxu0 %v752
  %997 = vmatprep.subr.bf16.mxu0 0
  %998 = vmatpush1.bf16.msra.mxu0 %v753
  %999 = vmatprep.subr.bf16.mxu0 0
  %1000 = vmatpush1.bf16.msra.mxu0 %v754
  %1001 = vmatprep.subr.bf16.mxu0 0
  %1002 = vmatpush1.bf16.msra.mxu0 %v755
  %1003 = vmatprep.subr.bf16.mxu0 0
  %1004 = vmatpush1.bf16.msra.mxu0 %v756
  %1005 = vmatprep.subr.bf16.mxu0 0
  %1006 = vmatpush1.bf16.msra.mxu0 %v757
  %1007 = vmatprep.subr.bf16.mxu0 0
  %1008 = vmatpush1.bf16.msra.mxu0 %v758
  %1009 = vmatprep.subr.bf16.mxu0 0
  %1010 = vmatpush1.bf16.msra.mxu0 %v759
  %1011 = vmatprep.subr.bf16.mxu0 0
  %1012 = vmatpush1.bf16.msra.mxu0 %v760
  %1013 = vmatprep.subr.bf16.mxu0 0
  %1014 = vmatpush1.bf16.msra.mxu0 %v761
  %1015 = vmatprep.subr.bf16.mxu0 0
  %1016 = vmatpush1.bf16.msra.mxu0 %v762
  %1017 = vmatprep.subr.bf16.mxu0 0
  %1018 = vmatpush1.bf16.msra.mxu0 %v763
  %1019 = vmatprep.subr.bf16.mxu0 0
  %1020 = vmatpush1.bf16.msra.mxu0 %v764
  %1021 = vmatprep.subr.bf16.mxu0 0
  %1022 = vmatpush1.bf16.msra.mxu0 %v765
  %1023 = vmatprep.subr.bf16.mxu0 0
  %1024 = vmatpush1.bf16.msra.mxu0 %v766
  %1025 = vmatprep.mubr.bf16.mxu0 %v364
  %1026 = vmatmul.mubr.bf16.gmra.mrb[0].mxu0 %v363
  %v1027 = vpop.f32.mrb[0].mxu0
  %v1028 = vadd.f32 %v963, %v1027
  %v1029 = vpop.f32.mrb[0].mxu0
  %v1030 = vpop.f32.mrb[0].mxu0
  %v1031 = vadd.f32 %v966, %v1030
  %v1032 = vpop.f32.mrb[0].mxu0
  %1033 = vmatprep.mubr.bf16.mxu0 %v373
  %1034 = vmatmul.mubr.bf16.gmra.mrb[0].mxu0 %v372
  %v1035 = vpop.f32.mrb[0].mxu0
  %v1036 = vadd.f32 %v971, %v1035
  %v1037 = vpop.f32.mrb[0].mxu0
  %v1038 = vpop.f32.mrb[0].mxu0
  %v1039 = vadd.f32 %v974, %v1038
  %v1040 = vpop.f32.mrb[0].mxu0
  %1041 = vmatprep.mubr.bf16.mxu0 %v382
  %1042 = vmatmul.mubr.bf16.gmra.mrb[0].mxu0 %v381
  %v1043 = vpop.f32.mrb[0].mxu0
  %v1044 = vadd.f32 %v979, %v1043
  %v1045 = vpop.f32.mrb[0].mxu0
  %v1046 = vpop.f32.mrb[0].mxu0
  %v1047 = vadd.f32 %v982, %v1046
  %v1048 = vpop.f32.mrb[0].mxu0
  %1049 = vmatprep.mubr.bf16.mxu0 %v391
  %1050 = vmatmul.mubr.bf16.gmra.mrb[0].mxu0 %v390
  %v1051 = vpop.f32.mrb[0].mxu0
  %v1052 = vadd.f32 %v987, %v1051
  %v1053 = vpop.f32.mrb[0].mxu0
  %v1054 = vpop.f32.mrb[0].mxu0
  %v1055 = vadd.f32 %v990, %v1054
  %v1056 = vpop.f32.mrb[0].mxu0
  %1057 = vdwg.mxu0
  %1058 = vmatprep.subr.bf16.mxu0 0
  %1059 = vmatpush1.bf16.msra.mxu0 %v767
  %1060 = vmatprep.subr.bf16.mxu0 0
  %1061 = vmatpush1.bf16.msra.mxu0 %v768
  %1062 = vmatprep.subr.bf16.mxu0 0
  %1063 = vmatpush1.bf16.msra.mxu0 %v769
  %1064 = vmatprep.subr.bf16.mxu0 0
  %1065 = vmatpush1.bf16.msra.mxu0 %v770
  %1066 = vmatprep.subr.bf16.mxu0 0
  %1067 = vmatpush1.bf16.msra.mxu0 %v771
  %1068 = vmatprep.subr.bf16.mxu0 0
  %1069 = vmatpush1.bf16.msra.mxu0 %v772
  %1070 = vmatprep.subr.bf16.mxu0 0
  %1071 = vmatpush1.bf16.msra.mxu0 %v773
  %1072 = vmatprep.subr.bf16.mxu0 0
  %1073 = vmatpush1.bf16.msra.mxu0 %v774
  %1074 = vmatprep.subr.bf16.mxu0 0
  %1075 = vmatpush1.bf16.msra.mxu0 %v775
  %1076 = vmatprep.subr.bf16.mxu0 0
  %1077 = vmatpush1.bf16.msra.mxu0 %v776
  %1078 = vmatprep.subr.bf16.mxu0 0
  %1079 = vmatpush1.bf16.msra.mxu0 %v777
  %1080 = vmatprep.subr.bf16.mxu0 0
  %1081 = vmatpush1.bf16.msra.mxu0 %v778
  %1082 = vmatprep.subr.bf16.mxu0 0
  %1083 = vmatpush1.bf16.msra.mxu0 %v779
  %1084 = vmatprep.subr.bf16.mxu0 0
  %1085 = vmatpush1.bf16.msra.mxu0 %v780
  %1086 = vmatprep.subr.bf16.mxu0 0
  %1087 = vmatpush1.bf16.msra.mxu0 %v781
  %1088 = vmatprep.subr.bf16.mxu0 0
  %1089 = vmatpush1.bf16.msra.mxu0 %v782
  %1090 = vmatprep.mubr.bf16.mxu0 %v366
  %1091 = vmatmul.mubr.bf16.gmra.mrb[0].mxu0 %v365
  %v1092 = vpop.f32.mrb[0].mxu0
  %v1093 = vadd.f32 %v1028, %v1092
  %v1094 = vpop.f32.mrb[0].mxu0
  %v1095 = vpop.f32.mrb[0].mxu0
  %v1096 = vadd.f32 %v1031, %v1095
  %v1097 = vpop.f32.mrb[0].mxu0
  %1098 = vmatprep.mubr.bf16.mxu0 %v375
  %1099 = vmatmul.mubr.bf16.gmra.mrb[0].mxu0 %v374
  %v1100 = vpop.f32.mrb[0].mxu0
  %v1101 = vadd.f32 %v1036, %v1100
  %v1102 = vpop.f32.mrb[0].mxu0
  %v1103 = vpop.f32.mrb[0].mxu0
  %v1104 = vadd.f32 %v1039, %v1103
  %v1105 = vpop.f32.mrb[0].mxu0
  %1106 = vmatprep.mubr.bf16.mxu0 %v384
  %1107 = vmatmul.mubr.bf16.gmra.mrb[0].mxu0 %v383
  %v1108 = vpop.f32.mrb[0].mxu0
  %v1109 = vadd.f32 %v1044, %v1108
  %v1110 = vpop.f32.mrb[0].mxu0
  %v1111 = vpop.f32.mrb[0].mxu0
  %v1112 = vadd.f32 %v1047, %v1111
  %v1113 = vpop.f32.mrb[0].mxu0
  %1114 = vmatprep.mubr.bf16.mxu0 %v393
  %1115 = vmatmul.mubr.bf16.gmra.mrb[0].mxu0 %v392
  %v1116 = vpop.f32.mrb[0].mxu0
  %v1117 = vadd.f32 %v1052, %v1116
  %v1118 = vpop.f32.mrb[0].mxu0
  %v1119 = vpop.f32.mrb[0].mxu0
  %v1120 = vadd.f32 %v1055, %v1119
  %v1121 = vpop.f32.mrb[0].mxu0
  %1122 = vdwg.mxu0
  %1123 = vmatprep.subr.bf16.mxu0 0
  %1124 = vmatpush1.bf16.msra.mxu0 %v783
  %1125 = vmatprep.subr.bf16.mxu0 0
  %1126 = vmatpush1.bf16.msra.mxu0 %v784
  %1127 = vmatprep.subr.bf16.mxu0 0
  %1128 = vmatpush1.bf16.msra.mxu0 %v785
  %1129 = vmatprep.subr.bf16.mxu0 0
  %1130 = vmatpush1.bf16.msra.mxu0 %v786
  %1131 = vmatprep.subr.bf16.mxu0 0
  %1132 = vmatpush1.bf16.msra.mxu0 %v787
  %1133 = vmatprep.subr.bf16.mxu0 0
  %1134 = vmatpush1.bf16.msra.mxu0 %v788
  %1135 = vmatprep.subr.bf16.mxu0 0
  %1136 = vmatpush1.bf16.msra.mxu0 %v789
  %1137 = vmatprep.subr.bf16.mxu0 0
  %1138 = vmatpush1.bf16.msra.mxu0 %v790
  %1139 = vmatprep.subr.bf16.mxu0 0
  %1140 = vmatpush1.bf16.msra.mxu0 0
  %1141 = vmatprep.subr.bf16.mxu0 0
  %1142 = vmatpush1.bf16.msra.mxu0 0
  %1143 = vmatprep.subr.bf16.mxu0 0
  %1144 = vmatpush1.bf16.msra.mxu0 0
  %1145 = vmatprep.subr.bf16.mxu0 0
  %1146 = vmatpush1.bf16.msra.mxu0 0
  %1147 = vmatprep.subr.bf16.mxu0 0
  %1148 = vmatpush1.bf16.msra.mxu0 0
  %1149 = vmatprep.subr.bf16.mxu0 0
  %1150 = vmatpush1.bf16.msra.mxu0 0
  %1151 = vmatprep.subr.bf16.mxu0 0
  %1152 = vmatpush1.bf16.msra.mxu0 0
  %1153 = vmatprep.subr.bf16.mxu0 0
  %1154 = vmatpush1.bf16.msra.mxu0 0
  %1155 = vmatprep.mubr.bf16.mxu0 0
  %1156 = vmatmul.mubr.bf16.gmra.mrb[0].mxu0 %v367
  %v1157 = vpop.f32.mrb[0].mxu0
  %v1158 = vadd.f32 %v1093, %v1157
  %v1159 = vpop.f32.mrb[0].mxu0
  %v1160 = vpop.f32.mrb[0].mxu0
  %v1161 = vadd.f32 %v1096, %v1160
  %v1162 = vpop.f32.mrb[0].mxu0
  %1163 = vmatprep.mubr.bf16.mxu0 0
  %1164 = vmatmul.mubr.bf16.gmra.mrb[0].mxu0 %v376
  %v1165 = vpop.f32.mrb[0].mxu0
  %v1166 = vadd.f32 %v1101, %v1165
  %v1167 = vpop.f32.mrb[0].mxu0
  %v1168 = vpop.f32.mrb[0].mxu0
  %v1169 = vadd.f32 %v1104, %v1168
  %v1170 = vpop.f32.mrb[0].mxu0
  %1171 = vmatprep.mubr.bf16.mxu0 0
  %1172 = vmatmul.mubr.bf16.gmra.mrb[0].mxu0 %v385
  %v1173 = vpop.f32.mrb[0].mxu0
  %v1174 = vadd.f32 %v1109, %v1173
  %v1175 = vpop.f32.mrb[0].mxu0
  %v1176 = vpop.f32.mrb[0].mxu0
  %v1177 = vadd.f32 %v1112, %v1176
  %v1178 = vpop.f32.mrb[0].mxu0
  %1179 = vmatprep.mubr.bf16.mxu0 0
  %1180 = vmatmul.mubr.bf16.gmra.mrb[0].mxu0 %v394
  %v1181 = vpop.f32.mrb[0].mxu0
  %v1182 = vadd.f32 %v1117, %v1181
  %v1183 = vpop.f32.mrb[0].mxu0
  %v1184 = vpop.f32.mrb[0].mxu0
  %v1185 = vadd.f32 %v1120, %v1184
  %v1186 = vpop.f32.mrb[0].mxu0
  %1187 = vdwg.mxu0
  %1188 = vst [vmem:[%s3] sm:$0xff] %v1158
  %1189 = vst [vmem:[%s3 + $0x8] sm:$0xff] %v1161
  %1190 = vst [vmem:[%s3 + $0x10] sm:$0xff] %v1166
  %1191 = vst [vmem:[%s3 + $0x18] sm:$0xff] %v1169
  %1192 = vst [vmem:[%s3 + $0x20] sm:$0xff] %v1174
  %1193 = vst [vmem:[%s3 + $0x28] sm:$0xff] %v1177
  %1194 = vst [vmem:[%s3 + $0x30] sm:$0xff] %v1182
  %1195 = vst [vmem:[%s3 + $0x38] sm:$0xff] %v1185
  // Predicated region
  $region14: #{conv_trans_forward.15} parent=0 // pred_check
    _
  $region15: #{conv_trans_forward.15} parent=0 // pred_check_branch
    %1197 = sbr.rel (0) target = $region17
  $region16: #{conv_trans_forward.15} parent=0 // pred_region
    _
  $region17: #{conv_trans_forward.15} parent=0 // pred_fallthru
    _
  // Predicated region
  $region18: #{conv_trans_forward.15} parent=0 // pred_check
    _
  $region19: #{conv_trans_forward.15} parent=0 // pred_check_branch
    %1199 = sbr.rel (0) target = $region21
  $region20: #{conv_trans_forward.15} parent=0 // pred_region
    _
  $region21: #{conv_trans_forward.15} parent=0 // pred_fallthru
    _

// kernel: conv_trans_forward.16
$region0: #{conv_trans_forward.16}
  #allocation0 [shape = 'u32[]', space=smem, size = 0x4, offset = 0x4, fixed_abs, tag = 'smem constant byte address 0x4 - core index']
  #allocation1 [shape = 'u32[144,128]{1,0:T(1,128)}', space=vmem, size = 0x12000, scoped, tag = 'internal scratch']
  %s0 = inlined_call_operand.vmem [shape: bf16[32,576], index: 0, kind: input, shape index: {}]
  %s1 = inlined_call_operand.vmem [shape: bf16[576,256], index: 1, kind: input, shape index: {}]
  %s2 = inlined_call_operand.vmem [shape: f32[32,1], index: 2, kind: input, shape index: {}]
  %s3 = inlined_call_operand.vmem [shape: f32[32,256], index: 3, kind: output, shape index: {}]
  %s4 = sld [smem:[#allocation0]]
  $region120: #{conv_trans_forward.16} parent=0
    _
  %s6 = ssub.s32 1, %s4
  %s7 = scalar_select 0, %s6, %s4
  $region1: #{conv_trans_forward.16} parent=0
    #allocation2 [shape = 'u8[294912]{0}', space=vmem, size = 0x48000, scoped, tag = 'input window, operand 1']
    #allocation3 [shape = 'u8[32768]{0}', space=vmem, size = 0x8000, scoped, tag = 'output window, operand 0']
    loop: start=0, step=1, limit=4
    $region2: #{conv_trans_forward.16} parent=1 // loop_pre_header
      _
    $region3: #{conv_trans_forward.16} parent=1 // loop_header
      %s9 = sphi 0, %s13
      %p10 = scmp.ge.s32.totalorder %s9, 4
      %s17 = sphi 0, %s17
      %s19 = sphi 0, %s17
      %s20 = sphi 0, %s19
      %s34 = sphi 0, %s20
      %s40 = sphi 0, %s42
      %s43 = sphi 0, %s40
      %s44 = sphi 0, %s43
      %s60 = sphi 0, %s44
      %s64 = sphi 0, %s64
      %s66 = sphi 0, %s64
      %s67 = sphi 0, %s66
      %s81 = sphi 0, %s67
      %s87 = sphi 0, %s89
      %s90 = sphi 0, %s87
      %s91 = sphi 0, %s90
      %s107 = sphi 0, %s91
    $region4: #{conv_trans_forward.16} parent=1 // loop_header_branch
      %12 = sbr.rel (%p10) target = $region8
    $region5: #{conv_trans_forward.16} parent=1 // loop_body
      %s14 = ssub.s32 %s9, 1
      %s15 = ssub.s32 %s9, 2
      %s16 = sadd.s32 %s9, 1
      %s18 = sadd.s32 %s17, 1
      %p21 = scmp.eq.s32.totalorder %s9, 1
      %p22 = scmp.ne.s32.totalorder %s17, %s19
      %p23 = scmp.eq.s32.totalorder %s9, 0
      %p24 = por %p22, %p23
      %p25 = scmp.ne.s32.totalorder %s17, %s19
      %p26 = scmp.eq.s32.totalorder %s14, 1
      %p27 = por %p25, %p26
      %p28 = scmp.ne.s32.totalorder %s19, %s20
      %p29 = scmp.eq.s32.totalorder %s14, 0
      %p30 = por %p28, %p29
      %p31 = scmp.ne.s32.totalorder %s19, %s20
      %p32 = scmp.eq.s32.totalorder %s15, 1
      %p33 = por %p31, %p32
      %p35 = scmp.ne.s32.totalorder %s20, %s34
      %p36 = scmp.eq.s32.totalorder %s15, 0
      %p37 = por %p35, %p36
      %s38 = ssub.s32 %s9, %s16
      %p39 = scmp.eq.s32.totalorder %s38, 0
      %s41 = sadd.s32 %s40, 1
      %s42 = scalar_select %p39, %s40, %s41
      %p45 = pneg %p39
      %p46 = scmp.eq.s32.totalorder %s9, 1
      %p47 = por %p45, %p46
      %p48 = scmp.ne.s32.totalorder %s40, %s43
      %p49 = scmp.eq.s32.totalorder %s9, 0
      %p50 = por %p48, %p49
      %p51 = scmp.ne.s32.totalorder %s40, %s43
      %p52 = scmp.eq.s32.totalorder %s14, 1
      %p53 = por %p51, %p52
      %p54 = scmp.ne.s32.totalorder %s43, %s44
      %p55 = scmp.eq.s32.totalorder %s14, 0
      %p56 = por %p54, %p55
      %p57 = scmp.ne.s32.totalorder %s43, %s44
      %p58 = scmp.eq.s32.totalorder %s15, 1
      %p59 = por %p57, %p58
      %p61 = scmp.ne.s32.totalorder %s44, %s60
      %p62 = scmp.eq.s32.totalorder %s15, 0
      %p63 = por %p61, %p62
      %s65 = sadd.s32 %s64, 1
      %p68 = scmp.eq.s32.totalorder %s9, 1
      %p69 = scmp.ne.s32.totalorder %s64, %s66
      %p70 = scmp.eq.s32.totalorder %s9, 0
      %p71 = por %p69, %p70
      %p72 = scmp.ne.s32.totalorder %s64, %s66
      %p73 = scmp.eq.s32.totalorder %s14, 1
      %p74 = por %p72, %p73
      %p75 = scmp.ne.s32.totalorder %s66, %s67
      %p76 = scmp.eq.s32.totalorder %s14, 0
      %p77 = por %p75, %p76
      %p78 = scmp.ne.s32.totalorder %s66, %s67
      %p79 = scmp.eq.s32.totalorder %s15, 1
      %p80 = por %p78, %p79
      %p82 = scmp.ne.s32.totalorder %s67, %s81
      %p83 = scmp.eq.s32.totalorder %s15, 0
      %p84 = por %p82, %p83
      %s85 = ssub.s32 %s9, %s16
      %p86 = scmp.eq.s32.totalorder %s85, 0
      %s88 = sadd.s32 %s87, 1
      %s89 = scalar_select %p86, %s87, %s88
      %p92 = pneg %p86
      %p93 = scmp.eq.s32.totalorder %s9, 1
      %p94 = por %p92, %p93
      %p95 = scmp.ne.s32.totalorder %s87, %s90
      %p96 = scmp.eq.s32.totalorder %s9, 0
      %p97 = por %p95, %p96
      %p98 = scmp.ne.s32.totalorder %s87, %s90
      %p99 = scmp.eq.s32.totalorder %s14, 1
      %p100 = por %p98, %p99
      %p101 = scmp.ne.s32.totalorder %s90, %s91
      %p102 = scmp.eq.s32.totalorder %s14, 0
      %p103 = por %p101, %p102
      %p104 = scmp.ne.s32.totalorder %s90, %s91
      %p105 = scmp.eq.s32.totalorder %s15, 1
      %p106 = por %p104, %p105
      %p108 = scmp.ne.s32.totalorder %s91, %s107
      %p109 = scmp.eq.s32.totalorder %s15, 0
      %p110 = por %p108, %p109
      %p111 = scmp.le.s32.totalorder 1, %s9
      %p112 = scmp.lt.s32.totalorder %s9, 3
      %p113 = pnand %p111, %p112
      %p114 = pneg %p113
      // Predicated region
      $region9: #{conv_trans_forward.16} parent=5 // pred_check
        _
      $region10: #{conv_trans_forward.16} parent=5 // pred_check_branch
        %116 = sbr.rel (%p113) target = $region12
      $region11: #{conv_trans_forward.16} parent=5 // pred_region
        %s117 = ssub.s32 %s9, 1
        // Predicated region
        $region13: #{conv_trans_forward.16} parent=11 // pred_check
          %p118 = pneg %p30
        $region14: #{conv_trans_forward.16} parent=11 // pred_check_branch
          %120 = sbr.rel (%p118) target = $region16
        $region15: #{conv_trans_forward.16} parent=11 // pred_region
          _
        $region16: #{conv_trans_forward.16} parent=11 // pred_fallthru
          _
        // Predicated region
        $region17: #{conv_trans_forward.16} parent=11 // pred_check
          %p121 = pneg %p77
        $region18: #{conv_trans_forward.16} parent=11 // pred_check_branch
          %123 = sbr.rel (%p121) target = $region20
        $region19: #{conv_trans_forward.16} parent=11 // pred_region
          _
        $region20: #{conv_trans_forward.16} parent=11 // pred_fallthru
          _
      $region12: #{conv_trans_forward.16} parent=5 // pred_fallthru
        _
      %p124 = scmp.lt.s32.totalorder %s9, 2
      // Predicated region
      $region21: #{conv_trans_forward.16} parent=5 // pred_check
        %p125 = pneg %p124
      $region22: #{conv_trans_forward.16} parent=5 // pred_check_branch
        %127 = sbr.rel (%p125) target = $region24
      $region23: #{conv_trans_forward.16} parent=5 // pred_region
        // Predicated region
        $region25: #{conv_trans_forward.16} parent=23 // pred_check
          %p128 = pneg %p50
        $region26: #{conv_trans_forward.16} parent=23 // pred_check_branch
          %130 = sbr.rel (%p128) target = $region28
        $region27: #{conv_trans_forward.16} parent=23 // pred_region
          %s131 = sand.u32 %s40, 1
          %s132 = sand.u32 %s40, 1
          %s133 = smul.addr %s132, 288
          %s134 = scalar_lea.vmem [#allocation2], %s133
          %s135 = smul.addr %s9, 4
          %s136 = scalar_lea.vmem %s1, %s135
          // Predicated region
          $region29: #{conv_trans_forward.16} parent=27 // pred_check
            _
          $region30: #{conv_trans_forward.16} parent=27 // pred_check_branch
            %138 = sbr.rel (0) target = $region32
          $region31: #{conv_trans_forward.16} parent=27 // pred_region
            // Predicated region
            $region33: #{conv_trans_forward.16} parent=31 // pred_check
              _
            $region34: #{conv_trans_forward.16} parent=31 // pred_check_branch
              %140 = sbr.rel target = $region36
            $region35: #{conv_trans_forward.16} parent=31 // pred_region
              // Predicated region
              $region48: #{conv_trans_forward.16} parent=35 // pred_check
                _
              $region49: #{conv_trans_forward.16} parent=35 // pred_check_branch
                %297 = sbr.rel (0) target = $region51
              $region50: #{conv_trans_forward.16} parent=35 // pred_region
                loop: start=0, step=1, limit=1
                $region52: #{conv_trans_forward.16} parent=50 // loop_pre_header
                  _
                $region53: #{conv_trans_forward.16} parent=50 // loop_header
                  %s299 = sphi 0, %s303
                  %p300 = scmp.ge.s32.totalorder %s299, 1
                  %s304 = sphi %s136, %s136
                  %s305 = sphi %s134, %s134
                $region54: #{conv_trans_forward.16} parent=50 // loop_header_branch
                  %302 = sbr.rel (%p300) target = $region58
                $region55: #{conv_trans_forward.16} parent=50 // loop_body
                  _
                $region56: #{conv_trans_forward.16} parent=50 // loop_footer
                  %s303 = sadd.s32 1, %s299
                $region57: #{conv_trans_forward.16} parent=50 // loop_footer_branch
                  %298 = sbr.rel target = $region53
                $region58: #{conv_trans_forward.16} parent=50 // loop_exit
                  _
                loop: start=0, step=1, limit=1
                $region59: #{conv_trans_forward.16} parent=50 // loop_pre_header
                  _
                $region60: #{conv_trans_forward.16} parent=50 // loop_header
                  %s308 = sphi 0, %s312
                  %p309 = scmp.ge.s32.totalorder %s308, 1
                  %s313 = sphi %s136, %s136
                  %s314 = sphi %s134, %s134
                $region61: #{conv_trans_forward.16} parent=50 // loop_header_branch
                  %311 = sbr.rel (%p309) target = $region65
                $region62: #{conv_trans_forward.16} parent=50 // loop_body
                  %v315 = vld [vmem:[%s313] sm:$0xf]
                  %316 = vst [vmem:[%s314] sm:$0xf] %v315
                  %v317 = vld [vmem:[%s313 + $0x8] sm:$0xf]
                  %318 = vst [vmem:[%s314 + $0x4] sm:$0xf] %v317
                  %v319 = vld [vmem:[%s313 + $0x10] sm:$0xf]
                  %320 = vst [vmem:[%s314 + $0x8] sm:$0xf] %v319
                  %v321 = vld [vmem:[%s313 + $0x18] sm:$0xf]
                  %322 = vst [vmem:[%s314 + $0xc] sm:$0xf] %v321
                  %v323 = vld [vmem:[%s313 + $0x20] sm:$0xf]
                  %324 = vst [vmem:[%s314 + $0x10] sm:$0xf] %v323
                  %v325 = vld [vmem:[%s313 + $0x28] sm:$0xf]
                  %326 = vst [vmem:[%s314 + $0x14] sm:$0xf] %v325
                  %v327 = vld [vmem:[%s313 + $0x30] sm:$0xf]
                  %328 = vst [vmem:[%s314 + $0x18] sm:$0xf] %v327
                  %v329 = vld [vmem:[%s313 + $0x38] sm:$0xf]
                  %330 = vst [vmem:[%s314 + $0x1c] sm:$0xf] %v329
                  %v331 = vld [vmem:[%s313 + $0x40] sm:$0xf]
                  %332 = vst [vmem:[%s314 + $0x20] sm:$0xf] %v331
                  %v333 = vld [vmem:[%s313 + $0x48] sm:$0xf]
                  %334 = vst [vmem:[%s314 + $0x24] sm:$0xf] %v333
                  %v335 = vld [vmem:[%s313 + $0x50] sm:$0xf]
                  %336 = vst [vmem:[%s314 + $0x28] sm:$0xf] %v335
                  %v337 = vld [vmem:[%s313 + $0x58] sm:$0xf]
                  %338 = vst [vmem:[%s314 + $0x2c] sm:$0xf] %v337
                  %v339 = vld [vmem:[%s313 + $0x60] sm:$0xf]
                  %340 = vst [vmem:[%s314 + $0x30] sm:$0xf] %v339
                  %v341 = vld [vmem:[%s313 + $0x68] sm:$0xf]
                  %342 = vst [vmem:[%s314 + $0x34] sm:$0xf] %v341
                  %v343 = vld [vmem:[%s313 + $0x70] sm:$0xf]
                  %344 = vst [vmem:[%s314 + $0x38] sm:$0xf] %v343
                  %v345 = vld [vmem:[%s313 + $0x78] sm:$0xf]
                  %346 = vst [vmem:[%s314 + $0x3c] sm:$0xf] %v345
                  %v347 = vld [vmem:[%s313 + $0x80] sm:$0xf]
                  %348 = vst [vmem:[%s314 + $0x40] sm:$0xf] %v347
                  %v349 = vld [vmem:[%s313 + $0x88] sm:$0xf]
                  %350 = vst [vmem:[%s314 + $0x44] sm:$0xf] %v349
                  %v351 = vld [vmem:[%s313 + $0x90] sm:$0xf]
                  %352 = vst [vmem:[%s314 + $0x48] sm:$0xf] %v351
                  %v353 = vld [vmem:[%s313 + $0x98] sm:$0xf]
                  %354 = vst [vmem:[%s314 + $0x4c] sm:$0xf] %v353
                  %v355 = vld [vmem:[%s313 + $0xa0] sm:$0xf]
                  %356 = vst [vmem:[%s314 + $0x50] sm:$0xf] %v355
                  %v357 = vld [vmem:[%s313 + $0xa8] sm:$0xf]
                  %358 = vst [vmem:[%s314 + $0x54] sm:$0xf] %v357
                  %v359 = vld [vmem:[%s313 + $0xb0] sm:$0xf]
                  %360 = vst [vmem:[%s314 + $0x58] sm:$0xf] %v359
                  %v361 = vld [vmem:[%s313 + $0xb8] sm:$0xf]
                  %362 = vst [vmem:[%s314 + $0x5c] sm:$0xf] %v361
                  %v363 = vld [vmem:[%s313 + $0xc0] sm:$0xf]
                  %364 = vst [vmem:[%s314 + $0x60] sm:$0xf] %v363
                  %v365 = vld [vmem:[%s313 + $0xc8] sm:$0xf]
                  %366 = vst [vmem:[%s314 + $0x64] sm:$0xf] %v365
                  %v367 = vld [vmem:[%s313 + $0xd0] sm:$0xf]
                  %368 = vst [vmem:[%s314 + $0x68] sm:$0xf] %v367
                  %v369 = vld [vmem:[%s313 + $0xd8] sm:$0xf]
                  %370 = vst [vmem:[%s314 + $0x6c] sm:$0xf] %v369
                  %v371 = vld [vmem:[%s313 + $0xe0] sm:$0xf]
                  %372 = vst [vmem:[%s314 + $0x70] sm:$0xf] %v371
                  %v373 = vld [vmem:[%s313 + $0xe8] sm:$0xf]
                  %374 = vst [vmem:[%s314 + $0x74] sm:$0xf] %v373
                  %v375 = vld [vmem:[%s313 + $0xf0] sm:$0xf]
                  %376 = vst [vmem:[%s314 + $0x78] sm:$0xf] %v375
                  %v377 = vld [vmem:[%s313 + $0xf8] sm:$0xf]
                  %378 = vst [vmem:[%s314 + $0x7c] sm:$0xf] %v377
                  %v379 = vld [vmem:[%s313 + $0x100] sm:$0xf]
                  %380 = vst [vmem:[%s314 + $0x80] sm:$0xf] %v379
                  %v381 = vld [vmem:[%s313 + $0x108] sm:$0xf]
                  %382 = vst [vmem:[%s314 + $0x84] sm:$0xf] %v381
                  %v383 = vld [vmem:[%s313 + $0x110] sm:$0xf]
                  %384 = vst [vmem:[%s314 + $0x88] sm:$0xf] %v383
                  %v385 = vld [vmem:[%s313 + $0x118] sm:$0xf]
                  %386 = vst [vmem:[%s314 + $0x8c] sm:$0xf] %v385
                  %v387 = vld [vmem:[%s313 + $0x120] sm:$0xf]
                  %388 = vst [vmem:[%s314 + $0x90] sm:$0xf] %v387
                  %v389 = vld [vmem:[%s313 + $0x128] sm:$0xf]
                  %390 = vst [vmem:[%s314 + $0x94] sm:$0xf] %v389
                  %v391 = vld [vmem:[%s313 + $0x130] sm:$0xf]
                  %392 = vst [vmem:[%s314 + $0x98] sm:$0xf] %v391
                  %v393 = vld [vmem:[%s313 + $0x138] sm:$0xf]
                  %394 = vst [vmem:[%s314 + $0x9c] sm:$0xf] %v393
                  %v395 = vld [vmem:[%s313 + $0x140] sm:$0xf]
                  %396 = vst [vmem:[%s314 + $0xa0] sm:$0xf] %v395
                  %v397 = vld [vmem:[%s313 + $0x148] sm:$0xf]
                  %398 = vst [vmem:[%s314 + $0xa4] sm:$0xf] %v397
                  %v399 = vld [vmem:[%s313 + $0x150] sm:$0xf]
                  %400 = vst [vmem:[%s314 + $0xa8] sm:$0xf] %v399
                  %v401 = vld [vmem:[%s313 + $0x158] sm:$0xf]
                  %402 = vst [vmem:[%s314 + $0xac] sm:$0xf] %v401
                  %v403 = vld [vmem:[%s313 + $0x160] sm:$0xf]
                  %404 = vst [vmem:[%s314 + $0xb0] sm:$0xf] %v403
                  %v405 = vld [vmem:[%s313 + $0x168] sm:$0xf]
                  %406 = vst [vmem:[%s314 + $0xb4] sm:$0xf] %v405
                  %v407 = vld [vmem:[%s313 + $0x170] sm:$0xf]
                  %408 = vst [vmem:[%s314 + $0xb8] sm:$0xf] %v407
                  %v409 = vld [vmem:[%s313 + $0x178] sm:$0xf]
                  %410 = vst [vmem:[%s314 + $0xbc] sm:$0xf] %v409
                  %v411 = vld [vmem:[%s313 + $0x180] sm:$0xf]
                  %412 = vst [vmem:[%s314 + $0xc0] sm:$0xf] %v411
                  %v413 = vld [vmem:[%s313 + $0x188] sm:$0xf]
                  %414 = vst [vmem:[%s314 + $0xc4] sm:$0xf] %v413
                  %v415 = vld [vmem:[%s313 + $0x190] sm:$0xf]
                  %416 = vst [vmem:[%s314 + $0xc8] sm:$0xf] %v415
                  %v417 = vld [vmem:[%s313 + $0x198] sm:$0xf]
                  %418 = vst [vmem:[%s314 + $0xcc] sm:$0xf] %v417
                  %v419 = vld [vmem:[%s313 + $0x1a0] sm:$0xf]
                  %420 = vst [vmem:[%s314 + $0xd0] sm:$0xf] %v419
                  %v421 = vld [vmem:[%s313 + $0x1a8] sm:$0xf]
                  %422 = vst [vmem:[%s314 + $0xd4] sm:$0xf] %v421
                  %v423 = vld [vmem:[%s313 + $0x1b0] sm:$0xf]
                  %424 = vst [vmem:[%s314 + $0xd8] sm:$0xf] %v423
                  %v425 = vld [vmem:[%s313 + $0x1b8] sm:$0xf]
                  %426 = vst [vmem:[%s314 + $0xdc] sm:$0xf] %v425
                  %v427 = vld [vmem:[%s313 + $0x1c0] sm:$0xf]
                  %428 = vst [vmem:[%s314 + $0xe0] sm:$0xf] %v427
                  %v429 = vld [vmem:[%s313 + $0x1c8] sm:$0xf]
                  %430 = vst [vmem:[%s314 + $0xe4] sm:$0xf] %v429
                  %v431 = vld [vmem:[%s313 + $0x1d0] sm:$0xf]
                  %432 = vst [vmem:[%s314 + $0xe8] sm:$0xf] %v431
                  %v433 = vld [vmem:[%s313 + $0x1d8] sm:$0xf]
                  %434 = vst [vmem:[%s314 + $0xec] sm:$0xf] %v433
                  %v435 = vld [vmem:[%s313 + $0x1e0] sm:$0xf]
                  %436 = vst [vmem:[%s314 + $0xf0] sm:$0xf] %v435
                  %v437 = vld [vmem:[%s313 + $0x1e8] sm:$0xf]
                  %438 = vst [vmem:[%s314 + $0xf4] sm:$0xf] %v437
                  %v439 = vld [vmem:[%s313 + $0x1f0] sm:$0xf]
                  %440 = vst [vmem:[%s314 + $0xf8] sm:$0xf] %v439
                  %v441 = vld [vmem:[%s313 + $0x1f8] sm:$0xf]
                  %442 = vst [vmem:[%s314 + $0xfc] sm:$0xf] %v441
                  %v443 = vld [vmem:[%s313 + $0x200] sm:$0xf]
                  %444 = vst [vmem:[%s314 + $0x100] sm:$0xf] %v443
                  %v445 = vld [vmem:[%s313 + $0x208] sm:$0xf]
                  %446 = vst [vmem:[%s314 + $0x104] sm:$0xf] %v445
                  %v447 = vld [vmem:[%s313 + $0x210] sm:$0xf]
                  %448 = vst [vmem:[%s314 + $0x108] sm:$0xf] %v447
                  %v449 = vld [vmem:[%s313 + $0x218] sm:$0xf]
                  %450 = vst [vmem:[%s314 + $0x10c] sm:$0xf] %v449
                  %v451 = vld [vmem:[%s313 + $0x220] sm:$0xf]
                  %452 = vst [vmem:[%s314 + $0x110] sm:$0xf] %v451
                  %v453 = vld [vmem:[%s313 + $0x228] sm:$0xf]
                  %454 = vst [vmem:[%s314 + $0x114] sm:$0xf] %v453
                  %v455 = vld [vmem:[%s313 + $0x230] sm:$0xf]
                  %456 = vst [vmem:[%s314 + $0x118] sm:$0xf] %v455
                  %v457 = vld [vmem:[%s313 + $0x238] sm:$0xf]
                  %458 = vst [vmem:[%s314 + $0x11c] sm:$0xf] %v457
                $region63: #{conv_trans_forward.16} parent=50 // loop_footer
                  %s312 = sadd.s32 1, %s308
                $region64: #{conv_trans_forward.16} parent=50 // loop_footer_branch
                  %307 = sbr.rel target = $region60
                $region65: #{conv_trans_forward.16} parent=50 // loop_exit
                  _
              $region51: #{conv_trans_forward.16} parent=35 // pred_fallthru
                _
            $region36: #{conv_trans_forward.16} parent=31 // pred_fallthru
              _
            // Predicated region
            $region37: #{conv_trans_forward.16} parent=31 // pred_check
              _
            $region38: #{conv_trans_forward.16} parent=31 // pred_check_branch
              %142 = sbr.rel (0) target = $region40
            $region39: #{conv_trans_forward.16} parent=31 // pred_region
              loop: start=0, step=1, limit=1
              $region41: #{conv_trans_forward.16} parent=39 // loop_pre_header
                _
              $region42: #{conv_trans_forward.16} parent=39 // loop_header
                %s145 = sphi 0, %s149
                %p146 = scmp.ge.s32.totalorder %s145, 1
                %s150 = sphi %s136, %s136
                %s151 = sphi %s134, %s134
              $region43: #{conv_trans_forward.16} parent=39 // loop_header_branch
                %148 = sbr.rel (%p146) target = $region47
              $region44: #{conv_trans_forward.16} parent=39 // loop_body
                %v152 = vld [vmem:[%s150] sm:$0xf]
                %153 = vst [vmem:[%s151] sm:$0xf] %v152
                %v154 = vld [vmem:[%s150 + $0x8] sm:$0xf]
                %155 = vst [vmem:[%s151 + $0x4] sm:$0xf] %v154
                %v156 = vld [vmem:[%s150 + $0x10] sm:$0xf]
                %157 = vst [vmem:[%s151 + $0x8] sm:$0xf] %v156
                %v158 = vld [vmem:[%s150 + $0x18] sm:$0xf]
                %159 = vst [vmem:[%s151 + $0xc] sm:$0xf] %v158
                %v160 = vld [vmem:[%s150 + $0x20] sm:$0xf]
                %161 = vst [vmem:[%s151 + $0x10] sm:$0xf] %v160
                %v162 = vld [vmem:[%s150 + $0x28] sm:$0xf]
                %163 = vst [vmem:[%s151 + $0x14] sm:$0xf] %v162
                %v164 = vld [vmem:[%s150 + $0x30] sm:$0xf]
                %165 = vst [vmem:[%s151 + $0x18] sm:$0xf] %v164
                %v166 = vld [vmem:[%s150 + $0x38] sm:$0xf]
                %167 = vst [vmem:[%s151 + $0x1c] sm:$0xf] %v166
                %v168 = vld [vmem:[%s150 + $0x40] sm:$0xf]
                %169 = vst [vmem:[%s151 + $0x20] sm:$0xf] %v168
                %v170 = vld [vmem:[%s150 + $0x48] sm:$0xf]
                %171 = vst [vmem:[%s151 + $0x24] sm:$0xf] %v170
                %v172 = vld [vmem:[%s150 + $0x50] sm:$0xf]
                %173 = vst [vmem:[%s151 + $0x28] sm:$0xf] %v172
                %v174 = vld [vmem:[%s150 + $0x58] sm:$0xf]
                %175 = vst [vmem:[%s151 + $0x2c] sm:$0xf] %v174
                %v176 = vld [vmem:[%s150 + $0x60] sm:$0xf]
                %177 = vst [vmem:[%s151 + $0x30] sm:$0xf] %v176
                %v178 = vld [vmem:[%s150 + $0x68] sm:$0xf]
                %179 = vst [vmem:[%s151 + $0x34] sm:$0xf] %v178
                %v180 = vld [vmem:[%s150 + $0x70] sm:$0xf]
                %181 = vst [vmem:[%s151 + $0x38] sm:$0xf] %v180
                %v182 = vld [vmem:[%s150 + $0x78] sm:$0xf]
                %183 = vst [vmem:[%s151 + $0x3c] sm:$0xf] %v182
                %v184 = vld [vmem:[%s150 + $0x80] sm:$0xf]
                %185 = vst [vmem:[%s151 + $0x40] sm:$0xf] %v184
                %v186 = vld [vmem:[%s150 + $0x88] sm:$0xf]
                %187 = vst [vmem:[%s151 + $0x44] sm:$0xf] %v186
                %v188 = vld [vmem:[%s150 + $0x90] sm:$0xf]
                %189 = vst [vmem:[%s151 + $0x48] sm:$0xf] %v188
                %v190 = vld [vmem:[%s150 + $0x98] sm:$0xf]
                %191 = vst [vmem:[%s151 + $0x4c] sm:$0xf] %v190
                %v192 = vld [vmem:[%s150 + $0xa0] sm:$0xf]
                %193 = vst [vmem:[%s151 + $0x50] sm:$0xf] %v192
                %v194 = vld [vmem:[%s150 + $0xa8] sm:$0xf]
                %195 = vst [vmem:[%s151 + $0x54] sm:$0xf] %v194
                %v196 = vld [vmem:[%s150 + $0xb0] sm:$0xf]
                %197 = vst [vmem:[%s151 + $0x58] sm:$0xf] %v196
                %v198 = vld [vmem:[%s150 + $0xb8] sm:$0xf]
                %199 = vst [vmem:[%s151 + $0x5c] sm:$0xf] %v198
                %v200 = vld [vmem:[%s150 + $0xc0] sm:$0xf]
                %201 = vst [vmem:[%s151 + $0x60] sm:$0xf] %v200
                %v202 = vld [vmem:[%s150 + $0xc8] sm:$0xf]
                %203 = vst [vmem:[%s151 + $0x64] sm:$0xf] %v202
                %v204 = vld [vmem:[%s150 + $0xd0] sm:$0xf]
                %205 = vst [vmem:[%s151 + $0x68] sm:$0xf] %v204
                %v206 = vld [vmem:[%s150 + $0xd8] sm:$0xf]
                %207 = vst [vmem:[%s151 + $0x6c] sm:$0xf] %v206
                %v208 = vld [vmem:[%s150 + $0xe0] sm:$0xf]
                %209 = vst [vmem:[%s151 + $0x70] sm:$0xf] %v208
                %v210 = vld [vmem:[%s150 + $0xe8] sm:$0xf]
                %211 = vst [vmem:[%s151 + $0x74] sm:$0xf] %v210
                %v212 = vld [vmem:[%s150 + $0xf0] sm:$0xf]
                %213 = vst [vmem:[%s151 + $0x78] sm:$0xf] %v212
                %v214 = vld [vmem:[%s150 + $0xf8] sm:$0xf]
                %215 = vst [vmem:[%s151 + $0x7c] sm:$0xf] %v214
                %v216 = vld [vmem:[%s150 + $0x100] sm:$0xf]
                %217 = vst [vmem:[%s151 + $0x80] sm:$0xf] %v216
                %v218 = vld [vmem:[%s150 + $0x108] sm:$0xf]
                %219 = vst [vmem:[%s151 + $0x84] sm:$0xf] %v218
                %v220 = vld [vmem:[%s150 + $0x110] sm:$0xf]
                %221 = vst [vmem:[%s151 + $0x88] sm:$0xf] %v220
                %v222 = vld [vmem:[%s150 + $0x118] sm:$0xf]
                %223 = vst [vmem:[%s151 + $0x8c] sm:$0xf] %v222
                %v224 = vld [vmem:[%s150 + $0x120] sm:$0xf]
                %225 = vst [vmem:[%s151 + $0x90] sm:$0xf] %v224
                %v226 = vld [vmem:[%s150 + $0x128] sm:$0xf]
                %227 = vst [vmem:[%s151 + $0x94] sm:$0xf] %v226
                %v228 = vld [vmem:[%s150 + $0x130] sm:$0xf]
                %229 = vst [vmem:[%s151 + $0x98] sm:$0xf] %v228
                %v230 = vld [vmem:[%s150 + $0x138] sm:$0xf]
                %231 = vst [vmem:[%s151 + $0x9c] sm:$0xf] %v230
                %v232 = vld [vmem:[%s150 + $0x140] sm:$0xf]
                %233 = vst [vmem:[%s151 + $0xa0] sm:$0xf] %v232
                %v234 = vld [vmem:[%s150 + $0x148] sm:$0xf]
                %235 = vst [vmem:[%s151 + $0xa4] sm:$0xf] %v234
                %v236 = vld [vmem:[%s150 + $0x150] sm:$0xf]
                %237 = vst [vmem:[%s151 + $0xa8] sm:$0xf] %v236
                %v238 = vld [vmem:[%s150 + $0x158] sm:$0xf]
                %239 = vst [vmem:[%s151 + $0xac] sm:$0xf] %v238
                %v240 = vld [vmem:[%s150 + $0x160] sm:$0xf]
                %241 = vst [vmem:[%s151 + $0xb0] sm:$0xf] %v240
                %v242 = vld [vmem:[%s150 + $0x168] sm:$0xf]
                %243 = vst [vmem:[%s151 + $0xb4] sm:$0xf] %v242
                %v244 = vld [vmem:[%s150 + $0x170] sm:$0xf]
                %245 = vst [vmem:[%s151 + $0xb8] sm:$0xf] %v244
                %v246 = vld [vmem:[%s150 + $0x178] sm:$0xf]
                %247 = vst [vmem:[%s151 + $0xbc] sm:$0xf] %v246
                %v248 = vld [vmem:[%s150 + $0x180] sm:$0xf]
                %249 = vst [vmem:[%s151 + $0xc0] sm:$0xf] %v248
                %v250 = vld [vmem:[%s150 + $0x188] sm:$0xf]
                %251 = vst [vmem:[%s151 + $0xc4] sm:$0xf] %v250
                %v252 = vld [vmem:[%s150 + $0x190] sm:$0xf]
                %253 = vst [vmem:[%s151 + $0xc8] sm:$0xf] %v252
                %v254 = vld [vmem:[%s150 + $0x198] sm:$0xf]
                %255 = vst [vmem:[%s151 + $0xcc] sm:$0xf] %v254
                %v256 = vld [vmem:[%s150 + $0x1a0] sm:$0xf]
                %257 = vst [vmem:[%s151 + $0xd0] sm:$0xf] %v256
                %v258 = vld [vmem:[%s150 + $0x1a8] sm:$0xf]
                %259 = vst [vmem:[%s151 + $0xd4] sm:$0xf] %v258
                %v260 = vld [vmem:[%s150 + $0x1b0] sm:$0xf]
                %261 = vst [vmem:[%s151 + $0xd8] sm:$0xf] %v260
                %v262 = vld [vmem:[%s150 + $0x1b8] sm:$0xf]
                %263 = vst [vmem:[%s151 + $0xdc] sm:$0xf] %v262
                %v264 = vld [vmem:[%s150 + $0x1c0] sm:$0xf]
                %265 = vst [vmem:[%s151 + $0xe0] sm:$0xf] %v264
                %v266 = vld [vmem:[%s150 + $0x1c8] sm:$0xf]
                %267 = vst [vmem:[%s151 + $0xe4] sm:$0xf] %v266
                %v268 = vld [vmem:[%s150 + $0x1d0] sm:$0xf]
                %269 = vst [vmem:[%s151 + $0xe8] sm:$0xf] %v268
                %v270 = vld [vmem:[%s150 + $0x1d8] sm:$0xf]
                %271 = vst [vmem:[%s151 + $0xec] sm:$0xf] %v270
                %v272 = vld [vmem:[%s150 + $0x1e0] sm:$0xf]
                %273 = vst [vmem:[%s151 + $0xf0] sm:$0xf] %v272
                %v274 = vld [vmem:[%s150 + $0x1e8] sm:$0xf]
                %275 = vst [vmem:[%s151 + $0xf4] sm:$0xf] %v274
                %v276 = vld [vmem:[%s150 + $0x1f0] sm:$0xf]
                %277 = vst [vmem:[%s151 + $0xf8] sm:$0xf] %v276
                %v278 = vld [vmem:[%s150 + $0x1f8] sm:$0xf]
                %279 = vst [vmem:[%s151 + $0xfc] sm:$0xf] %v278
                %v280 = vld [vmem:[%s150 + $0x200] sm:$0xf]
                %281 = vst [vmem:[%s151 + $0x100] sm:$0xf] %v280
                %v282 = vld [vmem:[%s150 + $0x208] sm:$0xf]
                %283 = vst [vmem:[%s151 + $0x104] sm:$0xf] %v282
                %v284 = vld [vmem:[%s150 + $0x210] sm:$0xf]
                %285 = vst [vmem:[%s151 + $0x108] sm:$0xf] %v284
                %v286 = vld [vmem:[%s150 + $0x218] sm:$0xf]
                %287 = vst [vmem:[%s151 + $0x10c] sm:$0xf] %v286
                %v288 = vld [vmem:[%s150 + $0x220] sm:$0xf]
                %289 = vst [vmem:[%s151 + $0x110] sm:$0xf] %v288
                %v290 = vld [vmem:[%s150 + $0x228] sm:$0xf]
                %291 = vst [vmem:[%s151 + $0x114] sm:$0xf] %v290
                %v292 = vld [vmem:[%s150 + $0x230] sm:$0xf]
                %293 = vst [vmem:[%s151 + $0x118] sm:$0xf] %v292
                %v294 = vld [vmem:[%s150 + $0x238] sm:$0xf]
                %295 = vst [vmem:[%s151 + $0x11c] sm:$0xf] %v294
              $region45: #{conv_trans_forward.16} parent=39 // loop_footer
                %s149 = sadd.s32 1, %s145
              $region46: #{conv_trans_forward.16} parent=39 // loop_footer_branch
                %144 = sbr.rel target = $region42
              $region47: #{conv_trans_forward.16} parent=39 // loop_exit
                _
            $region40: #{conv_trans_forward.16} parent=31 // pred_fallthru
              _
          $region32: #{conv_trans_forward.16} parent=27 // pred_fallthru
            _
          %459 = vnop
        $region28: #{conv_trans_forward.16} parent=23 // pred_fallthru
          _
      $region24: #{conv_trans_forward.16} parent=5 // pred_fallthru
        _
      %p460 = scmp.le.s32.totalorder 1, %s9
      %p461 = scmp.lt.s32.totalorder %s9, 3
      %p462 = pnand %p460, %p461
      %p463 = pneg %p462
      // Predicated region
      $region66: #{conv_trans_forward.16} parent=5 // pred_check
        _
      $region67: #{conv_trans_forward.16} parent=5 // pred_check_branch
        %465 = sbr.rel (%p462) target = $region69
      $region68: #{conv_trans_forward.16} parent=5 // pred_region
        %s466 = ssub.s32 %s9, 1
        %s467 = sand.u32 %s43, 1
        %s468 = sand.u32 %s43, 1
        %s469 = smul.addr %s468, 288
        %s470 = scalar_lea.vmem [#allocation2], %s469
        // Predicated region
        $region70: #{conv_trans_forward.16} parent=68 // pred_check
          %p471 = pneg %p56
        $region71: #{conv_trans_forward.16} parent=68 // pred_check_branch
          %473 = sbr.rel (%p471) target = $region73
        $region72: #{conv_trans_forward.16} parent=68 // pred_region
          _
        $region73: #{conv_trans_forward.16} parent=68 // pred_fallthru
          _
        %p474 = pneg %p30
        %p475 = pneg %p27
        %s476 = sand.u32 %s43, 1
        %s477 = sand.u32 %s43, 1
        %s478 = smul.addr %s477, 288
        %s479 = scalar_lea.vmem [#allocation2], %s478
        %p480 = pneg %p56
        %p481 = pneg %p53
        %p482 = pneg %p77
        %p483 = pneg %p74
        %p484 = pneg %p103
        %p485 = pneg %p100
        %s486 = sand.u32 %s90, 1
        %s487 = sand.u32 %s90, 1
        %s488 = smul.addr %s487, 32
        %s489 = scalar_lea.vmem [#allocation3], %s488
        %v491 = vld [vmem:[%s0] sm:$0xff]
        %v492 = vld [vmem:[%s0 + $0x8] sm:$0xff]
        %v493 = vld [vmem:[%s0 + $0x10] sm:$0xf]
        %v494 = vld [vmem:[%s0 + $0x14] sm:$0xff]
        %v495 = vld [vmem:[%s0 + $0x1c] sm:$0xff]
        %v496 = vld [vmem:[%s0 + $0x24] sm:$0xf]
        %v497 = vld [vmem:[%s0 + $0x28] sm:$0xff]
        %v498 = vld [vmem:[%s0 + $0x30] sm:$0xff]
        %v499 = vld [vmem:[%s0 + $0x38] sm:$0xf]
        %v500 = vld [vmem:[%s0 + $0x3c] sm:$0xff]
        %v501 = vld [vmem:[%s0 + $0x44] sm:$0xff]
        %v502 = vld [vmem:[%s0 + $0x4c] sm:$0xf]
        %v503 = vld [vmem:[%s470] sm:$0xf]
        %v504 = vld [vmem:[%s470 + $0x4] sm:$0xf]
        %v505 = vld [vmem:[%s470 + $0x8] sm:$0xf]
        %v506 = vld [vmem:[%s470 + $0xc] sm:$0xf]
        %v507 = vld [vmem:[%s470 + $0x10] sm:$0xf]
        %v508 = vld [vmem:[%s470 + $0x14] sm:$0xf]
        %v509 = vld [vmem:[%s470 + $0x18] sm:$0xf]
        %v510 = vld [vmem:[%s470 + $0x1c] sm:$0xf]
        %v511 = vld [vmem:[%s470 + $0x20] sm:$0xf]
        %v512 = vld [vmem:[%s470 + $0x24] sm:$0xf]
        %v513 = vld [vmem:[%s470 + $0x28] sm:$0xf]
        %v514 = vld [vmem:[%s470 + $0x2c] sm:$0xf]
        %v515 = vld [vmem:[%s470 + $0x30] sm:$0xf]
        %v516 = vld [vmem:[%s470 + $0x34] sm:$0xf]
        %v517 = vld [vmem:[%s470 + $0x38] sm:$0xf]
        %v518 = vld [vmem:[%s470 + $0x3c] sm:$0xf]
        %v519 = vld [vmem:[%s470 + $0x40] sm:$0xf]
        %v520 = vld [vmem:[%s470 + $0x44] sm:$0xf]
        %v521 = vld [vmem:[%s470 + $0x48] sm:$0xf]
        %v522 = vld [vmem:[%s470 + $0x4c] sm:$0xf]
        %v523 = vld [vmem:[%s470 + $0x50] sm:$0xf]
        %v524 = vld [vmem:[%s470 + $0x54] sm:$0xf]
        %v525 = vld [vmem:[%s470 + $0x58] sm:$0xf]
        %v526 = vld [vmem:[%s470 + $0x5c] sm:$0xf]
        %v527 = vld [vmem:[%s470 + $0x60] sm:$0xf]
        %v528 = vld [vmem:[%s470 + $0x64] sm:$0xf]
        %v529 = vld [vmem:[%s470 + $0x68] sm:$0xf]
        %v530 = vld [vmem:[%s470 + $0x6c] sm:$0xf]
        %v531 = vld [vmem:[%s470 + $0x70] sm:$0xf]
        %v532 = vld [vmem:[%s470 + $0x74] sm:$0xf]
        %v533 = vld [vmem:[%s470 + $0x78] sm:$0xf]
        %v534 = vld [vmem:[%s470 + $0x7c] sm:$0xf]
        %v535 = vld [vmem:[%s470 + $0x80] sm:$0xf]
        %v536 = vld [vmem:[%s470 + $0x84] sm:$0xf]
        %v537 = vld [vmem:[%s470 + $0x88] sm:$0xf]
        %v538 = vld [vmem:[%s470 + $0x8c] sm:$0xf]
        %v539 = vld [vmem:[%s470 + $0x90] sm:$0xf]
        %v540 = vld [vmem:[%s470 + $0x94] sm:$0xf]
        %v541 = vld [vmem:[%s470 + $0x98] sm:$0xf]
        %v542 = vld [vmem:[%s470 + $0x9c] sm:$0xf]
        %v543 = vld [vmem:[%s470 + $0xa0] sm:$0xf]
        %v544 = vld [vmem:[%s470 + $0xa4] sm:$0xf]
        %v545 = vld [vmem:[%s470 + $0xa8] sm:$0xf]
        %v546 = vld [vmem:[%s470 + $0xac] sm:$0xf]
        %v547 = vld [vmem:[%s470 + $0xb0] sm:$0xf]
        %v548 = vld [vmem:[%s470 + $0xb4] sm:$0xf]
        %v549 = vld [vmem:[%s470 + $0xb8] sm:$0xf]
        %v550 = vld [vmem:[%s470 + $0xbc] sm:$0xf]
        %v551 = vld [vmem:[%s470 + $0xc0] sm:$0xf]
        %v552 = vld [vmem:[%s470 + $0xc4] sm:$0xf]
        %v553 = vld [vmem:[%s470 + $0xc8] sm:$0xf]
        %v554 = vld [vmem:[%s470 + $0xcc] sm:$0xf]
        %v555 = vld [vmem:[%s470 + $0xd0] sm:$0xf]
        %v556 = vld [vmem:[%s470 + $0xd4] sm:$0xf]
        %v557 = vld [vmem:[%s470 + $0xd8] sm:$0xf]
        %v558 = vld [vmem:[%s470 + $0xdc] sm:$0xf]
        %v559 = vld [vmem:[%s470 + $0xe0] sm:$0xf]
        %v560 = vld [vmem:[%s470 + $0xe4] sm:$0xf]
        %v561 = vld [vmem:[%s470 + $0xe8] sm:$0xf]
        %v562 = vld [vmem:[%s470 + $0xec] sm:$0xf]
        %v563 = vld [vmem:[%s470 + $0xf0] sm:$0xf]
        %v564 = vld [vmem:[%s470 + $0xf4] sm:$0xf]
        %v565 = vld [vmem:[%s470 + $0xf8] sm:$0xf]
        %v566 = vld [vmem:[%s470 + $0xfc] sm:$0xf]
        %v567 = vld [vmem:[%s470 + $0x100] sm:$0xf]
        %v568 = vld [vmem:[%s470 + $0x104] sm:$0xf]
        %v569 = vld [vmem:[%s470 + $0x108] sm:$0xf]
        %v570 = vld [vmem:[%s470 + $0x10c] sm:$0xf]
        %v571 = vld [vmem:[%s470 + $0x110] sm:$0xf]
        %v572 = vld [vmem:[%s470 + $0x114] sm:$0xf]
        %v573 = vld [vmem:[%s470 + $0x118] sm:$0xf]
        %v574 = vld [vmem:[%s470 + $0x11c] sm:$0xf]
        %v575 = vld [vmem:[%s2] sm:$0xff]
        %v576 = vld [vmem:[%s2 + $0x8] sm:$0xff]
        %v577 = vld [vmem:[%s2 + $0x10] sm:$0xff]
        %v578 = vld [vmem:[%s2 + $0x18] sm:$0xff]
        %580 = vset.pattern.permute.xlu0 0
        %581 = vperm.xlu0 %580, %v575
        %v582 = vpop.permute.xlu0 %581
        %585 = vset.pattern.permute.xlu0 0
        %586 = vperm.xlu0 %585, %v576
        %v587 = vpop.permute.xlu0 %586
        %590 = vset.pattern.permute.xlu0 0
        %591 = vperm.xlu0 %590, %v577
        %v592 = vpop.permute.xlu0 %591
        %595 = vset.pattern.permute.xlu0 0
        %596 = vperm.xlu0 %595, %v578
        %v597 = vpop.permute.xlu0 %596
        %v611 = vunpack.c.l.b16 %v491
        %v612 = vunpack.c.h.b16 %v491
        %v613 = vunpack.c.l.b16 %v492
        %v614 = vunpack.c.h.b16 %v492
        %v615 = vunpack.c.l.b16 %v493
        %v616 = vunpack.c.l.b16 %v494
        %v617 = vunpack.c.h.b16 %v494
        %v618 = vunpack.c.l.b16 %v495
        %v619 = vunpack.c.h.b16 %v495
        %v620 = vunpack.c.l.b16 %v496
        %v621 = vunpack.c.l.b16 %v497
        %v622 = vunpack.c.h.b16 %v497
        %v623 = vunpack.c.l.b16 %v498
        %v624 = vunpack.c.h.b16 %v498
        %v625 = vunpack.c.l.b16 %v499
        %v626 = vunpack.c.l.b16 %v500
        %v627 = vunpack.c.h.b16 %v500
        %v628 = vunpack.c.l.b16 %v501
        %v629 = vunpack.c.h.b16 %v501
        %v630 = vunpack.c.l.b16 %v502
        %v631 = vpack.c.b16 %v616, %v611
        %v632 = vpack.c.b16 %v617, %v612
        %v633 = vpack.c.b16 %v618, %v613
        %v634 = vpack.c.b16 %v619, %v614
        %v635 = vpack.c.b16 %v620, %v615
        %v636 = vpack.c.b16 %v626, %v621
        %v637 = vpack.c.b16 %v627, %v622
        %v638 = vpack.c.b16 %v628, %v623
        %v639 = vpack.c.b16 %v629, %v624
        %v640 = vpack.c.b16 %v630, %v625
        %v721 = vunpack.c.l.b16 %v503
        %v722 = vunpack.c.l.b16 %v504
        %v723 = vunpack.c.l.b16 %v505
        %v724 = vunpack.c.l.b16 %v506
        %v725 = vunpack.c.l.b16 %v507
        %v726 = vunpack.c.l.b16 %v508
        %v727 = vunpack.c.l.b16 %v509
        %v728 = vunpack.c.l.b16 %v510
        %v729 = vunpack.c.l.b16 %v511
        %v730 = vunpack.c.l.b16 %v512
        %v731 = vunpack.c.l.b16 %v513
        %v732 = vunpack.c.l.b16 %v514
        %v733 = vunpack.c.l.b16 %v515
        %v734 = vunpack.c.l.b16 %v516
        %v735 = vunpack.c.l.b16 %v517
        %v736 = vunpack.c.l.b16 %v518
        %v737 = vunpack.c.l.b16 %v519
        %v738 = vunpack.c.l.b16 %v520
        %v739 = vunpack.c.l.b16 %v521
        %v740 = vunpack.c.l.b16 %v522
        %v741 = vunpack.c.l.b16 %v523
        %v742 = vunpack.c.l.b16 %v524
        %v743 = vunpack.c.l.b16 %v525
        %v744 = vunpack.c.l.b16 %v526
        %v745 = vunpack.c.l.b16 %v527
        %v746 = vunpack.c.l.b16 %v528
        %v747 = vunpack.c.l.b16 %v529
        %v748 = vunpack.c.l.b16 %v530
        %v749 = vunpack.c.l.b16 %v531
        %v750 = vunpack.c.l.b16 %v532
        %v751 = vunpack.c.l.b16 %v533
        %v752 = vunpack.c.l.b16 %v534
        %v753 = vunpack.c.l.b16 %v535
        %v754 = vunpack.c.l.b16 %v536
        %v755 = vunpack.c.l.b16 %v537
        %v756 = vunpack.c.l.b16 %v538
        %v757 = vunpack.c.l.b16 %v539
        %v758 = vunpack.c.l.b16 %v540
        %v759 = vunpack.c.l.b16 %v541
        %v760 = vunpack.c.l.b16 %v542
        %v761 = vunpack.c.l.b16 %v543
        %v762 = vunpack.c.l.b16 %v544
        %v763 = vunpack.c.l.b16 %v545
        %v764 = vunpack.c.l.b16 %v546
        %v765 = vunpack.c.l.b16 %v547
        %v766 = vunpack.c.l.b16 %v548
        %v767 = vunpack.c.l.b16 %v549
        %v768 = vunpack.c.l.b16 %v550
        %v769 = vunpack.c.l.b16 %v551
        %v770 = vunpack.c.l.b16 %v552
        %v771 = vunpack.c.l.b16 %v553
        %v772 = vunpack.c.l.b16 %v554
        %v773 = vunpack.c.l.b16 %v555
        %v774 = vunpack.c.l.b16 %v556
        %v775 = vunpack.c.l.b16 %v557
        %v776 = vunpack.c.l.b16 %v558
        %v777 = vunpack.c.l.b16 %v559
        %v778 = vunpack.c.l.b16 %v560
        %v779 = vunpack.c.l.b16 %v561
        %v780 = vunpack.c.l.b16 %v562
        %v781 = vunpack.c.l.b16 %v563
        %v782 = vunpack.c.l.b16 %v564
        %v783 = vunpack.c.l.b16 %v565
        %v784 = vunpack.c.l.b16 %v566
        %v785 = vunpack.c.l.b16 %v567
        %v786 = vunpack.c.l.b16 %v568
        %v787 = vunpack.c.l.b16 %v569
        %v788 = vunpack.c.l.b16 %v570
        %v789 = vunpack.c.l.b16 %v571
        %v790 = vunpack.c.l.b16 %v572
        %v791 = vunpack.c.l.b16 %v573
        %v792 = vunpack.c.l.b16 %v574
        %v793 = vpack.c.b16 %v722, %v721
        %v794 = vpack.c.b16 %v724, %v723
        %v795 = vpack.c.b16 %v726, %v725
        %v796 = vpack.c.b16 %v728, %v727
        %v797 = vpack.c.b16 %v730, %v729
        %v798 = vpack.c.b16 %v732, %v731
        %v799 = vpack.c.b16 %v734, %v733
        %v800 = vpack.c.b16 %v736, %v735
        %v801 = vpack.c.b16 %v738, %v737
        %v802 = vpack.c.b16 %v740, %v739
        %v803 = vpack.c.b16 %v742, %v741
        %v804 = vpack.c.b16 %v744, %v743
        %v805 = vpack.c.b16 %v746, %v745
        %v806 = vpack.c.b16 %v748, %v747
        %v807 = vpack.c.b16 %v750, %v749
        %v808 = vpack.c.b16 %v752, %v751
        %v809 = vpack.c.b16 %v754, %v753
        %v810 = vpack.c.b16 %v756, %v755
        %v811 = vpack.c.b16 %v758, %v757
        %v812 = vpack.c.b16 %v760, %v759
        %v813 = vpack.c.b16 %v762, %v761
        %v814 = vpack.c.b16 %v764, %v763
        %v815 = vpack.c.b16 %v766, %v765
        %v816 = vpack.c.b16 %v768, %v767
        %v817 = vpack.c.b16 %v770, %v769
        %v818 = vpack.c.b16 %v772, %v771
        %v819 = vpack.c.b16 %v774, %v773
        %v820 = vpack.c.b16 %v776, %v775
        %v821 = vpack.c.b16 %v778, %v777
        %v822 = vpack.c.b16 %v780, %v779
        %v823 = vpack.c.b16 %v782, %v781
        %v824 = vpack.c.b16 %v784, %v783
        %v825 = vpack.c.b16 %v786, %v785
        %v826 = vpack.c.b16 %v788, %v787
        %v827 = vpack.c.b16 %v790, %v789
        %v828 = vpack.c.b16 %v792, %v791
        %vm865 = vcmask 523264
        %v867 = vsel %vm865, %v635, 0
        %v870 = vsel %vm865, %v640, 0
        %872 = vmatprep.subr.bf16.mxu0 0
        %873 = vmatpush1.bf16.msra.mxu0 %v793
        %874 = vmatprep.subr.bf16.mxu0 0
        %875 = vmatpush1.bf16.msra.mxu0 %v794
        %876 = vmatprep.subr.bf16.mxu0 0
        %877 = vmatpush1.bf16.msra.mxu0 %v795
        %878 = vmatprep.subr.bf16.mxu0 0
        %879 = vmatpush1.bf16.msra.mxu0 %v796
        %880 = vmatprep.subr.bf16.mxu0 0
        %881 = vmatpush1.bf16.msra.mxu0 %v797
        %882 = vmatprep.subr.bf16.mxu0 0
        %883 = vmatpush1.bf16.msra.mxu0 %v798
        %884 = vmatprep.subr.bf16.mxu0 0
        %885 = vmatpush1.bf16.msra.mxu0 %v799
        %886 = vmatprep.subr.bf16.mxu0 0
        %887 = vmatpush1.bf16.msra.mxu0 %v800
        %888 = vmatprep.subr.bf16.mxu0 0
        %889 = vmatpush1.bf16.msra.mxu0 %v801
        %890 = vmatprep.subr.bf16.mxu0 0
        %891 = vmatpush1.bf16.msra.mxu0 %v802
        %892 = vmatprep.subr.bf16.mxu0 0
        %893 = vmatpush1.bf16.msra.mxu0 %v803
        %894 = vmatprep.subr.bf16.mxu0 0
        %895 = vmatpush1.bf16.msra.mxu0 %v804
        %896 = vmatprep.subr.bf16.mxu0 0
        %897 = vmatpush1.bf16.msra.mxu0 %v805
        %898 = vmatprep.subr.bf16.mxu0 0
        %899 = vmatpush1.bf16.msra.mxu0 %v806
        %900 = vmatprep.subr.bf16.mxu0 0
        %901 = vmatpush1.bf16.msra.mxu0 %v807
        %902 = vmatprep.subr.bf16.mxu0 0
        %903 = vmatpush1.bf16.msra.mxu0 %v808
        %904 = vmatprep.mubr.bf16.mxu0 %v632
        %905 = vmatmul.mubr.bf16.gmra.mrb[0].mxu0 %v631
        %v906 = vpop.f32.mrb[0].mxu0
        %v907 = vadd.f32 %v582, %v906
        %v908 = vpop.f32.mrb[0].mxu0
        %v909 = vpop.f32.mrb[0].mxu0
        %v910 = vadd.f32 %v587, %v909
        %v911 = vpop.f32.mrb[0].mxu0
        %912 = vmatprep.mubr.bf16.mxu0 %v637
        %913 = vmatmul.mubr.bf16.gmra.mrb[0].mxu0 %v636
        %v914 = vpop.f32.mrb[0].mxu0
        %v915 = vadd.f32 %v592, %v914
        %v916 = vpop.f32.mrb[0].mxu0
        %v917 = vpop.f32.mrb[0].mxu0
        %v918 = vadd.f32 %v597, %v917
        %v919 = vpop.f32.mrb[0].mxu0
        %920 = vdwg.mxu0
        %921 = vmatprep.subr.bf16.mxu0 0
        %922 = vmatpush1.bf16.msra.mxu0 %v809
        %923 = vmatprep.subr.bf16.mxu0 0
        %924 = vmatpush1.bf16.msra.mxu0 %v810
        %925 = vmatprep.subr.bf16.mxu0 0
        %926 = vmatpush1.bf16.msra.mxu0 %v811
        %927 = vmatprep.subr.bf16.mxu0 0
        %928 = vmatpush1.bf16.msra.mxu0 %v812
        %929 = vmatprep.subr.bf16.mxu0 0
        %930 = vmatpush1.bf16.msra.mxu0 %v813
        %931 = vmatprep.subr.bf16.mxu0 0
        %932 = vmatpush1.bf16.msra.mxu0 %v814
        %933 = vmatprep.subr.bf16.mxu0 0
        %934 = vmatpush1.bf16.msra.mxu0 %v815
        %935 = vmatprep.subr.bf16.mxu0 0
        %936 = vmatpush1.bf16.msra.mxu0 %v816
        %937 = vmatprep.subr.bf16.mxu0 0
        %938 = vmatpush1.bf16.msra.mxu0 %v817
        %939 = vmatprep.subr.bf16.mxu0 0
        %940 = vmatpush1.bf16.msra.mxu0 %v818
        %941 = vmatprep.subr.bf16.mxu0 0
        %942 = vmatpush1.bf16.msra.mxu0 %v819
        %943 = vmatprep.subr.bf16.mxu0 0
        %944 = vmatpush1.bf16.msra.mxu0 %v820
        %945 = vmatprep.subr.bf16.mxu0 0
        %946 = vmatpush1.bf16.msra.mxu0 %v821
        %947 = vmatprep.subr.bf16.mxu0 0
        %948 = vmatpush1.bf16.msra.mxu0 %v822
        %949 = vmatprep.subr.bf16.mxu0 0
        %950 = vmatpush1.bf16.msra.mxu0 %v823
        %951 = vmatprep.subr.bf16.mxu0 0
        %952 = vmatpush1.bf16.msra.mxu0 %v824
        %953 = vmatprep.mubr.bf16.mxu0 %v634
        %954 = vmatmul.mubr.bf16.gmra.mrb[0].mxu0 %v633
        %v955 = vpop.f32.mrb[0].mxu0
        %v956 = vadd.f32 %v907, %v955
        %v957 = vpop.f32.mrb[0].mxu0
        %v958 = vpop.f32.mrb[0].mxu0
        %v959 = vadd.f32 %v910, %v958
        %v960 = vpop.f32.mrb[0].mxu0
        %961 = vmatprep.mubr.bf16.mxu0 %v639
        %962 = vmatmul.mubr.bf16.gmra.mrb[0].mxu0 %v638
        %v963 = vpop.f32.mrb[0].mxu0
        %v964 = vadd.f32 %v915, %v963
        %v965 = vpop.f32.mrb[0].mxu0
        %v966 = vpop.f32.mrb[0].mxu0
        %v967 = vadd.f32 %v918, %v966
        %v968 = vpop.f32.mrb[0].mxu0
        %969 = vdwg.mxu0
        %970 = vmatprep.subr.bf16.mxu0 0
        %971 = vmatpush1.bf16.msra.mxu0 %v825
        %972 = vmatprep.subr.bf16.mxu0 0
        %973 = vmatpush1.bf16.msra.mxu0 %v826
        %974 = vmatprep.subr.bf16.mxu0 0
        %975 = vmatpush1.bf16.msra.mxu0 %v827
        %976 = vmatprep.subr.bf16.mxu0 0
        %977 = vmatpush1.bf16.msra.mxu0 %v828
        %978 = vmatprep.subr.bf16.mxu0 0
        %979 = vmatpush1.bf16.msra.mxu0 0
        %980 = vmatprep.subr.bf16.mxu0 0
        %981 = vmatpush1.bf16.msra.mxu0 0
        %982 = vmatprep.subr.bf16.mxu0 0
        %983 = vmatpush1.bf16.msra.mxu0 0
        %984 = vmatprep.subr.bf16.mxu0 0
        %985 = vmatpush1.bf16.msra.mxu0 0
        %986 = vmatprep.subr.bf16.mxu0 0
        %987 = vmatpush1.bf16.msra.mxu0 0
        %988 = vmatprep.subr.bf16.mxu0 0
        %989 = vmatpush1.bf16.msra.mxu0 0
        %990 = vmatprep.subr.bf16.mxu0 0
        %991 = vmatpush1.bf16.msra.mxu0 0
        %992 = vmatprep.subr.bf16.mxu0 0
        %993 = vmatpush1.bf16.msra.mxu0 0
        %994 = vmatprep.subr.bf16.mxu0 0
        %995 = vmatpush1.bf16.msra.mxu0 0
        %996 = vmatprep.subr.bf16.mxu0 0
        %997 = vmatpush1.bf16.msra.mxu0 0
        %998 = vmatprep.subr.bf16.mxu0 0
        %999 = vmatpush1.bf16.msra.mxu0 0
        %1000 = vmatprep.subr.bf16.mxu0 0
        %1001 = vmatpush1.bf16.msra.mxu0 0
        %1002 = vmatprep.mubr.bf16.mxu0 0
        %1003 = vmatmul.mubr.bf16.gmra.mrb[0].mxu0 %v867
        %v1004 = vpop.f32.mrb[0].mxu0
        %v1005 = vadd.f32 %v956, %v1004
        %v1006 = vpop.f32.mrb[0].mxu0
        %v1007 = vpop.f32.mrb[0].mxu0
        %v1008 = vadd.f32 %v959, %v1007
        %v1009 = vpop.f32.mrb[0].mxu0
        %1010 = vmatprep.mubr.bf16.mxu0 0
        %1011 = vmatmul.mubr.bf16.gmra.mrb[0].mxu0 %v870
        %v1012 = vpop.f32.mrb[0].mxu0
        %v1013 = vadd.f32 %v964, %v1012
        %v1014 = vpop.f32.mrb[0].mxu0
        %v1015 = vpop.f32.mrb[0].mxu0
        %v1016 = vadd.f32 %v967, %v1015
        %v1017 = vpop.f32.mrb[0].mxu0
        %1018 = vdwg.mxu0
        %1019 = vst [vmem:[%s489] sm:$0xff] %v1005
        %1020 = vst [vmem:[%s489 + $0x8] sm:$0xff] %v1008
        %1021 = vst [vmem:[%s489 + $0x10] sm:$0xff] %v1013
        %1022 = vst [vmem:[%s489 + $0x18] sm:$0xff] %v1016
        %s1023 = sand.u32 %s90, 1
        %s1024 = sand.u32 %s90, 1
        %s1025 = smul.addr %s1024, 32
        %s1026 = scalar_lea.vmem [#allocation3], %s1025
        // Predicated region
        $region74: #{conv_trans_forward.16} parent=68 // pred_check
          %p1027 = pneg %p100
        $region75: #{conv_trans_forward.16} parent=68 // pred_check_branch
          %1029 = sbr.rel (%p1027) target = $region77
        $region76: #{conv_trans_forward.16} parent=68 // pred_region
          %s1030 = smul.addr %s14, 8
          %s1031 = scalar_lea.vmem %s3, %s1030
          // Predicated region
          $region78: #{conv_trans_forward.16} parent=76 // pred_check
            _
          $region79: #{conv_trans_forward.16} parent=76 // pred_check_branch
            %1033 = sbr.rel (0) target = $region81
          $region80: #{conv_trans_forward.16} parent=76 // pred_region
            // Predicated region
            $region82: #{conv_trans_forward.16} parent=80 // pred_check
              _
            $region83: #{conv_trans_forward.16} parent=80 // pred_check_branch
              %1035 = sbr.rel (0) target = $region85
            $region84: #{conv_trans_forward.16} parent=80 // pred_region
              // Predicated region
              $region97: #{conv_trans_forward.16} parent=84 // pred_check
                _
              $region98: #{conv_trans_forward.16} parent=84 // pred_check_branch
                %1056 = sbr.rel (0) target = $region100
              $region99: #{conv_trans_forward.16} parent=84 // pred_region
                loop: start=0, step=1, limit=1
                $region101: #{conv_trans_forward.16} parent=99 // loop_pre_header
                  _
                $region102: #{conv_trans_forward.16} parent=99 // loop_header
                  %s1058 = sphi 0, %s1062
                  %p1059 = scmp.ge.s32.totalorder %s1058, 1
                  %s1063 = sphi %s1026, %s1026
                  %s1064 = sphi %s1031, %s1031
                $region103: #{conv_trans_forward.16} parent=99 // loop_header_branch
                  %1061 = sbr.rel (%p1059) target = $region107
                $region104: #{conv_trans_forward.16} parent=99 // loop_body
                  %v1065 = vld [vmem:[%s1063] sm:$0xff]
                  %1066 = vst [vmem:[%s1064] sm:$0xff] %v1065
                  %v1067 = vld [vmem:[%s1063 + $0x8] sm:$0xff]
                  %1068 = vst [vmem:[%s1064 + $0x10] sm:$0xff] %v1067
                  %v1069 = vld [vmem:[%s1063 + $0x10] sm:$0xff]
                  %1070 = vst [vmem:[%s1064 + $0x20] sm:$0xff] %v1069
                  %v1071 = vld [vmem:[%s1063 + $0x18] sm:$0xff]
                  %1072 = vst [vmem:[%s1064 + $0x30] sm:$0xff] %v1071
                $region105: #{conv_trans_forward.16} parent=99 // loop_footer
                  %s1062 = sadd.s32 1, %s1058
                $region106: #{conv_trans_forward.16} parent=99 // loop_footer_branch
                  %1057 = sbr.rel target = $region102
                $region107: #{conv_trans_forward.16} parent=99 // loop_exit
                  _
              $region100: #{conv_trans_forward.16} parent=84 // pred_fallthru
                _
              // Predicated region
              $region108: #{conv_trans_forward.16} parent=84 // pred_check
                _
              $region109: #{conv_trans_forward.16} parent=84 // pred_check_branch
                %1074 = sbr.rel target = $region111
              $region110: #{conv_trans_forward.16} parent=84 // pred_region
                _
              $region111: #{conv_trans_forward.16} parent=84 // pred_fallthru
                _
            $region85: #{conv_trans_forward.16} parent=80 // pred_fallthru
              _
            // Predicated region
            $region86: #{conv_trans_forward.16} parent=80 // pred_check
              _
            $region87: #{conv_trans_forward.16} parent=80 // pred_check_branch
              %1037 = sbr.rel target = $region89
            $region88: #{conv_trans_forward.16} parent=80 // pred_region
              loop: start=0, step=1, limit=1
              $region90: #{conv_trans_forward.16} parent=88 // loop_pre_header
                _
              $region91: #{conv_trans_forward.16} parent=88 // loop_header
                %s1040 = sphi 0, %s1044
                %p1041 = scmp.ge.s32.totalorder %s1040, 1
                %s1045 = sphi %s1026, %s1026
                %s1046 = sphi %s1031, %s1031
              $region92: #{conv_trans_forward.16} parent=88 // loop_header_branch
                %1043 = sbr.rel (%p1041) target = $region96
              $region93: #{conv_trans_forward.16} parent=88 // loop_body
                %v1047 = vld [vmem:[%s1045] sm:$0xff]
                %1048 = vst [vmem:[%s1046] sm:$0xff] %v1047
                %v1049 = vld [vmem:[%s1045 + $0x8] sm:$0xff]
                %1050 = vst [vmem:[%s1046 + $0x10] sm:$0xff] %v1049
                %v1051 = vld [vmem:[%s1045 + $0x10] sm:$0xff]
                %1052 = vst [vmem:[%s1046 + $0x20] sm:$0xff] %v1051
                %v1053 = vld [vmem:[%s1045 + $0x18] sm:$0xff]
                %1054 = vst [vmem:[%s1046 + $0x30] sm:$0xff] %v1053
              $region94: #{conv_trans_forward.16} parent=88 // loop_footer
                %s1044 = sadd.s32 1, %s1040
              $region95: #{conv_trans_forward.16} parent=88 // loop_footer_branch
                %1039 = sbr.rel target = $region91
              $region96: #{conv_trans_forward.16} parent=88 // loop_exit
                _
            $region89: #{conv_trans_forward.16} parent=80 // pred_fallthru
              _
          $region81: #{conv_trans_forward.16} parent=76 // pred_fallthru
            _
          %1075 = vnop
        $region77: #{conv_trans_forward.16} parent=68 // pred_fallthru
          _
      $region69: #{conv_trans_forward.16} parent=5 // pred_fallthru
        _
      %p1076 = scmp.le.s32.totalorder 2, %s9
      // Predicated region
      $region112: #{conv_trans_forward.16} parent=5 // pred_check
        %p1077 = pneg %p1076
      $region113: #{conv_trans_forward.16} parent=5 // pred_check_branch
        %1079 = sbr.rel (%p1077) target = $region115
      $region114: #{conv_trans_forward.16} parent=5 // pred_region
        %s1080 = ssub.s32 %s9, 2
        // Predicated region
        $region116: #{conv_trans_forward.16} parent=114 // pred_check
          %p1081 = pneg %p106
        $region117: #{conv_trans_forward.16} parent=114 // pred_check_branch
          %1083 = sbr.rel (%p1081) target = $region119
        $region118: #{conv_trans_forward.16} parent=114 // pred_region
          %s1084 = sand.u32 %s91, 1
          %s1085 = sand.u32 %s91, 1
          %s1086 = smul.addr %s1085, 32
          %s1087 = scalar_lea.vmem [#allocation3], %s1086
        $region119: #{conv_trans_forward.16} parent=114 // pred_fallthru
          _
      $region115: #{conv_trans_forward.16} parent=5 // pred_fallthru
        _
    $region6: #{conv_trans_forward.16} parent=1 // loop_footer
      %s13 = sadd.s32 1, %s9
    $region7: #{conv_trans_forward.16} parent=1 // loop_footer_branch
      %8 = sbr.rel target = $region3
    $region8: #{conv_trans_forward.16} parent=1 // loop_exit
      _

// kernel: conv_trans_forward.17
$region0: #{conv_trans_forward.17}
  #allocation0 [shape = 'u32[]', space=smem, size = 0x4, offset = 0x4, fixed_abs, tag = 'smem constant byte address 0x4 - core index']
  #allocation1 [shape = 'u32[144,128]{1,0:T(1,128)}', space=vmem, size = 0x12000, scoped, tag = 'internal scratch']
  %s0 = inlined_call_operand.vmem [shape: bf16[16,288], index: 0, kind: input, shape index: {}]
  %s1 = inlined_call_operand.vmem [shape: bf16[288,640], index: 1, kind: input, shape index: {}]
  %s2 = inlined_call_operand.vmem [shape: f32[16,1], index: 2, kind: input, shape index: {}]
  %s3 = inlined_call_operand.vmem [shape: f32[16,640], index: 3, kind: output, shape index: {}]
  %s4 = sld [smem:[#allocation0]]
  $region120: #{conv_trans_forward.17} parent=0
    _
  %s6 = ssub.s32 1, %s4
  %s7 = scalar_select 0, %s6, %s4
  $region1: #{conv_trans_forward.17} parent=0
    #allocation2 [shape = 'u8[147456]{0}', space=vmem, size = 0x24000, scoped, tag = 'input window, operand 1']
    #allocation3 [shape = 'u8[16384]{0}', space=vmem, size = 0x4000, scoped, tag = 'output window, operand 0']
    loop: start=0, step=1, limit=7
    $region2: #{conv_trans_forward.17} parent=1 // loop_pre_header
      _
    $region3: #{conv_trans_forward.17} parent=1 // loop_header
      %s9 = sphi 0, %s13
      %p10 = scmp.ge.s32.totalorder %s9, 7
      %s17 = sphi 0, %s17
      %s19 = sphi 0, %s17
      %s20 = sphi 0, %s19
      %s34 = sphi 0, %s20
      %s40 = sphi 0, %s42
      %s43 = sphi 0, %s40
      %s44 = sphi 0, %s43
      %s60 = sphi 0, %s44
      %s64 = sphi 0, %s64
      %s66 = sphi 0, %s64
      %s67 = sphi 0, %s66
      %s81 = sphi 0, %s67
      %s87 = sphi 0, %s89
      %s90 = sphi 0, %s87
      %s91 = sphi 0, %s90
      %s107 = sphi 0, %s91
    $region4: #{conv_trans_forward.17} parent=1 // loop_header_branch
      %12 = sbr.rel (%p10) target = $region8
    $region5: #{conv_trans_forward.17} parent=1 // loop_body
      %s14 = ssub.s32 %s9, 1
      %s15 = ssub.s32 %s9, 2
      %s16 = sadd.s32 %s9, 1
      %s18 = sadd.s32 %s17, 1
      %p21 = scmp.eq.s32.totalorder %s9, 4
      %p22 = scmp.ne.s32.totalorder %s17, %s19
      %p23 = scmp.eq.s32.totalorder %s9, 0
      %p24 = por %p22, %p23
      %p25 = scmp.ne.s32.totalorder %s17, %s19
      %p26 = scmp.eq.s32.totalorder %s14, 4
      %p27 = por %p25, %p26
      %p28 = scmp.ne.s32.totalorder %s19, %s20
      %p29 = scmp.eq.s32.totalorder %s14, 0
      %p30 = por %p28, %p29
      %p31 = scmp.ne.s32.totalorder %s19, %s20
      %p32 = scmp.eq.s32.totalorder %s15, 4
      %p33 = por %p31, %p32
      %p35 = scmp.ne.s32.totalorder %s20, %s34
      %p36 = scmp.eq.s32.totalorder %s15, 0
      %p37 = por %p35, %p36
      %s38 = ssub.s32 %s9, %s16
      %p39 = scmp.eq.s32.totalorder %s38, 0
      %s41 = sadd.s32 %s40, 1
      %s42 = scalar_select %p39, %s40, %s41
      %p45 = pneg %p39
      %p46 = scmp.eq.s32.totalorder %s9, 4
      %p47 = por %p45, %p46
      %p48 = scmp.ne.s32.totalorder %s40, %s43
      %p49 = scmp.eq.s32.totalorder %s9, 0
      %p50 = por %p48, %p49
      %p51 = scmp.ne.s32.totalorder %s40, %s43
      %p52 = scmp.eq.s32.totalorder %s14, 4
      %p53 = por %p51, %p52
      %p54 = scmp.ne.s32.totalorder %s43, %s44
      %p55 = scmp.eq.s32.totalorder %s14, 0
      %p56 = por %p54, %p55
      %p57 = scmp.ne.s32.totalorder %s43, %s44
      %p58 = scmp.eq.s32.totalorder %s15, 4
      %p59 = por %p57, %p58
      %p61 = scmp.ne.s32.totalorder %s44, %s60
      %p62 = scmp.eq.s32.totalorder %s15, 0
      %p63 = por %p61, %p62
      %s65 = sadd.s32 %s64, 1
      %p68 = scmp.eq.s32.totalorder %s9, 4
      %p69 = scmp.ne.s32.totalorder %s64, %s66
      %p70 = scmp.eq.s32.totalorder %s9, 0
      %p71 = por %p69, %p70
      %p72 = scmp.ne.s32.totalorder %s64, %s66
      %p73 = scmp.eq.s32.totalorder %s14, 4
      %p74 = por %p72, %p73
      %p75 = scmp.ne.s32.totalorder %s66, %s67
      %p76 = scmp.eq.s32.totalorder %s14, 0
      %p77 = por %p75, %p76
      %p78 = scmp.ne.s32.totalorder %s66, %s67
      %p79 = scmp.eq.s32.totalorder %s15, 4
      %p80 = por %p78, %p79
      %p82 = scmp.ne.s32.totalorder %s67, %s81
      %p83 = scmp.eq.s32.totalorder %s15, 0
      %p84 = por %p82, %p83
      %s85 = ssub.s32 %s9, %s16
      %p86 = scmp.eq.s32.totalorder %s85, 0
      %s88 = sadd.s32 %s87, 1
      %s89 = scalar_select %p86, %s87, %s88
      %p92 = pneg %p86
      %p93 = scmp.eq.s32.totalorder %s9, 4
      %p94 = por %p92, %p93
      %p95 = scmp.ne.s32.totalorder %s87, %s90
      %p96 = scmp.eq.s32.totalorder %s9, 0
      %p97 = por %p95, %p96
      %p98 = scmp.ne.s32.totalorder %s87, %s90
      %p99 = scmp.eq.s32.totalorder %s14, 4
      %p100 = por %p98, %p99
      %p101 = scmp.ne.s32.totalorder %s90, %s91
      %p102 = scmp.eq.s32.totalorder %s14, 0
      %p103 = por %p101, %p102
      %p104 = scmp.ne.s32.totalorder %s90, %s91
      %p105 = scmp.eq.s32.totalorder %s15, 4
      %p106 = por %p104, %p105
      %p108 = scmp.ne.s32.totalorder %s91, %s107
      %p109 = scmp.eq.s32.totalorder %s15, 0
      %p110 = por %p108, %p109
      %p111 = scmp.le.s32.totalorder 1, %s9
      %p112 = scmp.lt.s32.totalorder %s9, 6
      %p113 = pnand %p111, %p112
      %p114 = pneg %p113
      // Predicated region
      $region9: #{conv_trans_forward.17} parent=5 // pred_check
        _
      $region10: #{conv_trans_forward.17} parent=5 // pred_check_branch
        %116 = sbr.rel (%p113) target = $region12
      $region11: #{conv_trans_forward.17} parent=5 // pred_region
        %s117 = ssub.s32 %s9, 1
        // Predicated region
        $region13: #{conv_trans_forward.17} parent=11 // pred_check
          %p118 = pneg %p30
        $region14: #{conv_trans_forward.17} parent=11 // pred_check_branch
          %120 = sbr.rel (%p118) target = $region16
        $region15: #{conv_trans_forward.17} parent=11 // pred_region
          _
        $region16: #{conv_trans_forward.17} parent=11 // pred_fallthru
          _
        // Predicated region
        $region17: #{conv_trans_forward.17} parent=11 // pred_check
          %p121 = pneg %p77
        $region18: #{conv_trans_forward.17} parent=11 // pred_check_branch
          %123 = sbr.rel (%p121) target = $region20
        $region19: #{conv_trans_forward.17} parent=11 // pred_region
          _
        $region20: #{conv_trans_forward.17} parent=11 // pred_fallthru
          _
      $region12: #{conv_trans_forward.17} parent=5 // pred_fallthru
        _
      %p124 = scmp.lt.s32.totalorder %s9, 5
      // Predicated region
      $region21: #{conv_trans_forward.17} parent=5 // pred_check
        %p125 = pneg %p124
      $region22: #{conv_trans_forward.17} parent=5 // pred_check_branch
        %127 = sbr.rel (%p125) target = $region24
      $region23: #{conv_trans_forward.17} parent=5 // pred_region
        // Predicated region
        $region25: #{conv_trans_forward.17} parent=23 // pred_check
          %p128 = pneg %p50
        $region26: #{conv_trans_forward.17} parent=23 // pred_check_branch
          %130 = sbr.rel (%p128) target = $region28
        $region27: #{conv_trans_forward.17} parent=23 // pred_region
          %s131 = sand.u32 %s40, 1
          %s132 = sand.u32 %s40, 1
          %s133 = smul.addr %s132, 144
          %s134 = scalar_lea.vmem [#allocation2], %s133
          %s135 = smul.addr %s9, 4
          %s136 = scalar_lea.vmem %s1, %s135
          // Predicated region
          $region29: #{conv_trans_forward.17} parent=27 // pred_check
            _
          $region30: #{conv_trans_forward.17} parent=27 // pred_check_branch
            %138 = sbr.rel (0) target = $region32
          $region31: #{conv_trans_forward.17} parent=27 // pred_region
            // Predicated region
            $region33: #{conv_trans_forward.17} parent=31 // pred_check
              _
            $region34: #{conv_trans_forward.17} parent=31 // pred_check_branch
              %140 = sbr.rel target = $region36
            $region35: #{conv_trans_forward.17} parent=31 // pred_region
              // Predicated region
              $region48: #{conv_trans_forward.17} parent=35 // pred_check
                _
              $region49: #{conv_trans_forward.17} parent=35 // pred_check_branch
                %225 = sbr.rel (0) target = $region51
              $region50: #{conv_trans_forward.17} parent=35 // pred_region
                loop: start=0, step=1, limit=1
                $region52: #{conv_trans_forward.17} parent=50 // loop_pre_header
                  _
                $region53: #{conv_trans_forward.17} parent=50 // loop_header
                  %s227 = sphi 0, %s231
                  %p228 = scmp.ge.s32.totalorder %s227, 1
                  %s232 = sphi %s136, %s136
                  %s233 = sphi %s134, %s134
                $region54: #{conv_trans_forward.17} parent=50 // loop_header_branch
                  %230 = sbr.rel (%p228) target = $region58
                $region55: #{conv_trans_forward.17} parent=50 // loop_body
                  _
                $region56: #{conv_trans_forward.17} parent=50 // loop_footer
                  %s231 = sadd.s32 1, %s227
                $region57: #{conv_trans_forward.17} parent=50 // loop_footer_branch
                  %226 = sbr.rel target = $region53
                $region58: #{conv_trans_forward.17} parent=50 // loop_exit
                  _
                loop: start=0, step=1, limit=1
                $region59: #{conv_trans_forward.17} parent=50 // loop_pre_header
                  _
                $region60: #{conv_trans_forward.17} parent=50 // loop_header
                  %s236 = sphi 0, %s240
                  %p237 = scmp.ge.s32.totalorder %s236, 1
                  %s241 = sphi %s136, %s136
                  %s242 = sphi %s134, %s134
                $region61: #{conv_trans_forward.17} parent=50 // loop_header_branch
                  %239 = sbr.rel (%p237) target = $region65
                $region62: #{conv_trans_forward.17} parent=50 // loop_body
                  %v243 = vld [vmem:[%s241] sm:$0xf]
                  %244 = vst [vmem:[%s242] sm:$0xf] %v243
                  %v245 = vld [vmem:[%s241 + $0x14] sm:$0xf]
                  %246 = vst [vmem:[%s242 + $0x4] sm:$0xf] %v245
                  %v247 = vld [vmem:[%s241 + $0x28] sm:$0xf]
                  %248 = vst [vmem:[%s242 + $0x8] sm:$0xf] %v247
                  %v249 = vld [vmem:[%s241 + $0x3c] sm:$0xf]
                  %250 = vst [vmem:[%s242 + $0xc] sm:$0xf] %v249
                  %v251 = vld [vmem:[%s241 + $0x50] sm:$0xf]
                  %252 = vst [vmem:[%s242 + $0x10] sm:$0xf] %v251
                  %v253 = vld [vmem:[%s241 + $0x64] sm:$0xf]
                  %254 = vst [vmem:[%s242 + $0x14] sm:$0xf] %v253
                  %v255 = vld [vmem:[%s241 + $0x78] sm:$0xf]
                  %256 = vst [vmem:[%s242 + $0x18] sm:$0xf] %v255
                  %v257 = vld [vmem:[%s241 + $0x8c] sm:$0xf]
                  %258 = vst [vmem:[%s242 + $0x1c] sm:$0xf] %v257
                  %v259 = vld [vmem:[%s241 + $0xa0] sm:$0xf]
                  %260 = vst [vmem:[%s242 + $0x20] sm:$0xf] %v259
                  %v261 = vld [vmem:[%s241 + $0xb4] sm:$0xf]
                  %262 = vst [vmem:[%s242 + $0x24] sm:$0xf] %v261
                  %v263 = vld [vmem:[%s241 + $0xc8] sm:$0xf]
                  %264 = vst [vmem:[%s242 + $0x28] sm:$0xf] %v263
                  %v265 = vld [vmem:[%s241 + $0xdc] sm:$0xf]
                  %266 = vst [vmem:[%s242 + $0x2c] sm:$0xf] %v265
                  %v267 = vld [vmem:[%s241 + $0xf0] sm:$0xf]
                  %268 = vst [vmem:[%s242 + $0x30] sm:$0xf] %v267
                  %v269 = vld [vmem:[%s241 + $0x104] sm:$0xf]
                  %270 = vst [vmem:[%s242 + $0x34] sm:$0xf] %v269
                  %v271 = vld [vmem:[%s241 + $0x118] sm:$0xf]
                  %272 = vst [vmem:[%s242 + $0x38] sm:$0xf] %v271
                  %v273 = vld [vmem:[%s241 + $0x12c] sm:$0xf]
                  %274 = vst [vmem:[%s242 + $0x3c] sm:$0xf] %v273
                  %v275 = vld [vmem:[%s241 + $0x140] sm:$0xf]
                  %276 = vst [vmem:[%s242 + $0x40] sm:$0xf] %v275
                  %v277 = vld [vmem:[%s241 + $0x154] sm:$0xf]
                  %278 = vst [vmem:[%s242 + $0x44] sm:$0xf] %v277
                  %v279 = vld [vmem:[%s241 + $0x168] sm:$0xf]
                  %280 = vst [vmem:[%s242 + $0x48] sm:$0xf] %v279
                  %v281 = vld [vmem:[%s241 + $0x17c] sm:$0xf]
                  %282 = vst [vmem:[%s242 + $0x4c] sm:$0xf] %v281
                  %v283 = vld [vmem:[%s241 + $0x190] sm:$0xf]
                  %284 = vst [vmem:[%s242 + $0x50] sm:$0xf] %v283
                  %v285 = vld [vmem:[%s241 + $0x1a4] sm:$0xf]
                  %286 = vst [vmem:[%s242 + $0x54] sm:$0xf] %v285
                  %v287 = vld [vmem:[%s241 + $0x1b8] sm:$0xf]
                  %288 = vst [vmem:[%s242 + $0x58] sm:$0xf] %v287
                  %v289 = vld [vmem:[%s241 + $0x1cc] sm:$0xf]
                  %290 = vst [vmem:[%s242 + $0x5c] sm:$0xf] %v289
                  %v291 = vld [vmem:[%s241 + $0x1e0] sm:$0xf]
                  %292 = vst [vmem:[%s242 + $0x60] sm:$0xf] %v291
                  %v293 = vld [vmem:[%s241 + $0x1f4] sm:$0xf]
                  %294 = vst [vmem:[%s242 + $0x64] sm:$0xf] %v293
                  %v295 = vld [vmem:[%s241 + $0x208] sm:$0xf]
                  %296 = vst [vmem:[%s242 + $0x68] sm:$0xf] %v295
                  %v297 = vld [vmem:[%s241 + $0x21c] sm:$0xf]
                  %298 = vst [vmem:[%s242 + $0x6c] sm:$0xf] %v297
                  %v299 = vld [vmem:[%s241 + $0x230] sm:$0xf]
                  %300 = vst [vmem:[%s242 + $0x70] sm:$0xf] %v299
                  %v301 = vld [vmem:[%s241 + $0x244] sm:$0xf]
                  %302 = vst [vmem:[%s242 + $0x74] sm:$0xf] %v301
                  %v303 = vld [vmem:[%s241 + $0x258] sm:$0xf]
                  %304 = vst [vmem:[%s242 + $0x78] sm:$0xf] %v303
                  %v305 = vld [vmem:[%s241 + $0x26c] sm:$0xf]
                  %306 = vst [vmem:[%s242 + $0x7c] sm:$0xf] %v305
                  %v307 = vld [vmem:[%s241 + $0x280] sm:$0xf]
                  %308 = vst [vmem:[%s242 + $0x80] sm:$0xf] %v307
                  %v309 = vld [vmem:[%s241 + $0x294] sm:$0xf]
                  %310 = vst [vmem:[%s242 + $0x84] sm:$0xf] %v309
                  %v311 = vld [vmem:[%s241 + $0x2a8] sm:$0xf]
                  %312 = vst [vmem:[%s242 + $0x88] sm:$0xf] %v311
                  %v313 = vld [vmem:[%s241 + $0x2bc] sm:$0xf]
                  %314 = vst [vmem:[%s242 + $0x8c] sm:$0xf] %v313
                $region63: #{conv_trans_forward.17} parent=50 // loop_footer
                  %s240 = sadd.s32 1, %s236
                $region64: #{conv_trans_forward.17} parent=50 // loop_footer_branch
                  %235 = sbr.rel target = $region60
                $region65: #{conv_trans_forward.17} parent=50 // loop_exit
                  _
              $region51: #{conv_trans_forward.17} parent=35 // pred_fallthru
                _
            $region36: #{conv_trans_forward.17} parent=31 // pred_fallthru
              _
            // Predicated region
            $region37: #{conv_trans_forward.17} parent=31 // pred_check
              _
            $region38: #{conv_trans_forward.17} parent=31 // pred_check_branch
              %142 = sbr.rel (0) target = $region40
            $region39: #{conv_trans_forward.17} parent=31 // pred_region
              loop: start=0, step=1, limit=1
              $region41: #{conv_trans_forward.17} parent=39 // loop_pre_header
                _
              $region42: #{conv_trans_forward.17} parent=39 // loop_header
                %s145 = sphi 0, %s149
                %p146 = scmp.ge.s32.totalorder %s145, 1
                %s150 = sphi %s136, %s136
                %s151 = sphi %s134, %s134
              $region43: #{conv_trans_forward.17} parent=39 // loop_header_branch
                %148 = sbr.rel (%p146) target = $region47
              $region44: #{conv_trans_forward.17} parent=39 // loop_body
                %v152 = vld [vmem:[%s150] sm:$0xf]
                %153 = vst [vmem:[%s151] sm:$0xf] %v152
                %v154 = vld [vmem:[%s150 + $0x14] sm:$0xf]
                %155 = vst [vmem:[%s151 + $0x4] sm:$0xf] %v154
                %v156 = vld [vmem:[%s150 + $0x28] sm:$0xf]
                %157 = vst [vmem:[%s151 + $0x8] sm:$0xf] %v156
                %v158 = vld [vmem:[%s150 + $0x3c] sm:$0xf]
                %159 = vst [vmem:[%s151 + $0xc] sm:$0xf] %v158
                %v160 = vld [vmem:[%s150 + $0x50] sm:$0xf]
                %161 = vst [vmem:[%s151 + $0x10] sm:$0xf] %v160
                %v162 = vld [vmem:[%s150 + $0x64] sm:$0xf]
                %163 = vst [vmem:[%s151 + $0x14] sm:$0xf] %v162
                %v164 = vld [vmem:[%s150 + $0x78] sm:$0xf]
                %165 = vst [vmem:[%s151 + $0x18] sm:$0xf] %v164
                %v166 = vld [vmem:[%s150 + $0x8c] sm:$0xf]
                %167 = vst [vmem:[%s151 + $0x1c] sm:$0xf] %v166
                %v168 = vld [vmem:[%s150 + $0xa0] sm:$0xf]
                %169 = vst [vmem:[%s151 + $0x20] sm:$0xf] %v168
                %v170 = vld [vmem:[%s150 + $0xb4] sm:$0xf]
                %171 = vst [vmem:[%s151 + $0x24] sm:$0xf] %v170
                %v172 = vld [vmem:[%s150 + $0xc8] sm:$0xf]
                %173 = vst [vmem:[%s151 + $0x28] sm:$0xf] %v172
                %v174 = vld [vmem:[%s150 + $0xdc] sm:$0xf]
                %175 = vst [vmem:[%s151 + $0x2c] sm:$0xf] %v174
                %v176 = vld [vmem:[%s150 + $0xf0] sm:$0xf]
                %177 = vst [vmem:[%s151 + $0x30] sm:$0xf] %v176
                %v178 = vld [vmem:[%s150 + $0x104] sm:$0xf]
                %179 = vst [vmem:[%s151 + $0x34] sm:$0xf] %v178
                %v180 = vld [vmem:[%s150 + $0x118] sm:$0xf]
                %181 = vst [vmem:[%s151 + $0x38] sm:$0xf] %v180
                %v182 = vld [vmem:[%s150 + $0x12c] sm:$0xf]
                %183 = vst [vmem:[%s151 + $0x3c] sm:$0xf] %v182
                %v184 = vld [vmem:[%s150 + $0x140] sm:$0xf]
                %185 = vst [vmem:[%s151 + $0x40] sm:$0xf] %v184
                %v186 = vld [vmem:[%s150 + $0x154] sm:$0xf]
                %187 = vst [vmem:[%s151 + $0x44] sm:$0xf] %v186
                %v188 = vld [vmem:[%s150 + $0x168] sm:$0xf]
                %189 = vst [vmem:[%s151 + $0x48] sm:$0xf] %v188
                %v190 = vld [vmem:[%s150 + $0x17c] sm:$0xf]
                %191 = vst [vmem:[%s151 + $0x4c] sm:$0xf] %v190
                %v192 = vld [vmem:[%s150 + $0x190] sm:$0xf]
                %193 = vst [vmem:[%s151 + $0x50] sm:$0xf] %v192
                %v194 = vld [vmem:[%s150 + $0x1a4] sm:$0xf]
                %195 = vst [vmem:[%s151 + $0x54] sm:$0xf] %v194
                %v196 = vld [vmem:[%s150 + $0x1b8] sm:$0xf]
                %197 = vst [vmem:[%s151 + $0x58] sm:$0xf] %v196
                %v198 = vld [vmem:[%s150 + $0x1cc] sm:$0xf]
                %199 = vst [vmem:[%s151 + $0x5c] sm:$0xf] %v198
                %v200 = vld [vmem:[%s150 + $0x1e0] sm:$0xf]
                %201 = vst [vmem:[%s151 + $0x60] sm:$0xf] %v200
                %v202 = vld [vmem:[%s150 + $0x1f4] sm:$0xf]
                %203 = vst [vmem:[%s151 + $0x64] sm:$0xf] %v202
                %v204 = vld [vmem:[%s150 + $0x208] sm:$0xf]
                %205 = vst [vmem:[%s151 + $0x68] sm:$0xf] %v204
                %v206 = vld [vmem:[%s150 + $0x21c] sm:$0xf]
                %207 = vst [vmem:[%s151 + $0x6c] sm:$0xf] %v206
                %v208 = vld [vmem:[%s150 + $0x230] sm:$0xf]
                %209 = vst [vmem:[%s151 + $0x70] sm:$0xf] %v208
                %v210 = vld [vmem:[%s150 + $0x244] sm:$0xf]
                %211 = vst [vmem:[%s151 + $0x74] sm:$0xf] %v210
                %v212 = vld [vmem:[%s150 + $0x258] sm:$0xf]
                %213 = vst [vmem:[%s151 + $0x78] sm:$0xf] %v212
                %v214 = vld [vmem:[%s150 + $0x26c] sm:$0xf]
                %215 = vst [vmem:[%s151 + $0x7c] sm:$0xf] %v214
                %v216 = vld [vmem:[%s150 + $0x280] sm:$0xf]
                %217 = vst [vmem:[%s151 + $0x80] sm:$0xf] %v216
                %v218 = vld [vmem:[%s150 + $0x294] sm:$0xf]
                %219 = vst [vmem:[%s151 + $0x84] sm:$0xf] %v218
                %v220 = vld [vmem:[%s150 + $0x2a8] sm:$0xf]
                %221 = vst [vmem:[%s151 + $0x88] sm:$0xf] %v220
                %v222 = vld [vmem:[%s150 + $0x2bc] sm:$0xf]
                %223 = vst [vmem:[%s151 + $0x8c] sm:$0xf] %v222
              $region45: #{conv_trans_forward.17} parent=39 // loop_footer
                %s149 = sadd.s32 1, %s145
              $region46: #{conv_trans_forward.17} parent=39 // loop_footer_branch
                %144 = sbr.rel target = $region42
              $region47: #{conv_trans_forward.17} parent=39 // loop_exit
                _
            $region40: #{conv_trans_forward.17} parent=31 // pred_fallthru
              _
          $region32: #{conv_trans_forward.17} parent=27 // pred_fallthru
            _
          %315 = vnop
        $region28: #{conv_trans_forward.17} parent=23 // pred_fallthru
          _
      $region24: #{conv_trans_forward.17} parent=5 // pred_fallthru
        _
      %p316 = scmp.le.s32.totalorder 1, %s9
      %p317 = scmp.lt.s32.totalorder %s9, 6
      %p318 = pnand %p316, %p317
      %p319 = pneg %p318
      // Predicated region
      $region66: #{conv_trans_forward.17} parent=5 // pred_check
        _
      $region67: #{conv_trans_forward.17} parent=5 // pred_check_branch
        %321 = sbr.rel (%p318) target = $region69
      $region68: #{conv_trans_forward.17} parent=5 // pred_region
        %s322 = ssub.s32 %s9, 1
        %s323 = sand.u32 %s43, 1
        %s324 = sand.u32 %s43, 1
        %s325 = smul.addr %s324, 144
        %s326 = scalar_lea.vmem [#allocation2], %s325
        // Predicated region
        $region70: #{conv_trans_forward.17} parent=68 // pred_check
          %p327 = pneg %p56
        $region71: #{conv_trans_forward.17} parent=68 // pred_check_branch
          %329 = sbr.rel (%p327) target = $region73
        $region72: #{conv_trans_forward.17} parent=68 // pred_region
          _
        $region73: #{conv_trans_forward.17} parent=68 // pred_fallthru
          _
        %p330 = pneg %p30
        %p331 = pneg %p27
        %s332 = sand.u32 %s43, 1
        %s333 = sand.u32 %s43, 1
        %s334 = smul.addr %s333, 144
        %s335 = scalar_lea.vmem [#allocation2], %s334
        %p336 = pneg %p56
        %p337 = pneg %p53
        %p338 = pneg %p77
        %p339 = pneg %p74
        %p340 = pneg %p103
        %p341 = pneg %p100
        %s342 = sand.u32 %s90, 1
        %s343 = sand.u32 %s90, 1
        %s344 = smul.addr %s343, 16
        %s345 = scalar_lea.vmem [#allocation3], %s344
        %v347 = vld [vmem:[%s0] sm:$0xff]
        %v348 = vld [vmem:[%s0 + $0x8] sm:$0xf]
        %v349 = vld [vmem:[%s0 + $0xc] sm:$0xff]
        %v350 = vld [vmem:[%s0 + $0x14] sm:$0xf]
        %v351 = vld [vmem:[%s326] sm:$0xf]
        %v352 = vld [vmem:[%s326 + $0x4] sm:$0xf]
        %v353 = vld [vmem:[%s326 + $0x8] sm:$0xf]
        %v354 = vld [vmem:[%s326 + $0xc] sm:$0xf]
        %v355 = vld [vmem:[%s326 + $0x10] sm:$0xf]
        %v356 = vld [vmem:[%s326 + $0x14] sm:$0xf]
        %v357 = vld [vmem:[%s326 + $0x18] sm:$0xf]
        %v358 = vld [vmem:[%s326 + $0x1c] sm:$0xf]
        %v359 = vld [vmem:[%s326 + $0x20] sm:$0xf]
        %v360 = vld [vmem:[%s326 + $0x24] sm:$0xf]
        %v361 = vld [vmem:[%s326 + $0x28] sm:$0xf]
        %v362 = vld [vmem:[%s326 + $0x2c] sm:$0xf]
        %v363 = vld [vmem:[%s326 + $0x30] sm:$0xf]
        %v364 = vld [vmem:[%s326 + $0x34] sm:$0xf]
        %v365 = vld [vmem:[%s326 + $0x38] sm:$0xf]
        %v366 = vld [vmem:[%s326 + $0x3c] sm:$0xf]
        %v367 = vld [vmem:[%s326 + $0x40] sm:$0xf]
        %v368 = vld [vmem:[%s326 + $0x44] sm:$0xf]
        %v369 = vld [vmem:[%s326 + $0x48] sm:$0xf]
        %v370 = vld [vmem:[%s326 + $0x4c] sm:$0xf]
        %v371 = vld [vmem:[%s326 + $0x50] sm:$0xf]
        %v372 = vld [vmem:[%s326 + $0x54] sm:$0xf]
        %v373 = vld [vmem:[%s326 + $0x58] sm:$0xf]
        %v374 = vld [vmem:[%s326 + $0x5c] sm:$0xf]
        %v375 = vld [vmem:[%s326 + $0x60] sm:$0xf]
        %v376 = vld [vmem:[%s326 + $0x64] sm:$0xf]
        %v377 = vld [vmem:[%s326 + $0x68] sm:$0xf]
        %v378 = vld [vmem:[%s326 + $0x6c] sm:$0xf]
        %v379 = vld [vmem:[%s326 + $0x70] sm:$0xf]
        %v380 = vld [vmem:[%s326 + $0x74] sm:$0xf]
        %v381 = vld [vmem:[%s326 + $0x78] sm:$0xf]
        %v382 = vld [vmem:[%s326 + $0x7c] sm:$0xf]
        %v383 = vld [vmem:[%s326 + $0x80] sm:$0xf]
        %v384 = vld [vmem:[%s326 + $0x84] sm:$0xf]
        %v385 = vld [vmem:[%s326 + $0x88] sm:$0xf]
        %v386 = vld [vmem:[%s326 + $0x8c] sm:$0xf]
        %v387 = vld [vmem:[%s2] sm:$0xff]
        %v388 = vld [vmem:[%s2 + $0x8] sm:$0xff]
        %390 = vset.pattern.permute.xlu0 0
        %391 = vperm.xlu0 %390, %v387
        %v392 = vpop.permute.xlu0 %391
        %395 = vset.pattern.permute.xlu0 0
        %396 = vperm.xlu0 %395, %v388
        %v397 = vpop.permute.xlu0 %396
        %v403 = vunpack.c.l.b16 %v347
        %v404 = vunpack.c.h.b16 %v347
        %v405 = vunpack.c.l.b16 %v348
        %v406 = vunpack.c.l.b16 %v349
        %v407 = vunpack.c.h.b16 %v349
        %v408 = vunpack.c.l.b16 %v350
        %v409 = vpack.c.b16 %v406, %v403
        %v410 = vpack.c.b16 %v407, %v404
        %v411 = vpack.c.b16 %v408, %v405
        %v450 = vunpack.c.l.b16 %v351
        %v451 = vunpack.c.l.b16 %v352
        %v452 = vunpack.c.l.b16 %v353
        %v453 = vunpack.c.l.b16 %v354
        %v454 = vunpack.c.l.b16 %v355
        %v455 = vunpack.c.l.b16 %v356
        %v456 = vunpack.c.l.b16 %v357
        %v457 = vunpack.c.l.b16 %v358
        %v458 = vunpack.c.l.b16 %v359
        %v459 = vunpack.c.l.b16 %v360
        %v460 = vunpack.c.l.b16 %v361
        %v461 = vunpack.c.l.b16 %v362
        %v462 = vunpack.c.l.b16 %v363
        %v463 = vunpack.c.l.b16 %v364
        %v464 = vunpack.c.l.b16 %v365
        %v465 = vunpack.c.l.b16 %v366
        %v466 = vunpack.c.l.b16 %v367
        %v467 = vunpack.c.l.b16 %v368
        %v468 = vunpack.c.l.b16 %v369
        %v469 = vunpack.c.l.b16 %v370
        %v470 = vunpack.c.l.b16 %v371
        %v471 = vunpack.c.l.b16 %v372
        %v472 = vunpack.c.l.b16 %v373
        %v473 = vunpack.c.l.b16 %v374
        %v474 = vunpack.c.l.b16 %v375
        %v475 = vunpack.c.l.b16 %v376
        %v476 = vunpack.c.l.b16 %v377
        %v477 = vunpack.c.l.b16 %v378
        %v478 = vunpack.c.l.b16 %v379
        %v479 = vunpack.c.l.b16 %v380
        %v480 = vunpack.c.l.b16 %v381
        %v481 = vunpack.c.l.b16 %v382
        %v482 = vunpack.c.l.b16 %v383
        %v483 = vunpack.c.l.b16 %v384
        %v484 = vunpack.c.l.b16 %v385
        %v485 = vunpack.c.l.b16 %v386
        %v486 = vpack.c.b16 %v451, %v450
        %v487 = vpack.c.b16 %v453, %v452
        %v488 = vpack.c.b16 %v455, %v454
        %v489 = vpack.c.b16 %v457, %v456
        %v490 = vpack.c.b16 %v459, %v458
        %v491 = vpack.c.b16 %v461, %v460
        %v492 = vpack.c.b16 %v463, %v462
        %v493 = vpack.c.b16 %v465, %v464
        %v494 = vpack.c.b16 %v467, %v466
        %v495 = vpack.c.b16 %v469, %v468
        %v496 = vpack.c.b16 %v471, %v470
        %v497 = vpack.c.b16 %v473, %v472
        %v498 = vpack.c.b16 %v475, %v474
        %v499 = vpack.c.b16 %v477, %v476
        %v500 = vpack.c.b16 %v479, %v478
        %v501 = vpack.c.b16 %v481, %v480
        %v502 = vpack.c.b16 %v483, %v482
        %v503 = vpack.c.b16 %v485, %v484
        %vm522 = vcmask 261120
        %v524 = vsel %vm522, %v411, 0
        %526 = vmatprep.subr.bf16.mxu0 0
        %527 = vmatpush1.bf16.msra.mxu0 %v486
        %528 = vmatprep.subr.bf16.mxu0 0
        %529 = vmatpush1.bf16.msra.mxu0 %v487
        %530 = vmatprep.subr.bf16.mxu0 0
        %531 = vmatpush1.bf16.msra.mxu0 %v488
        %532 = vmatprep.subr.bf16.mxu0 0
        %533 = vmatpush1.bf16.msra.mxu0 %v489
        %534 = vmatprep.subr.bf16.mxu0 0
        %535 = vmatpush1.bf16.msra.mxu0 %v490
        %536 = vmatprep.subr.bf16.mxu0 0
        %537 = vmatpush1.bf16.msra.mxu0 %v491
        %538 = vmatprep.subr.bf16.mxu0 0
        %539 = vmatpush1.bf16.msra.mxu0 %v492
        %540 = vmatprep.subr.bf16.mxu0 0
        %541 = vmatpush1.bf16.msra.mxu0 %v493
        %542 = vmatprep.subr.bf16.mxu0 0
        %543 = vmatpush1.bf16.msra.mxu0 %v494
        %544 = vmatprep.subr.bf16.mxu0 0
        %545 = vmatpush1.bf16.msra.mxu0 %v495
        %546 = vmatprep.subr.bf16.mxu0 0
        %547 = vmatpush1.bf16.msra.mxu0 %v496
        %548 = vmatprep.subr.bf16.mxu0 0
        %549 = vmatpush1.bf16.msra.mxu0 %v497
        %550 = vmatprep.subr.bf16.mxu0 0
        %551 = vmatpush1.bf16.msra.mxu0 %v498
        %552 = vmatprep.subr.bf16.mxu0 0
        %553 = vmatpush1.bf16.msra.mxu0 %v499
        %554 = vmatprep.subr.bf16.mxu0 0
        %555 = vmatpush1.bf16.msra.mxu0 %v500
        %556 = vmatprep.subr.bf16.mxu0 0
        %557 = vmatpush1.bf16.msra.mxu0 %v501
        %558 = vmatprep.mubr.bf16.mxu0 %v410
        %559 = vmatmul.mubr.bf16.gmra.mrb[0].mxu0 %v409
        %v560 = vpop.f32.mrb[0].mxu0
        %v561 = vadd.f32 %v392, %v560
        %v562 = vpop.f32.mrb[0].mxu0
        %v563 = vpop.f32.mrb[0].mxu0
        %v564 = vadd.f32 %v397, %v563
        %v565 = vpop.f32.mrb[0].mxu0
        %566 = vdwg.mxu0
        %567 = vmatprep.subr.bf16.mxu0 0
        %568 = vmatpush1.bf16.msra.mxu0 %v502
        %569 = vmatprep.subr.bf16.mxu0 0
        %570 = vmatpush1.bf16.msra.mxu0 %v503
        %571 = vmatprep.subr.bf16.mxu0 0
        %572 = vmatpush1.bf16.msra.mxu0 0
        %573 = vmatprep.subr.bf16.mxu0 0
        %574 = vmatpush1.bf16.msra.mxu0 0
        %575 = vmatprep.subr.bf16.mxu0 0
        %576 = vmatpush1.bf16.msra.mxu0 0
        %577 = vmatprep.subr.bf16.mxu0 0
        %578 = vmatpush1.bf16.msra.mxu0 0
        %579 = vmatprep.subr.bf16.mxu0 0
        %580 = vmatpush1.bf16.msra.mxu0 0
        %581 = vmatprep.subr.bf16.mxu0 0
        %582 = vmatpush1.bf16.msra.mxu0 0
        %583 = vmatprep.subr.bf16.mxu0 0
        %584 = vmatpush1.bf16.msra.mxu0 0
        %585 = vmatprep.subr.bf16.mxu0 0
        %586 = vmatpush1.bf16.msra.mxu0 0
        %587 = vmatprep.subr.bf16.mxu0 0
        %588 = vmatpush1.bf16.msra.mxu0 0
        %589 = vmatprep.subr.bf16.mxu0 0
        %590 = vmatpush1.bf16.msra.mxu0 0
        %591 = vmatprep.subr.bf16.mxu0 0
        %592 = vmatpush1.bf16.msra.mxu0 0
        %593 = vmatprep.subr.bf16.mxu0 0
        %594 = vmatpush1.bf16.msra.mxu0 0
        %595 = vmatprep.subr.bf16.mxu0 0
        %596 = vmatpush1.bf16.msra.mxu0 0
        %597 = vmatprep.subr.bf16.mxu0 0
        %598 = vmatpush1.bf16.msra.mxu0 0
        %599 = vmatprep.mubr.bf16.mxu0 0
        %600 = vmatmul.mubr.bf16.gmra.mrb[0].mxu0 %v524
        %v601 = vpop.f32.mrb[0].mxu0
        %v602 = vadd.f32 %v561, %v601
        %v603 = vpop.f32.mrb[0].mxu0
        %v604 = vpop.f32.mrb[0].mxu0
        %v605 = vadd.f32 %v564, %v604
        %v606 = vpop.f32.mrb[0].mxu0
        %607 = vdwg.mxu0
        %608 = vst [vmem:[%s345] sm:$0xff] %v602
        %609 = vst [vmem:[%s345 + $0x8] sm:$0xff] %v605
        %s610 = sand.u32 %s90, 1
        %s611 = sand.u32 %s90, 1
        %s612 = smul.addr %s611, 16
        %s613 = scalar_lea.vmem [#allocation3], %s612
        // Predicated region
        $region74: #{conv_trans_forward.17} parent=68 // pred_check
          %p614 = pneg %p100
        $region75: #{conv_trans_forward.17} parent=68 // pred_check_branch
          %616 = sbr.rel (%p614) target = $region77
        $region76: #{conv_trans_forward.17} parent=68 // pred_region
          %s617 = smul.addr %s14, 8
          %s618 = scalar_lea.vmem %s3, %s617
          // Predicated region
          $region78: #{conv_trans_forward.17} parent=76 // pred_check
            _
          $region79: #{conv_trans_forward.17} parent=76 // pred_check_branch
            %620 = sbr.rel (0) target = $region81
          $region80: #{conv_trans_forward.17} parent=76 // pred_region
            // Predicated region
            $region82: #{conv_trans_forward.17} parent=80 // pred_check
              _
            $region83: #{conv_trans_forward.17} parent=80 // pred_check_branch
              %622 = sbr.rel (0) target = $region85
            $region84: #{conv_trans_forward.17} parent=80 // pred_region
              // Predicated region
              $region97: #{conv_trans_forward.17} parent=84 // pred_check
                _
              $region98: #{conv_trans_forward.17} parent=84 // pred_check_branch
                %639 = sbr.rel (0) target = $region100
              $region99: #{conv_trans_forward.17} parent=84 // pred_region
                loop: start=0, step=1, limit=1
                $region101: #{conv_trans_forward.17} parent=99 // loop_pre_header
                  _
                $region102: #{conv_trans_forward.17} parent=99 // loop_header
                  %s641 = sphi 0, %s645
                  %p642 = scmp.ge.s32.totalorder %s641, 1
                  %s646 = sphi %s613, %s613
                  %s647 = sphi %s618, %s618
                $region103: #{conv_trans_forward.17} parent=99 // loop_header_branch
                  %644 = sbr.rel (%p642) target = $region107
                $region104: #{conv_trans_forward.17} parent=99 // loop_body
                  %v648 = vld [vmem:[%s646] sm:$0xff]
                  %649 = vst [vmem:[%s647] sm:$0xff] %v648
                  %v650 = vld [vmem:[%s646 + $0x8] sm:$0xff]
                  %651 = vst [vmem:[%s647 + $0x28] sm:$0xff] %v650
                $region105: #{conv_trans_forward.17} parent=99 // loop_footer
                  %s645 = sadd.s32 1, %s641
                $region106: #{conv_trans_forward.17} parent=99 // loop_footer_branch
                  %640 = sbr.rel target = $region102
                $region107: #{conv_trans_forward.17} parent=99 // loop_exit
                  _
              $region100: #{conv_trans_forward.17} parent=84 // pred_fallthru
                _
              // Predicated region
              $region108: #{conv_trans_forward.17} parent=84 // pred_check
                _
              $region109: #{conv_trans_forward.17} parent=84 // pred_check_branch
                %653 = sbr.rel target = $region111
              $region110: #{conv_trans_forward.17} parent=84 // pred_region
                _
              $region111: #{conv_trans_forward.17} parent=84 // pred_fallthru
                _
            $region85: #{conv_trans_forward.17} parent=80 // pred_fallthru
              _
            // Predicated region
            $region86: #{conv_trans_forward.17} parent=80 // pred_check
              _
            $region87: #{conv_trans_forward.17} parent=80 // pred_check_branch
              %624 = sbr.rel target = $region89
            $region88: #{conv_trans_forward.17} parent=80 // pred_region
              loop: start=0, step=1, limit=1
              $region90: #{conv_trans_forward.17} parent=88 // loop_pre_header
                _
              $region91: #{conv_trans_forward.17} parent=88 // loop_header
                %s627 = sphi 0, %s631
                %p628 = scmp.ge.s32.totalorder %s627, 1
                %s632 = sphi %s613, %s613
                %s633 = sphi %s618, %s618
              $region92: #{conv_trans_forward.17} parent=88 // loop_header_branch
                %630 = sbr.rel (%p628) target = $region96
              $region93: #{conv_trans_forward.17} parent=88 // loop_body
                %v634 = vld [vmem:[%s632] sm:$0xff]
                %635 = vst [vmem:[%s633] sm:$0xff] %v634
                %v636 = vld [vmem:[%s632 + $0x8] sm:$0xff]
                %637 = vst [vmem:[%s633 + $0x28] sm:$0xff] %v636
              $region94: #{conv_trans_forward.17} parent=88 // loop_footer
                %s631 = sadd.s32 1, %s627
              $region95: #{conv_trans_forward.17} parent=88 // loop_footer_branch
                %626 = sbr.rel target = $region91
              $region96: #{conv_trans_forward.17} parent=88 // loop_exit
                _
            $region89: #{conv_trans_forward.17} parent=80 // pred_fallthru
              _
          $region81: #{conv_trans_forward.17} parent=76 // pred_fallthru
            _
          %654 = vnop
        $region77: #{conv_trans_forward.17} parent=68 // pred_fallthru
          _
      $region69: #{conv_trans_forward.17} parent=5 // pred_fallthru
        _
      %p655 = scmp.le.s32.totalorder 2, %s9
      // Predicated region
      $region112: #{conv_trans_forward.17} parent=5 // pred_check
        %p656 = pneg %p655
      $region113: #{conv_trans_forward.17} parent=5 // pred_check_branch
        %658 = sbr.rel (%p656) target = $region115
      $region114: #{conv_trans_forward.17} parent=5 // pred_region
        %s659 = ssub.s32 %s9, 2
        // Predicated region
        $region116: #{conv_trans_forward.17} parent=114 // pred_check
          %p660 = pneg %p106
        $region117: #{conv_trans_forward.17} parent=114 // pred_check_branch
          %662 = sbr.rel (%p660) target = $region119
        $region118: #{conv_trans_forward.17} parent=114 // pred_region
          %s663 = sand.u32 %s91, 1
          %s664 = sand.u32 %s91, 1
          %s665 = smul.addr %s664, 16
          %s666 = scalar_lea.vmem [#allocation3], %s665
        $region119: #{conv_trans_forward.17} parent=114 // pred_fallthru
          _
      $region115: #{conv_trans_forward.17} parent=5 // pred_fallthru
        _
    $region6: #{conv_trans_forward.17} parent=1 // loop_footer
      %s13 = sadd.s32 1, %s9
    $region7: #{conv_trans_forward.17} parent=1 // loop_footer_branch
      %8 = sbr.rel target = $region3
    $region8: #{conv_trans_forward.17} parent=1 // loop_exit
      _

// kernel: conv_trans_forward.18
$region0: #{conv_trans_forward.18}
  #allocation0 [shape = 'u32[]', space=smem, size = 0x4, offset = 0x4, fixed_abs, tag = 'smem constant byte address 0x4 - core index']
  #allocation1 [shape = 'u32[144,128]{1,0:T(1,128)}', space=vmem, size = 0x12000, scoped, tag = 'internal scratch']
  %s0 = inlined_call_operand.vmem [shape: bf16[2,144], index: 0, kind: input, shape index: {}]
  %s1 = inlined_call_operand.vmem [shape: bf16[144,1536], index: 1, kind: input, shape index: {}]
  %s2 = inlined_call_operand.vmem [shape: f32[2,1], index: 2, kind: input, shape index: {}]
  %s3 = inlined_call_operand.vmem [shape: f32[2,1536], index: 3, kind: output, shape index: {}]
  %s4 = sld [smem:[#allocation0]]
  $region86: #{conv_trans_forward.18} parent=0
    _
  %s6 = ssub.s32 1, %s4
  %s7 = scalar_select 0, %s6, %s4
  $region1: #{conv_trans_forward.18} parent=0
    #allocation2 [shape = 'u8[73728]{0}', space=vmem, size = 0x12000, scoped, tag = 'input window, operand 1']
    loop: start=0, step=1, limit=14
    $region2: #{conv_trans_forward.18} parent=1 // loop_pre_header
      _
    $region3: #{conv_trans_forward.18} parent=1 // loop_header
      %s9 = sphi 0, %s13
      %p10 = scmp.ge.s32.totalorder %s9, 14
      %s17 = sphi 0, %s17
      %s19 = sphi 0, %s17
      %s20 = sphi 0, %s19
      %s34 = sphi 0, %s20
      %s40 = sphi 0, %s42
      %s43 = sphi 0, %s40
      %s44 = sphi 0, %s43
      %s60 = sphi 0, %s44
      %s64 = sphi 0, %s64
      %s66 = sphi 0, %s64
      %s67 = sphi 0, %s66
      %s81 = sphi 0, %s67
      %s87 = sphi 0, %s89
      %s90 = sphi 0, %s87
      %s91 = sphi 0, %s90
      %s107 = sphi 0, %s91
    $region4: #{conv_trans_forward.18} parent=1 // loop_header_branch
      %12 = sbr.rel (%p10) target = $region8
    $region5: #{conv_trans_forward.18} parent=1 // loop_body
      %s14 = ssub.s32 %s9, 1
      %s15 = ssub.s32 %s9, 2
      %s16 = sadd.s32 %s9, 1
      %s18 = sadd.s32 %s17, 1
      %p21 = scmp.eq.s32.totalorder %s9, 11
      %p22 = scmp.ne.s32.totalorder %s17, %s19
      %p23 = scmp.eq.s32.totalorder %s9, 0
      %p24 = por %p22, %p23
      %p25 = scmp.ne.s32.totalorder %s17, %s19
      %p26 = scmp.eq.s32.totalorder %s14, 11
      %p27 = por %p25, %p26
      %p28 = scmp.ne.s32.totalorder %s19, %s20
      %p29 = scmp.eq.s32.totalorder %s14, 0
      %p30 = por %p28, %p29
      %p31 = scmp.ne.s32.totalorder %s19, %s20
      %p32 = scmp.eq.s32.totalorder %s15, 11
      %p33 = por %p31, %p32
      %p35 = scmp.ne.s32.totalorder %s20, %s34
      %p36 = scmp.eq.s32.totalorder %s15, 0
      %p37 = por %p35, %p36
      %s38 = ssub.s32 %s9, %s16
      %p39 = scmp.eq.s32.totalorder %s38, 0
      %s41 = sadd.s32 %s40, 1
      %s42 = scalar_select %p39, %s40, %s41
      %p45 = pneg %p39
      %p46 = scmp.eq.s32.totalorder %s9, 11
      %p47 = por %p45, %p46
      %p48 = scmp.ne.s32.totalorder %s40, %s43
      %p49 = scmp.eq.s32.totalorder %s9, 0
      %p50 = por %p48, %p49
      %p51 = scmp.ne.s32.totalorder %s40, %s43
      %p52 = scmp.eq.s32.totalorder %s14, 11
      %p53 = por %p51, %p52
      %p54 = scmp.ne.s32.totalorder %s43, %s44
      %p55 = scmp.eq.s32.totalorder %s14, 0
      %p56 = por %p54, %p55
      %p57 = scmp.ne.s32.totalorder %s43, %s44
      %p58 = scmp.eq.s32.totalorder %s15, 11
      %p59 = por %p57, %p58
      %p61 = scmp.ne.s32.totalorder %s44, %s60
      %p62 = scmp.eq.s32.totalorder %s15, 0
      %p63 = por %p61, %p62
      %s65 = sadd.s32 %s64, 1
      %p68 = scmp.eq.s32.totalorder %s9, 11
      %p69 = scmp.ne.s32.totalorder %s64, %s66
      %p70 = scmp.eq.s32.totalorder %s9, 0
      %p71 = por %p69, %p70
      %p72 = scmp.ne.s32.totalorder %s64, %s66
      %p73 = scmp.eq.s32.totalorder %s14, 11
      %p74 = por %p72, %p73
      %p75 = scmp.ne.s32.totalorder %s66, %s67
      %p76 = scmp.eq.s32.totalorder %s14, 0
      %p77 = por %p75, %p76
      %p78 = scmp.ne.s32.totalorder %s66, %s67
      %p79 = scmp.eq.s32.totalorder %s15, 11
      %p80 = por %p78, %p79
      %p82 = scmp.ne.s32.totalorder %s67, %s81
      %p83 = scmp.eq.s32.totalorder %s15, 0
      %p84 = por %p82, %p83
      %s85 = ssub.s32 %s9, %s16
      %p86 = scmp.eq.s32.totalorder %s85, 0
      %s88 = sadd.s32 %s87, 1
      %s89 = scalar_select %p86, %s87, %s88
      %p92 = pneg %p86
      %p93 = scmp.eq.s32.totalorder %s9, 11
      %p94 = por %p92, %p93
      %p95 = scmp.ne.s32.totalorder %s87, %s90
      %p96 = scmp.eq.s32.totalorder %s9, 0
      %p97 = por %p95, %p96
      %p98 = scmp.ne.s32.totalorder %s87, %s90
      %p99 = scmp.eq.s32.totalorder %s14, 11
      %p100 = por %p98, %p99
      %p101 = scmp.ne.s32.totalorder %s90, %s91
      %p102 = scmp.eq.s32.totalorder %s14, 0
      %p103 = por %p101, %p102
      %p104 = scmp.ne.s32.totalorder %s90, %s91
      %p105 = scmp.eq.s32.totalorder %s15, 11
      %p106 = por %p104, %p105
      %p108 = scmp.ne.s32.totalorder %s91, %s107
      %p109 = scmp.eq.s32.totalorder %s15, 0
      %p110 = por %p108, %p109
      %p111 = scmp.le.s32.totalorder 1, %s9
      %p112 = scmp.lt.s32.totalorder %s9, 13
      %p113 = pnand %p111, %p112
      %p114 = pneg %p113
      // Predicated region
      $region9: #{conv_trans_forward.18} parent=5 // pred_check
        _
      $region10: #{conv_trans_forward.18} parent=5 // pred_check_branch
        %116 = sbr.rel (%p113) target = $region12
      $region11: #{conv_trans_forward.18} parent=5 // pred_region
        %s117 = ssub.s32 %s9, 1
        // Predicated region
        $region13: #{conv_trans_forward.18} parent=11 // pred_check
          %p118 = pneg %p30
        $region14: #{conv_trans_forward.18} parent=11 // pred_check_branch
          %120 = sbr.rel (%p118) target = $region16
        $region15: #{conv_trans_forward.18} parent=11 // pred_region
          _
        $region16: #{conv_trans_forward.18} parent=11 // pred_fallthru
          _
        // Predicated region
        $region17: #{conv_trans_forward.18} parent=11 // pred_check
          %p121 = pneg %p77
        $region18: #{conv_trans_forward.18} parent=11 // pred_check_branch
          %123 = sbr.rel (%p121) target = $region20
        $region19: #{conv_trans_forward.18} parent=11 // pred_region
          _
        $region20: #{conv_trans_forward.18} parent=11 // pred_fallthru
          _
      $region12: #{conv_trans_forward.18} parent=5 // pred_fallthru
        _
      %p124 = scmp.lt.s32.totalorder %s9, 12
      // Predicated region
      $region21: #{conv_trans_forward.18} parent=5 // pred_check
        %p125 = pneg %p124
      $region22: #{conv_trans_forward.18} parent=5 // pred_check_branch
        %127 = sbr.rel (%p125) target = $region24
      $region23: #{conv_trans_forward.18} parent=5 // pred_region
        // Predicated region
        $region25: #{conv_trans_forward.18} parent=23 // pred_check
          %p128 = pneg %p50
        $region26: #{conv_trans_forward.18} parent=23 // pred_check_branch
          %130 = sbr.rel (%p128) target = $region28
        $region27: #{conv_trans_forward.18} parent=23 // pred_region
          %s131 = sand.u32 %s40, 1
          %s132 = sand.u32 %s40, 1
          %s133 = smul.addr %s132, 72
          %s134 = scalar_lea.vmem [#allocation2], %s133
          %s135 = smul.addr %s9, 4
          %s136 = scalar_lea.vmem %s1, %s135
          // Predicated region
          $region29: #{conv_trans_forward.18} parent=27 // pred_check
            _
          $region30: #{conv_trans_forward.18} parent=27 // pred_check_branch
            %138 = sbr.rel (0) target = $region32
          $region31: #{conv_trans_forward.18} parent=27 // pred_region
            // Predicated region
            $region33: #{conv_trans_forward.18} parent=31 // pred_check
              _
            $region34: #{conv_trans_forward.18} parent=31 // pred_check_branch
              %140 = sbr.rel target = $region36
            $region35: #{conv_trans_forward.18} parent=31 // pred_region
              // Predicated region
              $region48: #{conv_trans_forward.18} parent=35 // pred_check
                _
              $region49: #{conv_trans_forward.18} parent=35 // pred_check_branch
                %189 = sbr.rel (0) target = $region51
              $region50: #{conv_trans_forward.18} parent=35 // pred_region
                loop: start=0, step=1, limit=1
                $region52: #{conv_trans_forward.18} parent=50 // loop_pre_header
                  _
                $region53: #{conv_trans_forward.18} parent=50 // loop_header
                  %s191 = sphi 0, %s195
                  %p192 = scmp.ge.s32.totalorder %s191, 1
                  %s196 = sphi %s136, %s136
                  %s197 = sphi %s134, %s134
                $region54: #{conv_trans_forward.18} parent=50 // loop_header_branch
                  %194 = sbr.rel (%p192) target = $region58
                $region55: #{conv_trans_forward.18} parent=50 // loop_body
                  _
                $region56: #{conv_trans_forward.18} parent=50 // loop_footer
                  %s195 = sadd.s32 1, %s191
                $region57: #{conv_trans_forward.18} parent=50 // loop_footer_branch
                  %190 = sbr.rel target = $region53
                $region58: #{conv_trans_forward.18} parent=50 // loop_exit
                  _
                loop: start=0, step=1, limit=1
                $region59: #{conv_trans_forward.18} parent=50 // loop_pre_header
                  _
                $region60: #{conv_trans_forward.18} parent=50 // loop_header
                  %s200 = sphi 0, %s204
                  %p201 = scmp.ge.s32.totalorder %s200, 1
                  %s205 = sphi %s136, %s136
                  %s206 = sphi %s134, %s134
                $region61: #{conv_trans_forward.18} parent=50 // loop_header_branch
                  %203 = sbr.rel (%p201) target = $region65
                $region62: #{conv_trans_forward.18} parent=50 // loop_body
                  %v207 = vld [vmem:[%s205] sm:$0xf]
                  %208 = vst [vmem:[%s206] sm:$0xf] %v207
                  %v209 = vld [vmem:[%s205 + $0x30] sm:$0xf]
                  %210 = vst [vmem:[%s206 + $0x4] sm:$0xf] %v209
                  %v211 = vld [vmem:[%s205 + $0x60] sm:$0xf]
                  %212 = vst [vmem:[%s206 + $0x8] sm:$0xf] %v211
                  %v213 = vld [vmem:[%s205 + $0x90] sm:$0xf]
                  %214 = vst [vmem:[%s206 + $0xc] sm:$0xf] %v213
                  %v215 = vld [vmem:[%s205 + $0xc0] sm:$0xf]
                  %216 = vst [vmem:[%s206 + $0x10] sm:$0xf] %v215
                  %v217 = vld [vmem:[%s205 + $0xf0] sm:$0xf]
                  %218 = vst [vmem:[%s206 + $0x14] sm:$0xf] %v217
                  %v219 = vld [vmem:[%s205 + $0x120] sm:$0xf]
                  %220 = vst [vmem:[%s206 + $0x18] sm:$0xf] %v219
                  %v221 = vld [vmem:[%s205 + $0x150] sm:$0xf]
                  %222 = vst [vmem:[%s206 + $0x1c] sm:$0xf] %v221
                  %v223 = vld [vmem:[%s205 + $0x180] sm:$0xf]
                  %224 = vst [vmem:[%s206 + $0x20] sm:$0xf] %v223
                  %v225 = vld [vmem:[%s205 + $0x1b0] sm:$0xf]
                  %226 = vst [vmem:[%s206 + $0x24] sm:$0xf] %v225
                  %v227 = vld [vmem:[%s205 + $0x1e0] sm:$0xf]
                  %228 = vst [vmem:[%s206 + $0x28] sm:$0xf] %v227
                  %v229 = vld [vmem:[%s205 + $0x210] sm:$0xf]
                  %230 = vst [vmem:[%s206 + $0x2c] sm:$0xf] %v229
                  %v231 = vld [vmem:[%s205 + $0x240] sm:$0xf]
                  %232 = vst [vmem:[%s206 + $0x30] sm:$0xf] %v231
                  %v233 = vld [vmem:[%s205 + $0x270] sm:$0xf]
                  %234 = vst [vmem:[%s206 + $0x34] sm:$0xf] %v233
                  %v235 = vld [vmem:[%s205 + $0x2a0] sm:$0xf]
                  %236 = vst [vmem:[%s206 + $0x38] sm:$0xf] %v235
                  %v237 = vld [vmem:[%s205 + $0x2d0] sm:$0xf]
                  %238 = vst [vmem:[%s206 + $0x3c] sm:$0xf] %v237
                  %v239 = vld [vmem:[%s205 + $0x300] sm:$0xf]
                  %240 = vst [vmem:[%s206 + $0x40] sm:$0xf] %v239
                  %v241 = vld [vmem:[%s205 + $0x330] sm:$0xf]
                  %242 = vst [vmem:[%s206 + $0x44] sm:$0xf] %v241
                $region63: #{conv_trans_forward.18} parent=50 // loop_footer
                  %s204 = sadd.s32 1, %s200
                $region64: #{conv_trans_forward.18} parent=50 // loop_footer_branch
                  %199 = sbr.rel target = $region60
                $region65: #{conv_trans_forward.18} parent=50 // loop_exit
                  _
              $region51: #{conv_trans_forward.18} parent=35 // pred_fallthru
                _
            $region36: #{conv_trans_forward.18} parent=31 // pred_fallthru
              _
            // Predicated region
            $region37: #{conv_trans_forward.18} parent=31 // pred_check
              _
            $region38: #{conv_trans_forward.18} parent=31 // pred_check_branch
              %142 = sbr.rel (0) target = $region40
            $region39: #{conv_trans_forward.18} parent=31 // pred_region
              loop: start=0, step=1, limit=1
              $region41: #{conv_trans_forward.18} parent=39 // loop_pre_header
                _
              $region42: #{conv_trans_forward.18} parent=39 // loop_header
                %s145 = sphi 0, %s149
                %p146 = scmp.ge.s32.totalorder %s145, 1
                %s150 = sphi %s136, %s136
                %s151 = sphi %s134, %s134
              $region43: #{conv_trans_forward.18} parent=39 // loop_header_branch
                %148 = sbr.rel (%p146) target = $region47
              $region44: #{conv_trans_forward.18} parent=39 // loop_body
                %v152 = vld [vmem:[%s150] sm:$0xf]
                %153 = vst [vmem:[%s151] sm:$0xf] %v152
                %v154 = vld [vmem:[%s150 + $0x30] sm:$0xf]
                %155 = vst [vmem:[%s151 + $0x4] sm:$0xf] %v154
                %v156 = vld [vmem:[%s150 + $0x60] sm:$0xf]
                %157 = vst [vmem:[%s151 + $0x8] sm:$0xf] %v156
                %v158 = vld [vmem:[%s150 + $0x90] sm:$0xf]
                %159 = vst [vmem:[%s151 + $0xc] sm:$0xf] %v158
                %v160 = vld [vmem:[%s150 + $0xc0] sm:$0xf]
                %161 = vst [vmem:[%s151 + $0x10] sm:$0xf] %v160
                %v162 = vld [vmem:[%s150 + $0xf0] sm:$0xf]
                %163 = vst [vmem:[%s151 + $0x14] sm:$0xf] %v162
                %v164 = vld [vmem:[%s150 + $0x120] sm:$0xf]
                %165 = vst [vmem:[%s151 + $0x18] sm:$0xf] %v164
                %v166 = vld [vmem:[%s150 + $0x150] sm:$0xf]
                %167 = vst [vmem:[%s151 + $0x1c] sm:$0xf] %v166
                %v168 = vld [vmem:[%s150 + $0x180] sm:$0xf]
                %169 = vst [vmem:[%s151 + $0x20] sm:$0xf] %v168
                %v170 = vld [vmem:[%s150 + $0x1b0] sm:$0xf]
                %171 = vst [vmem:[%s151 + $0x24] sm:$0xf] %v170
                %v172 = vld [vmem:[%s150 + $0x1e0] sm:$0xf]
                %173 = vst [vmem:[%s151 + $0x28] sm:$0xf] %v172
                %v174 = vld [vmem:[%s150 + $0x210] sm:$0xf]
                %175 = vst [vmem:[%s151 + $0x2c] sm:$0xf] %v174
                %v176 = vld [vmem:[%s150 + $0x240] sm:$0xf]
                %177 = vst [vmem:[%s151 + $0x30] sm:$0xf] %v176
                %v178 = vld [vmem:[%s150 + $0x270] sm:$0xf]
                %179 = vst [vmem:[%s151 + $0x34] sm:$0xf] %v178
                %v180 = vld [vmem:[%s150 + $0x2a0] sm:$0xf]
                %181 = vst [vmem:[%s151 + $0x38] sm:$0xf] %v180
                %v182 = vld [vmem:[%s150 + $0x2d0] sm:$0xf]
                %183 = vst [vmem:[%s151 + $0x3c] sm:$0xf] %v182
                %v184 = vld [vmem:[%s150 + $0x300] sm:$0xf]
                %185 = vst [vmem:[%s151 + $0x40] sm:$0xf] %v184
                %v186 = vld [vmem:[%s150 + $0x330] sm:$0xf]
                %187 = vst [vmem:[%s151 + $0x44] sm:$0xf] %v186
              $region45: #{conv_trans_forward.18} parent=39 // loop_footer
                %s149 = sadd.s32 1, %s145
              $region46: #{conv_trans_forward.18} parent=39 // loop_footer_branch
                %144 = sbr.rel target = $region42
              $region47: #{conv_trans_forward.18} parent=39 // loop_exit
                _
            $region40: #{conv_trans_forward.18} parent=31 // pred_fallthru
              _
          $region32: #{conv_trans_forward.18} parent=27 // pred_fallthru
            _
          %243 = vnop
        $region28: #{conv_trans_forward.18} parent=23 // pred_fallthru
          _
      $region24: #{conv_trans_forward.18} parent=5 // pred_fallthru
        _
      %p244 = scmp.le.s32.totalorder 1, %s9
      %p245 = scmp.lt.s32.totalorder %s9, 13
      %p246 = pnand %p244, %p245
      %p247 = pneg %p246
      // Predicated region
      $region66: #{conv_trans_forward.18} parent=5 // pred_check
        _
      $region67: #{conv_trans_forward.18} parent=5 // pred_check_branch
        %249 = sbr.rel (%p246) target = $region69
      $region68: #{conv_trans_forward.18} parent=5 // pred_region
        %s250 = ssub.s32 %s9, 1
        %s251 = sand.u32 %s43, 1
        %s252 = sand.u32 %s43, 1
        %s253 = smul.addr %s252, 72
        %s254 = scalar_lea.vmem [#allocation2], %s253
        // Predicated region
        $region70: #{conv_trans_forward.18} parent=68 // pred_check
          %p255 = pneg %p56
        $region71: #{conv_trans_forward.18} parent=68 // pred_check_branch
          %257 = sbr.rel (%p255) target = $region73
        $region72: #{conv_trans_forward.18} parent=68 // pred_region
          _
        $region73: #{conv_trans_forward.18} parent=68 // pred_fallthru
          _
        %p258 = pneg %p30
        %p259 = pneg %p27
        %s260 = sand.u32 %s43, 1
        %s261 = sand.u32 %s43, 1
        %s262 = smul.addr %s261, 72
        %s263 = scalar_lea.vmem [#allocation2], %s262
        %p264 = pneg %p56
        %p265 = pneg %p53
        %p266 = pneg %p77
        %p267 = pneg %p74
        %p268 = pneg %p103
        %p269 = pneg %p100
        %p270 = scmp.lt.s32.totalorder %s14, 11
        %s271 = scalar_select %p270, %s14, 11
        %s272 = smul.addr %s271, 2
        %s273 = scalar_lea.vmem %s3, %s272
        %p274 = scmp.lt.s32.totalorder %s14, 11
        %s275 = scalar_select %p274, %s14, 11
        %s276 = smul.addr %s275, 2
        %s277 = scalar_lea.vmem %s3, %s276
        %v279 = vld [vmem:[%s0] sm:$0x3]
        %v280 = vld [vmem:[%s254] sm:$0xf]
        %v281 = vld [vmem:[%s254 + $0x4] sm:$0xf]
        %v282 = vld [vmem:[%s254 + $0x8] sm:$0xf]
        %v283 = vld [vmem:[%s254 + $0xc] sm:$0xf]
        %v284 = vld [vmem:[%s254 + $0x10] sm:$0xf]
        %v285 = vld [vmem:[%s254 + $0x14] sm:$0xf]
        %v286 = vld [vmem:[%s254 + $0x18] sm:$0xf]
        %v287 = vld [vmem:[%s254 + $0x1c] sm:$0xf]
        %v288 = vld [vmem:[%s254 + $0x20] sm:$0xf]
        %v289 = vld [vmem:[%s254 + $0x24] sm:$0xf]
        %v290 = vld [vmem:[%s254 + $0x28] sm:$0xf]
        %v291 = vld [vmem:[%s254 + $0x2c] sm:$0xf]
        %v292 = vld [vmem:[%s254 + $0x30] sm:$0xf]
        %v293 = vld [vmem:[%s254 + $0x34] sm:$0xf]
        %v294 = vld [vmem:[%s254 + $0x38] sm:$0xf]
        %v295 = vld [vmem:[%s254 + $0x3c] sm:$0xf]
        %v296 = vld [vmem:[%s254 + $0x40] sm:$0xf]
        %v297 = vld [vmem:[%s254 + $0x44] sm:$0xf]
        %v298 = vld [vmem:[%s2] sm:$0x3]
        %300 = vset.pattern.permute.xlu0 0
        %301 = vperm.xlu0 %300, %v298
        %v302 = vpop.permute.xlu0 %301
        %v306 = vunpack.c.l.s4 1966171168
        %v307 = vunpack.c.0.s8 %v306
        %v308 = vlaneseq
        %v309 = vshrl.u32 %v308, 7
        %v310 = vsub.s32 %v307, %v309
        %v311 = vrot.slane %v279, %v310
        %v312 = vcombine.high %v311, %v311
        %v314 = vunpack.c.l.s4 1966171168
        %v315 = vunpack.c.0.s8 %v314
        %v316 = vlaneseq
        %v317 = vshrl.u32 %v316, 7
        %v318 = vsub.s32 %v315, %v317
        %v319 = vrot.slane %v311, %v318
        %v321 = vunpack.c.l.s4 1966171168
        %v322 = vunpack.c.0.s8 %v321
        %v323 = vlaneseq
        %v324 = vshrl.u32 %v323, 7
        %v325 = vsub.s32 %v322, %v324
        %v326 = vrot.slane %v312, %v325
        %v346 = vunpack.c.l.b16 %v280
        %v347 = vunpack.c.l.b16 %v281
        %v348 = vunpack.c.l.b16 %v282
        %v349 = vunpack.c.l.b16 %v283
        %v350 = vunpack.c.l.b16 %v284
        %v351 = vunpack.c.l.b16 %v285
        %v352 = vunpack.c.l.b16 %v286
        %v353 = vunpack.c.l.b16 %v287
        %v354 = vunpack.c.l.b16 %v288
        %v355 = vunpack.c.l.b16 %v289
        %v356 = vunpack.c.l.b16 %v290
        %v357 = vunpack.c.l.b16 %v291
        %v358 = vunpack.c.l.b16 %v292
        %v359 = vunpack.c.l.b16 %v293
        %v360 = vunpack.c.l.b16 %v294
        %v361 = vunpack.c.l.b16 %v295
        %v362 = vunpack.c.l.b16 %v296
        %v363 = vunpack.c.l.b16 %v297
        %v364 = vpack.c.b16 %v347, %v346
        %v365 = vpack.c.b16 %v349, %v348
        %v366 = vpack.c.b16 %v351, %v350
        %v367 = vpack.c.b16 %v353, %v352
        %v368 = vpack.c.b16 %v355, %v354
        %v369 = vpack.c.b16 %v357, %v356
        %v370 = vpack.c.b16 %v359, %v358
        %v371 = vpack.c.b16 %v361, %v360
        %v372 = vpack.c.b16 %v363, %v362
        %vm382 = vcmask 130048
        %v384 = vsel %vm382, %v326, 0
        %386 = vmatprep.subr.bf16.mxu0 0
        %387 = vmatpush1.bf16.msra.mxu0 %v364
        %388 = vmatprep.subr.bf16.mxu0 0
        %389 = vmatpush1.bf16.msra.mxu0 %v365
        %390 = vmatprep.subr.bf16.mxu0 0
        %391 = vmatpush1.bf16.msra.mxu0 %v366
        %392 = vmatprep.subr.bf16.mxu0 0
        %393 = vmatpush1.bf16.msra.mxu0 %v367
        %394 = vmatprep.subr.bf16.mxu0 0
        %395 = vmatpush1.bf16.msra.mxu0 %v368
        %396 = vmatprep.subr.bf16.mxu0 0
        %397 = vmatpush1.bf16.msra.mxu0 %v369
        %398 = vmatprep.subr.bf16.mxu0 0
        %399 = vmatpush1.bf16.msra.mxu0 %v370
        %400 = vmatprep.subr.bf16.mxu0 0
        %401 = vmatpush1.bf16.msra.mxu0 %v371
        %402 = vmatprep.subr.bf16.mxu0 0
        %403 = vmatpush1.bf16.msra.mxu0 %v372
        %404 = vmatprep.subr.bf16.mxu0 0
        %405 = vmatpush1.bf16.msra.mxu0 0
        %406 = vmatprep.subr.bf16.mxu0 0
        %407 = vmatpush1.bf16.msra.mxu0 0
        %408 = vmatprep.subr.bf16.mxu0 0
        %409 = vmatpush1.bf16.msra.mxu0 0
        %410 = vmatprep.subr.bf16.mxu0 0
        %411 = vmatpush1.bf16.msra.mxu0 0
        %412 = vmatprep.subr.bf16.mxu0 0
        %413 = vmatpush1.bf16.msra.mxu0 0
        %414 = vmatprep.subr.bf16.mxu0 0
        %415 = vmatpush1.bf16.msra.mxu0 0
        %416 = vmatprep.subr.bf16.mxu0 0
        %417 = vmatpush1.bf16.msra.mxu0 0
        %418 = vmatprep.mubr.bf16.mxu0 %v384
        %419 = vmatmul.mubr.bf16.gmra.mrb[0].mxu0 %v319
        %v420 = vpop.f32.mrb[0].mxu0
        %v421 = vadd.f32 %v302, %v420
        %v422 = vpop.f32.mrb[0].mxu0
        %v423 = vpop.f32.mrb[0].mxu0
        %v424 = vpop.f32.mrb[0].mxu0
        %425 = vdwg.mxu0
        %426 = vst [vmem:[%s277] sm:$0x3] %v421
        %p427 = scmp.lt.s32.totalorder %s14, 11
        %s428 = scalar_select %p427, %s14, 11
        %s429 = smul.addr %s428, 2
        %s430 = scalar_lea.vmem %s3, %s429
        // Predicated region
        $region74: #{conv_trans_forward.18} parent=68 // pred_check
          %p431 = pneg %p100
        $region75: #{conv_trans_forward.18} parent=68 // pred_check_branch
          %433 = sbr.rel (%p431) target = $region77
        $region76: #{conv_trans_forward.18} parent=68 // pred_region
          _
        $region77: #{conv_trans_forward.18} parent=68 // pred_fallthru
          _
      $region69: #{conv_trans_forward.18} parent=5 // pred_fallthru
        _
      %p434 = scmp.le.s32.totalorder 2, %s9
      // Predicated region
      $region78: #{conv_trans_forward.18} parent=5 // pred_check
        %p435 = pneg %p434
      $region79: #{conv_trans_forward.18} parent=5 // pred_check_branch
        %437 = sbr.rel (%p435) target = $region81
      $region80: #{conv_trans_forward.18} parent=5 // pred_region
        %s438 = ssub.s32 %s9, 2
        // Predicated region
        $region82: #{conv_trans_forward.18} parent=80 // pred_check
          %p439 = pneg %p106
        $region83: #{conv_trans_forward.18} parent=80 // pred_check_branch
          %441 = sbr.rel (%p439) target = $region85
        $region84: #{conv_trans_forward.18} parent=80 // pred_region
          %p442 = scmp.lt.s32.totalorder %s15, 11
          %s443 = scalar_select %p442, %s15, 11
          %s444 = smul.addr %s443, 2
          %s445 = scalar_lea.vmem %s3, %s444
        $region85: #{conv_trans_forward.18} parent=80 // pred_fallthru
          _
      $region81: #{conv_trans_forward.18} parent=5 // pred_fallthru
        _
    $region6: #{conv_trans_forward.18} parent=1 // loop_footer
      %s13 = sadd.s32 1, %s9
    $region7: #{conv_trans_forward.18} parent=1 // loop_footer_branch
      %8 = sbr.rel target = $region3
    $region8: #{conv_trans_forward.18} parent=1 // loop_exit
      _

// kernel: conv_trans_forward.19
$region0: #{conv_trans_forward.19}
  #allocation0 [shape = 'u32[]', space=smem, size = 0x4, offset = 0x4, fixed_abs, tag = 'smem constant byte address 0x4 - core index']
  #allocation1 [shape = 'u32[144,128]{1,0:T(1,128)}', space=vmem, size = 0x12000, scoped, tag = 'internal scratch']
  %s0 = inlined_call_operand.vmem [shape: f32[96,31], index: 0, kind: input, shape index: {}]
  %s1 = inlined_call_operand.vmem [shape: bf16[31,512], index: 1, kind: input, shape index: {}]
  %s2 = inlined_call_operand.vmem [shape: f32[1,512], index: 2, kind: input, shape index: {}]
  %s3 = inlined_call_operand.vmem [shape: bf16[512,31], index: 3, kind: input, shape index: {}]
  %s4 = inlined_call_operand.vmem [shape: f32[1,31], index: 4, kind: input, shape index: {}]
  %s5 = inlined_call_operand.vmem [shape: f32[96,31], index: 5, kind: output, shape index: {}]
  %s6 = sld [smem:[#allocation0]]
  $region30: #{conv_trans_forward.19} parent=0
    _
  %s8 = ssub.s32 1, %s6
  %s9 = scalar_select 0, %s8, %s6
  // Predicated region
  $region2: #{conv_trans_forward.19} parent=0 // pred_check
    _
  $region3: #{conv_trans_forward.19} parent=0 // pred_check_branch
    %11 = sbr.rel (0) target = $region5
  $region4: #{conv_trans_forward.19} parent=0 // pred_region
    _
  $region5: #{conv_trans_forward.19} parent=0 // pred_fallthru
    _
  // Predicated region
  $region6: #{conv_trans_forward.19} parent=0 // pred_check
    _
  $region7: #{conv_trans_forward.19} parent=0 // pred_check_branch
    %13 = sbr.rel (0) target = $region9
  $region8: #{conv_trans_forward.19} parent=0 // pred_region
    _
  $region9: #{conv_trans_forward.19} parent=0 // pred_fallthru
    _
  // Predicated region
  $region10: #{conv_trans_forward.19} parent=0 // pred_check
    _
  $region11: #{conv_trans_forward.19} parent=0 // pred_check_branch
    %15 = sbr.rel (0) target = $region13
  $region12: #{conv_trans_forward.19} parent=0 // pred_region
    _
  $region13: #{conv_trans_forward.19} parent=0 // pred_fallthru
    _
  // Predicated region
  $region14: #{conv_trans_forward.19} parent=0 // pred_check
    _
  $region15: #{conv_trans_forward.19} parent=0 // pred_check_branch
    %17 = sbr.rel (0) target = $region17
  $region16: #{conv_trans_forward.19} parent=0 // pred_region
    _
  $region17: #{conv_trans_forward.19} parent=0 // pred_fallthru
    _
  // Predicated region
  $region18: #{conv_trans_forward.19} parent=0 // pred_check
    _
  $region19: #{conv_trans_forward.19} parent=0 // pred_check_branch
    %19 = sbr.rel (0) target = $region21
  $region20: #{conv_trans_forward.19} parent=0 // pred_region
    _
  $region21: #{conv_trans_forward.19} parent=0 // pred_fallthru
    _
  %v21 = vld [vmem:[%s0] sm:$0xff]
  %v22 = vld [vmem:[%s0 + $0x8] sm:$0xff]
  %v23 = vld [vmem:[%s0 + $0x10] sm:$0xff]
  %v24 = vld [vmem:[%s0 + $0x18] sm:$0xff]
  %v25 = vld [vmem:[%s0 + $0x20] sm:$0xff]
  %v26 = vld [vmem:[%s0 + $0x28] sm:$0xff]
  %v27 = vld [vmem:[%s0 + $0x30] sm:$0xff]
  %v28 = vld [vmem:[%s0 + $0x38] sm:$0xff]
  %v29 = vld [vmem:[%s0 + $0x40] sm:$0xff]
  %v30 = vld [vmem:[%s0 + $0x48] sm:$0xff]
  %v31 = vld [vmem:[%s0 + $0x50] sm:$0xff]
  %v32 = vld [vmem:[%s0 + $0x58] sm:$0xff]
  %v33 = vpack.c.bf16 %v22, %v21
  %v34 = vpack.c.bf16 %v24, %v23
  %v35 = vpack.c.bf16 %v26, %v25
  %v36 = vpack.c.bf16 %v28, %v27
  %v37 = vpack.c.bf16 %v30, %v29
  %v38 = vpack.c.bf16 %v32, %v31
  %v39 = vld [vmem:[%s1] sm:$0xff]
  %v40 = vld [vmem:[%s1 + $0x8] sm:$0xff]
  %v41 = vld [vmem:[%s1 + $0x10] sm:$0xff]
  %v42 = vld [vmem:[%s1 + $0x18] sm:$0xff]
  %v43 = vld [vmem:[%s1 + $0x20] sm:$0xff]
  %v44 = vld [vmem:[%s1 + $0x28] sm:$0xff]
  %v45 = vld [vmem:[%s1 + $0x30] sm:$0xff]
  %v46 = vld [vmem:[%s1 + $0x38] sm:$0xff]
  %v47 = vld [vmem:[%s2] sm:$0xf]
  %v49 = vlaneseq
  %v50 = vshrl.u32 %v49, 7
  %v51 = vsub.s32 0, %v50
  %v52 = vrot.slane %v47, %v51
  %v53 = vlaneseq
  %v54 = vshrl.u32 %v53, 7
  %v55 = vsub.s32 1, %v54
  %v56 = vrot.slane %v47, %v55
  %v57 = vlaneseq
  %v58 = vshrl.u32 %v57, 7
  %v59 = vsub.s32 2, %v58
  %v60 = vrot.slane %v47, %v59
  %v61 = vlaneseq
  %v62 = vshrl.u32 %v61, 7
  %v63 = vsub.s32 3, %v62
  %v64 = vrot.slane %v47, %v63
  %v77 = vunpack.c.l.b16 %v39
  %v78 = vunpack.c.h.b16 %v39
  %v79 = vunpack.c.l.b16 %v40
  %v80 = vunpack.c.h.b16 %v40
  %v81 = vunpack.c.l.b16 %v41
  %v82 = vunpack.c.h.b16 %v41
  %v83 = vunpack.c.l.b16 %v42
  %v84 = vunpack.c.h.b16 %v42
  %v85 = vunpack.c.l.b16 %v43
  %v86 = vunpack.c.h.b16 %v43
  %v87 = vunpack.c.l.b16 %v44
  %v88 = vunpack.c.h.b16 %v44
  %v89 = vunpack.c.l.b16 %v45
  %v90 = vunpack.c.h.b16 %v45
  %v91 = vunpack.c.l.b16 %v46
  %v92 = vunpack.c.h.b16 %v46
  %v93 = vpack.c.b16 %v81, %v77
  %v94 = vpack.c.b16 %v82, %v78
  %v95 = vpack.c.b16 %v83, %v79
  %v96 = vpack.c.b16 %v84, %v80
  %v97 = vpack.c.b16 %v89, %v85
  %v98 = vpack.c.b16 %v90, %v86
  %v99 = vpack.c.b16 %v91, %v87
  %v100 = vpack.c.b16 %v92, %v88
  %vm105 = vcmask 252928
  %v107 = vsel %vm105, %v33, 0
  %v110 = vsel %vm105, %v34, 0
  %v113 = vsel %vm105, %v35, 0
  %v116 = vsel %vm105, %v36, 0
  %v119 = vsel %vm105, %v37, 0
  %v122 = vsel %vm105, %v38, 0
  %vm124 = vcmask 1046528
  %vm125 = vcmask 1047552
  %v126 = vsel %vm124, 4294967295, 65535
  %v127 = vsel %vm125, %v126, 0
  %v129 = vand.u32 %v97, %v127
  %v132 = vand.u32 %v98, %v127
  %v135 = vand.u32 %v99, %v127
  %v138 = vand.u32 %v100, %v127
  %140 = vmatprep.subr.bf16.mxu0 %v94
  %141 = vmatpush1.bf16.msra.mxu0 %v93
  %142 = vmatprep.subr.bf16.mxu0 %v132
  %143 = vmatpush1.bf16.msra.mxu0 %v129
  %144 = vmatprep.subr.bf16.mxu0 0
  %145 = vmatpush1.bf16.msra.mxu0 0
  %146 = vmatprep.subr.bf16.mxu0 0
  %147 = vmatpush1.bf16.msra.mxu0 0
  %148 = vmatprep.subr.bf16.mxu0 0
  %149 = vmatpush1.bf16.msra.mxu0 0
  %150 = vmatprep.subr.bf16.mxu0 0
  %151 = vmatpush1.bf16.msra.mxu0 0
  %152 = vmatprep.subr.bf16.mxu0 0
  %153 = vmatpush1.bf16.msra.mxu0 0
  %154 = vmatprep.subr.bf16.mxu0 0
  %155 = vmatpush1.bf16.msra.mxu0 0
  %156 = vmatprep.subr.bf16.mxu0 0
  %157 = vmatpush1.bf16.msra.mxu0 0
  %158 = vmatprep.subr.bf16.mxu0 0
  %159 = vmatpush1.bf16.msra.mxu0 0
  %160 = vmatprep.subr.bf16.mxu0 0
  %161 = vmatpush1.bf16.msra.mxu0 0
  %162 = vmatprep.subr.bf16.mxu0 0
  %163 = vmatpush1.bf16.msra.mxu0 0
  %164 = vmatprep.subr.bf16.mxu0 0
  %165 = vmatpush1.bf16.msra.mxu0 0
  %166 = vmatprep.subr.bf16.mxu0 0
  %167 = vmatpush1.bf16.msra.mxu0 0
  %168 = vmatprep.subr.bf16.mxu0 0
  %169 = vmatpush1.bf16.msra.mxu0 0
  %170 = vmatprep.subr.bf16.mxu0 0
  %171 = vmatpush1.bf16.msra.mxu0 0
  %172 = vmatprep.mubr.bf16.mxu0 0
  %173 = vmatmul.mubr.bf16.gmra.mrb[0].mxu0 %v107
  %v174 = vpop.f32.mrb[0].mxu0
  %v175 = vadd.f32 %v52, %v174
  %v176 = vpop.f32.mrb[0].mxu0
  %v177 = vadd.f32 %v56, %v176
  %v178 = vpop.f32.mrb[0].mxu0
  %v179 = vadd.f32 %v52, %v178
  %v180 = vpop.f32.mrb[0].mxu0
  %v181 = vadd.f32 %v56, %v180
  %182 = vmatprep.mubr.bf16.mxu0 0
  %183 = vmatmul.mubr.bf16.gmra.mrb[0].mxu0 %v110
  %v184 = vpop.f32.mrb[0].mxu0
  %v185 = vadd.f32 %v52, %v184
  %v186 = vpop.f32.mrb[0].mxu0
  %v187 = vadd.f32 %v56, %v186
  %v188 = vpop.f32.mrb[0].mxu0
  %v189 = vadd.f32 %v52, %v188
  %v190 = vpop.f32.mrb[0].mxu0
  %v191 = vadd.f32 %v56, %v190
  %192 = vmatprep.mubr.bf16.mxu0 0
  %193 = vmatmul.mubr.bf16.gmra.mrb[0].mxu0 %v113
  %v194 = vpop.f32.mrb[0].mxu0
  %v195 = vadd.f32 %v52, %v194
  %v196 = vpop.f32.mrb[0].mxu0
  %v197 = vadd.f32 %v56, %v196
  %v198 = vpop.f32.mrb[0].mxu0
  %v199 = vadd.f32 %v52, %v198
  %v200 = vpop.f32.mrb[0].mxu0
  %v201 = vadd.f32 %v56, %v200
  %202 = vmatprep.mubr.bf16.mxu0 0
  %203 = vmatmul.mubr.bf16.gmra.mrb[0].mxu0 %v116
  %v204 = vpop.f32.mrb[0].mxu0
  %v205 = vadd.f32 %v52, %v204
  %v206 = vpop.f32.mrb[0].mxu0
  %v207 = vadd.f32 %v56, %v206
  %v208 = vpop.f32.mrb[0].mxu0
  %v209 = vadd.f32 %v52, %v208
  %v210 = vpop.f32.mrb[0].mxu0
  %v211 = vadd.f32 %v56, %v210
  %212 = vmatprep.mubr.bf16.mxu0 0
  %213 = vmatmul.mubr.bf16.gmra.mrb[0].mxu0 %v119
  %v214 = vpop.f32.mrb[0].mxu0
  %v215 = vadd.f32 %v52, %v214
  %v216 = vpop.f32.mrb[0].mxu0
  %v217 = vadd.f32 %v56, %v216
  %v218 = vpop.f32.mrb[0].mxu0
  %v219 = vadd.f32 %v52, %v218
  %v220 = vpop.f32.mrb[0].mxu0
  %v221 = vadd.f32 %v56, %v220
  %222 = vmatprep.mubr.bf16.mxu0 0
  %223 = vmatmul.mubr.bf16.gmra.mrb[0].mxu0 %v122
  %v224 = vpop.f32.mrb[0].mxu0
  %v225 = vadd.f32 %v52, %v224
  %v226 = vpop.f32.mrb[0].mxu0
  %v227 = vadd.f32 %v56, %v226
  %v228 = vpop.f32.mrb[0].mxu0
  %v229 = vadd.f32 %v52, %v228
  %v230 = vpop.f32.mrb[0].mxu0
  %v231 = vadd.f32 %v56, %v230
  %232 = vdwg.mxu0
  %233 = vmatprep.subr.bf16.mxu0 %v96
  %234 = vmatpush1.bf16.msra.mxu0 %v95
  %235 = vmatprep.subr.bf16.mxu0 %v138
  %236 = vmatpush1.bf16.msra.mxu0 %v135
  %237 = vmatprep.subr.bf16.mxu0 0
  %238 = vmatpush1.bf16.msra.mxu0 0
  %239 = vmatprep.subr.bf16.mxu0 0
  %240 = vmatpush1.bf16.msra.mxu0 0
  %241 = vmatprep.subr.bf16.mxu0 0
  %242 = vmatpush1.bf16.msra.mxu0 0
  %243 = vmatprep.subr.bf16.mxu0 0
  %244 = vmatpush1.bf16.msra.mxu0 0
  %245 = vmatprep.subr.bf16.mxu0 0
  %246 = vmatpush1.bf16.msra.mxu0 0
  %247 = vmatprep.subr.bf16.mxu0 0
  %248 = vmatpush1.bf16.msra.mxu0 0
  %249 = vmatprep.subr.bf16.mxu0 0
  %250 = vmatpush1.bf16.msra.mxu0 0
  %251 = vmatprep.subr.bf16.mxu0 0
  %252 = vmatpush1.bf16.msra.mxu0 0
  %253 = vmatprep.subr.bf16.mxu0 0
  %254 = vmatpush1.bf16.msra.mxu0 0
  %255 = vmatprep.subr.bf16.mxu0 0
  %256 = vmatpush1.bf16.msra.mxu0 0
  %257 = vmatprep.subr.bf16.mxu0 0
  %258 = vmatpush1.bf16.msra.mxu0 0
  %259 = vmatprep.subr.bf16.mxu0 0
  %260 = vmatpush1.bf16.msra.mxu0 0
  %261 = vmatprep.subr.bf16.mxu0 0
  %262 = vmatpush1.bf16.msra.mxu0 0
  %263 = vmatprep.subr.bf16.mxu0 0
  %264 = vmatpush1.bf16.msra.mxu0 0
  %265 = vmatprep.mubr.bf16.mxu0 0
  %266 = vmatmul.mubr.bf16.gmra.mrb[0].mxu0 %v107
  %v267 = vpop.f32.mrb[0].mxu0
  %v268 = vadd.f32 %v60, %v267
  %v269 = vpop.f32.mrb[0].mxu0
  %v270 = vadd.f32 %v64, %v269
  %v271 = vpop.f32.mrb[0].mxu0
  %v272 = vadd.f32 %v60, %v271
  %v273 = vpop.f32.mrb[0].mxu0
  %v274 = vadd.f32 %v64, %v273
  %275 = vmatprep.mubr.bf16.mxu0 0
  %276 = vmatmul.mubr.bf16.gmra.mrb[0].mxu0 %v110
  %v277 = vpop.f32.mrb[0].mxu0
  %v278 = vadd.f32 %v60, %v277
  %v279 = vpop.f32.mrb[0].mxu0
  %v280 = vadd.f32 %v64, %v279
  %v281 = vpop.f32.mrb[0].mxu0
  %v282 = vadd.f32 %v60, %v281
  %v283 = vpop.f32.mrb[0].mxu0
  %v284 = vadd.f32 %v64, %v283
  %285 = vmatprep.mubr.bf16.mxu0 0
  %286 = vmatmul.mubr.bf16.gmra.mrb[0].mxu0 %v113
  %v287 = vpop.f32.mrb[0].mxu0
  %v288 = vadd.f32 %v60, %v287
  %v289 = vpop.f32.mrb[0].mxu0
  %v290 = vadd.f32 %v64, %v289
  %v291 = vpop.f32.mrb[0].mxu0
  %v292 = vadd.f32 %v60, %v291
  %v293 = vpop.f32.mrb[0].mxu0
  %v294 = vadd.f32 %v64, %v293
  %295 = vmatprep.mubr.bf16.mxu0 0
  %296 = vmatmul.mubr.bf16.gmra.mrb[0].mxu0 %v116
  %v297 = vpop.f32.mrb[0].mxu0
  %v298 = vadd.f32 %v60, %v297
  %v299 = vpop.f32.mrb[0].mxu0
  %v300 = vadd.f32 %v64, %v299
  %v301 = vpop.f32.mrb[0].mxu0
  %v302 = vadd.f32 %v60, %v301
  %v303 = vpop.f32.mrb[0].mxu0
  %v304 = vadd.f32 %v64, %v303
  %305 = vmatprep.mubr.bf16.mxu0 0
  %306 = vmatmul.mubr.bf16.gmra.mrb[0].mxu0 %v119
  %v307 = vpop.f32.mrb[0].mxu0
  %v308 = vadd.f32 %v60, %v307
  %v309 = vpop.f32.mrb[0].mxu0
  %v310 = vadd.f32 %v64, %v309
  %v311 = vpop.f32.mrb[0].mxu0
  %v312 = vadd.f32 %v60, %v311
  %v313 = vpop.f32.mrb[0].mxu0
  %v314 = vadd.f32 %v64, %v313
  %315 = vmatprep.mubr.bf16.mxu0 0
  %316 = vmatmul.mubr.bf16.gmra.mrb[0].mxu0 %v122
  %v317 = vpop.f32.mrb[0].mxu0
  %v318 = vadd.f32 %v60, %v317
  %v319 = vpop.f32.mrb[0].mxu0
  %v320 = vadd.f32 %v64, %v319
  %v321 = vpop.f32.mrb[0].mxu0
  %v322 = vadd.f32 %v60, %v321
  %v323 = vpop.f32.mrb[0].mxu0
  %v324 = vadd.f32 %v64, %v323
  %325 = vdwg.mxu0
  %v326 = vtanh.pop %v175
  %v327 = vtanh.pop %v177
  %v328 = vtanh.pop %v268
  %v329 = vtanh.pop %v270
  %v330 = vtanh.pop %v179
  %v331 = vtanh.pop %v181
  %v332 = vtanh.pop %v272
  %v333 = vtanh.pop %v274
  %v334 = vtanh.pop %v185
  %v335 = vtanh.pop %v187
  %v336 = vtanh.pop %v278
  %v337 = vtanh.pop %v280
  %v338 = vtanh.pop %v189
  %v339 = vtanh.pop %v191
  %v340 = vtanh.pop %v282
  %v341 = vtanh.pop %v284
  %v342 = vtanh.pop %v195
  %v343 = vtanh.pop %v197
  %v344 = vtanh.pop %v288
  %v345 = vtanh.pop %v290
  %v346 = vtanh.pop %v199
  %v347 = vtanh.pop %v201
  %v348 = vtanh.pop %v292
  %v349 = vtanh.pop %v294
  %v350 = vtanh.pop %v205
  %v351 = vtanh.pop %v207
  %v352 = vtanh.pop %v298
  %v353 = vtanh.pop %v300
  %v354 = vtanh.pop %v209
  %v355 = vtanh.pop %v211
  %v356 = vtanh.pop %v302
  %v357 = vtanh.pop %v304
  %v358 = vtanh.pop %v215
  %v359 = vtanh.pop %v217
  %v360 = vtanh.pop %v308
  %v361 = vtanh.pop %v310
  %v362 = vtanh.pop %v219
  %v363 = vtanh.pop %v221
  %v364 = vtanh.pop %v312
  %v365 = vtanh.pop %v314
  %v366 = vtanh.pop %v225
  %v367 = vtanh.pop %v227
  %v368 = vtanh.pop %v318
  %v369 = vtanh.pop %v320
  %v370 = vtanh.pop %v229
  %v371 = vtanh.pop %v231
  %v372 = vtanh.pop %v322
  %v373 = vtanh.pop %v324
  %v374 = vpack.c.bf16 %v330, %v326
  %v375 = vpack.c.bf16 %v331, %v327
  %v376 = vpack.c.bf16 %v332, %v328
  %v377 = vpack.c.bf16 %v333, %v329
  %v378 = vpack.c.bf16 %v338, %v334
  %v379 = vpack.c.bf16 %v339, %v335
  %v380 = vpack.c.bf16 %v340, %v336
  %v381 = vpack.c.bf16 %v341, %v337
  %v382 = vpack.c.bf16 %v346, %v342
  %v383 = vpack.c.bf16 %v347, %v343
  %v384 = vpack.c.bf16 %v348, %v344
  %v385 = vpack.c.bf16 %v349, %v345
  %v386 = vpack.c.bf16 %v354, %v350
  %v387 = vpack.c.bf16 %v355, %v351
  %v388 = vpack.c.bf16 %v356, %v352
  %v389 = vpack.c.bf16 %v357, %v353
  %v390 = vpack.c.bf16 %v362, %v358
  %v391 = vpack.c.bf16 %v363, %v359
  %v392 = vpack.c.bf16 %v364, %v360
  %v393 = vpack.c.bf16 %v365, %v361
  %v394 = vpack.c.bf16 %v370, %v366
  %v395 = vpack.c.bf16 %v371, %v367
  %v396 = vpack.c.bf16 %v372, %v368
  %v397 = vpack.c.bf16 %v373, %v369
  %v398 = vld [vmem:[%s3] sm:$0xf]
  %v399 = vld [vmem:[%s3 + $0x4] sm:$0xf]
  %v400 = vld [vmem:[%s3 + $0x8] sm:$0xf]
  %v401 = vld [vmem:[%s3 + $0xc] sm:$0xf]
  %v402 = vld [vmem:[%s3 + $0x10] sm:$0xf]
  %v403 = vld [vmem:[%s3 + $0x14] sm:$0xf]
  %v404 = vld [vmem:[%s3 + $0x18] sm:$0xf]
  %v405 = vld [vmem:[%s3 + $0x1c] sm:$0xf]
  %v406 = vld [vmem:[%s3 + $0x20] sm:$0xf]
  %v407 = vld [vmem:[%s3 + $0x24] sm:$0xf]
  %v408 = vld [vmem:[%s3 + $0x28] sm:$0xf]
  %v409 = vld [vmem:[%s3 + $0x2c] sm:$0xf]
  %v410 = vld [vmem:[%s3 + $0x30] sm:$0xf]
  %v411 = vld [vmem:[%s3 + $0x34] sm:$0xf]
  %v412 = vld [vmem:[%s3 + $0x38] sm:$0xf]
  %v413 = vld [vmem:[%s3 + $0x3c] sm:$0xf]
  %v414 = vld [vmem:[%s3 + $0x40] sm:$0xf]
  %v415 = vld [vmem:[%s3 + $0x44] sm:$0xf]
  %v416 = vld [vmem:[%s3 + $0x48] sm:$0xf]
  %v417 = vld [vmem:[%s3 + $0x4c] sm:$0xf]
  %v418 = vld [vmem:[%s3 + $0x50] sm:$0xf]
  %v419 = vld [vmem:[%s3 + $0x54] sm:$0xf]
  %v420 = vld [vmem:[%s3 + $0x58] sm:$0xf]
  %v421 = vld [vmem:[%s3 + $0x5c] sm:$0xf]
  %v422 = vld [vmem:[%s3 + $0x60] sm:$0xf]
  %v423 = vld [vmem:[%s3 + $0x64] sm:$0xf]
  %v424 = vld [vmem:[%s3 + $0x68] sm:$0xf]
  %v425 = vld [vmem:[%s3 + $0x6c] sm:$0xf]
  %v426 = vld [vmem:[%s3 + $0x70] sm:$0xf]
  %v427 = vld [vmem:[%s3 + $0x74] sm:$0xf]
  %v428 = vld [vmem:[%s3 + $0x78] sm:$0xf]
  %v429 = vld [vmem:[%s3 + $0x7c] sm:$0xf]
  %v430 = vld [vmem:[%s3 + $0x80] sm:$0xf]
  %v431 = vld [vmem:[%s3 + $0x84] sm:$0xf]
  %v432 = vld [vmem:[%s3 + $0x88] sm:$0xf]
  %v433 = vld [vmem:[%s3 + $0x8c] sm:$0xf]
  %v434 = vld [vmem:[%s3 + $0x90] sm:$0xf]
  %v435 = vld [vmem:[%s3 + $0x94] sm:$0xf]
  %v436 = vld [vmem:[%s3 + $0x98] sm:$0xf]
  %v437 = vld [vmem:[%s3 + $0x9c] sm:$0xf]
  %v438 = vld [vmem:[%s3 + $0xa0] sm:$0xf]
  %v439 = vld [vmem:[%s3 + $0xa4] sm:$0xf]
  %v440 = vld [vmem:[%s3 + $0xa8] sm:$0xf]
  %v441 = vld [vmem:[%s3 + $0xac] sm:$0xf]
  %v442 = vld [vmem:[%s3 + $0xb0] sm:$0xf]
  %v443 = vld [vmem:[%s3 + $0xb4] sm:$0xf]
  %v444 = vld [vmem:[%s3 + $0xb8] sm:$0xf]
  %v445 = vld [vmem:[%s3 + $0xbc] sm:$0xf]
  %v446 = vld [vmem:[%s3 + $0xc0] sm:$0xf]
  %v447 = vld [vmem:[%s3 + $0xc4] sm:$0xf]
  %v448 = vld [vmem:[%s3 + $0xc8] sm:$0xf]
  %v449 = vld [vmem:[%s3 + $0xcc] sm:$0xf]
  %v450 = vld [vmem:[%s3 + $0xd0] sm:$0xf]
  %v451 = vld [vmem:[%s3 + $0xd4] sm:$0xf]
  %v452 = vld [vmem:[%s3 + $0xd8] sm:$0xf]
  %v453 = vld [vmem:[%s3 + $0xdc] sm:$0xf]
  %v454 = vld [vmem:[%s3 + $0xe0] sm:$0xf]
  %v455 = vld [vmem:[%s3 + $0xe4] sm:$0xf]
  %v456 = vld [vmem:[%s3 + $0xe8] sm:$0xf]
  %v457 = vld [vmem:[%s3 + $0xec] sm:$0xf]
  %v458 = vld [vmem:[%s3 + $0xf0] sm:$0xf]
  %v459 = vld [vmem:[%s3 + $0xf4] sm:$0xf]
  %v460 = vld [vmem:[%s3 + $0xf8] sm:$0xf]
  %v461 = vld [vmem:[%s3 + $0xfc] sm:$0xf]
  %v462 = vld [vmem:[%s4] sm:$0x1]
  %v464 = vlaneseq
  %v465 = vshrl.u32 %v464, 7
  %v466 = vsub.s32 0, %v465
  %v467 = vrot.slane %v462, %v466
  %v533 = vunpack.c.l.b16 %v398
  %v534 = vunpack.c.l.b16 %v399
  %v535 = vunpack.c.l.b16 %v400
  %v536 = vunpack.c.l.b16 %v401
  %v537 = vunpack.c.l.b16 %v402
  %v538 = vunpack.c.l.b16 %v403
  %v539 = vunpack.c.l.b16 %v404
  %v540 = vunpack.c.l.b16 %v405
  %v541 = vunpack.c.l.b16 %v406
  %v542 = vunpack.c.l.b16 %v407
  %v543 = vunpack.c.l.b16 %v408
  %v544 = vunpack.c.l.b16 %v409
  %v545 = vunpack.c.l.b16 %v410
  %v546 = vunpack.c.l.b16 %v411
  %v547 = vunpack.c.l.b16 %v412
  %v548 = vunpack.c.l.b16 %v413
  %v549 = vunpack.c.l.b16 %v414
  %v550 = vunpack.c.l.b16 %v415
  %v551 = vunpack.c.l.b16 %v416
  %v552 = vunpack.c.l.b16 %v417
  %v553 = vunpack.c.l.b16 %v418
  %v554 = vunpack.c.l.b16 %v419
  %v555 = vunpack.c.l.b16 %v420
  %v556 = vunpack.c.l.b16 %v421
  %v557 = vunpack.c.l.b16 %v422
  %v558 = vunpack.c.l.b16 %v423
  %v559 = vunpack.c.l.b16 %v424
  %v560 = vunpack.c.l.b16 %v425
  %v561 = vunpack.c.l.b16 %v426
  %v562 = vunpack.c.l.b16 %v427
  %v563 = vunpack.c.l.b16 %v428
  %v564 = vunpack.c.l.b16 %v429
  %v565 = vunpack.c.l.b16 %v430
  %v566 = vunpack.c.l.b16 %v431
  %v567 = vunpack.c.l.b16 %v432
  %v568 = vunpack.c.l.b16 %v433
  %v569 = vunpack.c.l.b16 %v434
  %v570 = vunpack.c.l.b16 %v435
  %v571 = vunpack.c.l.b16 %v436
  %v572 = vunpack.c.l.b16 %v437
  %v573 = vunpack.c.l.b16 %v438
  %v574 = vunpack.c.l.b16 %v439
  %v575 = vunpack.c.l.b16 %v440
  %v576 = vunpack.c.l.b16 %v441
  %v577 = vunpack.c.l.b16 %v442
  %v578 = vunpack.c.l.b16 %v443
  %v579 = vunpack.c.l.b16 %v444
  %v580 = vunpack.c.l.b16 %v445
  %v581 = vunpack.c.l.b16 %v446
  %v582 = vunpack.c.l.b16 %v447
  %v583 = vunpack.c.l.b16 %v448
  %v584 = vunpack.c.l.b16 %v449
  %v585 = vunpack.c.l.b16 %v450
  %v586 = vunpack.c.l.b16 %v451
  %v587 = vunpack.c.l.b16 %v452
  %v588 = vunpack.c.l.b16 %v453
  %v589 = vunpack.c.l.b16 %v454
  %v590 = vunpack.c.l.b16 %v455
  %v591 = vunpack.c.l.b16 %v456
  %v592 = vunpack.c.l.b16 %v457
  %v593 = vunpack.c.l.b16 %v458
  %v594 = vunpack.c.l.b16 %v459
  %v595 = vunpack.c.l.b16 %v460
  %v596 = vunpack.c.l.b16 %v461
  %v597 = vpack.c.b16 %v534, %v533
  %v598 = vpack.c.b16 %v536, %v535
  %v599 = vpack.c.b16 %v538, %v537
  %v600 = vpack.c.b16 %v540, %v539
  %v601 = vpack.c.b16 %v542, %v541
  %v602 = vpack.c.b16 %v544, %v543
  %v603 = vpack.c.b16 %v546, %v545
  %v604 = vpack.c.b16 %v548, %v547
  %v605 = vpack.c.b16 %v550, %v549
  %v606 = vpack.c.b16 %v552, %v551
  %v607 = vpack.c.b16 %v554, %v553
  %v608 = vpack.c.b16 %v556, %v555
  %v609 = vpack.c.b16 %v558, %v557
  %v610 = vpack.c.b16 %v560, %v559
  %v611 = vpack.c.b16 %v562, %v561
  %v612 = vpack.c.b16 %v564, %v563
  %v613 = vpack.c.b16 %v566, %v565
  %v614 = vpack.c.b16 %v568, %v567
  %v615 = vpack.c.b16 %v570, %v569
  %v616 = vpack.c.b16 %v572, %v571
  %v617 = vpack.c.b16 %v574, %v573
  %v618 = vpack.c.b16 %v576, %v575
  %v619 = vpack.c.b16 %v578, %v577
  %v620 = vpack.c.b16 %v580, %v579
  %v621 = vpack.c.b16 %v582, %v581
  %v622 = vpack.c.b16 %v584, %v583
  %v623 = vpack.c.b16 %v586, %v585
  %v624 = vpack.c.b16 %v588, %v587
  %v625 = vpack.c.b16 %v590, %v589
  %v626 = vpack.c.b16 %v592, %v591
  %v627 = vpack.c.b16 %v594, %v593
  %v628 = vpack.c.b16 %v596, %v595
  %661 = vmatprep.subr.bf16.mxu0 0
  %662 = vmatpush1.bf16.msra.mxu0 %v597
  %663 = vmatprep.subr.bf16.mxu0 0
  %664 = vmatpush1.bf16.msra.mxu0 %v598
  %665 = vmatprep.subr.bf16.mxu0 0
  %666 = vmatpush1.bf16.msra.mxu0 %v599
  %667 = vmatprep.subr.bf16.mxu0 0
  %668 = vmatpush1.bf16.msra.mxu0 %v600
  %669 = vmatprep.subr.bf16.mxu0 0
  %670 = vmatpush1.bf16.msra.mxu0 %v601
  %671 = vmatprep.subr.bf16.mxu0 0
  %672 = vmatpush1.bf16.msra.mxu0 %v602
  %673 = vmatprep.subr.bf16.mxu0 0
  %674 = vmatpush1.bf16.msra.mxu0 %v603
  %675 = vmatprep.subr.bf16.mxu0 0
  %676 = vmatpush1.bf16.msra.mxu0 %v604
  %677 = vmatprep.subr.bf16.mxu0 0
  %678 = vmatpush1.bf16.msra.mxu0 %v605
  %679 = vmatprep.subr.bf16.mxu0 0
  %680 = vmatpush1.bf16.msra.mxu0 %v606
  %681 = vmatprep.subr.bf16.mxu0 0
  %682 = vmatpush1.bf16.msra.mxu0 %v607
  %683 = vmatprep.subr.bf16.mxu0 0
  %684 = vmatpush1.bf16.msra.mxu0 %v608
  %685 = vmatprep.subr.bf16.mxu0 0
  %686 = vmatpush1.bf16.msra.mxu0 %v609
  %687 = vmatprep.subr.bf16.mxu0 0
  %688 = vmatpush1.bf16.msra.mxu0 %v610
  %689 = vmatprep.subr.bf16.mxu0 0
  %690 = vmatpush1.bf16.msra.mxu0 %v611
  %691 = vmatprep.subr.bf16.mxu0 0
  %692 = vmatpush1.bf16.msra.mxu0 %v612
  %693 = vmatprep.mubr.bf16.mxu0 %v375
  %694 = vmatmul.mubr.bf16.gmra.mrb[0].mxu0 %v374
  %v695 = vpop.f32.mrb[0].mxu0
  %v696 = vadd.f32 %v467, %v695
  %v697 = vpop.f32.mrb[0].mxu0
  %v698 = vpop.f32.mrb[0].mxu0
  %v699 = vadd.f32 %v467, %v698
  %v700 = vpop.f32.mrb[0].mxu0
  %701 = vmatprep.mubr.bf16.mxu0 %v379
  %702 = vmatmul.mubr.bf16.gmra.mrb[0].mxu0 %v378
  %v703 = vpop.f32.mrb[0].mxu0
  %v704 = vadd.f32 %v467, %v703
  %v705 = vpop.f32.mrb[0].mxu0
  %v706 = vpop.f32.mrb[0].mxu0
  %v707 = vadd.f32 %v467, %v706
  %v708 = vpop.f32.mrb[0].mxu0
  %709 = vmatprep.mubr.bf16.mxu0 %v383
  %710 = vmatmul.mubr.bf16.gmra.mrb[0].mxu0 %v382
  %v711 = vpop.f32.mrb[0].mxu0
  %v712 = vadd.f32 %v467, %v711
  %v713 = vpop.f32.mrb[0].mxu0
  %v714 = vpop.f32.mrb[0].mxu0
  %v715 = vadd.f32 %v467, %v714
  %v716 = vpop.f32.mrb[0].mxu0
  %717 = vmatprep.mubr.bf16.mxu0 %v387
  %718 = vmatmul.mubr.bf16.gmra.mrb[0].mxu0 %v386
  %v719 = vpop.f32.mrb[0].mxu0
  %v720 = vadd.f32 %v467, %v719
  %v721 = vpop.f32.mrb[0].mxu0
  %v722 = vpop.f32.mrb[0].mxu0
  %v723 = vadd.f32 %v467, %v722
  %v724 = vpop.f32.mrb[0].mxu0
  %725 = vmatprep.mubr.bf16.mxu0 %v391
  %726 = vmatmul.mubr.bf16.gmra.mrb[0].mxu0 %v390
  %v727 = vpop.f32.mrb[0].mxu0
  %v728 = vadd.f32 %v467, %v727
  %v729 = vpop.f32.mrb[0].mxu0
  %v730 = vpop.f32.mrb[0].mxu0
  %v731 = vadd.f32 %v467, %v730
  %v732 = vpop.f32.mrb[0].mxu0
  %733 = vmatprep.mubr.bf16.mxu0 %v395
  %734 = vmatmul.mubr.bf16.gmra.mrb[0].mxu0 %v394
  %v735 = vpop.f32.mrb[0].mxu0
  %v736 = vadd.f32 %v467, %v735
  %v737 = vpop.f32.mrb[0].mxu0
  %v738 = vpop.f32.mrb[0].mxu0
  %v739 = vadd.f32 %v467, %v738
  %v740 = vpop.f32.mrb[0].mxu0
  %741 = vdwg.mxu0
  %742 = vmatprep.subr.bf16.mxu0 0
  %743 = vmatpush1.bf16.msra.mxu0 %v613
  %744 = vmatprep.subr.bf16.mxu0 0
  %745 = vmatpush1.bf16.msra.mxu0 %v614
  %746 = vmatprep.subr.bf16.mxu0 0
  %747 = vmatpush1.bf16.msra.mxu0 %v615
  %748 = vmatprep.subr.bf16.mxu0 0
  %749 = vmatpush1.bf16.msra.mxu0 %v616
  %750 = vmatprep.subr.bf16.mxu0 0
  %751 = vmatpush1.bf16.msra.mxu0 %v617
  %752 = vmatprep.subr.bf16.mxu0 0
  %753 = vmatpush1.bf16.msra.mxu0 %v618
  %754 = vmatprep.subr.bf16.mxu0 0
  %755 = vmatpush1.bf16.msra.mxu0 %v619
  %756 = vmatprep.subr.bf16.mxu0 0
  %757 = vmatpush1.bf16.msra.mxu0 %v620
  %758 = vmatprep.subr.bf16.mxu0 0
  %759 = vmatpush1.bf16.msra.mxu0 %v621
  %760 = vmatprep.subr.bf16.mxu0 0
  %761 = vmatpush1.bf16.msra.mxu0 %v622
  %762 = vmatprep.subr.bf16.mxu0 0
  %763 = vmatpush1.bf16.msra.mxu0 %v623
  %764 = vmatprep.subr.bf16.mxu0 0
  %765 = vmatpush1.bf16.msra.mxu0 %v624
  %766 = vmatprep.subr.bf16.mxu0 0
  %767 = vmatpush1.bf16.msra.mxu0 %v625
  %768 = vmatprep.subr.bf16.mxu0 0
  %769 = vmatpush1.bf16.msra.mxu0 %v626
  %770 = vmatprep.subr.bf16.mxu0 0
  %771 = vmatpush1.bf16.msra.mxu0 %v627
  %772 = vmatprep.subr.bf16.mxu0 0
  %773 = vmatpush1.bf16.msra.mxu0 %v628
  %774 = vmatprep.mubr.bf16.mxu0 %v377
  %775 = vmatmul.mubr.bf16.gmra.mrb[0].mxu0 %v376
  %v776 = vpop.f32.mrb[0].mxu0
  %v777 = vadd.f32 %v696, %v776
  %v778 = vpop.f32.mrb[0].mxu0
  %v779 = vpop.f32.mrb[0].mxu0
  %v780 = vadd.f32 %v699, %v779
  %v781 = vpop.f32.mrb[0].mxu0
  %782 = vmatprep.mubr.bf16.mxu0 %v381
  %783 = vmatmul.mubr.bf16.gmra.mrb[0].mxu0 %v380
  %v784 = vpop.f32.mrb[0].mxu0
  %v785 = vadd.f32 %v704, %v784
  %v786 = vpop.f32.mrb[0].mxu0
  %v787 = vpop.f32.mrb[0].mxu0
  %v788 = vadd.f32 %v707, %v787
  %v789 = vpop.f32.mrb[0].mxu0
  %790 = vmatprep.mubr.bf16.mxu0 %v385
  %791 = vmatmul.mubr.bf16.gmra.mrb[0].mxu0 %v384
  %v792 = vpop.f32.mrb[0].mxu0
  %v793 = vadd.f32 %v712, %v792
  %v794 = vpop.f32.mrb[0].mxu0
  %v795 = vpop.f32.mrb[0].mxu0
  %v796 = vadd.f32 %v715, %v795
  %v797 = vpop.f32.mrb[0].mxu0
  %798 = vmatprep.mubr.bf16.mxu0 %v389
  %799 = vmatmul.mubr.bf16.gmra.mrb[0].mxu0 %v388
  %v800 = vpop.f32.mrb[0].mxu0
  %v801 = vadd.f32 %v720, %v800
  %v802 = vpop.f32.mrb[0].mxu0
  %v803 = vpop.f32.mrb[0].mxu0
  %v804 = vadd.f32 %v723, %v803
  %v805 = vpop.f32.mrb[0].mxu0
  %806 = vmatprep.mubr.bf16.mxu0 %v393
  %807 = vmatmul.mubr.bf16.gmra.mrb[0].mxu0 %v392
  %v808 = vpop.f32.mrb[0].mxu0
  %v809 = vadd.f32 %v728, %v808
  %v810 = vpop.f32.mrb[0].mxu0
  %v811 = vpop.f32.mrb[0].mxu0
  %v812 = vadd.f32 %v731, %v811
  %v813 = vpop.f32.mrb[0].mxu0
  %814 = vmatprep.mubr.bf16.mxu0 %v397
  %815 = vmatmul.mubr.bf16.gmra.mrb[0].mxu0 %v396
  %v816 = vpop.f32.mrb[0].mxu0
  %v817 = vadd.f32 %v736, %v816
  %v818 = vpop.f32.mrb[0].mxu0
  %v819 = vpop.f32.mrb[0].mxu0
  %v820 = vadd.f32 %v739, %v819
  %v821 = vpop.f32.mrb[0].mxu0
  %822 = vdwg.mxu0
  %823 = vst.msk [vmem:[%s5] sm:$0xff] %vm105, %v777
  %824 = vst.msk [vmem:[%s5 + $0x8] sm:$0xff] %vm105, %v780
  %825 = vst.msk [vmem:[%s5 + $0x10] sm:$0xff] %vm105, %v785
  %826 = vst.msk [vmem:[%s5 + $0x18] sm:$0xff] %vm105, %v788
  %827 = vst.msk [vmem:[%s5 + $0x20] sm:$0xff] %vm105, %v793
  %828 = vst.msk [vmem:[%s5 + $0x28] sm:$0xff] %vm105, %v796
  %829 = vst.msk [vmem:[%s5 + $0x30] sm:$0xff] %vm105, %v801
  %830 = vst.msk [vmem:[%s5 + $0x38] sm:$0xff] %vm105, %v804
  %831 = vst.msk [vmem:[%s5 + $0x40] sm:$0xff] %vm105, %v809
  %832 = vst.msk [vmem:[%s5 + $0x48] sm:$0xff] %vm105, %v812
  %833 = vst.msk [vmem:[%s5 + $0x50] sm:$0xff] %vm105, %v817
  %834 = vst.msk [vmem:[%s5 + $0x58] sm:$0xff] %vm105, %v820
  // Predicated region
  $region22: #{conv_trans_forward.19} parent=0 // pred_check
    _
  $region23: #{conv_trans_forward.19} parent=0 // pred_check_branch
    %836 = sbr.rel (0) target = $region25
  $region24: #{conv_trans_forward.19} parent=0 // pred_region
    _
  $region25: #{conv_trans_forward.19} parent=0 // pred_fallthru
    _
  // Predicated region
  $region26: #{conv_trans_forward.19} parent=0 // pred_check
    _
  $region27: #{conv_trans_forward.19} parent=0 // pred_check_branch
    %838 = sbr.rel (0) target = $region29
  $region28: #{conv_trans_forward.19} parent=0 // pred_region
    _
  $region29: #{conv_trans_forward.19} parent=0 // pred_fallthru
    _

</llo_original>
